<compile_context>
chip_gen: v7x
topology: tpu7x:2x2x1
jax: 0.10.0
libtpu: 0.0.40
codegen_flags: <defaults>
</compile_context>

<pallas_src>
import functools
import math

import jax
import jax.numpy as jnp
import numpy as np
from jax.experimental import pallas as pl
from jax.experimental.pallas import tpu as pltpu

D_MODEL = 256                      # internal_features in the PyTorch module
D_STATE = 16
D_CONV = 8
EXPAND = 4
D_INNER = EXPAND * D_MODEL         # 1024
DT_RANK = math.ceil(D_MODEL / 16)  # 16
LANE_GROUP = 128                   # lane-aligned group width for x_proj outputs
NEG_INF = -1e30                    # bias for padded softmax columns


def _silu(v):
    return v * jax.nn.sigmoid(v)


def _softplus(v):
    return jnp.where(v > 20.0, v, jnp.log1p(jnp.exp(jnp.minimum(v, 20.0))))


def _a_neg_is_s4d_integer(a_neg):
    """True iff a_neg[n, :] == -(n+1) for every channel (canonical S4D-real
    init).  The kernel then replaces the per-state exp() with powers of a
    single exp(-dt) pass (~16x fewer transcendentals).  Traced or arbitrary
    A falls back to the generic per-state exp path (always exact)."""
    try:
        a = np.asarray(a_neg)
    except Exception:
        return False
    if a.ndim != 2:
        return False
    expect = -np.arange(1, a.shape[0] + 1, dtype=np.float64)[:, None]
    return bool(np.all(a == expect))


# ---------------------------------------------------------------------------
# Pallas kernel: one NuSelectorModelII forward for a (bt, L, F) batch tile.
# ---------------------------------------------------------------------------
def nu_selector_kernel(x_ref, w_in_ref, b_in_ref, w_inx_ref, w_inz_ref,
                       w_conv_ref, b_conv_ref, w_xproj_ref, w_dtproj_ref,
                       b_dtproj_ref, a_neg_ref, d_skip_ref, w_outproj_ref,
                       w_final_ref, b_final_ref, out_ref, *, use_s4d_powers):
    f32 = jnp.float32
    bf16 = jnp.bfloat16
    bt, seq_len, f_in = x_ref.shape
    d_conv = w_conv_ref.shape[0]
    rows = bt * seq_len

    # --- LazyLinear -> Dropout(eval: identity) -> Sigmoid (bf16 MXU, f32 acc)
    # TODO(synk): nn.Dropout(p=0.01) training-mode RNG masking is not modeled.
    x = x_ref[...].reshape(rows, f_in)
    h = jax.nn.sigmoid(
        jnp.dot(x, w_in_ref[...], preferred_element_type=f32) + b_in_ref[...])
    h_bf = h.astype(bf16)

    # --- Mamba in_proj: x-half over the full sequence; z-half only for the
    # last timestep (the module only consumes softmax(out[:, -1, :])).
    x2 = jnp.dot(h_bf, w_inx_ref[...], preferred_element_type=f32)    # (rows, d_inner)
    h_last = h_bf.reshape(bt, seq_len, D_MODEL)[:, seq_len - 1, :]
    z_last = jnp.dot(h_last, w_inz_ref[...], preferred_element_type=f32)  # (bt, d_inner)

    # --- depthwise causal conv1d: sublane roll (XLU) + causal mask (VPU).
    # Rolls act on the flattened (bt*L, d_inner) layout; the rows that would
    # read across a batch boundary are exactly the rows the causal mask zeroes.
    w_conv = w_conv_ref[...]                                           # (d_conv, d_inner)
    t_idx = jax.lax.broadcasted_iota(jnp.int32, (rows, 1), 0) % seq_len
    conv = x2 * w_conv[d_conv - 1][None, :]                            # shift-0 tap
    for k in range(d_conv - 1):
        s = d_conv - 1 - k
        if s >= seq_len:
            continue
        rolled = pltpu.roll(x2, shift=s, axis=0)
        conv = conv + jnp.where(t_idx >= s, rolled, 0.0) * w_conv[k][None, :]
    u2 = _silu(conv + b_conv_ref[...])                                 # (rows, d_inner)
    u3 = u2.reshape(bt, seq_len, D_INNER)

    # --- x_proj with lane-aligned 128-wide groups: [dt_in | B | C]
    x_dbl = jnp.dot(u2.astype(bf16), w_xproj_ref[...], preferred_element_type=f32)
    dt_in = x_dbl[:, 0:LANE_GROUP]
    b3 = x_dbl[:, LANE_GROUP:LANE_GROUP + D_STATE].reshape(bt, seq_len, D_STATE)
    c_last = x_dbl[:, 2 * LANE_GROUP:2 * LANE_GROUP + D_STATE] \
        .reshape(bt, seq_len, D_STATE)[:, seq_len - 1, :]              # (bt, d_state)

    # --- dt = softplus(dt_proj(dt_in) + bias) (f32; K=128, padded rows are 0)
    dt = _softplus(jnp.dot(dt_in, w_dtproj_ref[...], preferred_element_type=f32)
                   + b_dtproj_ref[...])
    dt3 = dt.reshape(bt, seq_len, D_INNER)
    dtu = dt3 * u3

    # --- closed-form selective scan.  Only h_{L-1} is needed:
    #   h_L[b,n,d] = sum_t exp(a_neg[n,d]*S[b,t,d]) * dt[b,t,d]*u[b,t,d]*B[b,t,n]
    # with S the exclusive suffix-sum of dt over time.  dt >= 0 and a_neg <= 0
    # so every exponent is <= 0 (numerically stable).  No serial recurrence,
    # no per-step (bt, d_state, d_inner) temporaries.
    if use_s4d_powers:
        # a_neg[n, :] == -(n+1): exp(a_neg[n]*S) == P^(n+1) with P = exp(-S),
        # and P is the exclusive suffix-*product* of q = exp(-dt).  One EUP
        # pass; the 16 per-state decays become a Horner polynomial on the VPU.
        q = jnp.exp(-dt3)
        parts = []
        run = jnp.ones((bt, D_INNER), f32)
        for t in range(seq_len - 1, -1, -1):
            parts.append(run[:, None, :])
            run = run * q[:, t, :]
        p_slab = jnp.concatenate(parts[::-1], axis=1)                  # (bt, L, d_inner)
        cb = b3 * c_last[:, None, :]                                   # (bt, L, d_state)
        g = cb[:, :, D_STATE - 1:D_STATE]                              # (bt, L, 1)
        for n in range(D_STATE - 2, -1, -1):
            g = g * p_slab + cb[:, :, n:n + 1]
        g = g * p_slab                                                 # sum_n cb_n P^(n+1)
        y_last = jnp.sum(dtu * g, axis=1)                              # (bt, d_inner)
    else:
        # generic a_neg: one exp per state over (bt, L, d_inner); still fully
        # parallel over time and states.
        parts = []
        run = jnp.zeros((bt, D_INNER), f32)
        for t in range(seq_len - 1, -1, -1):
            parts.append(run[:, None, :])
            run = run + dt3[:, t, :]
        s_slab = jnp.concatenate(parts[::-1], axis=1)                  # (bt, L, d_inner)
        a_neg = a_neg_ref[...]
        y_last = jnp.zeros((bt, D_INNER), f32)
        for n in range(D_STATE):
            decay = jnp.exp(s_slab * a_neg[n][None, None, :])
            contrib = jnp.sum(decay * dtu * b3[:, :, n:n + 1], axis=1)
            y_last = y_last + c_last[:, n:n + 1] * contrib

    y_last = y_last + u3[:, seq_len - 1, :] * d_skip_ref[...]          # D skip
    y_last = y_last * _silu(z_last)                                    # gate

    # --- out_proj + final Linear on the last timestep only.
    # 1/temperature is pre-folded into w_final/b_final by the wrapper; padded
    # logit columns carry a -1e30 bias so the softmax ignores them.
    o = jnp.dot(y_last.astype(bf16), w_outproj_ref[...], preferred_element_type=f32)
    logits = jnp.dot(o, w_final_ref[...], preferred_element_type=f32) + b_final_ref[...]
    m = jnp.max(logits, axis=-1, keepdims=True)
    e = jnp.exp(logits - m)
    out_ref[...] = e / jnp.sum(e, axis=-1, keepdims=True)


# ---------------------------------------------------------------------------
# Wrappers
# ---------------------------------------------------------------------------
def _full_block_spec(arr):
    nd = arr.ndim
    return pl.BlockSpec(arr.shape, lambda b, _nd=nd: (0,) * _nd)


def nu_selector_forward(x, params, temperature=1.0):
    """One NuSelectorModelII forward: (B, L, F) -> (B, n_out) softmax probs."""
    B, L, F = x.shape
    n_out = params["w_final"].shape[1]
    f32, bf16 = jnp.float32, jnp.bfloat16

    # fold 1/temperature into the final linear (exact; no recompile on change)
    inv_t = jnp.float32(1.0) / jnp.float32(temperature)
    w_final = params["w_final"].astype(f32) * inv_t
    b_final = params["b_final"].astype(f32) * inv_t

    # lane-dense output: pad n_out to a multiple of 128; padded logits pinned
    # to -1e30 through the bias so they vanish from the softmax.
    n_pad = pl.cdiv(n_out, 128) * 128
    w_final = jnp.pad(w_final, ((0, 0), (0, n_pad - n_out)))
    b_final = jnp.concatenate(
        [b_final, jnp.full((1, n_pad - n_out), NEG_INF, f32)], axis=1)

    # lane-dense feature padding (zero rows of w_in keep the math exact);
    # x passed to the kernel in bf16 (halves the per-step input DMA).
    f_pad = pl.cdiv(F, 128) * 128
    w_in = params["w_in"].astype(bf16)
    if f_pad != F:
        x = jnp.pad(x, ((0, 0), (0, 0), (0, f_pad - F)))
        w_in = jnp.pad(w_in, ((0, f_pad - F), (0, 0)))
    x = x.astype(bf16)

    # split in_proj: z is only needed for the last timestep
    w_inx = params["w_inproj"][:, :D_INNER].astype(bf16)
    w_inz = params["w_inproj"][:, D_INNER:].astype(bf16)

    # lane-align x_proj outputs: three zero-padded 128-wide groups [dt | B | C]
    w_xp = params["w_xproj"]

    def _pad_group(w):
        return jnp.pad(w, ((0, 0), (0, LANE_GROUP - w.shape[1])))

    w_xproj = jnp.concatenate(
        [_pad_group(w_xp[:, :DT_RANK]),
         _pad_group(w_xp[:, DT_RANK:DT_RANK + D_STATE]),
         _pad_group(w_xp[:, DT_RANK + D_STATE:])], axis=1).astype(bf16)
    # dt_proj consumes the padded 128-wide dt group (extra rows are zero)
    w_dtproj = jnp.pad(params["w_dtproj"].astype(f32),
                       ((0, LANE_GROUP - DT_RANK), (0, 0)))

    # Batch tiling: target M = bt*L ~= 256 rows per grid step (fills the
    # v6e/v7x 256-wide MXU; v5e only needs 128).  Keep >= 2 grid steps when
    # that does not drop M below 128, so the "parallel" axis can shard across
    # v7x's two TensorCores.  Per-step working set stays well under the
    # 48 MiB VMEM cap below (v7x has only 64 MiB physical per core).
    ROWS_TARGET = 256
    bt = min(B, max(1, ROWS_TARGET // L))
    if bt == B and B > 1 and (B // 2) * L >= 128:
        bt = -(-B // 2)
    if bt < B and bt % 8 != 0:
        # keep the (bt, n_pad) output block sublane-aligned when tiling
        bt = max(8, (bt // 8) * 8) if bt > 8 else min(B, 8)
    b_pad = pl.cdiv(B, bt) * bt
    if b_pad != B:
        x = jnp.pad(x, ((0, b_pad - B), (0, 0), (0, 0)))

    use_s4d = _a_neg_is_s4d_integer(params["a_neg"])

    weights = [w_in, params["b_in"], w_inx, w_inz, params["w_conv"],
               params["b_conv"], w_xproj, w_dtproj, params["b_dtproj"],
               params["a_neg"], params["d_skip"],
               params["w_outproj"].astype(bf16), w_final, b_final]

    in_specs = [pl.BlockSpec((bt, L, f_pad), lambda b: (b, 0, 0))]
    in_specs += [_full_block_spec(w) for w in weights]

    out = pl.pallas_call(
        functools.partial(nu_selector_kernel, use_s4d_powers=use_s4d),
        out_shape=jax.ShapeDtypeStruct((b_pad, n_pad), jnp.float32),
        grid=(b_pad // bt,),
        in_specs=in_specs,
        out_specs=pl.BlockSpec((bt, n_pad), lambda b: (b, 0)),
        compiler_params=pltpu.CompilerParams(
            dimension_semantics=("parallel",),
            vmem_limit_bytes=48 * 1024 * 1024),
    )(x, *weights)
    return out[:B, :n_out]


def nu_selector_reference(x, params, temperature=1.0):
    """Pure-JAX f32 reference of one selector head (for validation)."""
    f32 = jnp.float32
    B, L, _ = x.shape
    p = {k: v.astype(f32) for k, v in params.items()}
    h = jax.nn.sigmoid(jnp.einsum("blf,fd->bld", x.astype(f32), p["w_in"]) + p["b_in"])
    xz = jnp.einsum("bld,de->ble", h, p["w_inproj"])
    x_part, z = xz[..., :D_INNER], xz[..., D_INNER:]
    xpad = jnp.pad(x_part, ((0, 0), (D_CONV - 1, 0), (0, 0)))
    conv = sum(xpad[:, k:k + L, :] * p["w_conv"][k][None, None, :]
               for k in range(D_CONV))
    u = _silu(conv + p["b_conv"])
    x_dbl = jnp.einsum("bld,de->ble", u, p["w_xproj"])
    dt = _softplus(jnp.einsum("blr,rd->bld", x_dbl[..., :DT_RANK], p["w_dtproj"])
                   + p["b_dtproj"])
    b_ssm = x_dbl[..., DT_RANK:DT_RANK + D_STATE]
    c_ssm = x_dbl[..., DT_RANK + D_STATE:]
    h_state = jnp.zeros((B, D_STATE, D_INNER), f32)
    for t in range(L):
        dA = jnp.exp(dt[:, t, None, :] * p["a_neg"][None])
        dBu = (dt[:, t] * u[:, t])[:, None, :] * b_ssm[:, t, :, None]
        h_state = dA * h_state + dBu
    y = jnp.sum(h_state * c_ssm[:, L - 1, :, None], axis=1)
    y = y + u[:, L - 1] * p["d_skip"]
    y = y * _silu(z[:, L - 1])
    o = y @ p["w_outproj"]
    logits = (o @ p["w_final"] + p["b_final"]) / temperature
    return jax.nn.softmax(logits, axis=-1)


def _compose_selectors(selector_fn, x, selector_params, temperature):
    """NuModelII forward: chain 5 selectors, dstacking probs onto the input."""
    B, L, _ = x.shape
    feats = x
    outs = []
    for i, p in enumerate(selector_params):
        o = selector_fn(feats, p, temperature)
        outs.append(o)
        if i + 1 < len(selector_params):
            feats = jnp.concatenate(
                [feats, jnp.broadcast_to(o[:, None, :], (B, L, o.shape[-1]))],
                axis=-1)
    return jnp.concatenate(outs, axis=-1)


def nu_model_forward(x, selector_params, temperature=1.0):
    return _compose_selectors(nu_selector_forward, x, selector_params, temperature)


def nu_model_reference(x, selector_params, temperature=1.0):
    return _compose_selectors(nu_selector_reference, x, selector_params, temperature)


# ---------------------------------------------------------------------------
# Parameter init
# ---------------------------------------------------------------------------
def init_selector_params(key, f_in, n_out):
    ks = jax.random.split(key, 11)
    s = 0.05
    f32, bf16 = jnp.float32, jnp.bfloat16
    return {
        # LazyLinear(f_in -> 256)
        "w_in": jax.random.normal(ks[0], (f_in, D_MODEL), f32) * s,
        "b_in": jax.random.normal(ks[1], (1, D_MODEL), f32) * s,
        # Mamba in_proj (no bias); big projections stored in bf16
        "w_inproj": (jax.random.normal(ks[2], (D_MODEL, 2 * D_INNER), f32) * s).astype(bf16),
        # depthwise conv1d: (d_conv, d_inner) weights + (1, d_inner) bias
        "w_conv": jax.random.normal(ks[3], (D_CONV, D_INNER), f32) * s,
        "b_conv": jax.random.normal(ks[4], (1, D_INNER), f32) * s,
        # x_proj (no bias)
        "w_xproj": (jax.random.normal(ks[5], (D_INNER, DT_RANK + 2 * D_STATE), f32) * s).astype(bf16),
        # dt_proj
        "w_dtproj": jax.random.normal(ks[6], (DT_RANK, D_INNER), f32) * s,
        "b_dtproj": jax.random.normal(ks[7], (1, D_INNER), f32) * s,
        # canonical Mamba S4D-real init, stored as -exp(A_log)^T : (d_state, d_inner)
        "a_neg": (-jnp.arange(1, D_STATE + 1, dtype=f32)[:, None]
                  * jnp.ones((1, D_INNER), f32)),
        "d_skip": jnp.ones((1, D_INNER), f32),
        # out_proj (no bias)
        "w_outproj": (jax.random.normal(ks[8], (D_INNER, D_MODEL), f32) * s).astype(bf16),
        # final Linear(256 -> n_out)
        "w_final": jax.random.normal(ks[9], (D_MODEL, n_out), f32) * s,
        "b_final": jax.random.normal(ks[10], (1, n_out), f32) * s,
    }


def init_model_params(key, f_base, n_outs):
    keys = jax.random.split(key, len(n_outs))
    params = []
    f_in = f_base
    for k, n_out in zip(keys, n_outs):
        params.append(init_selector_params(k, f_in, n_out))
        f_in += n_out   # next selector sees x dstacked with this head's probs
    return params


# ---------------------------------------------------------------------------
if __name__ == "__main__":
    key = jax.random.PRNGKey(0)
    B, L, F0 = 2, 8, 16
    # meta_data list lengths: intervals, directions, octaves, time_ratios_i/ii
    n_outs = [6, 3, 4, 5, 5]

    kx, kp = jax.random.split(key)
    x = jax.random.normal(kx, (B, L, F0), jnp.float32)
    params = init_model_params(kp, F0, n_outs)

    out = nu_model_forward(x, params, temperature=1.0)
    out = jax.block_until_ready(out)

    assert out.shape == (B, sum(n_outs))
    assert bool(jnp.all(jnp.isfinite(out)))
    # each selector block is a softmax -> every row sums to the number of heads
    assert bool(jnp.allclose(jnp.sum(out, axis=1), float(len(n_outs)), atol=1e-4))

    # validate against a pure-JAX f32 reference (bf16 matmul inputs in the
    # kernel -> loose absolute tolerance on probabilities)
    ref = nu_model_reference(x, params, temperature=1.0)
    assert bool(jnp.allclose(out, ref, atol=5e-2)), "kernel/reference mismatch"

    print("KERNEL_OK")
</pallas_src>

<mosaic_0001>
module attributes {stable_mosaic.version = 11 : i64} {
  func.func @nu_selector_kernel(%arg0: i32, %arg1: memref<2x8x128xbf16, #tpu.memory_space<vmem>>, %arg2: memref<128x256xbf16, #tpu.memory_space<vmem>>, %arg3: memref<1x256xf32, #tpu.memory_space<vmem>>, %arg4: memref<256x1024xbf16, #tpu.memory_space<vmem>>, %arg5: memref<256x1024xbf16, #tpu.memory_space<vmem>>, %arg6: memref<8x1024xf32, #tpu.memory_space<vmem>>, %arg7: memref<1x1024xf32, #tpu.memory_space<vmem>>, %arg8: memref<1024x384xbf16, #tpu.memory_space<vmem>>, %arg9: memref<128x1024xf32, #tpu.memory_space<vmem>>, %arg10: memref<1x1024xf32, #tpu.memory_space<vmem>>, %arg11: memref<16x1024xf32, #tpu.memory_space<vmem>>, %arg12: memref<1x1024xf32, #tpu.memory_space<vmem>>, %arg13: memref<1024x256xbf16, #tpu.memory_space<vmem>>, %arg14: memref<256x128xf32, #tpu.memory_space<vmem>>, %arg15: memref<1x128xf32, #tpu.memory_space<vmem>>, %arg16: memref<2x128xf32, #tpu.memory_space<vmem>>) attributes {dimension_semantics = [#tpu.dimension_semantics<parallel>], iteration_bounds = array<i64: 1>, scalar_prefetch = 0 : i64, scratch_operands = 0 : i64, tpu.core_type = #tpu.core_type<tc>, window_params = [{transform_indices = @transform_0, window_bounds = array<i64: 2, 8, 128>}, {pipeline_mode = #tpu.pipeline_mode<synchronous>, transform_indices = @transform_1, window_bounds = array<i64: 128, 256>}, {pipeline_mode = #tpu.pipeline_mode<synchronous>, transform_indices = @transform_2, window_bounds = array<i64: 1, 256>}, {pipeline_mode = #tpu.pipeline_mode<synchronous>, transform_indices = @transform_3, window_bounds = array<i64: 256, 1024>}, {pipeline_mode = #tpu.pipeline_mode<synchronous>, transform_indices = @transform_4, window_bounds = array<i64: 256, 1024>}, {pipeline_mode = #tpu.pipeline_mode<synchronous>, transform_indices = @transform_5, window_bounds = array<i64: 8, 1024>}, {pipeline_mode = #tpu.pipeline_mode<synchronous>, transform_indices = @transform_6, window_bounds = array<i64: 1, 1024>}, {pipeline_mode = #tpu.pipeline_mode<synchronous>, transform_indices = @transform_7, window_bounds = array<i64: 1024, 384>}, {pipeline_mode = #tpu.pipeline_mode<synchronous>, transform_indices = @transform_8, window_bounds = array<i64: 128, 1024>}, {pipeline_mode = #tpu.pipeline_mode<synchronous>, transform_indices = @transform_9, window_bounds = array<i64: 1, 1024>}, {pipeline_mode = #tpu.pipeline_mode<synchronous>, transform_indices = @transform_10, window_bounds = array<i64: 16, 1024>}, {pipeline_mode = #tpu.pipeline_mode<synchronous>, transform_indices = @transform_11, window_bounds = array<i64: 1, 1024>}, {pipeline_mode = #tpu.pipeline_mode<synchronous>, transform_indices = @transform_12, window_bounds = array<i64: 1024, 256>}, {pipeline_mode = #tpu.pipeline_mode<synchronous>, transform_indices = @transform_13, window_bounds = array<i64: 256, 128>}, {pipeline_mode = #tpu.pipeline_mode<synchronous>, transform_indices = @transform_14, window_bounds = array<i64: 1, 128>}, {transform_indices = @transform_15, window_bounds = array<i64: 2, 128>}]} {
    %c0 = arith.constant 0 : index
    %c0_0 = arith.constant 0 : index
    %c0_1 = arith.constant 0 : index
    %0 = vector.load %arg1[%c0, %c0_0, %c0_1] : memref<2x8x128xbf16, #tpu.memory_space<vmem>>, vector<2x8x128xbf16>
    %1 = vector.shape_cast %0 : vector<2x8x128xbf16> to vector<16x128xbf16>
    %c0_2 = arith.constant 0 : index
    %c0_3 = arith.constant 0 : index
    %2 = vector.load %arg2[%c0_2, %c0_3] : memref<128x256xbf16, #tpu.memory_space<vmem>>, vector<128x256xbf16>
    %cst = arith.constant dense<0.000000e+00> : vector<16x256xf32>
    %3 = tpu.matmul %1, %2, %cst {dimension_numbers = #tpu.dot_dimension_numbers<[1], [0], [0], [1], [0, 0, 1, 1], [], []>} : vector<16x128xbf16>, vector<128x256xbf16>, vector<16x256xf32> -> vector<16x256xf32>
    %c0_4 = arith.constant 0 : index
    %c0_5 = arith.constant 0 : index
    %4 = vector.load %arg3[%c0_4, %c0_5] : memref<1x256xf32, #tpu.memory_space<vmem>>, vector<1x256xf32>
    %5 = vector.broadcast %4 : vector<1x256xf32> to vector<16x256xf32>
    %6 = arith.addf %3, %5 : vector<16x256xf32>
    %7 = arith.negf %6 : vector<16x256xf32>
    %8 = math.exp %7 : vector<16x256xf32>
    %cst_6 = arith.constant 1.000000e+00 : f32
    %9 = vector.broadcast %cst_6 : f32 to vector<16x256xf32>
    %10 = arith.addf %9, %8 : vector<16x256xf32>
    %11 = arith.divf %9, %10 : vector<16x256xf32>
    %12 = arith.truncf %11 : vector<16x256xf32> to vector<16x256xbf16>
    %c0_7 = arith.constant 0 : index
    %c0_8 = arith.constant 0 : index
    %13 = vector.load %arg4[%c0_7, %c0_8] : memref<256x1024xbf16, #tpu.memory_space<vmem>>, vector<256x1024xbf16>
    %cst_9 = arith.constant dense<0.000000e+00> : vector<16x1024xf32>
    %14 = tpu.matmul %12, %13, %cst_9 {dimension_numbers = #tpu.dot_dimension_numbers<[1], [0], [0], [1], [0, 0, 1, 1], [], []>} : vector<16x256xbf16>, vector<256x1024xbf16>, vector<16x1024xf32> -> vector<16x1024xf32>
    %15 = vector.shape_cast %12 : vector<16x256xbf16> to vector<2x8x256xbf16>
    %16 = vector.extract_strided_slice %15 {offsets = [0, 7, 0], sizes = [2, 1, 256], strides = [1, 1, 1]} : vector<2x8x256xbf16> to vector<2x1x256xbf16>
    %17 = vector.shape_cast %16 : vector<2x1x256xbf16> to vector<2x256xbf16>
    %c0_10 = arith.constant 0 : index
    %c0_11 = arith.constant 0 : index
    %18 = vector.load %arg5[%c0_10, %c0_11] : memref<256x1024xbf16, #tpu.memory_space<vmem>>, vector<256x1024xbf16>
    %cst_12 = arith.constant dense<0.000000e+00> : vector<2x1024xf32>
    %19 = tpu.matmul %17, %18, %cst_12 {dimension_numbers = #tpu.dot_dimension_numbers<[1], [0], [0], [1], [0, 0, 1, 1], [], []>} : vector<2x256xbf16>, vector<256x1024xbf16>, vector<2x1024xf32> -> vector<2x1024xf32>
    %c0_13 = arith.constant 0 : index
    %c0_14 = arith.constant 0 : index
    %20 = vector.load %arg6[%c0_13, %c0_14] : memref<8x1024xf32, #tpu.memory_space<vmem>>, vector<8x1024xf32>
    %21 = tpu.iota {dimensions = array<i32: 0>} : vector<16x1xi32>
    %c8_i32 = arith.constant 8 : i32
    %c0_i32 = arith.constant 0 : i32
    %22 = arith.cmpi eq, %c8_i32, %c0_i32 : i32
    %c1_i32 = arith.constant 1 : i32
    %23 = arith.select %22, %c1_i32, %c8_i32 : i32
    %24 = vector.broadcast %23 : i32 to vector<16x1xi32>
    %25 = arith.remsi %21, %24 : vector<16x1xi32>
    %c0_i32_15 = arith.constant 0 : i32
    %26 = vector.broadcast %c0_i32_15 : i32 to vector<16x1xi32>
    %27 = arith.cmpi ne, %25, %26 : vector<16x1xi32>
    %c0_i32_16 = arith.constant 0 : i32
    %28 = vector.broadcast %c0_i32_16 : i32 to vector<16x1xi32>
    %29 = arith.cmpi slt, %25, %28 : vector<16x1xi32>
    %c0_i32_17 = arith.constant 0 : i32
    %30 = arith.cmpi slt, %23, %c0_i32_17 : i32
    %31 = vector.broadcast %30 : i1 to vector<16x1xi1>
    %32 = vector.broadcast %31 : vector<16x1xi1> to vector<16x1xi1>
    %33 = arith.xori %29, %32 : vector<16x1xi1>
    %34 = arith.andi %33, %27 : vector<16x1xi1>
    %35 = vector.broadcast %23 : i32 to vector<16x1xi32>
    %36 = arith.addi %25, %35 : vector<16x1xi32>
    %37 = arith.select %34, %36, %25 : vector<16x1xi1>, vector<16x1xi32>
    %38 = vector.extract_strided_slice %20 {offsets = [7, 0], sizes = [1, 1024], strides = [1, 1]} : vector<8x1024xf32> to vector<1x1024xf32>
    %39 = vector.shape_cast %38 : vector<1x1024xf32> to vector<1024xf32>
    %40 = vector.shape_cast %39 : vector<1024xf32> to vector<1x1024xf32>
    %41 = vector.broadcast %40 : vector<1x1024xf32> to vector<16x1024xf32>
    %42 = arith.mulf %14, %41 : vector<16x1024xf32>
    %c7_i32 = arith.constant 7 : i32
    %43 = tpu.dynamic_rotate %14 by %c7_i32 dim 0 : vector<16x1024xf32>, i32 -> vector<16x1024xf32>
    %c7_i32_18 = arith.constant 7 : i32
    %44 = vector.broadcast %c7_i32_18 : i32 to vector<16x1xi32>
    %45 = arith.cmpi sge, %37, %44 : vector<16x1xi32>
    %cst_19 = arith.constant 0.000000e+00 : f32
    %46 = vector.shape_cast %45 : vector<16x1xi1> to vector<16x1xi1>
    %47 = vector.broadcast %46 : vector<16x1xi1> to vector<16x1024xi1>
    %48 = vector.broadcast %cst_19 : f32 to vector<16x1024xf32>
    %49 = arith.select %47, %43, %48 : vector<16x1024xi1>, vector<16x1024xf32>
    %50 = vector.extract_strided_slice %20 {offsets = [0, 0], sizes = [1, 1024], strides = [1, 1]} : vector<8x1024xf32> to vector<1x1024xf32>
    %51 = vector.shape_cast %50 : vector<1x1024xf32> to vector<1024xf32>
    %52 = vector.shape_cast %51 : vector<1024xf32> to vector<1x1024xf32>
    %53 = vector.broadcast %52 : vector<1x1024xf32> to vector<16x1024xf32>
    %54 = arith.mulf %49, %53 : vector<16x1024xf32>
    %55 = arith.addf %42, %54 : vector<16x1024xf32>
    %c6_i32 = arith.constant 6 : i32
    %56 = tpu.dynamic_rotate %14 by %c6_i32 dim 0 : vector<16x1024xf32>, i32 -> vector<16x1024xf32>
    %c6_i32_20 = arith.constant 6 : i32
    %57 = vector.broadcast %c6_i32_20 : i32 to vector<16x1xi32>
    %58 = arith.cmpi sge, %37, %57 : vector<16x1xi32>
    %cst_21 = arith.constant 0.000000e+00 : f32
    %59 = vector.shape_cast %58 : vector<16x1xi1> to vector<16x1xi1>
    %60 = vector.broadcast %59 : vector<16x1xi1> to vector<16x1024xi1>
    %61 = vector.broadcast %cst_21 : f32 to vector<16x1024xf32>
    %62 = arith.select %60, %56, %61 : vector<16x1024xi1>, vector<16x1024xf32>
    %63 = vector.extract_strided_slice %20 {offsets = [1, 0], sizes = [1, 1024], strides = [1, 1]} : vector<8x1024xf32> to vector<1x1024xf32>
    %64 = vector.shape_cast %63 : vector<1x1024xf32> to vector<1024xf32>
    %65 = vector.shape_cast %64 : vector<1024xf32> to vector<1x1024xf32>
    %66 = vector.broadcast %65 : vector<1x1024xf32> to vector<16x1024xf32>
    %67 = arith.mulf %62, %66 : vector<16x1024xf32>
    %68 = arith.addf %55, %67 : vector<16x1024xf32>
    %c5_i32 = arith.constant 5 : i32
    %69 = tpu.dynamic_rotate %14 by %c5_i32 dim 0 : vector<16x1024xf32>, i32 -> vector<16x1024xf32>
    %c5_i32_22 = arith.constant 5 : i32
    %70 = vector.broadcast %c5_i32_22 : i32 to vector<16x1xi32>
    %71 = arith.cmpi sge, %37, %70 : vector<16x1xi32>
    %cst_23 = arith.constant 0.000000e+00 : f32
    %72 = vector.shape_cast %71 : vector<16x1xi1> to vector<16x1xi1>
    %73 = vector.broadcast %72 : vector<16x1xi1> to vector<16x1024xi1>
    %74 = vector.broadcast %cst_23 : f32 to vector<16x1024xf32>
    %75 = arith.select %73, %69, %74 : vector<16x1024xi1>, vector<16x1024xf32>
    %76 = vector.extract_strided_slice %20 {offsets = [2, 0], sizes = [1, 1024], strides = [1, 1]} : vector<8x1024xf32> to vector<1x1024xf32>
    %77 = vector.shape_cast %76 : vector<1x1024xf32> to vector<1024xf32>
    %78 = vector.shape_cast %77 : vector<1024xf32> to vector<1x1024xf32>
    %79 = vector.broadcast %78 : vector<1x1024xf32> to vector<16x1024xf32>
    %80 = arith.mulf %75, %79 : vector<16x1024xf32>
    %81 = arith.addf %68, %80 : vector<16x1024xf32>
    %c4_i32 = arith.constant 4 : i32
    %82 = tpu.dynamic_rotate %14 by %c4_i32 dim 0 : vector<16x1024xf32>, i32 -> vector<16x1024xf32>
    %c4_i32_24 = arith.constant 4 : i32
    %83 = vector.broadcast %c4_i32_24 : i32 to vector<16x1xi32>
    %84 = arith.cmpi sge, %37, %83 : vector<16x1xi32>
    %cst_25 = arith.constant 0.000000e+00 : f32
    %85 = vector.shape_cast %84 : vector<16x1xi1> to vector<16x1xi1>
    %86 = vector.broadcast %85 : vector<16x1xi1> to vector<16x1024xi1>
    %87 = vector.broadcast %cst_25 : f32 to vector<16x1024xf32>
    %88 = arith.select %86, %82, %87 : vector<16x1024xi1>, vector<16x1024xf32>
    %89 = vector.extract_strided_slice %20 {offsets = [3, 0], sizes = [1, 1024], strides = [1, 1]} : vector<8x1024xf32> to vector<1x1024xf32>
    %90 = vector.shape_cast %89 : vector<1x1024xf32> to vector<1024xf32>
    %91 = vector.shape_cast %90 : vector<1024xf32> to vector<1x1024xf32>
    %92 = vector.broadcast %91 : vector<1x1024xf32> to vector<16x1024xf32>
    %93 = arith.mulf %88, %92 : vector<16x1024xf32>
    %94 = arith.addf %81, %93 : vector<16x1024xf32>
    %c3_i32 = arith.constant 3 : i32
    %95 = tpu.dynamic_rotate %14 by %c3_i32 dim 0 : vector<16x1024xf32>, i32 -> vector<16x1024xf32>
    %c3_i32_26 = arith.constant 3 : i32
    %96 = vector.broadcast %c3_i32_26 : i32 to vector<16x1xi32>
    %97 = arith.cmpi sge, %37, %96 : vector<16x1xi32>
    %cst_27 = arith.constant 0.000000e+00 : f32
    %98 = vector.shape_cast %97 : vector<16x1xi1> to vector<16x1xi1>
    %99 = vector.broadcast %98 : vector<16x1xi1> to vector<16x1024xi1>
    %100 = vector.broadcast %cst_27 : f32 to vector<16x1024xf32>
    %101 = arith.select %99, %95, %100 : vector<16x1024xi1>, vector<16x1024xf32>
    %102 = vector.extract_strided_slice %20 {offsets = [4, 0], sizes = [1, 1024], strides = [1, 1]} : vector<8x1024xf32> to vector<1x1024xf32>
    %103 = vector.shape_cast %102 : vector<1x1024xf32> to vector<1024xf32>
    %104 = vector.shape_cast %103 : vector<1024xf32> to vector<1x1024xf32>
    %105 = vector.broadcast %104 : vector<1x1024xf32> to vector<16x1024xf32>
    %106 = arith.mulf %101, %105 : vector<16x1024xf32>
    %107 = arith.addf %94, %106 : vector<16x1024xf32>
    %c2_i32 = arith.constant 2 : i32
    %108 = tpu.dynamic_rotate %14 by %c2_i32 dim 0 : vector<16x1024xf32>, i32 -> vector<16x1024xf32>
    %c2_i32_28 = arith.constant 2 : i32
    %109 = vector.broadcast %c2_i32_28 : i32 to vector<16x1xi32>
    %110 = arith.cmpi sge, %37, %109 : vector<16x1xi32>
    %cst_29 = arith.constant 0.000000e+00 : f32
    %111 = vector.shape_cast %110 : vector<16x1xi1> to vector<16x1xi1>
    %112 = vector.broadcast %111 : vector<16x1xi1> to vector<16x1024xi1>
    %113 = vector.broadcast %cst_29 : f32 to vector<16x1024xf32>
    %114 = arith.select %112, %108, %113 : vector<16x1024xi1>, vector<16x1024xf32>
    %115 = vector.extract_strided_slice %20 {offsets = [5, 0], sizes = [1, 1024], strides = [1, 1]} : vector<8x1024xf32> to vector<1x1024xf32>
    %116 = vector.shape_cast %115 : vector<1x1024xf32> to vector<1024xf32>
    %117 = vector.shape_cast %116 : vector<1024xf32> to vector<1x1024xf32>
    %118 = vector.broadcast %117 : vector<1x1024xf32> to vector<16x1024xf32>
    %119 = arith.mulf %114, %118 : vector<16x1024xf32>
    %120 = arith.addf %107, %119 : vector<16x1024xf32>
    %c1_i32_30 = arith.constant 1 : i32
    %121 = tpu.dynamic_rotate %14 by %c1_i32_30 dim 0 : vector<16x1024xf32>, i32 -> vector<16x1024xf32>
    %c1_i32_31 = arith.constant 1 : i32
    %122 = vector.broadcast %c1_i32_31 : i32 to vector<16x1xi32>
    %123 = arith.cmpi sge, %37, %122 : vector<16x1xi32>
    %cst_32 = arith.constant 0.000000e+00 : f32
    %124 = vector.shape_cast %123 : vector<16x1xi1> to vector<16x1xi1>
    %125 = vector.broadcast %124 : vector<16x1xi1> to vector<16x1024xi1>
    %126 = vector.broadcast %cst_32 : f32 to vector<16x1024xf32>
    %127 = arith.select %125, %121, %126 : vector<16x1024xi1>, vector<16x1024xf32>
    %128 = vector.extract_strided_slice %20 {offsets = [6, 0], sizes = [1, 1024], strides = [1, 1]} : vector<8x1024xf32> to vector<1x1024xf32>
    %129 = vector.shape_cast %128 : vector<1x1024xf32> to vector<1024xf32>
    %130 = vector.shape_cast %129 : vector<1024xf32> to vector<1x1024xf32>
    %131 = vector.broadcast %130 : vector<1x1024xf32> to vector<16x1024xf32>
    %132 = arith.mulf %127, %131 : vector<16x1024xf32>
    %133 = arith.addf %120, %132 : vector<16x1024xf32>
    %c0_33 = arith.constant 0 : index
    %c0_34 = arith.constant 0 : index
    %134 = vector.load %arg7[%c0_33, %c0_34] : memref<1x1024xf32, #tpu.memory_space<vmem>>, vector<1x1024xf32>
    %135 = vector.broadcast %134 : vector<1x1024xf32> to vector<16x1024xf32>
    %136 = arith.addf %133, %135 : vector<16x1024xf32>
    %137 = arith.negf %136 : vector<16x1024xf32>
    %138 = math.exp %137 : vector<16x1024xf32>
    %cst_35 = arith.constant 1.000000e+00 : f32
    %139 = vector.broadcast %cst_35 : f32 to vector<16x1024xf32>
    %140 = arith.addf %139, %138 : vector<16x1024xf32>
    %141 = arith.divf %139, %140 : vector<16x1024xf32>
    %142 = arith.mulf %136, %141 : vector<16x1024xf32>
    %143 = vector.shape_cast %142 : vector<16x1024xf32> to vector<2x8x1024xf32>
    %144 = arith.truncf %142 : vector<16x1024xf32> to vector<16x1024xbf16>
    %c0_36 = arith.constant 0 : index
    %c0_37 = arith.constant 0 : index
    %145 = vector.load %arg8[%c0_36, %c0_37] : memref<1024x384xbf16, #tpu.memory_space<vmem>>, vector<1024x384xbf16>
    %cst_38 = arith.constant dense<0.000000e+00> : vector<16x384xf32>
    %146 = tpu.matmul %144, %145, %cst_38 {dimension_numbers = #tpu.dot_dimension_numbers<[1], [0], [0], [1], [0, 0, 1, 1], [], []>} : vector<16x1024xbf16>, vector<1024x384xbf16>, vector<16x384xf32> -> vector<16x384xf32>
    %147 = vector.extract_strided_slice %146 {offsets = [0, 0], sizes = [16, 128], strides = [1, 1]} : vector<16x384xf32> to vector<16x128xf32>
    %148 = vector.extract_strided_slice %146 {offsets = [0, 128], sizes = [16, 16], strides = [1, 1]} : vector<16x384xf32> to vector<16x16xf32>
    %149 = vector.shape_cast %148 : vector<16x16xf32> to vector<2x8x16xf32>
    %150 = vector.extract_strided_slice %146 {offsets = [0, 256], sizes = [16, 16], strides = [1, 1]} : vector<16x384xf32> to vector<16x16xf32>
    %151 = vector.shape_cast %150 : vector<16x16xf32> to vector<2x8x16xf32>
    %152 = vector.extract_strided_slice %151 {offsets = [0, 7, 0], sizes = [2, 1, 16], strides = [1, 1, 1]} : vector<2x8x16xf32> to vector<2x1x16xf32>
    %153 = vector.shape_cast %152 : vector<2x1x16xf32> to vector<2x16xf32>
    %c0_39 = arith.constant 0 : index
    %c0_40 = arith.constant 0 : index
    %154 = vector.load %arg9[%c0_39, %c0_40] : memref<128x1024xf32, #tpu.memory_space<vmem>>, vector<128x1024xf32>
    %cst_41 = arith.constant dense<0.000000e+00> : vector<16x1024xf32>
    %155 = tpu.matmul %147, %154, %cst_41 {dimension_numbers = #tpu.dot_dimension_numbers<[1], [0], [0], [1], [0, 0, 1, 1], [], []>} : vector<16x128xf32>, vector<128x1024xf32>, vector<16x1024xf32> -> vector<16x1024xf32>
    %c0_42 = arith.constant 0 : index
    %c0_43 = arith.constant 0 : index
    %156 = vector.load %arg10[%c0_42, %c0_43] : memref<1x1024xf32, #tpu.memory_space<vmem>>, vector<1x1024xf32>
    %157 = vector.broadcast %156 : vector<1x1024xf32> to vector<16x1024xf32>
    %158 = arith.addf %155, %157 : vector<16x1024xf32>
    %cst_44 = arith.constant 2.000000e+01 : f32
    %159 = vector.broadcast %cst_44 : f32 to vector<16x1024xf32>
    %160 = arith.cmpf ogt, %158, %159 : vector<16x1024xf32>
    %cst_45 = arith.constant 2.000000e+01 : f32
    %161 = vector.broadcast %cst_45 : f32 to vector<16x1024xf32>
    %162 = arith.minimumf %158, %161 : vector<16x1024xf32>
    %163 = math.exp %162 : vector<16x1024xf32>
    %164 = math.log1p %163 : vector<16x1024xf32>
    %165 = arith.select %160, %158, %164 : vector<16x1024xi1>, vector<16x1024xf32>
    %166 = vector.shape_cast %165 : vector<16x1024xf32> to vector<2x8x1024xf32>
    %167 = arith.mulf %166, %143 : vector<2x8x1024xf32>
    %cst_46 = arith.constant 0.000000e+00 : f32
    %168 = vector.broadcast %cst_46 : f32 to vector<2x8x1024xf32>
    %169 = arith.subf %168, %166 : vector<2x8x1024xf32>
    %170 = math.exp %169 : vector<2x8x1024xf32>
    %cst_47 = arith.constant 1.000000e+00 : f32
    %171 = vector.broadcast %cst_47 : f32 to vector<2x1024xf32>
    %172 = vector.shape_cast %171 : vector<2x1024xf32> to vector<2x1x1024xf32>
    %173 = vector.extract_strided_slice %170 {offsets = [0, 7, 0], sizes = [2, 1, 1024], strides = [1, 1, 1]} : vector<2x8x1024xf32> to vector<2x1x1024xf32>
    %174 = vector.shape_cast %173 : vector<2x1x1024xf32> to vector<2x1024xf32>
    %175 = arith.mulf %171, %174 : vector<2x1024xf32>
    %176 = vector.shape_cast %175 : vector<2x1024xf32> to vector<2x1x1024xf32>
    %177 = vector.extract_strided_slice %170 {offsets = [0, 6, 0], sizes = [2, 1, 1024], strides = [1, 1, 1]} : vector<2x8x1024xf32> to vector<2x1x1024xf32>
    %178 = vector.shape_cast %177 : vector<2x1x1024xf32> to vector<2x1024xf32>
    %179 = arith.mulf %175, %178 : vector<2x1024xf32>
    %180 = vector.shape_cast %179 : vector<2x1024xf32> to vector<2x1x1024xf32>
    %181 = vector.extract_strided_slice %170 {offsets = [0, 5, 0], sizes = [2, 1, 1024], strides = [1, 1, 1]} : vector<2x8x1024xf32> to vector<2x1x1024xf32>
    %182 = vector.shape_cast %181 : vector<2x1x1024xf32> to vector<2x1024xf32>
    %183 = arith.mulf %179, %182 : vector<2x1024xf32>
    %184 = vector.shape_cast %183 : vector<2x1024xf32> to vector<2x1x1024xf32>
    %185 = vector.extract_strided_slice %170 {offsets = [0, 4, 0], sizes = [2, 1, 1024], strides = [1, 1, 1]} : vector<2x8x1024xf32> to vector<2x1x1024xf32>
    %186 = vector.shape_cast %185 : vector<2x1x1024xf32> to vector<2x1024xf32>
    %187 = arith.mulf %183, %186 : vector<2x1024xf32>
    %188 = vector.shape_cast %187 : vector<2x1024xf32> to vector<2x1x1024xf32>
    %189 = vector.extract_strided_slice %170 {offsets = [0, 3, 0], sizes = [2, 1, 1024], strides = [1, 1, 1]} : vector<2x8x1024xf32> to vector<2x1x1024xf32>
    %190 = vector.shape_cast %189 : vector<2x1x1024xf32> to vector<2x1024xf32>
    %191 = arith.mulf %187, %190 : vector<2x1024xf32>
    %192 = vector.shape_cast %191 : vector<2x1024xf32> to vector<2x1x1024xf32>
    %193 = vector.extract_strided_slice %170 {offsets = [0, 2, 0], sizes = [2, 1, 1024], strides = [1, 1, 1]} : vector<2x8x1024xf32> to vector<2x1x1024xf32>
    %194 = vector.shape_cast %193 : vector<2x1x1024xf32> to vector<2x1024xf32>
    %195 = arith.mulf %191, %194 : vector<2x1024xf32>
    %196 = vector.shape_cast %195 : vector<2x1024xf32> to vector<2x1x1024xf32>
    %197 = vector.extract_strided_slice %170 {offsets = [0, 1, 0], sizes = [2, 1, 1024], strides = [1, 1, 1]} : vector<2x8x1024xf32> to vector<2x1x1024xf32>
    %198 = vector.shape_cast %197 : vector<2x1x1024xf32> to vector<2x1024xf32>
    %199 = arith.mulf %195, %198 : vector<2x1024xf32>
    %200 = vector.shape_cast %199 : vector<2x1024xf32> to vector<2x1x1024xf32>
    %201 = tpu.concatenate %200, %196, %192, %188, %184, %180, %176, %172 in 1 : vector<2x1x1024xf32>, vector<2x1x1024xf32>, vector<2x1x1024xf32>, vector<2x1x1024xf32>, vector<2x1x1024xf32>, vector<2x1x1024xf32>, vector<2x1x1024xf32>, vector<2x1x1024xf32> -> vector<2x8x1024xf32>
    %202 = vector.shape_cast %153 : vector<2x16xf32> to vector<2x1x16xf32>
    %203 = vector.broadcast %202 : vector<2x1x16xf32> to vector<2x8x16xf32>
    %204 = arith.mulf %149, %203 : vector<2x8x16xf32>
    %205 = vector.extract_strided_slice %204 {offsets = [0, 0, 15], sizes = [2, 8, 1], strides = [1, 1, 1]} : vector<2x8x16xf32> to vector<2x8x1xf32>
    %206 = vector.broadcast %205 : vector<2x8x1xf32> to vector<2x8x1024xf32>
    %207 = arith.mulf %206, %201 : vector<2x8x1024xf32>
    %208 = vector.extract_strided_slice %204 {offsets = [0, 0, 14], sizes = [2, 8, 1], strides = [1, 1, 1]} : vector<2x8x16xf32> to vector<2x8x1xf32>
    %209 = vector.broadcast %208 : vector<2x8x1xf32> to vector<2x8x1024xf32>
    %210 = arith.addf %207, %209 : vector<2x8x1024xf32>
    %211 = arith.mulf %210, %201 : vector<2x8x1024xf32>
    %212 = vector.extract_strided_slice %204 {offsets = [0, 0, 13], sizes = [2, 8, 1], strides = [1, 1, 1]} : vector<2x8x16xf32> to vector<2x8x1xf32>
    %213 = vector.broadcast %212 : vector<2x8x1xf32> to vector<2x8x1024xf32>
    %214 = arith.addf %211, %213 : vector<2x8x1024xf32>
    %215 = arith.mulf %214, %201 : vector<2x8x1024xf32>
    %216 = vector.extract_strided_slice %204 {offsets = [0, 0, 12], sizes = [2, 8, 1], strides = [1, 1, 1]} : vector<2x8x16xf32> to vector<2x8x1xf32>
    %217 = vector.broadcast %216 : vector<2x8x1xf32> to vector<2x8x1024xf32>
    %218 = arith.addf %215, %217 : vector<2x8x1024xf32>
    %219 = arith.mulf %218, %201 : vector<2x8x1024xf32>
    %220 = vector.extract_strided_slice %204 {offsets = [0, 0, 11], sizes = [2, 8, 1], strides = [1, 1, 1]} : vector<2x8x16xf32> to vector<2x8x1xf32>
    %221 = vector.broadcast %220 : vector<2x8x1xf32> to vector<2x8x1024xf32>
    %222 = arith.addf %219, %221 : vector<2x8x1024xf32>
    %223 = arith.mulf %222, %201 : vector<2x8x1024xf32>
    %224 = vector.extract_strided_slice %204 {offsets = [0, 0, 10], sizes = [2, 8, 1], strides = [1, 1, 1]} : vector<2x8x16xf32> to vector<2x8x1xf32>
    %225 = vector.broadcast %224 : vector<2x8x1xf32> to vector<2x8x1024xf32>
    %226 = arith.addf %223, %225 : vector<2x8x1024xf32>
    %227 = arith.mulf %226, %201 : vector<2x8x1024xf32>
    %228 = vector.extract_strided_slice %204 {offsets = [0, 0, 9], sizes = [2, 8, 1], strides = [1, 1, 1]} : vector<2x8x16xf32> to vector<2x8x1xf32>
    %229 = vector.broadcast %228 : vector<2x8x1xf32> to vector<2x8x1024xf32>
    %230 = arith.addf %227, %229 : vector<2x8x1024xf32>
    %231 = arith.mulf %230, %201 : vector<2x8x1024xf32>
    %232 = vector.extract_strided_slice %204 {offsets = [0, 0, 8], sizes = [2, 8, 1], strides = [1, 1, 1]} : vector<2x8x16xf32> to vector<2x8x1xf32>
    %233 = vector.broadcast %232 : vector<2x8x1xf32> to vector<2x8x1024xf32>
    %234 = arith.addf %231, %233 : vector<2x8x1024xf32>
    %235 = arith.mulf %234, %201 : vector<2x8x1024xf32>
    %236 = vector.extract_strided_slice %204 {offsets = [0, 0, 7], sizes = [2, 8, 1], strides = [1, 1, 1]} : vector<2x8x16xf32> to vector<2x8x1xf32>
    %237 = vector.broadcast %236 : vector<2x8x1xf32> to vector<2x8x1024xf32>
    %238 = arith.addf %235, %237 : vector<2x8x1024xf32>
    %239 = arith.mulf %238, %201 : vector<2x8x1024xf32>
    %240 = vector.extract_strided_slice %204 {offsets = [0, 0, 6], sizes = [2, 8, 1], strides = [1, 1, 1]} : vector<2x8x16xf32> to vector<2x8x1xf32>
    %241 = vector.broadcast %240 : vector<2x8x1xf32> to vector<2x8x1024xf32>
    %242 = arith.addf %239, %241 : vector<2x8x1024xf32>
    %243 = arith.mulf %242, %201 : vector<2x8x1024xf32>
    %244 = vector.extract_strided_slice %204 {offsets = [0, 0, 5], sizes = [2, 8, 1], strides = [1, 1, 1]} : vector<2x8x16xf32> to vector<2x8x1xf32>
    %245 = vector.broadcast %244 : vector<2x8x1xf32> to vector<2x8x1024xf32>
    %246 = arith.addf %243, %245 : vector<2x8x1024xf32>
    %247 = arith.mulf %246, %201 : vector<2x8x1024xf32>
    %248 = vector.extract_strided_slice %204 {offsets = [0, 0, 4], sizes = [2, 8, 1], strides = [1, 1, 1]} : vector<2x8x16xf32> to vector<2x8x1xf32>
    %249 = vector.broadcast %248 : vector<2x8x1xf32> to vector<2x8x1024xf32>
    %250 = arith.addf %247, %249 : vector<2x8x1024xf32>
    %251 = arith.mulf %250, %201 : vector<2x8x1024xf32>
    %252 = vector.extract_strided_slice %204 {offsets = [0, 0, 3], sizes = [2, 8, 1], strides = [1, 1, 1]} : vector<2x8x16xf32> to vector<2x8x1xf32>
    %253 = vector.broadcast %252 : vector<2x8x1xf32> to vector<2x8x1024xf32>
    %254 = arith.addf %251, %253 : vector<2x8x1024xf32>
    %255 = arith.mulf %254, %201 : vector<2x8x1024xf32>
    %256 = vector.extract_strided_slice %204 {offsets = [0, 0, 2], sizes = [2, 8, 1], strides = [1, 1, 1]} : vector<2x8x16xf32> to vector<2x8x1xf32>
    %257 = vector.broadcast %256 : vector<2x8x1xf32> to vector<2x8x1024xf32>
    %258 = arith.addf %255, %257 : vector<2x8x1024xf32>
    %259 = arith.mulf %258, %201 : vector<2x8x1024xf32>
    %260 = vector.extract_strided_slice %204 {offsets = [0, 0, 1], sizes = [2, 8, 1], strides = [1, 1, 1]} : vector<2x8x16xf32> to vector<2x8x1xf32>
    %261 = vector.broadcast %260 : vector<2x8x1xf32> to vector<2x8x1024xf32>
    %262 = arith.addf %259, %261 : vector<2x8x1024xf32>
    %263 = arith.mulf %262, %201 : vector<2x8x1024xf32>
    %264 = vector.extract_strided_slice %204 {offsets = [0, 0, 0], sizes = [2, 8, 1], strides = [1, 1, 1]} : vector<2x8x16xf32> to vector<2x8x1xf32>
    %265 = vector.broadcast %264 : vector<2x8x1xf32> to vector<2x8x1024xf32>
    %266 = arith.addf %263, %265 : vector<2x8x1024xf32>
    %267 = arith.mulf %266, %201 : vector<2x8x1024xf32>
    %268 = arith.mulf %167, %267 : vector<2x8x1024xf32>
    %cst_48 = arith.constant dense<0.000000e+00> : vector<2x1024xf32>
    %269 = vector.multi_reduction <add>, %268, %cst_48 [1] : vector<2x8x1024xf32> to vector<2x1024xf32>
    %270 = vector.extract_strided_slice %143 {offsets = [0, 7, 0], sizes = [2, 1, 1024], strides = [1, 1, 1]} : vector<2x8x1024xf32> to vector<2x1x1024xf32>
    %271 = vector.shape_cast %270 : vector<2x1x1024xf32> to vector<2x1024xf32>
    %c0_49 = arith.constant 0 : index
    %c0_50 = arith.constant 0 : index
    %272 = vector.load %arg12[%c0_49, %c0_50] : memref<1x1024xf32, #tpu.memory_space<vmem>>, vector<1x1024xf32>
    %273 = vector.broadcast %272 : vector<1x1024xf32> to vector<2x1024xf32>
    %274 = arith.mulf %271, %273 : vector<2x1024xf32>
    %275 = arith.addf %269, %274 : vector<2x1024xf32>
    %276 = arith.negf %19 : vector<2x1024xf32>
    %277 = math.exp %276 : vector<2x1024xf32>
    %cst_51 = arith.constant 1.000000e+00 : f32
    %278 = vector.broadcast %cst_51 : f32 to vector<2x1024xf32>
    %279 = arith.addf %278, %277 : vector<2x1024xf32>
    %280 = arith.divf %278, %279 : vector<2x1024xf32>
    %281 = arith.mulf %19, %280 : vector<2x1024xf32>
    %282 = arith.mulf %275, %281 : vector<2x1024xf32>
    %283 = arith.truncf %282 : vector<2x1024xf32> to vector<2x1024xbf16>
    %c0_52 = arith.constant 0 : index
    %c0_53 = arith.constant 0 : index
    %284 = vector.load %arg13[%c0_52, %c0_53] : memref<1024x256xbf16, #tpu.memory_space<vmem>>, vector<1024x256xbf16>
    %cst_54 = arith.constant dense<0.000000e+00> : vector<2x256xf32>
    %285 = tpu.matmul %283, %284, %cst_54 {dimension_numbers = #tpu.dot_dimension_numbers<[1], [0], [0], [1], [0, 0, 1, 1], [], []>} : vector<2x1024xbf16>, vector<1024x256xbf16>, vector<2x256xf32> -> vector<2x256xf32>
    %c0_55 = arith.constant 0 : index
    %c0_56 = arith.constant 0 : index
    %286 = vector.load %arg14[%c0_55, %c0_56] : memref<256x128xf32, #tpu.memory_space<vmem>>, vector<256x128xf32>
    %cst_57 = arith.constant dense<0.000000e+00> : vector<2x128xf32>
    %287 = tpu.matmul %285, %286, %cst_57 {dimension_numbers = #tpu.dot_dimension_numbers<[1], [0], [0], [1], [0, 0, 1, 1], [], []>} : vector<2x256xf32>, vector<256x128xf32>, vector<2x128xf32> -> vector<2x128xf32>
    %c0_58 = arith.constant 0 : index
    %c0_59 = arith.constant 0 : index
    %288 = vector.load %arg15[%c0_58, %c0_59] : memref<1x128xf32, #tpu.memory_space<vmem>>, vector<1x128xf32>
    %289 = vector.broadcast %288 : vector<1x128xf32> to vector<2x128xf32>
    %290 = arith.addf %287, %289 : vector<2x128xf32>
    %cst_60 = arith.constant dense<0xFF800000> : vector<2xf32>
    %291 = vector.multi_reduction <maximumf>, %290, %cst_60 [1] : vector<2x128xf32> to vector<2xf32>
    %292 = vector.shape_cast %291 : vector<2xf32> to vector<2x1xf32>
    %293 = vector.broadcast %292 : vector<2x1xf32> to vector<2x128xf32>
    %294 = arith.subf %290, %293 : vector<2x128xf32>
    %295 = math.exp %294 : vector<2x128xf32>
    %cst_61 = arith.constant dense<0.000000e+00> : vector<2xf32>
    %296 = vector.multi_reduction <add>, %295, %cst_61 [1] : vector<2x128xf32> to vector<2xf32>
    %297 = vector.shape_cast %296 : vector<2xf32> to vector<2x1xf32>
    %298 = vector.broadcast %297 : vector<2x1xf32> to vector<2x128xf32>
    %299 = arith.divf %295, %298 : vector<2x128xf32>
    %c0_62 = arith.constant 0 : index
    %c0_63 = arith.constant 0 : index
    %300 = vector.load %arg16[%c0_62, %c0_63] : memref<2x128xf32, #tpu.memory_space<vmem>>, vector<2x128xf32>
    tpu.vector_store %arg16[%c0_62, %c0_63], %299 {strides = array<i32>} : memref<2x128xf32, #tpu.memory_space<vmem>>, vector<2x128xf32>,
    return
  }
  func.func @transform_0(%arg0: i32) -> (i32, i32, i32) {
    %c0_i32 = arith.constant 0 : i32
    %c0_i32_0 = arith.constant 0 : i32
    %c0_i32_1 = arith.constant 0 : i32
    return %arg0, %c0_i32, %c0_i32_0 : i32, i32, i32
  }
  func.func @transform_1(%arg0: i32) -> (i32, i32) {
    %c0_i32 = arith.constant 0 : i32
    %c0_i32_0 = arith.constant 0 : i32
    %c0_i32_1 = arith.constant 0 : i32
    return %c0_i32, %c0_i32_0 : i32, i32
  }
  func.func @transform_2(%arg0: i32) -> (i32, i32) {
    %c0_i32 = arith.constant 0 : i32
    %c0_i32_0 = arith.constant 0 : i32
    %c0_i32_1 = arith.constant 0 : i32
    return %c0_i32, %c0_i32_0 : i32, i32
  }
  func.func @transform_3(%arg0: i32) -> (i32, i32) {
    %c0_i32 = arith.constant 0 : i32
    %c0_i32_0 = arith.constant 0 : i32
    %c0_i32_1 = arith.constant 0 : i32
    return %c0_i32, %c0_i32_0 : i32, i32
  }
  func.func @transform_4(%arg0: i32) -> (i32, i32) {
    %c0_i32 = arith.constant 0 : i32
    %c0_i32_0 = arith.constant 0 : i32
    %c0_i32_1 = arith.constant 0 : i32
    return %c0_i32, %c0_i32_0 : i32, i32
  }
  func.func @transform_5(%arg0: i32) -> (i32, i32) {
    %c0_i32 = arith.constant 0 : i32
    %c0_i32_0 = arith.constant 0 : i32
    %c0_i32_1 = arith.constant 0 : i32
    return %c0_i32, %c0_i32_0 : i32, i32
  }
  func.func @transform_6(%arg0: i32) -> (i32, i32) {
    %c0_i32 = arith.constant 0 : i32
    %c0_i32_0 = arith.constant 0 : i32
    %c0_i32_1 = arith.constant 0 : i32
    return %c0_i32, %c0_i32_0 : i32, i32
  }
  func.func @transform_7(%arg0: i32) -> (i32, i32) {
    %c0_i32 = arith.constant 0 : i32
    %c0_i32_0 = arith.constant 0 : i32
    %c0_i32_1 = arith.constant 0 : i32
    return %c0_i32, %c0_i32_0 : i32, i32
  }
  func.func @transform_8(%arg0: i32) -> (i32, i32) {
    %c0_i32 = arith.constant 0 : i32
    %c0_i32_0 = arith.constant 0 : i32
    %c0_i32_1 = arith.constant 0 : i32
    return %c0_i32, %c0_i32_0 : i32, i32
  }
  func.func @transform_9(%arg0: i32) -> (i32, i32) {
    %c0_i32 = arith.constant 0 : i32
    %c0_i32_0 = arith.constant 0 : i32
    %c0_i32_1 = arith.constant 0 : i32
    return %c0_i32, %c0_i32_0 : i32, i32
  }
  func.func @transform_10(%arg0: i32) -> (i32, i32) {
    %c0_i32 = arith.constant 0 : i32
    %c0_i32_0 = arith.constant 0 : i32
    %c0_i32_1 = arith.constant 0 : i32
    return %c0_i32, %c0_i32_0 : i32, i32
  }
  func.func @transform_11(%arg0: i32) -> (i32, i32) {
    %c0_i32 = arith.constant 0 : i32
    %c0_i32_0 = arith.constant 0 : i32
    %c0_i32_1 = arith.constant 0 : i32
    return %c0_i32, %c0_i32_0 : i32, i32
  }
  func.func @transform_12(%arg0: i32) -> (i32, i32) {
    %c0_i32 = arith.constant 0 : i32
    %c0_i32_0 = arith.constant 0 : i32
    %c0_i32_1 = arith.constant 0 : i32
    return %c0_i32, %c0_i32_0 : i32, i32
  }
  func.func @transform_13(%arg0: i32) -> (i32, i32) {
    %c0_i32 = arith.constant 0 : i32
    %c0_i32_0 = arith.constant 0 : i32
    %c0_i32_1 = arith.constant 0 : i32
    return %c0_i32, %c0_i32_0 : i32, i32
  }
  func.func @transform_14(%arg0: i32) -> (i32, i32) {
    %c0_i32 = arith.constant 0 : i32
    %c0_i32_0 = arith.constant 0 : i32
    %c0_i32_1 = arith.constant 0 : i32
    return %c0_i32, %c0_i32_0 : i32, i32
  }
  func.func @transform_15(%arg0: i32) -> (i32, i32) {
    %c0_i32 = arith.constant 0 : i32
    %c0_i32_0 = arith.constant 0 : i32
    return %arg0, %c0_i32 : i32, i32
  }
}

</mosaic_0001>

<llo_original>
// kernel: tpu_custom_call.1
$region0: #{tpu_custom_call.1}
  #allocation0 [shape = 'u32[]', space=smem, size = 0x4, offset = 0x4, fixed_abs, tag = 'smem constant byte address 0x4 - core index']
  #allocation1 [shape = 'u32[144,128]{1,0:T(1,128)}', space=vmem, size = 0x12000, scoped, tag = 'internal scratch']
  %s0 = inlined_call_operand.hbm [shape: bf16[2,8,128], index: 0, kind: input, shape index: {}]
  %s1 = inlined_call_operand.hbm [shape: bf16[128,256], index: 1, kind: input, shape index: {}]
  %s2 = inlined_call_operand.vmem [shape: f32[1,256], index: 2, kind: input, shape index: {}]
  %s3 = inlined_call_operand.hbm [shape: bf16[256,1024], index: 3, kind: input, shape index: {}]
  %s4 = inlined_call_operand.hbm [shape: bf16[256,1024], index: 4, kind: input, shape index: {}]
  %s5 = inlined_call_operand.hbm [shape: f32[8,1024], index: 5, kind: input, shape index: {}]
  %s6 = inlined_call_operand.vmem [shape: f32[1,1024], index: 6, kind: input, shape index: {}]
  %s7 = inlined_call_operand.hbm [shape: bf16[1024,384], index: 7, kind: input, shape index: {}]
  %s8 = inlined_call_operand.hbm [shape: f32[128,1024], index: 8, kind: input, shape index: {}]
  %s9 = inlined_call_operand.vmem [shape: f32[1,1024], index: 9, kind: input, shape index: {}]
  %s10 = inlined_call_operand.hbm [shape: f32[16,1024], index: 10, kind: input, shape index: {}]
  %s11 = inlined_call_operand.vmem [shape: f32[1,1024], index: 11, kind: input, shape index: {}]
  %s12 = inlined_call_operand.hbm [shape: bf16[1024,256], index: 12, kind: input, shape index: {}]
  %s13 = inlined_call_operand.hbm [shape: f32[256,128], index: 13, kind: input, shape index: {}]
  %s14 = inlined_call_operand.vmem [shape: f32[1,128], index: 14, kind: input, shape index: {}]
  %s15 = inlined_call_operand.hbm [shape: f32[2,128], index: 15, kind: output, shape index: {}]
  %s16 = sld [smem:[#allocation0]]
  $region110: #{tpu_custom_call.1} parent=0
    _
  %s18 = ssub.s32 1, %s16
  %s19 = scalar_select 0, %s18, %s16
  $region1: #{tpu_custom_call.1} parent=0
    #allocation2 [shape = 'u8[4096]{0}', space=vmem, size = 0x1000, scoped, tag = 'input window, operand 0, single buffered']
    #allocation3 [shape = 's32[1]{0}', space=sflag, size = 0x4, scoped, tag = 'scoped memory for tpu_custom_call.1']
    #allocation4 [shape = 's32[1]{0}', space=sflag, size = 0x4, scoped, tag = 'scoped memory for tpu_custom_call.1']
    #allocation5 [shape = 'u8[65536]{0}', space=vmem, size = 0x10000, scoped, tag = 'input window, operand 1, single buffered']
    #allocation6 [shape = 's32[1]{0}', space=sflag, size = 0x4, scoped, tag = 'scoped memory for tpu_custom_call.1']
    #allocation7 [shape = 'u8[524288]{0}', space=vmem, size = 0x80000, scoped, tag = 'input window, operand 3, single buffered']
    #allocation8 [shape = 'u8[524288]{0}', space=vmem, size = 0x80000, scoped, tag = 'input window, operand 4, single buffered']
    #allocation9 [shape = 's32[1]{0}', space=sflag, size = 0x4, scoped, tag = 'scoped memory for tpu_custom_call.1']
    #allocation10 [shape = 'u8[32768]{0}', space=vmem, size = 0x8000, scoped, tag = 'input window, operand 5, single buffered']
    #allocation11 [shape = 'u8[786432]{0}', space=vmem, size = 0xc0000, scoped, tag = 'input window, operand 7, single buffered']
    #allocation12 [shape = 's32[1]{0}', space=sflag, size = 0x4, scoped, tag = 'scoped memory for tpu_custom_call.1']
    #allocation13 [shape = 'u8[524288]{0}', space=vmem, size = 0x80000, scoped, tag = 'input window, operand 8, single buffered']
    #allocation14 [shape = 'u8[65536]{0}', space=vmem, size = 0x10000, scoped, tag = 'input window, operand 10, single buffered']
    #allocation15 [shape = 's32[1]{0}', space=sflag, size = 0x4, scoped, tag = 'scoped memory for tpu_custom_call.1']
    #allocation16 [shape = 'u8[524288]{0}', space=vmem, size = 0x80000, scoped, tag = 'input window, operand 12, single buffered']
    #allocation17 [shape = 'u8[131072]{0}', space=vmem, size = 0x20000, scoped, tag = 'input window, operand 13, single buffered']
    #allocation18 [shape = 's32[1]{0}', space=sflag, size = 0x4, scoped, tag = 'scoped memory for tpu_custom_call.1']
    #allocation19 [shape = 'u8[1024]{0}', space=vmem, size = 0x400, scoped, tag = 'output window, operand 0, single buffered']
    %20 = vsyncpa [#allocation3], 0
    %21 = vsyncpa [#allocation6], 0
    %22 = vsyncpa [#allocation9], 0
    %23 = vsyncpa [#allocation12], 0
    %24 = vsyncpa [#allocation15], 0
    %25 = vsyncpa [#allocation18], 0
    %26 = vsyncpa [#allocation4], 0
    // Predicated region
    $region2: #{tpu_custom_call.1} parent=1 // pred_check
      _
    $region3: #{tpu_custom_call.1} parent=1 // pred_check_branch
      %28 = sbr.rel (0) target = $region5
    $region4: #{tpu_custom_call.1} parent=1 // pred_region
      %s30 = ssub.s32 128, 128
      %31 = vsyncadd [#allocation3], %s30
      %s32 = sshll.u32 [#allocation2], 4
      %s33 = int_to_ptr.vmem [resolvable:$true] %s32
      %38 = dma.hbm_to_vmem [thread:$0]  %s0, 128, %s33, [#allocation3], 64, 64, 4
    $region5: #{tpu_custom_call.1} parent=1 // pred_fallthru
      _
    // Predicated region
    $region6: #{tpu_custom_call.1} parent=1 // pred_check
      _
    $region7: #{tpu_custom_call.1} parent=1 // pred_check_branch
      %40 = sbr.rel (0) target = $region9
    $region8: #{tpu_custom_call.1} parent=1 // pred_region
      %s42 = ssub.s32 2048, 2048
      %43 = vsyncadd [#allocation6], %s42
      %s44 = sshll.u32 [#allocation5], 4
      %s45 = int_to_ptr.vmem [resolvable:$true] %s44
      %50 = dma.hbm_to_vmem [thread:$0]  %s1, 2048, %s45, [#allocation6], 128, 128, 8
    $region9: #{tpu_custom_call.1} parent=1 // pred_fallthru
      _
    // Predicated region
    $region10: #{tpu_custom_call.1} parent=1 // pred_check
      _
    $region11: #{tpu_custom_call.1} parent=1 // pred_check_branch
      %52 = sbr.rel (0) target = $region13
    $region12: #{tpu_custom_call.1} parent=1 // pred_region
      _
    $region13: #{tpu_custom_call.1} parent=1 // pred_fallthru
      _
    // Predicated region
    $region14: #{tpu_custom_call.1} parent=1 // pred_check
      _
    $region15: #{tpu_custom_call.1} parent=1 // pred_check_branch
      %54 = sbr.rel (0) target = $region17
    $region16: #{tpu_custom_call.1} parent=1 // pred_region
      %s56 = ssub.s32 16384, 16384
      %57 = vsyncadd [#allocation6], %s56
      %s58 = sshll.u32 [#allocation7], 4
      %s59 = int_to_ptr.vmem [resolvable:$true] %s58
      %64 = dma.hbm_to_vmem [thread:$0]  %s3, 16384, %s59, [#allocation6], 512, 512, 32
    $region17: #{tpu_custom_call.1} parent=1 // pred_fallthru
      _
    // Predicated region
    $region18: #{tpu_custom_call.1} parent=1 // pred_check
      _
    $region19: #{tpu_custom_call.1} parent=1 // pred_check_branch
      %66 = sbr.rel (0) target = $region21
    $region20: #{tpu_custom_call.1} parent=1 // pred_region
      %s68 = ssub.s32 16384, 16384
      %69 = vsyncadd [#allocation9], %s68
      %s70 = sshll.u32 [#allocation8], 4
      %s71 = int_to_ptr.vmem [resolvable:$true] %s70
      %76 = dma.hbm_to_vmem [thread:$0]  %s4, 16384, %s71, [#allocation9], 512, 512, 32
    $region21: #{tpu_custom_call.1} parent=1 // pred_fallthru
      _
    // Predicated region
    $region22: #{tpu_custom_call.1} parent=1 // pred_check
      _
    $region23: #{tpu_custom_call.1} parent=1 // pred_check_branch
      %78 = sbr.rel (0) target = $region25
    $region24: #{tpu_custom_call.1} parent=1 // pred_region
      %s80 = ssub.s32 1024, 1024
      %81 = vsyncadd [#allocation9], %s80
      %s83 = sshll.u32 [#allocation10], 4
      %s84 = int_to_ptr.vmem [resolvable:$true] %s83
      %86 = dma.hbm_to_vmem [thread:$0]  %s5, 1024, %s84, [#allocation9]
    $region25: #{tpu_custom_call.1} parent=1 // pred_fallthru
      _
    // Predicated region
    $region26: #{tpu_custom_call.1} parent=1 // pred_check
      _
    $region27: #{tpu_custom_call.1} parent=1 // pred_check_branch
      %88 = sbr.rel (0) target = $region29
    $region28: #{tpu_custom_call.1} parent=1 // pred_region
      _
    $region29: #{tpu_custom_call.1} parent=1 // pred_fallthru
      _
    // Predicated region
    $region30: #{tpu_custom_call.1} parent=1 // pred_check
      _
    $region31: #{tpu_custom_call.1} parent=1 // pred_check_branch
      %90 = sbr.rel (0) target = $region33
    $region32: #{tpu_custom_call.1} parent=1 // pred_region
      %s92 = ssub.s32 24576, 24576
      %93 = vsyncadd [#allocation12], %s92
      %s94 = sshll.u32 [#allocation11], 4
      %s95 = int_to_ptr.vmem [resolvable:$true] %s94
      %100 = dma.hbm_to_vmem [thread:$0]  %s7, 24576, %s95, [#allocation12], 192, 192, 12
    $region33: #{tpu_custom_call.1} parent=1 // pred_fallthru
      _
    // Predicated region
    $region34: #{tpu_custom_call.1} parent=1 // pred_check
      _
    $region35: #{tpu_custom_call.1} parent=1 // pred_check_branch
      %102 = sbr.rel (0) target = $region37
    $region36: #{tpu_custom_call.1} parent=1 // pred_region
      %s104 = ssub.s32 16384, 16384
      %105 = vsyncadd [#allocation12], %s104
      %s106 = sshll.u32 [#allocation13], 4
      %s107 = int_to_ptr.vmem [resolvable:$true] %s106
      %112 = dma.hbm_to_vmem [thread:$0]  %s8, 16384, %s107, [#allocation12], 1024, 1024, 64
    $region37: #{tpu_custom_call.1} parent=1 // pred_fallthru
      _
    // Predicated region
    $region38: #{tpu_custom_call.1} parent=1 // pred_check
      _
    $region39: #{tpu_custom_call.1} parent=1 // pred_check_branch
      %114 = sbr.rel (0) target = $region41
    $region40: #{tpu_custom_call.1} parent=1 // pred_region
      _
    $region41: #{tpu_custom_call.1} parent=1 // pred_fallthru
      _
    // Predicated region
    $region42: #{tpu_custom_call.1} parent=1 // pred_check
      _
    $region43: #{tpu_custom_call.1} parent=1 // pred_check_branch
      %116 = sbr.rel (0) target = $region45
    $region44: #{tpu_custom_call.1} parent=1 // pred_region
      %s118 = ssub.s32 2048, 2048
      %119 = vsyncadd [#allocation15], %s118
      %s120 = sshll.u32 [#allocation14], 4
      %s121 = int_to_ptr.vmem [resolvable:$true] %s120
      %126 = dma.hbm_to_vmem [thread:$0]  %s10, 2048, %s121, [#allocation15], 1024, 1024, 64
    $region45: #{tpu_custom_call.1} parent=1 // pred_fallthru
      _
    // Predicated region
    $region46: #{tpu_custom_call.1} parent=1 // pred_check
      _
    $region47: #{tpu_custom_call.1} parent=1 // pred_check_branch
      %128 = sbr.rel (0) target = $region49
    $region48: #{tpu_custom_call.1} parent=1 // pred_region
      _
    $region49: #{tpu_custom_call.1} parent=1 // pred_fallthru
      _
    // Predicated region
    $region50: #{tpu_custom_call.1} parent=1 // pred_check
      _
    $region51: #{tpu_custom_call.1} parent=1 // pred_check_branch
      %130 = sbr.rel (0) target = $region53
    $region52: #{tpu_custom_call.1} parent=1 // pred_region
      %s132 = ssub.s32 16384, 16384
      %133 = vsyncadd [#allocation15], %s132
      %s134 = sshll.u32 [#allocation16], 4
      %s135 = int_to_ptr.vmem [resolvable:$true] %s134
      %140 = dma.hbm_to_vmem [thread:$0]  %s12, 16384, %s135, [#allocation15], 128, 128, 8
    $region53: #{tpu_custom_call.1} parent=1 // pred_fallthru
      _
    // Predicated region
    $region54: #{tpu_custom_call.1} parent=1 // pred_check
      _
    $region55: #{tpu_custom_call.1} parent=1 // pred_check_branch
      %142 = sbr.rel (0) target = $region57
    $region56: #{tpu_custom_call.1} parent=1 // pred_region
      %s144 = ssub.s32 4096, 4096
      %145 = vsyncadd [#allocation18], %s144
      %s146 = sshll.u32 [#allocation17], 4
      %s147 = int_to_ptr.vmem [resolvable:$true] %s146
      %152 = dma.hbm_to_vmem [thread:$0]  %s13, 4096, %s147, [#allocation18], 128, 128, 8
    $region57: #{tpu_custom_call.1} parent=1 // pred_fallthru
      _
    // Predicated region
    $region58: #{tpu_custom_call.1} parent=1 // pred_check
      _
    $region59: #{tpu_custom_call.1} parent=1 // pred_check_branch
      %154 = sbr.rel (0) target = $region61
    $region60: #{tpu_custom_call.1} parent=1 // pred_region
      _
    $region61: #{tpu_custom_call.1} parent=1 // pred_fallthru
      _
    // Predicated region
    $region62: #{tpu_custom_call.1} parent=1 // pred_check
      _
    $region63: #{tpu_custom_call.1} parent=1 // pred_check_branch
      %156 = sbr.rel (0) target = $region65
    $region64: #{tpu_custom_call.1} parent=1 // pred_region
      %157 = dma.done [#allocation3], 128
    $region65: #{tpu_custom_call.1} parent=1 // pred_fallthru
      _
    // Predicated region
    $region66: #{tpu_custom_call.1} parent=1 // pred_check
      _
    $region67: #{tpu_custom_call.1} parent=1 // pred_check_branch
      %159 = sbr.rel (0) target = $region69
    $region68: #{tpu_custom_call.1} parent=1 // pred_region
      %160 = dma.done [#allocation6], 2048
    $region69: #{tpu_custom_call.1} parent=1 // pred_fallthru
      _
    // Predicated region
    $region70: #{tpu_custom_call.1} parent=1 // pred_check
      _
    $region71: #{tpu_custom_call.1} parent=1 // pred_check_branch
      %162 = sbr.rel (0) target = $region73
    $region72: #{tpu_custom_call.1} parent=1 // pred_region
      %163 = dma.done [#allocation6], 16384
    $region73: #{tpu_custom_call.1} parent=1 // pred_fallthru
      _
    // Predicated region
    $region74: #{tpu_custom_call.1} parent=1 // pred_check
      _
    $region75: #{tpu_custom_call.1} parent=1 // pred_check_branch
      %165 = sbr.rel (0) target = $region77
    $region76: #{tpu_custom_call.1} parent=1 // pred_region
      %166 = dma.done [#allocation9], 16384
    $region77: #{tpu_custom_call.1} parent=1 // pred_fallthru
      _
    // Predicated region
    $region78: #{tpu_custom_call.1} parent=1 // pred_check
      _
    $region79: #{tpu_custom_call.1} parent=1 // pred_check_branch
      %168 = sbr.rel (0) target = $region81
    $region80: #{tpu_custom_call.1} parent=1 // pred_region
      %169 = dma.done [#allocation9], 1024
    $region81: #{tpu_custom_call.1} parent=1 // pred_fallthru
      _
    // Predicated region
    $region82: #{tpu_custom_call.1} parent=1 // pred_check
      _
    $region83: #{tpu_custom_call.1} parent=1 // pred_check_branch
      %171 = sbr.rel (0) target = $region85
    $region84: #{tpu_custom_call.1} parent=1 // pred_region
      %172 = dma.done [#allocation12], 24576
    $region85: #{tpu_custom_call.1} parent=1 // pred_fallthru
      _
    // Predicated region
    $region86: #{tpu_custom_call.1} parent=1 // pred_check
      _
    $region87: #{tpu_custom_call.1} parent=1 // pred_check_branch
      %174 = sbr.rel (0) target = $region89
    $region88: #{tpu_custom_call.1} parent=1 // pred_region
      %175 = dma.done [#allocation12], 16384
    $region89: #{tpu_custom_call.1} parent=1 // pred_fallthru
      _
    // Predicated region
    $region90: #{tpu_custom_call.1} parent=1 // pred_check
      _
    $region91: #{tpu_custom_call.1} parent=1 // pred_check_branch
      %177 = sbr.rel (0) target = $region93
    $region92: #{tpu_custom_call.1} parent=1 // pred_region
      %178 = dma.done [#allocation15], 2048
    $region93: #{tpu_custom_call.1} parent=1 // pred_fallthru
      _
    // Predicated region
    $region94: #{tpu_custom_call.1} parent=1 // pred_check
      _
    $region95: #{tpu_custom_call.1} parent=1 // pred_check_branch
      %180 = sbr.rel (0) target = $region97
    $region96: #{tpu_custom_call.1} parent=1 // pred_region
      %181 = dma.done [#allocation15], 16384
    $region97: #{tpu_custom_call.1} parent=1 // pred_fallthru
      _
    // Predicated region
    $region98: #{tpu_custom_call.1} parent=1 // pred_check
      _
    $region99: #{tpu_custom_call.1} parent=1 // pred_check_branch
      %183 = sbr.rel (0) target = $region101
    $region100: #{tpu_custom_call.1} parent=1 // pred_region
      %184 = dma.done [#allocation18], 4096
    $region101: #{tpu_custom_call.1} parent=1 // pred_fallthru
      _
    %v186 = vld [vmem:[#allocation2] sm:$0xf]
    %v187 = vld [vmem:[#allocation2 + $0x4] sm:$0xf]
    %v188 = vld [vmem:[#allocation5] sm:$0xff]
    %v189 = vld [vmem:[#allocation5 + $0x8] sm:$0xff]
    %v190 = vld [vmem:[#allocation5 + $0x10] sm:$0xff]
    %v191 = vld [vmem:[#allocation5 + $0x18] sm:$0xff]
    %v192 = vld [vmem:[#allocation5 + $0x20] sm:$0xff]
    %v193 = vld [vmem:[#allocation5 + $0x28] sm:$0xff]
    %v194 = vld [vmem:[#allocation5 + $0x30] sm:$0xff]
    %v195 = vld [vmem:[#allocation5 + $0x38] sm:$0xff]
    %v196 = vld [vmem:[#allocation5 + $0x40] sm:$0xff]
    %v197 = vld [vmem:[#allocation5 + $0x48] sm:$0xff]
    %v198 = vld [vmem:[#allocation5 + $0x50] sm:$0xff]
    %v199 = vld [vmem:[#allocation5 + $0x58] sm:$0xff]
    %v200 = vld [vmem:[#allocation5 + $0x60] sm:$0xff]
    %v201 = vld [vmem:[#allocation5 + $0x68] sm:$0xff]
    %v202 = vld [vmem:[#allocation5 + $0x70] sm:$0xff]
    %v203 = vld [vmem:[#allocation5 + $0x78] sm:$0xff]
    %v204 = vld [vmem:[%s2] sm:$0x3]
    %v206 = vlaneseq
    %v207 = vshrl.u32 %v206, 7
    %v208 = vsub.s32 0, %v207
    %v209 = vrot.slane %v204, %v208
    %v210 = vlaneseq
    %v211 = vshrl.u32 %v210, 7
    %v212 = vsub.s32 1, %v211
    %v213 = vrot.slane %v204, %v212
    %v218 = vunpack.c.l.b16 %v186
    %v219 = vunpack.c.l.b16 %v187
    %v220 = vpack.c.b16 %v219, %v218
    %v238 = vunpack.c.l.b16 %v188
    %v239 = vunpack.c.h.b16 %v188
    %v240 = vunpack.c.l.b16 %v189
    %v241 = vunpack.c.h.b16 %v189
    %v242 = vunpack.c.l.b16 %v190
    %v243 = vunpack.c.h.b16 %v190
    %v244 = vunpack.c.l.b16 %v191
    %v245 = vunpack.c.h.b16 %v191
    %v246 = vunpack.c.l.b16 %v192
    %v247 = vunpack.c.h.b16 %v192
    %v248 = vunpack.c.l.b16 %v193
    %v249 = vunpack.c.h.b16 %v193
    %v250 = vunpack.c.l.b16 %v194
    %v251 = vunpack.c.h.b16 %v194
    %v252 = vunpack.c.l.b16 %v195
    %v253 = vunpack.c.h.b16 %v195
    %v254 = vunpack.c.l.b16 %v196
    %v255 = vunpack.c.h.b16 %v196
    %v256 = vunpack.c.l.b16 %v197
    %v257 = vunpack.c.h.b16 %v197
    %v258 = vunpack.c.l.b16 %v198
    %v259 = vunpack.c.h.b16 %v198
    %v260 = vunpack.c.l.b16 %v199
    %v261 = vunpack.c.h.b16 %v199
    %v262 = vunpack.c.l.b16 %v200
    %v263 = vunpack.c.h.b16 %v200
    %v264 = vunpack.c.l.b16 %v201
    %v265 = vunpack.c.h.b16 %v201
    %v266 = vunpack.c.l.b16 %v202
    %v267 = vunpack.c.h.b16 %v202
    %v268 = vunpack.c.l.b16 %v203
    %v269 = vunpack.c.h.b16 %v203
    %v270 = vpack.c.b16 %v240, %v238
    %v271 = vpack.c.b16 %v241, %v239
    %v272 = vpack.c.b16 %v244, %v242
    %v273 = vpack.c.b16 %v245, %v243
    %v274 = vpack.c.b16 %v248, %v246
    %v275 = vpack.c.b16 %v249, %v247
    %v276 = vpack.c.b16 %v252, %v250
    %v277 = vpack.c.b16 %v253, %v251
    %v278 = vpack.c.b16 %v256, %v254
    %v279 = vpack.c.b16 %v257, %v255
    %v280 = vpack.c.b16 %v260, %v258
    %v281 = vpack.c.b16 %v261, %v259
    %v282 = vpack.c.b16 %v264, %v262
    %v283 = vpack.c.b16 %v265, %v263
    %v284 = vpack.c.b16 %v268, %v266
    %v285 = vpack.c.b16 %v269, %v267
    %302 = vmatprep.subr.bf16.mxu0 %v271
    %303 = vmatpush1.bf16.msra.mxu0 %v270
    %304 = vmatprep.subr.bf16.mxu0 %v273
    %305 = vmatpush1.bf16.msra.mxu0 %v272
    %306 = vmatprep.subr.bf16.mxu0 %v275
    %307 = vmatpush1.bf16.msra.mxu0 %v274
    %308 = vmatprep.subr.bf16.mxu0 %v277
    %309 = vmatpush1.bf16.msra.mxu0 %v276
    %310 = vmatprep.subr.bf16.mxu0 %v279
    %311 = vmatpush1.bf16.msra.mxu0 %v278
    %312 = vmatprep.subr.bf16.mxu0 %v281
    %313 = vmatpush1.bf16.msra.mxu0 %v280
    %314 = vmatprep.subr.bf16.mxu0 %v283
    %315 = vmatpush1.bf16.msra.mxu0 %v282
    %316 = vmatprep.subr.bf16.mxu0 %v285
    %317 = vmatpush1.bf16.msra.mxu0 %v284
    %318 = vmatprep.subr.bf16.mxu0 0
    %319 = vmatpush1.bf16.msra.mxu0 0
    %320 = vmatprep.subr.bf16.mxu0 0
    %321 = vmatpush1.bf16.msra.mxu0 0
    %322 = vmatprep.subr.bf16.mxu0 0
    %323 = vmatpush1.bf16.msra.mxu0 0
    %324 = vmatprep.subr.bf16.mxu0 0
    %325 = vmatpush1.bf16.msra.mxu0 0
    %326 = vmatprep.subr.bf16.mxu0 0
    %327 = vmatpush1.bf16.msra.mxu0 0
    %328 = vmatprep.subr.bf16.mxu0 0
    %329 = vmatpush1.bf16.msra.mxu0 0
    %330 = vmatprep.subr.bf16.mxu0 0
    %331 = vmatpush1.bf16.msra.mxu0 0
    %332 = vmatprep.subr.bf16.mxu0 0
    %333 = vmatpush1.bf16.msra.mxu0 0
    %334 = vmatprep.mubr.bf16.mxu0 0
    %335 = vmatmul.mubr.bf16.gmra.mrb[0].mxu0 %v220
    %v336 = vpop.f32.mrb[0].mxu0
    %v337 = vadd.f32 %v209, %v336
    %v338 = vpop.f32.mrb[0].mxu0
    %v339 = vadd.f32 %v213, %v338
    %v340 = vpop.f32.mrb[0].mxu0
    %v341 = vadd.f32 %v209, %v340
    %v342 = vpop.f32.mrb[0].mxu0
    %v343 = vadd.f32 %v213, %v342
    %344 = vdwg.mxu0
    %v345 = vxor.u32 %v337, 2147483648
    %v346 = vxor.u32 %v339, 2147483648
    %v347 = vxor.u32 %v341, 2147483648
    %v348 = vxor.u32 %v343, 2147483648
    %v349 = vmul.f32 %v345, 1.442695
    %v350 = vpow.pop %v349
    %v351 = vmul.f32 %v346, 1.442695
    %v352 = vpow.pop %v351
    %v353 = vmul.f32 %v347, 1.442695
    %v354 = vpow.pop %v353
    %v355 = vmul.f32 %v348, 1.442695
    %v356 = vpow.pop %v355
    %v357 = vadd.f32 %v350, 1.0
    %v358 = vadd.f32 %v352, 1.0
    %v359 = vadd.f32 %v354, 1.0
    %v360 = vadd.f32 %v356, 1.0
    %v361 = vrcp.pop %v357
    %v362 = vmul.f32 1.0, %v361
    %v363 = vrcp.pop %v358
    %v364 = vmul.f32 1.0, %v363
    %v365 = vrcp.pop %v359
    %v366 = vmul.f32 1.0, %v365
    %v367 = vrcp.pop %v360
    %v368 = vmul.f32 1.0, %v367
    %v369 = vpack.c.bf16 %v366, %v362
    %v370 = vpack.c.bf16 %v368, %v364
    %v371 = vld [vmem:[#allocation7] sm:$0xff]
    %v372 = vld [vmem:[#allocation7 + $0x8] sm:$0xff]
    %v373 = vld [vmem:[#allocation7 + $0x10] sm:$0xff]
    %v374 = vld [vmem:[#allocation7 + $0x18] sm:$0xff]
    %v375 = vld [vmem:[#allocation7 + $0x20] sm:$0xff]
    %v376 = vld [vmem:[#allocation7 + $0x28] sm:$0xff]
    %v377 = vld [vmem:[#allocation7 + $0x30] sm:$0xff]
    %v378 = vld [vmem:[#allocation7 + $0x38] sm:$0xff]
    %v379 = vld [vmem:[#allocation7 + $0x40] sm:$0xff]
    %v380 = vld [vmem:[#allocation7 + $0x48] sm:$0xff]
    %v381 = vld [vmem:[#allocation7 + $0x50] sm:$0xff]
    %v382 = vld [vmem:[#allocation7 + $0x58] sm:$0xff]
    %v383 = vld [vmem:[#allocation7 + $0x60] sm:$0xff]
    %v384 = vld [vmem:[#allocation7 + $0x68] sm:$0xff]
    %v385 = vld [vmem:[#allocation7 + $0x70] sm:$0xff]
    %v386 = vld [vmem:[#allocation7 + $0x78] sm:$0xff]
    %v387 = vld [vmem:[#allocation7 + $0x80] sm:$0xff]
    %v388 = vld [vmem:[#allocation7 + $0x88] sm:$0xff]
    %v389 = vld [vmem:[#allocation7 + $0x90] sm:$0xff]
    %v390 = vld [vmem:[#allocation7 + $0x98] sm:$0xff]
    %v391 = vld [vmem:[#allocation7 + $0xa0] sm:$0xff]
    %v392 = vld [vmem:[#allocation7 + $0xa8] sm:$0xff]
    %v393 = vld [vmem:[#allocation7 + $0xb0] sm:$0xff]
    %v394 = vld [vmem:[#allocation7 + $0xb8] sm:$0xff]
    %v395 = vld [vmem:[#allocation7 + $0xc0] sm:$0xff]
    %v396 = vld [vmem:[#allocation7 + $0xc8] sm:$0xff]
    %v397 = vld [vmem:[#allocation7 + $0xd0] sm:$0xff]
    %v398 = vld [vmem:[#allocation7 + $0xd8] sm:$0xff]
    %v399 = vld [vmem:[#allocation7 + $0xe0] sm:$0xff]
    %v400 = vld [vmem:[#allocation7 + $0xe8] sm:$0xff]
    %v401 = vld [vmem:[#allocation7 + $0xf0] sm:$0xff]
    %v402 = vld [vmem:[#allocation7 + $0xf8] sm:$0xff]
    %v403 = vld [vmem:[#allocation7 + $0x100] sm:$0xff]
    %v404 = vld [vmem:[#allocation7 + $0x108] sm:$0xff]
    %v405 = vld [vmem:[#allocation7 + $0x110] sm:$0xff]
    %v406 = vld [vmem:[#allocation7 + $0x118] sm:$0xff]
    %v407 = vld [vmem:[#allocation7 + $0x120] sm:$0xff]
    %v408 = vld [vmem:[#allocation7 + $0x128] sm:$0xff]
    %v409 = vld [vmem:[#allocation7 + $0x130] sm:$0xff]
    %v410 = vld [vmem:[#allocation7 + $0x138] sm:$0xff]
    %v411 = vld [vmem:[#allocation7 + $0x140] sm:$0xff]
    %v412 = vld [vmem:[#allocation7 + $0x148] sm:$0xff]
    %v413 = vld [vmem:[#allocation7 + $0x150] sm:$0xff]
    %v414 = vld [vmem:[#allocation7 + $0x158] sm:$0xff]
    %v415 = vld [vmem:[#allocation7 + $0x160] sm:$0xff]
    %v416 = vld [vmem:[#allocation7 + $0x168] sm:$0xff]
    %v417 = vld [vmem:[#allocation7 + $0x170] sm:$0xff]
    %v418 = vld [vmem:[#allocation7 + $0x178] sm:$0xff]
    %v419 = vld [vmem:[#allocation7 + $0x180] sm:$0xff]
    %v420 = vld [vmem:[#allocation7 + $0x188] sm:$0xff]
    %v421 = vld [vmem:[#allocation7 + $0x190] sm:$0xff]
    %v422 = vld [vmem:[#allocation7 + $0x198] sm:$0xff]
    %v423 = vld [vmem:[#allocation7 + $0x1a0] sm:$0xff]
    %v424 = vld [vmem:[#allocation7 + $0x1a8] sm:$0xff]
    %v425 = vld [vmem:[#allocation7 + $0x1b0] sm:$0xff]
    %v426 = vld [vmem:[#allocation7 + $0x1b8] sm:$0xff]
    %v427 = vld [vmem:[#allocation7 + $0x1c0] sm:$0xff]
    %v428 = vld [vmem:[#allocation7 + $0x1c8] sm:$0xff]
    %v429 = vld [vmem:[#allocation7 + $0x1d0] sm:$0xff]
    %v430 = vld [vmem:[#allocation7 + $0x1d8] sm:$0xff]
    %v431 = vld [vmem:[#allocation7 + $0x1e0] sm:$0xff]
    %v432 = vld [vmem:[#allocation7 + $0x1e8] sm:$0xff]
    %v433 = vld [vmem:[#allocation7 + $0x1f0] sm:$0xff]
    %v434 = vld [vmem:[#allocation7 + $0x1f8] sm:$0xff]
    %v435 = vld [vmem:[#allocation7 + $0x200] sm:$0xff]
    %v436 = vld [vmem:[#allocation7 + $0x208] sm:$0xff]
    %v437 = vld [vmem:[#allocation7 + $0x210] sm:$0xff]
    %v438 = vld [vmem:[#allocation7 + $0x218] sm:$0xff]
    %v439 = vld [vmem:[#allocation7 + $0x220] sm:$0xff]
    %v440 = vld [vmem:[#allocation7 + $0x228] sm:$0xff]
    %v441 = vld [vmem:[#allocation7 + $0x230] sm:$0xff]
    %v442 = vld [vmem:[#allocation7 + $0x238] sm:$0xff]
    %v443 = vld [vmem:[#allocation7 + $0x240] sm:$0xff]
    %v444 = vld [vmem:[#allocation7 + $0x248] sm:$0xff]
    %v445 = vld [vmem:[#allocation7 + $0x250] sm:$0xff]
    %v446 = vld [vmem:[#allocation7 + $0x258] sm:$0xff]
    %v447 = vld [vmem:[#allocation7 + $0x260] sm:$0xff]
    %v448 = vld [vmem:[#allocation7 + $0x268] sm:$0xff]
    %v449 = vld [vmem:[#allocation7 + $0x270] sm:$0xff]
    %v450 = vld [vmem:[#allocation7 + $0x278] sm:$0xff]
    %v451 = vld [vmem:[#allocation7 + $0x280] sm:$0xff]
    %v452 = vld [vmem:[#allocation7 + $0x288] sm:$0xff]
    %v453 = vld [vmem:[#allocation7 + $0x290] sm:$0xff]
    %v454 = vld [vmem:[#allocation7 + $0x298] sm:$0xff]
    %v455 = vld [vmem:[#allocation7 + $0x2a0] sm:$0xff]
    %v456 = vld [vmem:[#allocation7 + $0x2a8] sm:$0xff]
    %v457 = vld [vmem:[#allocation7 + $0x2b0] sm:$0xff]
    %v458 = vld [vmem:[#allocation7 + $0x2b8] sm:$0xff]
    %v459 = vld [vmem:[#allocation7 + $0x2c0] sm:$0xff]
    %v460 = vld [vmem:[#allocation7 + $0x2c8] sm:$0xff]
    %v461 = vld [vmem:[#allocation7 + $0x2d0] sm:$0xff]
    %v462 = vld [vmem:[#allocation7 + $0x2d8] sm:$0xff]
    %v463 = vld [vmem:[#allocation7 + $0x2e0] sm:$0xff]
    %v464 = vld [vmem:[#allocation7 + $0x2e8] sm:$0xff]
    %v465 = vld [vmem:[#allocation7 + $0x2f0] sm:$0xff]
    %v466 = vld [vmem:[#allocation7 + $0x2f8] sm:$0xff]
    %v467 = vld [vmem:[#allocation7 + $0x300] sm:$0xff]
    %v468 = vld [vmem:[#allocation7 + $0x308] sm:$0xff]
    %v469 = vld [vmem:[#allocation7 + $0x310] sm:$0xff]
    %v470 = vld [vmem:[#allocation7 + $0x318] sm:$0xff]
    %v471 = vld [vmem:[#allocation7 + $0x320] sm:$0xff]
    %v472 = vld [vmem:[#allocation7 + $0x328] sm:$0xff]
    %v473 = vld [vmem:[#allocation7 + $0x330] sm:$0xff]
    %v474 = vld [vmem:[#allocation7 + $0x338] sm:$0xff]
    %v475 = vld [vmem:[#allocation7 + $0x340] sm:$0xff]
    %v476 = vld [vmem:[#allocation7 + $0x348] sm:$0xff]
    %v477 = vld [vmem:[#allocation7 + $0x350] sm:$0xff]
    %v478 = vld [vmem:[#allocation7 + $0x358] sm:$0xff]
    %v479 = vld [vmem:[#allocation7 + $0x360] sm:$0xff]
    %v480 = vld [vmem:[#allocation7 + $0x368] sm:$0xff]
    %v481 = vld [vmem:[#allocation7 + $0x370] sm:$0xff]
    %v482 = vld [vmem:[#allocation7 + $0x378] sm:$0xff]
    %v483 = vld [vmem:[#allocation7 + $0x380] sm:$0xff]
    %v484 = vld [vmem:[#allocation7 + $0x388] sm:$0xff]
    %v485 = vld [vmem:[#allocation7 + $0x390] sm:$0xff]
    %v486 = vld [vmem:[#allocation7 + $0x398] sm:$0xff]
    %v487 = vld [vmem:[#allocation7 + $0x3a0] sm:$0xff]
    %v488 = vld [vmem:[#allocation7 + $0x3a8] sm:$0xff]
    %v489 = vld [vmem:[#allocation7 + $0x3b0] sm:$0xff]
    %v490 = vld [vmem:[#allocation7 + $0x3b8] sm:$0xff]
    %v491 = vld [vmem:[#allocation7 + $0x3c0] sm:$0xff]
    %v492 = vld [vmem:[#allocation7 + $0x3c8] sm:$0xff]
    %v493 = vld [vmem:[#allocation7 + $0x3d0] sm:$0xff]
    %v494 = vld [vmem:[#allocation7 + $0x3d8] sm:$0xff]
    %v495 = vld [vmem:[#allocation7 + $0x3e0] sm:$0xff]
    %v496 = vld [vmem:[#allocation7 + $0x3e8] sm:$0xff]
    %v497 = vld [vmem:[#allocation7 + $0x3f0] sm:$0xff]
    %v498 = vld [vmem:[#allocation7 + $0x3f8] sm:$0xff]
    %v627 = vunpack.c.l.b16 %v371
    %v628 = vunpack.c.h.b16 %v371
    %v629 = vunpack.c.l.b16 %v372
    %v630 = vunpack.c.h.b16 %v372
    %v631 = vunpack.c.l.b16 %v373
    %v632 = vunpack.c.h.b16 %v373
    %v633 = vunpack.c.l.b16 %v374
    %v634 = vunpack.c.h.b16 %v374
    %v635 = vunpack.c.l.b16 %v375
    %v636 = vunpack.c.h.b16 %v375
    %v637 = vunpack.c.l.b16 %v376
    %v638 = vunpack.c.h.b16 %v376
    %v639 = vunpack.c.l.b16 %v377
    %v640 = vunpack.c.h.b16 %v377
    %v641 = vunpack.c.l.b16 %v378
    %v642 = vunpack.c.h.b16 %v378
    %v643 = vunpack.c.l.b16 %v379
    %v644 = vunpack.c.h.b16 %v379
    %v645 = vunpack.c.l.b16 %v380
    %v646 = vunpack.c.h.b16 %v380
    %v647 = vunpack.c.l.b16 %v381
    %v648 = vunpack.c.h.b16 %v381
    %v649 = vunpack.c.l.b16 %v382
    %v650 = vunpack.c.h.b16 %v382
    %v651 = vunpack.c.l.b16 %v383
    %v652 = vunpack.c.h.b16 %v383
    %v653 = vunpack.c.l.b16 %v384
    %v654 = vunpack.c.h.b16 %v384
    %v655 = vunpack.c.l.b16 %v385
    %v656 = vunpack.c.h.b16 %v385
    %v657 = vunpack.c.l.b16 %v386
    %v658 = vunpack.c.h.b16 %v386
    %v659 = vunpack.c.l.b16 %v387
    %v660 = vunpack.c.h.b16 %v387
    %v661 = vunpack.c.l.b16 %v388
    %v662 = vunpack.c.h.b16 %v388
    %v663 = vunpack.c.l.b16 %v389
    %v664 = vunpack.c.h.b16 %v389
    %v665 = vunpack.c.l.b16 %v390
    %v666 = vunpack.c.h.b16 %v390
    %v667 = vunpack.c.l.b16 %v391
    %v668 = vunpack.c.h.b16 %v391
    %v669 = vunpack.c.l.b16 %v392
    %v670 = vunpack.c.h.b16 %v392
    %v671 = vunpack.c.l.b16 %v393
    %v672 = vunpack.c.h.b16 %v393
    %v673 = vunpack.c.l.b16 %v394
    %v674 = vunpack.c.h.b16 %v394
    %v675 = vunpack.c.l.b16 %v395
    %v676 = vunpack.c.h.b16 %v395
    %v677 = vunpack.c.l.b16 %v396
    %v678 = vunpack.c.h.b16 %v396
    %v679 = vunpack.c.l.b16 %v397
    %v680 = vunpack.c.h.b16 %v397
    %v681 = vunpack.c.l.b16 %v398
    %v682 = vunpack.c.h.b16 %v398
    %v683 = vunpack.c.l.b16 %v399
    %v684 = vunpack.c.h.b16 %v399
    %v685 = vunpack.c.l.b16 %v400
    %v686 = vunpack.c.h.b16 %v400
    %v687 = vunpack.c.l.b16 %v401
    %v688 = vunpack.c.h.b16 %v401
    %v689 = vunpack.c.l.b16 %v402
    %v690 = vunpack.c.h.b16 %v402
    %v691 = vunpack.c.l.b16 %v403
    %v692 = vunpack.c.h.b16 %v403
    %v693 = vunpack.c.l.b16 %v404
    %v694 = vunpack.c.h.b16 %v404
    %v695 = vunpack.c.l.b16 %v405
    %v696 = vunpack.c.h.b16 %v405
    %v697 = vunpack.c.l.b16 %v406
    %v698 = vunpack.c.h.b16 %v406
    %v699 = vunpack.c.l.b16 %v407
    %v700 = vunpack.c.h.b16 %v407
    %v701 = vunpack.c.l.b16 %v408
    %v702 = vunpack.c.h.b16 %v408
    %v703 = vunpack.c.l.b16 %v409
    %v704 = vunpack.c.h.b16 %v409
    %v705 = vunpack.c.l.b16 %v410
    %v706 = vunpack.c.h.b16 %v410
    %v707 = vunpack.c.l.b16 %v411
    %v708 = vunpack.c.h.b16 %v411
    %v709 = vunpack.c.l.b16 %v412
    %v710 = vunpack.c.h.b16 %v412
    %v711 = vunpack.c.l.b16 %v413
    %v712 = vunpack.c.h.b16 %v413
    %v713 = vunpack.c.l.b16 %v414
    %v714 = vunpack.c.h.b16 %v414
    %v715 = vunpack.c.l.b16 %v415
    %v716 = vunpack.c.h.b16 %v415
    %v717 = vunpack.c.l.b16 %v416
    %v718 = vunpack.c.h.b16 %v416
    %v719 = vunpack.c.l.b16 %v417
    %v720 = vunpack.c.h.b16 %v417
    %v721 = vunpack.c.l.b16 %v418
    %v722 = vunpack.c.h.b16 %v418
    %v723 = vunpack.c.l.b16 %v419
    %v724 = vunpack.c.h.b16 %v419
    %v725 = vunpack.c.l.b16 %v420
    %v726 = vunpack.c.h.b16 %v420
    %v727 = vunpack.c.l.b16 %v421
    %v728 = vunpack.c.h.b16 %v421
    %v729 = vunpack.c.l.b16 %v422
    %v730 = vunpack.c.h.b16 %v422
    %v731 = vunpack.c.l.b16 %v423
    %v732 = vunpack.c.h.b16 %v423
    %v733 = vunpack.c.l.b16 %v424
    %v734 = vunpack.c.h.b16 %v424
    %v735 = vunpack.c.l.b16 %v425
    %v736 = vunpack.c.h.b16 %v425
    %v737 = vunpack.c.l.b16 %v426
    %v738 = vunpack.c.h.b16 %v426
    %v739 = vunpack.c.l.b16 %v427
    %v740 = vunpack.c.h.b16 %v427
    %v741 = vunpack.c.l.b16 %v428
    %v742 = vunpack.c.h.b16 %v428
    %v743 = vunpack.c.l.b16 %v429
    %v744 = vunpack.c.h.b16 %v429
    %v745 = vunpack.c.l.b16 %v430
    %v746 = vunpack.c.h.b16 %v430
    %v747 = vunpack.c.l.b16 %v431
    %v748 = vunpack.c.h.b16 %v431
    %v749 = vunpack.c.l.b16 %v432
    %v750 = vunpack.c.h.b16 %v432
    %v751 = vunpack.c.l.b16 %v433
    %v752 = vunpack.c.h.b16 %v433
    %v753 = vunpack.c.l.b16 %v434
    %v754 = vunpack.c.h.b16 %v434
    %v755 = vunpack.c.l.b16 %v435
    %v756 = vunpack.c.h.b16 %v435
    %v757 = vunpack.c.l.b16 %v436
    %v758 = vunpack.c.h.b16 %v436
    %v759 = vunpack.c.l.b16 %v437
    %v760 = vunpack.c.h.b16 %v437
    %v761 = vunpack.c.l.b16 %v438
    %v762 = vunpack.c.h.b16 %v438
    %v763 = vunpack.c.l.b16 %v439
    %v764 = vunpack.c.h.b16 %v439
    %v765 = vunpack.c.l.b16 %v440
    %v766 = vunpack.c.h.b16 %v440
    %v767 = vunpack.c.l.b16 %v441
    %v768 = vunpack.c.h.b16 %v441
    %v769 = vunpack.c.l.b16 %v442
    %v770 = vunpack.c.h.b16 %v442
    %v771 = vunpack.c.l.b16 %v443
    %v772 = vunpack.c.h.b16 %v443
    %v773 = vunpack.c.l.b16 %v444
    %v774 = vunpack.c.h.b16 %v444
    %v775 = vunpack.c.l.b16 %v445
    %v776 = vunpack.c.h.b16 %v445
    %v777 = vunpack.c.l.b16 %v446
    %v778 = vunpack.c.h.b16 %v446
    %v779 = vunpack.c.l.b16 %v447
    %v780 = vunpack.c.h.b16 %v447
    %v781 = vunpack.c.l.b16 %v448
    %v782 = vunpack.c.h.b16 %v448
    %v783 = vunpack.c.l.b16 %v449
    %v784 = vunpack.c.h.b16 %v449
    %v785 = vunpack.c.l.b16 %v450
    %v786 = vunpack.c.h.b16 %v450
    %v787 = vunpack.c.l.b16 %v451
    %v788 = vunpack.c.h.b16 %v451
    %v789 = vunpack.c.l.b16 %v452
    %v790 = vunpack.c.h.b16 %v452
    %v791 = vunpack.c.l.b16 %v453
    %v792 = vunpack.c.h.b16 %v453
    %v793 = vunpack.c.l.b16 %v454
    %v794 = vunpack.c.h.b16 %v454
    %v795 = vunpack.c.l.b16 %v455
    %v796 = vunpack.c.h.b16 %v455
    %v797 = vunpack.c.l.b16 %v456
    %v798 = vunpack.c.h.b16 %v456
    %v799 = vunpack.c.l.b16 %v457
    %v800 = vunpack.c.h.b16 %v457
    %v801 = vunpack.c.l.b16 %v458
    %v802 = vunpack.c.h.b16 %v458
    %v803 = vunpack.c.l.b16 %v459
    %v804 = vunpack.c.h.b16 %v459
    %v805 = vunpack.c.l.b16 %v460
    %v806 = vunpack.c.h.b16 %v460
    %v807 = vunpack.c.l.b16 %v461
    %v808 = vunpack.c.h.b16 %v461
    %v809 = vunpack.c.l.b16 %v462
    %v810 = vunpack.c.h.b16 %v462
    %v811 = vunpack.c.l.b16 %v463
    %v812 = vunpack.c.h.b16 %v463
    %v813 = vunpack.c.l.b16 %v464
    %v814 = vunpack.c.h.b16 %v464
    %v815 = vunpack.c.l.b16 %v465
    %v816 = vunpack.c.h.b16 %v465
    %v817 = vunpack.c.l.b16 %v466
    %v818 = vunpack.c.h.b16 %v466
    %v819 = vunpack.c.l.b16 %v467
    %v820 = vunpack.c.h.b16 %v467
    %v821 = vunpack.c.l.b16 %v468
    %v822 = vunpack.c.h.b16 %v468
    %v823 = vunpack.c.l.b16 %v469
    %v824 = vunpack.c.h.b16 %v469
    %v825 = vunpack.c.l.b16 %v470
    %v826 = vunpack.c.h.b16 %v470
    %v827 = vunpack.c.l.b16 %v471
    %v828 = vunpack.c.h.b16 %v471
    %v829 = vunpack.c.l.b16 %v472
    %v830 = vunpack.c.h.b16 %v472
    %v831 = vunpack.c.l.b16 %v473
    %v832 = vunpack.c.h.b16 %v473
    %v833 = vunpack.c.l.b16 %v474
    %v834 = vunpack.c.h.b16 %v474
    %v835 = vunpack.c.l.b16 %v475
    %v836 = vunpack.c.h.b16 %v475
    %v837 = vunpack.c.l.b16 %v476
    %v838 = vunpack.c.h.b16 %v476
    %v839 = vunpack.c.l.b16 %v477
    %v840 = vunpack.c.h.b16 %v477
    %v841 = vunpack.c.l.b16 %v478
    %v842 = vunpack.c.h.b16 %v478
    %v843 = vunpack.c.l.b16 %v479
    %v844 = vunpack.c.h.b16 %v479
    %v845 = vunpack.c.l.b16 %v480
    %v846 = vunpack.c.h.b16 %v480
    %v847 = vunpack.c.l.b16 %v481
    %v848 = vunpack.c.h.b16 %v481
    %v849 = vunpack.c.l.b16 %v482
    %v850 = vunpack.c.h.b16 %v482
    %v851 = vunpack.c.l.b16 %v483
    %v852 = vunpack.c.h.b16 %v483
    %v853 = vunpack.c.l.b16 %v484
    %v854 = vunpack.c.h.b16 %v484
    %v855 = vunpack.c.l.b16 %v485
    %v856 = vunpack.c.h.b16 %v485
    %v857 = vunpack.c.l.b16 %v486
    %v858 = vunpack.c.h.b16 %v486
    %v859 = vunpack.c.l.b16 %v487
    %v860 = vunpack.c.h.b16 %v487
    %v861 = vunpack.c.l.b16 %v488
    %v862 = vunpack.c.h.b16 %v488
    %v863 = vunpack.c.l.b16 %v489
    %v864 = vunpack.c.h.b16 %v489
    %v865 = vunpack.c.l.b16 %v490
    %v866 = vunpack.c.h.b16 %v490
    %v867 = vunpack.c.l.b16 %v491
    %v868 = vunpack.c.h.b16 %v491
    %v869 = vunpack.c.l.b16 %v492
    %v870 = vunpack.c.h.b16 %v492
    %v871 = vunpack.c.l.b16 %v493
    %v872 = vunpack.c.h.b16 %v493
    %v873 = vunpack.c.l.b16 %v494
    %v874 = vunpack.c.h.b16 %v494
    %v875 = vunpack.c.l.b16 %v495
    %v876 = vunpack.c.h.b16 %v495
    %v877 = vunpack.c.l.b16 %v496
    %v878 = vunpack.c.h.b16 %v496
    %v879 = vunpack.c.l.b16 %v497
    %v880 = vunpack.c.h.b16 %v497
    %v881 = vunpack.c.l.b16 %v498
    %v882 = vunpack.c.h.b16 %v498
    %v883 = vpack.c.b16 %v635, %v627
    %v884 = vpack.c.b16 %v636, %v628
    %v885 = vpack.c.b16 %v637, %v629
    %v886 = vpack.c.b16 %v638, %v630
    %v887 = vpack.c.b16 %v639, %v631
    %v888 = vpack.c.b16 %v640, %v632
    %v889 = vpack.c.b16 %v641, %v633
    %v890 = vpack.c.b16 %v642, %v634
    %v891 = vpack.c.b16 %v651, %v643
    %v892 = vpack.c.b16 %v652, %v644
    %v893 = vpack.c.b16 %v653, %v645
    %v894 = vpack.c.b16 %v654, %v646
    %v895 = vpack.c.b16 %v655, %v647
    %v896 = vpack.c.b16 %v656, %v648
    %v897 = vpack.c.b16 %v657, %v649
    %v898 = vpack.c.b16 %v658, %v650
    %v899 = vpack.c.b16 %v667, %v659
    %v900 = vpack.c.b16 %v668, %v660
    %v901 = vpack.c.b16 %v669, %v661
    %v902 = vpack.c.b16 %v670, %v662
    %v903 = vpack.c.b16 %v671, %v663
    %v904 = vpack.c.b16 %v672, %v664
    %v905 = vpack.c.b16 %v673, %v665
    %v906 = vpack.c.b16 %v674, %v666
    %v907 = vpack.c.b16 %v683, %v675
    %v908 = vpack.c.b16 %v684, %v676
    %v909 = vpack.c.b16 %v685, %v677
    %v910 = vpack.c.b16 %v686, %v678
    %v911 = vpack.c.b16 %v687, %v679
    %v912 = vpack.c.b16 %v688, %v680
    %v913 = vpack.c.b16 %v689, %v681
    %v914 = vpack.c.b16 %v690, %v682
    %v915 = vpack.c.b16 %v699, %v691
    %v916 = vpack.c.b16 %v700, %v692
    %v917 = vpack.c.b16 %v701, %v693
    %v918 = vpack.c.b16 %v702, %v694
    %v919 = vpack.c.b16 %v703, %v695
    %v920 = vpack.c.b16 %v704, %v696
    %v921 = vpack.c.b16 %v705, %v697
    %v922 = vpack.c.b16 %v706, %v698
    %v923 = vpack.c.b16 %v715, %v707
    %v924 = vpack.c.b16 %v716, %v708
    %v925 = vpack.c.b16 %v717, %v709
    %v926 = vpack.c.b16 %v718, %v710
    %v927 = vpack.c.b16 %v719, %v711
    %v928 = vpack.c.b16 %v720, %v712
    %v929 = vpack.c.b16 %v721, %v713
    %v930 = vpack.c.b16 %v722, %v714
    %v931 = vpack.c.b16 %v731, %v723
    %v932 = vpack.c.b16 %v732, %v724
    %v933 = vpack.c.b16 %v733, %v725
    %v934 = vpack.c.b16 %v734, %v726
    %v935 = vpack.c.b16 %v735, %v727
    %v936 = vpack.c.b16 %v736, %v728
    %v937 = vpack.c.b16 %v737, %v729
    %v938 = vpack.c.b16 %v738, %v730
    %v939 = vpack.c.b16 %v747, %v739
    %v940 = vpack.c.b16 %v748, %v740
    %v941 = vpack.c.b16 %v749, %v741
    %v942 = vpack.c.b16 %v750, %v742
    %v943 = vpack.c.b16 %v751, %v743
    %v944 = vpack.c.b16 %v752, %v744
    %v945 = vpack.c.b16 %v753, %v745
    %v946 = vpack.c.b16 %v754, %v746
    %v947 = vpack.c.b16 %v763, %v755
    %v948 = vpack.c.b16 %v764, %v756
    %v949 = vpack.c.b16 %v765, %v757
    %v950 = vpack.c.b16 %v766, %v758
    %v951 = vpack.c.b16 %v767, %v759
    %v952 = vpack.c.b16 %v768, %v760
    %v953 = vpack.c.b16 %v769, %v761
    %v954 = vpack.c.b16 %v770, %v762
    %v955 = vpack.c.b16 %v779, %v771
    %v956 = vpack.c.b16 %v780, %v772
    %v957 = vpack.c.b16 %v781, %v773
    %v958 = vpack.c.b16 %v782, %v774
    %v959 = vpack.c.b16 %v783, %v775
    %v960 = vpack.c.b16 %v784, %v776
    %v961 = vpack.c.b16 %v785, %v777
    %v962 = vpack.c.b16 %v786, %v778
    %v963 = vpack.c.b16 %v795, %v787
    %v964 = vpack.c.b16 %v796, %v788
    %v965 = vpack.c.b16 %v797, %v789
    %v966 = vpack.c.b16 %v798, %v790
    %v967 = vpack.c.b16 %v799, %v791
    %v968 = vpack.c.b16 %v800, %v792
    %v969 = vpack.c.b16 %v801, %v793
    %v970 = vpack.c.b16 %v802, %v794
    %v971 = vpack.c.b16 %v811, %v803
    %v972 = vpack.c.b16 %v812, %v804
    %v973 = vpack.c.b16 %v813, %v805
    %v974 = vpack.c.b16 %v814, %v806
    %v975 = vpack.c.b16 %v815, %v807
    %v976 = vpack.c.b16 %v816, %v808
    %v977 = vpack.c.b16 %v817, %v809
    %v978 = vpack.c.b16 %v818, %v810
    %v979 = vpack.c.b16 %v827, %v819
    %v980 = vpack.c.b16 %v828, %v820
    %v981 = vpack.c.b16 %v829, %v821
    %v982 = vpack.c.b16 %v830, %v822
    %v983 = vpack.c.b16 %v831, %v823
    %v984 = vpack.c.b16 %v832, %v824
    %v985 = vpack.c.b16 %v833, %v825
    %v986 = vpack.c.b16 %v834, %v826
    %v987 = vpack.c.b16 %v843, %v835
    %v988 = vpack.c.b16 %v844, %v836
    %v989 = vpack.c.b16 %v845, %v837
    %v990 = vpack.c.b16 %v846, %v838
    %v991 = vpack.c.b16 %v847, %v839
    %v992 = vpack.c.b16 %v848, %v840
    %v993 = vpack.c.b16 %v849, %v841
    %v994 = vpack.c.b16 %v850, %v842
    %v995 = vpack.c.b16 %v859, %v851
    %v996 = vpack.c.b16 %v860, %v852
    %v997 = vpack.c.b16 %v861, %v853
    %v998 = vpack.c.b16 %v862, %v854
    %v999 = vpack.c.b16 %v863, %v855
    %v1000 = vpack.c.b16 %v864, %v856
    %v1001 = vpack.c.b16 %v865, %v857
    %v1002 = vpack.c.b16 %v866, %v858
    %v1003 = vpack.c.b16 %v875, %v867
    %v1004 = vpack.c.b16 %v876, %v868
    %v1005 = vpack.c.b16 %v877, %v869
    %v1006 = vpack.c.b16 %v878, %v870
    %v1007 = vpack.c.b16 %v879, %v871
    %v1008 = vpack.c.b16 %v880, %v872
    %v1009 = vpack.c.b16 %v881, %v873
    %v1010 = vpack.c.b16 %v882, %v874
    %1139 = vmatprep.subr.bf16.mxu0 %v884
    %1140 = vmatpush1.bf16.msra.mxu0 %v883
    %1141 = vmatprep.subr.bf16.mxu0 %v892
    %1142 = vmatpush1.bf16.msra.mxu0 %v891
    %1143 = vmatprep.subr.bf16.mxu0 %v900
    %1144 = vmatpush1.bf16.msra.mxu0 %v899
    %1145 = vmatprep.subr.bf16.mxu0 %v908
    %1146 = vmatpush1.bf16.msra.mxu0 %v907
    %1147 = vmatprep.subr.bf16.mxu0 %v916
    %1148 = vmatpush1.bf16.msra.mxu0 %v915
    %1149 = vmatprep.subr.bf16.mxu0 %v924
    %1150 = vmatpush1.bf16.msra.mxu0 %v923
    %1151 = vmatprep.subr.bf16.mxu0 %v932
    %1152 = vmatpush1.bf16.msra.mxu0 %v931
    %1153 = vmatprep.subr.bf16.mxu0 %v940
    %1154 = vmatpush1.bf16.msra.mxu0 %v939
    %1155 = vmatprep.subr.bf16.mxu0 %v948
    %1156 = vmatpush1.bf16.msra.mxu0 %v947
    %1157 = vmatprep.subr.bf16.mxu0 %v956
    %1158 = vmatpush1.bf16.msra.mxu0 %v955
    %1159 = vmatprep.subr.bf16.mxu0 %v964
    %1160 = vmatpush1.bf16.msra.mxu0 %v963
    %1161 = vmatprep.subr.bf16.mxu0 %v972
    %1162 = vmatpush1.bf16.msra.mxu0 %v971
    %1163 = vmatprep.subr.bf16.mxu0 %v980
    %1164 = vmatpush1.bf16.msra.mxu0 %v979
    %1165 = vmatprep.subr.bf16.mxu0 %v988
    %1166 = vmatpush1.bf16.msra.mxu0 %v987
    %1167 = vmatprep.subr.bf16.mxu0 %v996
    %1168 = vmatpush1.bf16.msra.mxu0 %v995
    %1169 = vmatprep.subr.bf16.mxu0 %v1004
    %1170 = vmatpush1.bf16.msra.mxu0 %v1003
    %1171 = vmatprep.mubr.bf16.mxu0 %v370
    %1172 = vmatmul.mubr.bf16.gmra.mrb[0].mxu0 %v369
    %v1173 = vpop.f32.mrb[0].mxu0
    %v1174 = vadd.f32 0.0, %v1173
    %v1175 = vpop.f32.mrb[0].mxu0
    %v1176 = vadd.f32 0.0, %v1175
    %v1177 = vpop.f32.mrb[0].mxu0
    %v1178 = vadd.f32 0.0, %v1177
    %v1179 = vpop.f32.mrb[0].mxu0
    %v1180 = vadd.f32 0.0, %v1179
    %1181 = vdwg.mxu0
    %1182 = vmatprep.subr.bf16.mxu0 %v886
    %1183 = vmatpush1.bf16.msra.mxu0 %v885
    %1184 = vmatprep.subr.bf16.mxu0 %v894
    %1185 = vmatpush1.bf16.msra.mxu0 %v893
    %1186 = vmatprep.subr.bf16.mxu0 %v902
    %1187 = vmatpush1.bf16.msra.mxu0 %v901
    %1188 = vmatprep.subr.bf16.mxu0 %v910
    %1189 = vmatpush1.bf16.msra.mxu0 %v909
    %1190 = vmatprep.subr.bf16.mxu0 %v918
    %1191 = vmatpush1.bf16.msra.mxu0 %v917
    %1192 = vmatprep.subr.bf16.mxu0 %v926
    %1193 = vmatpush1.bf16.msra.mxu0 %v925
    %1194 = vmatprep.subr.bf16.mxu0 %v934
    %1195 = vmatpush1.bf16.msra.mxu0 %v933
    %1196 = vmatprep.subr.bf16.mxu0 %v942
    %1197 = vmatpush1.bf16.msra.mxu0 %v941
    %1198 = vmatprep.subr.bf16.mxu0 %v950
    %1199 = vmatpush1.bf16.msra.mxu0 %v949
    %1200 = vmatprep.subr.bf16.mxu0 %v958
    %1201 = vmatpush1.bf16.msra.mxu0 %v957
    %1202 = vmatprep.subr.bf16.mxu0 %v966
    %1203 = vmatpush1.bf16.msra.mxu0 %v965
    %1204 = vmatprep.subr.bf16.mxu0 %v974
    %1205 = vmatpush1.bf16.msra.mxu0 %v973
    %1206 = vmatprep.subr.bf16.mxu0 %v982
    %1207 = vmatpush1.bf16.msra.mxu0 %v981
    %1208 = vmatprep.subr.bf16.mxu0 %v990
    %1209 = vmatpush1.bf16.msra.mxu0 %v989
    %1210 = vmatprep.subr.bf16.mxu0 %v998
    %1211 = vmatpush1.bf16.msra.mxu0 %v997
    %1212 = vmatprep.subr.bf16.mxu0 %v1006
    %1213 = vmatpush1.bf16.msra.mxu0 %v1005
    %1214 = vmatprep.mubr.bf16.mxu0 %v370
    %1215 = vmatmul.mubr.bf16.gmra.mrb[0].mxu0 %v369
    %v1216 = vpop.f32.mrb[0].mxu0
    %v1217 = vadd.f32 0.0, %v1216
    %v1218 = vpop.f32.mrb[0].mxu0
    %v1219 = vadd.f32 0.0, %v1218
    %v1220 = vpop.f32.mrb[0].mxu0
    %v1221 = vadd.f32 0.0, %v1220
    %v1222 = vpop.f32.mrb[0].mxu0
    %v1223 = vadd.f32 0.0, %v1222
    %1224 = vdwg.mxu0
    %1225 = vmatprep.subr.bf16.mxu0 %v888
    %1226 = vmatpush1.bf16.msra.mxu0 %v887
    %1227 = vmatprep.subr.bf16.mxu0 %v896
    %1228 = vmatpush1.bf16.msra.mxu0 %v895
    %1229 = vmatprep.subr.bf16.mxu0 %v904
    %1230 = vmatpush1.bf16.msra.mxu0 %v903
    %1231 = vmatprep.subr.bf16.mxu0 %v912
    %1232 = vmatpush1.bf16.msra.mxu0 %v911
    %1233 = vmatprep.subr.bf16.mxu0 %v920
    %1234 = vmatpush1.bf16.msra.mxu0 %v919
    %1235 = vmatprep.subr.bf16.mxu0 %v928
    %1236 = vmatpush1.bf16.msra.mxu0 %v927
    %1237 = vmatprep.subr.bf16.mxu0 %v936
    %1238 = vmatpush1.bf16.msra.mxu0 %v935
    %1239 = vmatprep.subr.bf16.mxu0 %v944
    %1240 = vmatpush1.bf16.msra.mxu0 %v943
    %1241 = vmatprep.subr.bf16.mxu0 %v952
    %1242 = vmatpush1.bf16.msra.mxu0 %v951
    %1243 = vmatprep.subr.bf16.mxu0 %v960
    %1244 = vmatpush1.bf16.msra.mxu0 %v959
    %1245 = vmatprep.subr.bf16.mxu0 %v968
    %1246 = vmatpush1.bf16.msra.mxu0 %v967
    %1247 = vmatprep.subr.bf16.mxu0 %v976
    %1248 = vmatpush1.bf16.msra.mxu0 %v975
    %1249 = vmatprep.subr.bf16.mxu0 %v984
    %1250 = vmatpush1.bf16.msra.mxu0 %v983
    %1251 = vmatprep.subr.bf16.mxu0 %v992
    %1252 = vmatpush1.bf16.msra.mxu0 %v991
    %1253 = vmatprep.subr.bf16.mxu0 %v1000
    %1254 = vmatpush1.bf16.msra.mxu0 %v999
    %1255 = vmatprep.subr.bf16.mxu0 %v1008
    %1256 = vmatpush1.bf16.msra.mxu0 %v1007
    %1257 = vmatprep.mubr.bf16.mxu0 %v370
    %1258 = vmatmul.mubr.bf16.gmra.mrb[0].mxu0 %v369
    %v1259 = vpop.f32.mrb[0].mxu0
    %v1260 = vadd.f32 0.0, %v1259
    %v1261 = vpop.f32.mrb[0].mxu0
    %v1262 = vadd.f32 0.0, %v1261
    %v1263 = vpop.f32.mrb[0].mxu0
    %v1264 = vadd.f32 0.0, %v1263
    %v1265 = vpop.f32.mrb[0].mxu0
    %v1266 = vadd.f32 0.0, %v1265
    %1267 = vdwg.mxu0
    %1268 = vmatprep.subr.bf16.mxu0 %v890
    %1269 = vmatpush1.bf16.msra.mxu0 %v889
    %1270 = vmatprep.subr.bf16.mxu0 %v898
    %1271 = vmatpush1.bf16.msra.mxu0 %v897
    %1272 = vmatprep.subr.bf16.mxu0 %v906
    %1273 = vmatpush1.bf16.msra.mxu0 %v905
    %1274 = vmatprep.subr.bf16.mxu0 %v914
    %1275 = vmatpush1.bf16.msra.mxu0 %v913
    %1276 = vmatprep.subr.bf16.mxu0 %v922
    %1277 = vmatpush1.bf16.msra.mxu0 %v921
    %1278 = vmatprep.subr.bf16.mxu0 %v930
    %1279 = vmatpush1.bf16.msra.mxu0 %v929
    %1280 = vmatprep.subr.bf16.mxu0 %v938
    %1281 = vmatpush1.bf16.msra.mxu0 %v937
    %1282 = vmatprep.subr.bf16.mxu0 %v946
    %1283 = vmatpush1.bf16.msra.mxu0 %v945
    %1284 = vmatprep.subr.bf16.mxu0 %v954
    %1285 = vmatpush1.bf16.msra.mxu0 %v953
    %1286 = vmatprep.subr.bf16.mxu0 %v962
    %1287 = vmatpush1.bf16.msra.mxu0 %v961
    %1288 = vmatprep.subr.bf16.mxu0 %v970
    %1289 = vmatpush1.bf16.msra.mxu0 %v969
    %1290 = vmatprep.subr.bf16.mxu0 %v978
    %1291 = vmatpush1.bf16.msra.mxu0 %v977
    %1292 = vmatprep.subr.bf16.mxu0 %v986
    %1293 = vmatpush1.bf16.msra.mxu0 %v985
    %1294 = vmatprep.subr.bf16.mxu0 %v994
    %1295 = vmatpush1.bf16.msra.mxu0 %v993
    %1296 = vmatprep.subr.bf16.mxu0 %v1002
    %1297 = vmatpush1.bf16.msra.mxu0 %v1001
    %1298 = vmatprep.subr.bf16.mxu0 %v1010
    %1299 = vmatpush1.bf16.msra.mxu0 %v1009
    %1300 = vmatprep.mubr.bf16.mxu0 %v370
    %1301 = vmatmul.mubr.bf16.gmra.mrb[0].mxu0 %v369
    %v1302 = vpop.f32.mrb[0].mxu0
    %v1303 = vadd.f32 0.0, %v1302
    %v1304 = vpop.f32.mrb[0].mxu0
    %v1305 = vadd.f32 0.0, %v1304
    %v1306 = vpop.f32.mrb[0].mxu0
    %v1307 = vadd.f32 0.0, %v1306
    %v1308 = vpop.f32.mrb[0].mxu0
    %v1309 = vadd.f32 0.0, %v1308
    %1310 = vdwg.mxu0
    %v1313 = vunpack.c.l.b16 %v369
    %v1314 = vunpack.c.l.b16 %v370
    %v1315 = vunpack.c.h.b16 %v369
    %v1316 = vunpack.c.h.b16 %v370
    %v1317 = vld [vmem:[#allocation8] sm:$0xff]
    %v1318 = vld [vmem:[#allocation8 + $0x8] sm:$0xff]
    %v1319 = vld [vmem:[#allocation8 + $0x10] sm:$0xff]
    %v1320 = vld [vmem:[#allocation8 + $0x18] sm:$0xff]
    %v1321 = vld [vmem:[#allocation8 + $0x20] sm:$0xff]
    %v1322 = vld [vmem:[#allocation8 + $0x28] sm:$0xff]
    %v1323 = vld [vmem:[#allocation8 + $0x30] sm:$0xff]
    %v1324 = vld [vmem:[#allocation8 + $0x38] sm:$0xff]
    %v1325 = vld [vmem:[#allocation8 + $0x40] sm:$0xff]
    %v1326 = vld [vmem:[#allocation8 + $0x48] sm:$0xff]
    %v1327 = vld [vmem:[#allocation8 + $0x50] sm:$0xff]
    %v1328 = vld [vmem:[#allocation8 + $0x58] sm:$0xff]
    %v1329 = vld [vmem:[#allocation8 + $0x60] sm:$0xff]
    %v1330 = vld [vmem:[#allocation8 + $0x68] sm:$0xff]
    %v1331 = vld [vmem:[#allocation8 + $0x70] sm:$0xff]
    %v1332 = vld [vmem:[#allocation8 + $0x78] sm:$0xff]
    %v1333 = vld [vmem:[#allocation8 + $0x80] sm:$0xff]
    %v1334 = vld [vmem:[#allocation8 + $0x88] sm:$0xff]
    %v1335 = vld [vmem:[#allocation8 + $0x90] sm:$0xff]
    %v1336 = vld [vmem:[#allocation8 + $0x98] sm:$0xff]
    %v1337 = vld [vmem:[#allocation8 + $0xa0] sm:$0xff]
    %v1338 = vld [vmem:[#allocation8 + $0xa8] sm:$0xff]
    %v1339 = vld [vmem:[#allocation8 + $0xb0] sm:$0xff]
    %v1340 = vld [vmem:[#allocation8 + $0xb8] sm:$0xff]
    %v1341 = vld [vmem:[#allocation8 + $0xc0] sm:$0xff]
    %v1342 = vld [vmem:[#allocation8 + $0xc8] sm:$0xff]
    %v1343 = vld [vmem:[#allocation8 + $0xd0] sm:$0xff]
    %v1344 = vld [vmem:[#allocation8 + $0xd8] sm:$0xff]
    %v1345 = vld [vmem:[#allocation8 + $0xe0] sm:$0xff]
    %v1346 = vld [vmem:[#allocation8 + $0xe8] sm:$0xff]
    %v1347 = vld [vmem:[#allocation8 + $0xf0] sm:$0xff]
    %v1348 = vld [vmem:[#allocation8 + $0xf8] sm:$0xff]
    %v1349 = vld [vmem:[#allocation8 + $0x100] sm:$0xff]
    %v1350 = vld [vmem:[#allocation8 + $0x108] sm:$0xff]
    %v1351 = vld [vmem:[#allocation8 + $0x110] sm:$0xff]
    %v1352 = vld [vmem:[#allocation8 + $0x118] sm:$0xff]
    %v1353 = vld [vmem:[#allocation8 + $0x120] sm:$0xff]
    %v1354 = vld [vmem:[#allocation8 + $0x128] sm:$0xff]
    %v1355 = vld [vmem:[#allocation8 + $0x130] sm:$0xff]
    %v1356 = vld [vmem:[#allocation8 + $0x138] sm:$0xff]
    %v1357 = vld [vmem:[#allocation8 + $0x140] sm:$0xff]
    %v1358 = vld [vmem:[#allocation8 + $0x148] sm:$0xff]
    %v1359 = vld [vmem:[#allocation8 + $0x150] sm:$0xff]
    %v1360 = vld [vmem:[#allocation8 + $0x158] sm:$0xff]
    %v1361 = vld [vmem:[#allocation8 + $0x160] sm:$0xff]
    %v1362 = vld [vmem:[#allocation8 + $0x168] sm:$0xff]
    %v1363 = vld [vmem:[#allocation8 + $0x170] sm:$0xff]
    %v1364 = vld [vmem:[#allocation8 + $0x178] sm:$0xff]
    %v1365 = vld [vmem:[#allocation8 + $0x180] sm:$0xff]
    %v1366 = vld [vmem:[#allocation8 + $0x188] sm:$0xff]
    %v1367 = vld [vmem:[#allocation8 + $0x190] sm:$0xff]
    %v1368 = vld [vmem:[#allocation8 + $0x198] sm:$0xff]
    %v1369 = vld [vmem:[#allocation8 + $0x1a0] sm:$0xff]
    %v1370 = vld [vmem:[#allocation8 + $0x1a8] sm:$0xff]
    %v1371 = vld [vmem:[#allocation8 + $0x1b0] sm:$0xff]
    %v1372 = vld [vmem:[#allocation8 + $0x1b8] sm:$0xff]
    %v1373 = vld [vmem:[#allocation8 + $0x1c0] sm:$0xff]
    %v1374 = vld [vmem:[#allocation8 + $0x1c8] sm:$0xff]
    %v1375 = vld [vmem:[#allocation8 + $0x1d0] sm:$0xff]
    %v1376 = vld [vmem:[#allocation8 + $0x1d8] sm:$0xff]
    %v1377 = vld [vmem:[#allocation8 + $0x1e0] sm:$0xff]
    %v1378 = vld [vmem:[#allocation8 + $0x1e8] sm:$0xff]
    %v1379 = vld [vmem:[#allocation8 + $0x1f0] sm:$0xff]
    %v1380 = vld [vmem:[#allocation8 + $0x1f8] sm:$0xff]
    %v1381 = vld [vmem:[#allocation8 + $0x200] sm:$0xff]
    %v1382 = vld [vmem:[#allocation8 + $0x208] sm:$0xff]
    %v1383 = vld [vmem:[#allocation8 + $0x210] sm:$0xff]
    %v1384 = vld [vmem:[#allocation8 + $0x218] sm:$0xff]
    %v1385 = vld [vmem:[#allocation8 + $0x220] sm:$0xff]
    %v1386 = vld [vmem:[#allocation8 + $0x228] sm:$0xff]
    %v1387 = vld [vmem:[#allocation8 + $0x230] sm:$0xff]
    %v1388 = vld [vmem:[#allocation8 + $0x238] sm:$0xff]
    %v1389 = vld [vmem:[#allocation8 + $0x240] sm:$0xff]
    %v1390 = vld [vmem:[#allocation8 + $0x248] sm:$0xff]
    %v1391 = vld [vmem:[#allocation8 + $0x250] sm:$0xff]
    %v1392 = vld [vmem:[#allocation8 + $0x258] sm:$0xff]
    %v1393 = vld [vmem:[#allocation8 + $0x260] sm:$0xff]
    %v1394 = vld [vmem:[#allocation8 + $0x268] sm:$0xff]
    %v1395 = vld [vmem:[#allocation8 + $0x270] sm:$0xff]
    %v1396 = vld [vmem:[#allocation8 + $0x278] sm:$0xff]
    %v1397 = vld [vmem:[#allocation8 + $0x280] sm:$0xff]
    %v1398 = vld [vmem:[#allocation8 + $0x288] sm:$0xff]
    %v1399 = vld [vmem:[#allocation8 + $0x290] sm:$0xff]
    %v1400 = vld [vmem:[#allocation8 + $0x298] sm:$0xff]
    %v1401 = vld [vmem:[#allocation8 + $0x2a0] sm:$0xff]
    %v1402 = vld [vmem:[#allocation8 + $0x2a8] sm:$0xff]
    %v1403 = vld [vmem:[#allocation8 + $0x2b0] sm:$0xff]
    %v1404 = vld [vmem:[#allocation8 + $0x2b8] sm:$0xff]
    %v1405 = vld [vmem:[#allocation8 + $0x2c0] sm:$0xff]
    %v1406 = vld [vmem:[#allocation8 + $0x2c8] sm:$0xff]
    %v1407 = vld [vmem:[#allocation8 + $0x2d0] sm:$0xff]
    %v1408 = vld [vmem:[#allocation8 + $0x2d8] sm:$0xff]
    %v1409 = vld [vmem:[#allocation8 + $0x2e0] sm:$0xff]
    %v1410 = vld [vmem:[#allocation8 + $0x2e8] sm:$0xff]
    %v1411 = vld [vmem:[#allocation8 + $0x2f0] sm:$0xff]
    %v1412 = vld [vmem:[#allocation8 + $0x2f8] sm:$0xff]
    %v1413 = vld [vmem:[#allocation8 + $0x300] sm:$0xff]
    %v1414 = vld [vmem:[#allocation8 + $0x308] sm:$0xff]
    %v1415 = vld [vmem:[#allocation8 + $0x310] sm:$0xff]
    %v1416 = vld [vmem:[#allocation8 + $0x318] sm:$0xff]
    %v1417 = vld [vmem:[#allocation8 + $0x320] sm:$0xff]
    %v1418 = vld [vmem:[#allocation8 + $0x328] sm:$0xff]
    %v1419 = vld [vmem:[#allocation8 + $0x330] sm:$0xff]
    %v1420 = vld [vmem:[#allocation8 + $0x338] sm:$0xff]
    %v1421 = vld [vmem:[#allocation8 + $0x340] sm:$0xff]
    %v1422 = vld [vmem:[#allocation8 + $0x348] sm:$0xff]
    %v1423 = vld [vmem:[#allocation8 + $0x350] sm:$0xff]
    %v1424 = vld [vmem:[#allocation8 + $0x358] sm:$0xff]
    %v1425 = vld [vmem:[#allocation8 + $0x360] sm:$0xff]
    %v1426 = vld [vmem:[#allocation8 + $0x368] sm:$0xff]
    %v1427 = vld [vmem:[#allocation8 + $0x370] sm:$0xff]
    %v1428 = vld [vmem:[#allocation8 + $0x378] sm:$0xff]
    %v1429 = vld [vmem:[#allocation8 + $0x380] sm:$0xff]
    %v1430 = vld [vmem:[#allocation8 + $0x388] sm:$0xff]
    %v1431 = vld [vmem:[#allocation8 + $0x390] sm:$0xff]
    %v1432 = vld [vmem:[#allocation8 + $0x398] sm:$0xff]
    %v1433 = vld [vmem:[#allocation8 + $0x3a0] sm:$0xff]
    %v1434 = vld [vmem:[#allocation8 + $0x3a8] sm:$0xff]
    %v1435 = vld [vmem:[#allocation8 + $0x3b0] sm:$0xff]
    %v1436 = vld [vmem:[#allocation8 + $0x3b8] sm:$0xff]
    %v1437 = vld [vmem:[#allocation8 + $0x3c0] sm:$0xff]
    %v1438 = vld [vmem:[#allocation8 + $0x3c8] sm:$0xff]
    %v1439 = vld [vmem:[#allocation8 + $0x3d0] sm:$0xff]
    %v1440 = vld [vmem:[#allocation8 + $0x3d8] sm:$0xff]
    %v1441 = vld [vmem:[#allocation8 + $0x3e0] sm:$0xff]
    %v1442 = vld [vmem:[#allocation8 + $0x3e8] sm:$0xff]
    %v1443 = vld [vmem:[#allocation8 + $0x3f0] sm:$0xff]
    %v1444 = vld [vmem:[#allocation8 + $0x3f8] sm:$0xff]
    %v1445 = vpack.c.b16 %v1313, %v1313
    %v1446 = vpack.c.b16 %v1314, %v1314
    %v1447 = vpack.c.b16 %v1315, %v1315
    %v1448 = vpack.c.b16 %v1316, %v1316
    %v1449 = vunpack.c.l.b16 %v1445
    %v1450 = vunpack.c.l.b16 %v1446
    %v1451 = vunpack.c.l.b16 %v1447
    %v1452 = vunpack.c.l.b16 %v1448
    %v1453 = vrot.slane %v1449, 7
    %v1454 = vrot.slane %v1451, 6
    %vm1455 = vcmask 1041409
    %v1456 = vsel %vm1455, %v1454, %v1453
    %v1457 = vrot.slane %v1450, 7
    %v1458 = vrot.slane %v1452, 6
    %v1459 = vsel %vm1455, %v1458, %v1457
    %v1460 = vpack.c.b16 %v1456, %v1456
    %v1461 = vpack.c.b16 %v1459, %v1459
    %v1592 = vunpack.c.l.b16 %v1317
    %v1593 = vunpack.c.h.b16 %v1317
    %v1594 = vunpack.c.l.b16 %v1318
    %v1595 = vunpack.c.h.b16 %v1318
    %v1596 = vunpack.c.l.b16 %v1319
    %v1597 = vunpack.c.h.b16 %v1319
    %v1598 = vunpack.c.l.b16 %v1320
    %v1599 = vunpack.c.h.b16 %v1320
    %v1600 = vunpack.c.l.b16 %v1321
    %v1601 = vunpack.c.h.b16 %v1321
    %v1602 = vunpack.c.l.b16 %v1322
    %v1603 = vunpack.c.h.b16 %v1322
    %v1604 = vunpack.c.l.b16 %v1323
    %v1605 = vunpack.c.h.b16 %v1323
    %v1606 = vunpack.c.l.b16 %v1324
    %v1607 = vunpack.c.h.b16 %v1324
    %v1608 = vunpack.c.l.b16 %v1325
    %v1609 = vunpack.c.h.b16 %v1325
    %v1610 = vunpack.c.l.b16 %v1326
    %v1611 = vunpack.c.h.b16 %v1326
    %v1612 = vunpack.c.l.b16 %v1327
    %v1613 = vunpack.c.h.b16 %v1327
    %v1614 = vunpack.c.l.b16 %v1328
    %v1615 = vunpack.c.h.b16 %v1328
    %v1616 = vunpack.c.l.b16 %v1329
    %v1617 = vunpack.c.h.b16 %v1329
    %v1618 = vunpack.c.l.b16 %v1330
    %v1619 = vunpack.c.h.b16 %v1330
    %v1620 = vunpack.c.l.b16 %v1331
    %v1621 = vunpack.c.h.b16 %v1331
    %v1622 = vunpack.c.l.b16 %v1332
    %v1623 = vunpack.c.h.b16 %v1332
    %v1624 = vunpack.c.l.b16 %v1333
    %v1625 = vunpack.c.h.b16 %v1333
    %v1626 = vunpack.c.l.b16 %v1334
    %v1627 = vunpack.c.h.b16 %v1334
    %v1628 = vunpack.c.l.b16 %v1335
    %v1629 = vunpack.c.h.b16 %v1335
    %v1630 = vunpack.c.l.b16 %v1336
    %v1631 = vunpack.c.h.b16 %v1336
    %v1632 = vunpack.c.l.b16 %v1337
    %v1633 = vunpack.c.h.b16 %v1337
    %v1634 = vunpack.c.l.b16 %v1338
    %v1635 = vunpack.c.h.b16 %v1338
    %v1636 = vunpack.c.l.b16 %v1339
    %v1637 = vunpack.c.h.b16 %v1339
    %v1638 = vunpack.c.l.b16 %v1340
    %v1639 = vunpack.c.h.b16 %v1340
    %v1640 = vunpack.c.l.b16 %v1341
    %v1641 = vunpack.c.h.b16 %v1341
    %v1642 = vunpack.c.l.b16 %v1342
    %v1643 = vunpack.c.h.b16 %v1342
    %v1644 = vunpack.c.l.b16 %v1343
    %v1645 = vunpack.c.h.b16 %v1343
    %v1646 = vunpack.c.l.b16 %v1344
    %v1647 = vunpack.c.h.b16 %v1344
    %v1648 = vunpack.c.l.b16 %v1345
    %v1649 = vunpack.c.h.b16 %v1345
    %v1650 = vunpack.c.l.b16 %v1346
    %v1651 = vunpack.c.h.b16 %v1346
    %v1652 = vunpack.c.l.b16 %v1347
    %v1653 = vunpack.c.h.b16 %v1347
    %v1654 = vunpack.c.l.b16 %v1348
    %v1655 = vunpack.c.h.b16 %v1348
    %v1656 = vunpack.c.l.b16 %v1349
    %v1657 = vunpack.c.h.b16 %v1349
    %v1658 = vunpack.c.l.b16 %v1350
    %v1659 = vunpack.c.h.b16 %v1350
    %v1660 = vunpack.c.l.b16 %v1351
    %v1661 = vunpack.c.h.b16 %v1351
    %v1662 = vunpack.c.l.b16 %v1352
    %v1663 = vunpack.c.h.b16 %v1352
    %v1664 = vunpack.c.l.b16 %v1353
    %v1665 = vunpack.c.h.b16 %v1353
    %v1666 = vunpack.c.l.b16 %v1354
    %v1667 = vunpack.c.h.b16 %v1354
    %v1668 = vunpack.c.l.b16 %v1355
    %v1669 = vunpack.c.h.b16 %v1355
    %v1670 = vunpack.c.l.b16 %v1356
    %v1671 = vunpack.c.h.b16 %v1356
    %v1672 = vunpack.c.l.b16 %v1357
    %v1673 = vunpack.c.h.b16 %v1357
    %v1674 = vunpack.c.l.b16 %v1358
    %v1675 = vunpack.c.h.b16 %v1358
    %v1676 = vunpack.c.l.b16 %v1359
    %v1677 = vunpack.c.h.b16 %v1359
    %v1678 = vunpack.c.l.b16 %v1360
    %v1679 = vunpack.c.h.b16 %v1360
    %v1680 = vunpack.c.l.b16 %v1361
    %v1681 = vunpack.c.h.b16 %v1361
    %v1682 = vunpack.c.l.b16 %v1362
    %v1683 = vunpack.c.h.b16 %v1362
    %v1684 = vunpack.c.l.b16 %v1363
    %v1685 = vunpack.c.h.b16 %v1363
    %v1686 = vunpack.c.l.b16 %v1364
    %v1687 = vunpack.c.h.b16 %v1364
    %v1688 = vunpack.c.l.b16 %v1365
    %v1689 = vunpack.c.h.b16 %v1365
    %v1690 = vunpack.c.l.b16 %v1366
    %v1691 = vunpack.c.h.b16 %v1366
    %v1692 = vunpack.c.l.b16 %v1367
    %v1693 = vunpack.c.h.b16 %v1367
    %v1694 = vunpack.c.l.b16 %v1368
    %v1695 = vunpack.c.h.b16 %v1368
    %v1696 = vunpack.c.l.b16 %v1369
    %v1697 = vunpack.c.h.b16 %v1369
    %v1698 = vunpack.c.l.b16 %v1370
    %v1699 = vunpack.c.h.b16 %v1370
    %v1700 = vunpack.c.l.b16 %v1371
    %v1701 = vunpack.c.h.b16 %v1371
    %v1702 = vunpack.c.l.b16 %v1372
    %v1703 = vunpack.c.h.b16 %v1372
    %v1704 = vunpack.c.l.b16 %v1373
    %v1705 = vunpack.c.h.b16 %v1373
    %v1706 = vunpack.c.l.b16 %v1374
    %v1707 = vunpack.c.h.b16 %v1374
    %v1708 = vunpack.c.l.b16 %v1375
    %v1709 = vunpack.c.h.b16 %v1375
    %v1710 = vunpack.c.l.b16 %v1376
    %v1711 = vunpack.c.h.b16 %v1376
    %v1712 = vunpack.c.l.b16 %v1377
    %v1713 = vunpack.c.h.b16 %v1377
    %v1714 = vunpack.c.l.b16 %v1378
    %v1715 = vunpack.c.h.b16 %v1378
    %v1716 = vunpack.c.l.b16 %v1379
    %v1717 = vunpack.c.h.b16 %v1379
    %v1718 = vunpack.c.l.b16 %v1380
    %v1719 = vunpack.c.h.b16 %v1380
    %v1720 = vunpack.c.l.b16 %v1381
    %v1721 = vunpack.c.h.b16 %v1381
    %v1722 = vunpack.c.l.b16 %v1382
    %v1723 = vunpack.c.h.b16 %v1382
    %v1724 = vunpack.c.l.b16 %v1383
    %v1725 = vunpack.c.h.b16 %v1383
    %v1726 = vunpack.c.l.b16 %v1384
    %v1727 = vunpack.c.h.b16 %v1384
    %v1728 = vunpack.c.l.b16 %v1385
    %v1729 = vunpack.c.h.b16 %v1385
    %v1730 = vunpack.c.l.b16 %v1386
    %v1731 = vunpack.c.h.b16 %v1386
    %v1732 = vunpack.c.l.b16 %v1387
    %v1733 = vunpack.c.h.b16 %v1387
    %v1734 = vunpack.c.l.b16 %v1388
    %v1735 = vunpack.c.h.b16 %v1388
    %v1736 = vunpack.c.l.b16 %v1389
    %v1737 = vunpack.c.h.b16 %v1389
    %v1738 = vunpack.c.l.b16 %v1390
    %v1739 = vunpack.c.h.b16 %v1390
    %v1740 = vunpack.c.l.b16 %v1391
    %v1741 = vunpack.c.h.b16 %v1391
    %v1742 = vunpack.c.l.b16 %v1392
    %v1743 = vunpack.c.h.b16 %v1392
    %v1744 = vunpack.c.l.b16 %v1393
    %v1745 = vunpack.c.h.b16 %v1393
    %v1746 = vunpack.c.l.b16 %v1394
    %v1747 = vunpack.c.h.b16 %v1394
    %v1748 = vunpack.c.l.b16 %v1395
    %v1749 = vunpack.c.h.b16 %v1395
    %v1750 = vunpack.c.l.b16 %v1396
    %v1751 = vunpack.c.h.b16 %v1396
    %v1752 = vunpack.c.l.b16 %v1397
    %v1753 = vunpack.c.h.b16 %v1397
    %v1754 = vunpack.c.l.b16 %v1398
    %v1755 = vunpack.c.h.b16 %v1398
    %v1756 = vunpack.c.l.b16 %v1399
    %v1757 = vunpack.c.h.b16 %v1399
    %v1758 = vunpack.c.l.b16 %v1400
    %v1759 = vunpack.c.h.b16 %v1400
    %v1760 = vunpack.c.l.b16 %v1401
    %v1761 = vunpack.c.h.b16 %v1401
    %v1762 = vunpack.c.l.b16 %v1402
    %v1763 = vunpack.c.h.b16 %v1402
    %v1764 = vunpack.c.l.b16 %v1403
    %v1765 = vunpack.c.h.b16 %v1403
    %v1766 = vunpack.c.l.b16 %v1404
    %v1767 = vunpack.c.h.b16 %v1404
    %v1768 = vunpack.c.l.b16 %v1405
    %v1769 = vunpack.c.h.b16 %v1405
    %v1770 = vunpack.c.l.b16 %v1406
    %v1771 = vunpack.c.h.b16 %v1406
    %v1772 = vunpack.c.l.b16 %v1407
    %v1773 = vunpack.c.h.b16 %v1407
    %v1774 = vunpack.c.l.b16 %v1408
    %v1775 = vunpack.c.h.b16 %v1408
    %v1776 = vunpack.c.l.b16 %v1409
    %v1777 = vunpack.c.h.b16 %v1409
    %v1778 = vunpack.c.l.b16 %v1410
    %v1779 = vunpack.c.h.b16 %v1410
    %v1780 = vunpack.c.l.b16 %v1411
    %v1781 = vunpack.c.h.b16 %v1411
    %v1782 = vunpack.c.l.b16 %v1412
    %v1783 = vunpack.c.h.b16 %v1412
    %v1784 = vunpack.c.l.b16 %v1413
    %v1785 = vunpack.c.h.b16 %v1413
    %v1786 = vunpack.c.l.b16 %v1414
    %v1787 = vunpack.c.h.b16 %v1414
    %v1788 = vunpack.c.l.b16 %v1415
    %v1789 = vunpack.c.h.b16 %v1415
    %v1790 = vunpack.c.l.b16 %v1416
    %v1791 = vunpack.c.h.b16 %v1416
    %v1792 = vunpack.c.l.b16 %v1417
    %v1793 = vunpack.c.h.b16 %v1417
    %v1794 = vunpack.c.l.b16 %v1418
    %v1795 = vunpack.c.h.b16 %v1418
    %v1796 = vunpack.c.l.b16 %v1419
    %v1797 = vunpack.c.h.b16 %v1419
    %v1798 = vunpack.c.l.b16 %v1420
    %v1799 = vunpack.c.h.b16 %v1420
    %v1800 = vunpack.c.l.b16 %v1421
    %v1801 = vunpack.c.h.b16 %v1421
    %v1802 = vunpack.c.l.b16 %v1422
    %v1803 = vunpack.c.h.b16 %v1422
    %v1804 = vunpack.c.l.b16 %v1423
    %v1805 = vunpack.c.h.b16 %v1423
    %v1806 = vunpack.c.l.b16 %v1424
    %v1807 = vunpack.c.h.b16 %v1424
    %v1808 = vunpack.c.l.b16 %v1425
    %v1809 = vunpack.c.h.b16 %v1425
    %v1810 = vunpack.c.l.b16 %v1426
    %v1811 = vunpack.c.h.b16 %v1426
    %v1812 = vunpack.c.l.b16 %v1427
    %v1813 = vunpack.c.h.b16 %v1427
    %v1814 = vunpack.c.l.b16 %v1428
    %v1815 = vunpack.c.h.b16 %v1428
    %v1816 = vunpack.c.l.b16 %v1429
    %v1817 = vunpack.c.h.b16 %v1429
    %v1818 = vunpack.c.l.b16 %v1430
    %v1819 = vunpack.c.h.b16 %v1430
    %v1820 = vunpack.c.l.b16 %v1431
    %v1821 = vunpack.c.h.b16 %v1431
    %v1822 = vunpack.c.l.b16 %v1432
    %v1823 = vunpack.c.h.b16 %v1432
    %v1824 = vunpack.c.l.b16 %v1433
    %v1825 = vunpack.c.h.b16 %v1433
    %v1826 = vunpack.c.l.b16 %v1434
    %v1827 = vunpack.c.h.b16 %v1434
    %v1828 = vunpack.c.l.b16 %v1435
    %v1829 = vunpack.c.h.b16 %v1435
    %v1830 = vunpack.c.l.b16 %v1436
    %v1831 = vunpack.c.h.b16 %v1436
    %v1832 = vunpack.c.l.b16 %v1437
    %v1833 = vunpack.c.h.b16 %v1437
    %v1834 = vunpack.c.l.b16 %v1438
    %v1835 = vunpack.c.h.b16 %v1438
    %v1836 = vunpack.c.l.b16 %v1439
    %v1837 = vunpack.c.h.b16 %v1439
    %v1838 = vunpack.c.l.b16 %v1440
    %v1839 = vunpack.c.h.b16 %v1440
    %v1840 = vunpack.c.l.b16 %v1441
    %v1841 = vunpack.c.h.b16 %v1441
    %v1842 = vunpack.c.l.b16 %v1442
    %v1843 = vunpack.c.h.b16 %v1442
    %v1844 = vunpack.c.l.b16 %v1443
    %v1845 = vunpack.c.h.b16 %v1443
    %v1846 = vunpack.c.l.b16 %v1444
    %v1847 = vunpack.c.h.b16 %v1444
    %v1848 = vpack.c.b16 %v1600, %v1592
    %v1849 = vpack.c.b16 %v1601, %v1593
    %v1850 = vpack.c.b16 %v1602, %v1594
    %v1851 = vpack.c.b16 %v1603, %v1595
    %v1852 = vpack.c.b16 %v1604, %v1596
    %v1853 = vpack.c.b16 %v1605, %v1597
    %v1854 = vpack.c.b16 %v1606, %v1598
    %v1855 = vpack.c.b16 %v1607, %v1599
    %v1856 = vpack.c.b16 %v1616, %v1608
    %v1857 = vpack.c.b16 %v1617, %v1609
    %v1858 = vpack.c.b16 %v1618, %v1610
    %v1859 = vpack.c.b16 %v1619, %v1611
    %v1860 = vpack.c.b16 %v1620, %v1612
    %v1861 = vpack.c.b16 %v1621, %v1613
    %v1862 = vpack.c.b16 %v1622, %v1614
    %v1863 = vpack.c.b16 %v1623, %v1615
    %v1864 = vpack.c.b16 %v1632, %v1624
    %v1865 = vpack.c.b16 %v1633, %v1625
    %v1866 = vpack.c.b16 %v1634, %v1626
    %v1867 = vpack.c.b16 %v1635, %v1627
    %v1868 = vpack.c.b16 %v1636, %v1628
    %v1869 = vpack.c.b16 %v1637, %v1629
    %v1870 = vpack.c.b16 %v1638, %v1630
    %v1871 = vpack.c.b16 %v1639, %v1631
    %v1872 = vpack.c.b16 %v1648, %v1640
    %v1873 = vpack.c.b16 %v1649, %v1641
    %v1874 = vpack.c.b16 %v1650, %v1642
    %v1875 = vpack.c.b16 %v1651, %v1643
    %v1876 = vpack.c.b16 %v1652, %v1644
    %v1877 = vpack.c.b16 %v1653, %v1645
    %v1878 = vpack.c.b16 %v1654, %v1646
    %v1879 = vpack.c.b16 %v1655, %v1647
    %v1880 = vpack.c.b16 %v1664, %v1656
    %v1881 = vpack.c.b16 %v1665, %v1657
    %v1882 = vpack.c.b16 %v1666, %v1658
    %v1883 = vpack.c.b16 %v1667, %v1659
    %v1884 = vpack.c.b16 %v1668, %v1660
    %v1885 = vpack.c.b16 %v1669, %v1661
    %v1886 = vpack.c.b16 %v1670, %v1662
    %v1887 = vpack.c.b16 %v1671, %v1663
    %v1888 = vpack.c.b16 %v1680, %v1672
    %v1889 = vpack.c.b16 %v1681, %v1673
    %v1890 = vpack.c.b16 %v1682, %v1674
    %v1891 = vpack.c.b16 %v1683, %v1675
    %v1892 = vpack.c.b16 %v1684, %v1676
    %v1893 = vpack.c.b16 %v1685, %v1677
    %v1894 = vpack.c.b16 %v1686, %v1678
    %v1895 = vpack.c.b16 %v1687, %v1679
    %v1896 = vpack.c.b16 %v1696, %v1688
    %v1897 = vpack.c.b16 %v1697, %v1689
    %v1898 = vpack.c.b16 %v1698, %v1690
    %v1899 = vpack.c.b16 %v1699, %v1691
    %v1900 = vpack.c.b16 %v1700, %v1692
    %v1901 = vpack.c.b16 %v1701, %v1693
    %v1902 = vpack.c.b16 %v1702, %v1694
    %v1903 = vpack.c.b16 %v1703, %v1695
    %v1904 = vpack.c.b16 %v1712, %v1704
    %v1905 = vpack.c.b16 %v1713, %v1705
    %v1906 = vpack.c.b16 %v1714, %v1706
    %v1907 = vpack.c.b16 %v1715, %v1707
    %v1908 = vpack.c.b16 %v1716, %v1708
    %v1909 = vpack.c.b16 %v1717, %v1709
    %v1910 = vpack.c.b16 %v1718, %v1710
    %v1911 = vpack.c.b16 %v1719, %v1711
    %v1912 = vpack.c.b16 %v1728, %v1720
    %v1913 = vpack.c.b16 %v1729, %v1721
    %v1914 = vpack.c.b16 %v1730, %v1722
    %v1915 = vpack.c.b16 %v1731, %v1723
    %v1916 = vpack.c.b16 %v1732, %v1724
    %v1917 = vpack.c.b16 %v1733, %v1725
    %v1918 = vpack.c.b16 %v1734, %v1726
    %v1919 = vpack.c.b16 %v1735, %v1727
    %v1920 = vpack.c.b16 %v1744, %v1736
    %v1921 = vpack.c.b16 %v1745, %v1737
    %v1922 = vpack.c.b16 %v1746, %v1738
    %v1923 = vpack.c.b16 %v1747, %v1739
    %v1924 = vpack.c.b16 %v1748, %v1740
    %v1925 = vpack.c.b16 %v1749, %v1741
    %v1926 = vpack.c.b16 %v1750, %v1742
    %v1927 = vpack.c.b16 %v1751, %v1743
    %v1928 = vpack.c.b16 %v1760, %v1752
    %v1929 = vpack.c.b16 %v1761, %v1753
    %v1930 = vpack.c.b16 %v1762, %v1754
    %v1931 = vpack.c.b16 %v1763, %v1755
    %v1932 = vpack.c.b16 %v1764, %v1756
    %v1933 = vpack.c.b16 %v1765, %v1757
    %v1934 = vpack.c.b16 %v1766, %v1758
    %v1935 = vpack.c.b16 %v1767, %v1759
    %v1936 = vpack.c.b16 %v1776, %v1768
    %v1937 = vpack.c.b16 %v1777, %v1769
    %v1938 = vpack.c.b16 %v1778, %v1770
    %v1939 = vpack.c.b16 %v1779, %v1771
    %v1940 = vpack.c.b16 %v1780, %v1772
    %v1941 = vpack.c.b16 %v1781, %v1773
    %v1942 = vpack.c.b16 %v1782, %v1774
    %v1943 = vpack.c.b16 %v1783, %v1775
    %v1944 = vpack.c.b16 %v1792, %v1784
    %v1945 = vpack.c.b16 %v1793, %v1785
    %v1946 = vpack.c.b16 %v1794, %v1786
    %v1947 = vpack.c.b16 %v1795, %v1787
    %v1948 = vpack.c.b16 %v1796, %v1788
    %v1949 = vpack.c.b16 %v1797, %v1789
    %v1950 = vpack.c.b16 %v1798, %v1790
    %v1951 = vpack.c.b16 %v1799, %v1791
    %v1952 = vpack.c.b16 %v1808, %v1800
    %v1953 = vpack.c.b16 %v1809, %v1801
    %v1954 = vpack.c.b16 %v1810, %v1802
    %v1955 = vpack.c.b16 %v1811, %v1803
    %v1956 = vpack.c.b16 %v1812, %v1804
    %v1957 = vpack.c.b16 %v1813, %v1805
    %v1958 = vpack.c.b16 %v1814, %v1806
    %v1959 = vpack.c.b16 %v1815, %v1807
    %v1960 = vpack.c.b16 %v1824, %v1816
    %v1961 = vpack.c.b16 %v1825, %v1817
    %v1962 = vpack.c.b16 %v1826, %v1818
    %v1963 = vpack.c.b16 %v1827, %v1819
    %v1964 = vpack.c.b16 %v1828, %v1820
    %v1965 = vpack.c.b16 %v1829, %v1821
    %v1966 = vpack.c.b16 %v1830, %v1822
    %v1967 = vpack.c.b16 %v1831, %v1823
    %v1968 = vpack.c.b16 %v1840, %v1832
    %v1969 = vpack.c.b16 %v1841, %v1833
    %v1970 = vpack.c.b16 %v1842, %v1834
    %v1971 = vpack.c.b16 %v1843, %v1835
    %v1972 = vpack.c.b16 %v1844, %v1836
    %v1973 = vpack.c.b16 %v1845, %v1837
    %v1974 = vpack.c.b16 %v1846, %v1838
    %v1975 = vpack.c.b16 %v1847, %v1839
    %2104 = vmatprep.subr.bf16.mxu0 %v1849
    %2105 = vmatpush1.bf16.msra.mxu0 %v1848
    %2106 = vmatprep.subr.bf16.mxu0 %v1857
    %2107 = vmatpush1.bf16.msra.mxu0 %v1856
    %2108 = vmatprep.subr.bf16.mxu0 %v1865
    %2109 = vmatpush1.bf16.msra.mxu0 %v1864
    %2110 = vmatprep.subr.bf16.mxu0 %v1873
    %2111 = vmatpush1.bf16.msra.mxu0 %v1872
    %2112 = vmatprep.subr.bf16.mxu0 %v1881
    %2113 = vmatpush1.bf16.msra.mxu0 %v1880
    %2114 = vmatprep.subr.bf16.mxu0 %v1889
    %2115 = vmatpush1.bf16.msra.mxu0 %v1888
    %2116 = vmatprep.subr.bf16.mxu0 %v1897
    %2117 = vmatpush1.bf16.msra.mxu0 %v1896
    %2118 = vmatprep.subr.bf16.mxu0 %v1905
    %2119 = vmatpush1.bf16.msra.mxu0 %v1904
    %2120 = vmatprep.subr.bf16.mxu0 %v1913
    %2121 = vmatpush1.bf16.msra.mxu0 %v1912
    %2122 = vmatprep.subr.bf16.mxu0 %v1921
    %2123 = vmatpush1.bf16.msra.mxu0 %v1920
    %2124 = vmatprep.subr.bf16.mxu0 %v1929
    %2125 = vmatpush1.bf16.msra.mxu0 %v1928
    %2126 = vmatprep.subr.bf16.mxu0 %v1937
    %2127 = vmatpush1.bf16.msra.mxu0 %v1936
    %2128 = vmatprep.subr.bf16.mxu0 %v1945
    %2129 = vmatpush1.bf16.msra.mxu0 %v1944
    %2130 = vmatprep.subr.bf16.mxu0 %v1953
    %2131 = vmatpush1.bf16.msra.mxu0 %v1952
    %2132 = vmatprep.subr.bf16.mxu0 %v1961
    %2133 = vmatpush1.bf16.msra.mxu0 %v1960
    %2134 = vmatprep.subr.bf16.mxu0 %v1969
    %2135 = vmatpush1.bf16.msra.mxu0 %v1968
    %2136 = vmatprep.mubr.bf16.mxu0 %v1461
    %2137 = vmatmul.mubr.bf16.gmra.mrb[0].mxu0 %v1460
    %v2138 = vpop.f32.mrb[0].mxu0
    %v2139 = vadd.f32 0.0, %v2138
    %v2140 = vpop.f32.mrb[0].mxu0
    %v2141 = vadd.f32 0.0, %v2140
    %v2142 = vpop.f32.mrb[0].mxu0
    %v2143 = vpop.f32.mrb[0].mxu0
    %2144 = vdwg.mxu0
    %2145 = vmatprep.subr.bf16.mxu0 %v1851
    %2146 = vmatpush1.bf16.msra.mxu0 %v1850
    %2147 = vmatprep.subr.bf16.mxu0 %v1859
    %2148 = vmatpush1.bf16.msra.mxu0 %v1858
    %2149 = vmatprep.subr.bf16.mxu0 %v1867
    %2150 = vmatpush1.bf16.msra.mxu0 %v1866
    %2151 = vmatprep.subr.bf16.mxu0 %v1875
    %2152 = vmatpush1.bf16.msra.mxu0 %v1874
    %2153 = vmatprep.subr.bf16.mxu0 %v1883
    %2154 = vmatpush1.bf16.msra.mxu0 %v1882
    %2155 = vmatprep.subr.bf16.mxu0 %v1891
    %2156 = vmatpush1.bf16.msra.mxu0 %v1890
    %2157 = vmatprep.subr.bf16.mxu0 %v1899
    %2158 = vmatpush1.bf16.msra.mxu0 %v1898
    %2159 = vmatprep.subr.bf16.mxu0 %v1907
    %2160 = vmatpush1.bf16.msra.mxu0 %v1906
    %2161 = vmatprep.subr.bf16.mxu0 %v1915
    %2162 = vmatpush1.bf16.msra.mxu0 %v1914
    %2163 = vmatprep.subr.bf16.mxu0 %v1923
    %2164 = vmatpush1.bf16.msra.mxu0 %v1922
    %2165 = vmatprep.subr.bf16.mxu0 %v1931
    %2166 = vmatpush1.bf16.msra.mxu0 %v1930
    %2167 = vmatprep.subr.bf16.mxu0 %v1939
    %2168 = vmatpush1.bf16.msra.mxu0 %v1938
    %2169 = vmatprep.subr.bf16.mxu0 %v1947
    %2170 = vmatpush1.bf16.msra.mxu0 %v1946
    %2171 = vmatprep.subr.bf16.mxu0 %v1955
    %2172 = vmatpush1.bf16.msra.mxu0 %v1954
    %2173 = vmatprep.subr.bf16.mxu0 %v1963
    %2174 = vmatpush1.bf16.msra.mxu0 %v1962
    %2175 = vmatprep.subr.bf16.mxu0 %v1971
    %2176 = vmatpush1.bf16.msra.mxu0 %v1970
    %2177 = vmatprep.mubr.bf16.mxu0 %v1461
    %2178 = vmatmul.mubr.bf16.gmra.mrb[0].mxu0 %v1460
    %v2179 = vpop.f32.mrb[0].mxu0
    %v2180 = vadd.f32 0.0, %v2179
    %v2181 = vpop.f32.mrb[0].mxu0
    %v2182 = vadd.f32 0.0, %v2181
    %v2183 = vpop.f32.mrb[0].mxu0
    %v2184 = vpop.f32.mrb[0].mxu0
    %2185 = vdwg.mxu0
    %2186 = vmatprep.subr.bf16.mxu0 %v1853
    %2187 = vmatpush1.bf16.msra.mxu0 %v1852
    %2188 = vmatprep.subr.bf16.mxu0 %v1861
    %2189 = vmatpush1.bf16.msra.mxu0 %v1860
    %2190 = vmatprep.subr.bf16.mxu0 %v1869
    %2191 = vmatpush1.bf16.msra.mxu0 %v1868
    %2192 = vmatprep.subr.bf16.mxu0 %v1877
    %2193 = vmatpush1.bf16.msra.mxu0 %v1876
    %2194 = vmatprep.subr.bf16.mxu0 %v1885
    %2195 = vmatpush1.bf16.msra.mxu0 %v1884
    %2196 = vmatprep.subr.bf16.mxu0 %v1893
    %2197 = vmatpush1.bf16.msra.mxu0 %v1892
    %2198 = vmatprep.subr.bf16.mxu0 %v1901
    %2199 = vmatpush1.bf16.msra.mxu0 %v1900
    %2200 = vmatprep.subr.bf16.mxu0 %v1909
    %2201 = vmatpush1.bf16.msra.mxu0 %v1908
    %2202 = vmatprep.subr.bf16.mxu0 %v1917
    %2203 = vmatpush1.bf16.msra.mxu0 %v1916
    %2204 = vmatprep.subr.bf16.mxu0 %v1925
    %2205 = vmatpush1.bf16.msra.mxu0 %v1924
    %2206 = vmatprep.subr.bf16.mxu0 %v1933
    %2207 = vmatpush1.bf16.msra.mxu0 %v1932
    %2208 = vmatprep.subr.bf16.mxu0 %v1941
    %2209 = vmatpush1.bf16.msra.mxu0 %v1940
    %2210 = vmatprep.subr.bf16.mxu0 %v1949
    %2211 = vmatpush1.bf16.msra.mxu0 %v1948
    %2212 = vmatprep.subr.bf16.mxu0 %v1957
    %2213 = vmatpush1.bf16.msra.mxu0 %v1956
    %2214 = vmatprep.subr.bf16.mxu0 %v1965
    %2215 = vmatpush1.bf16.msra.mxu0 %v1964
    %2216 = vmatprep.subr.bf16.mxu0 %v1973
    %2217 = vmatpush1.bf16.msra.mxu0 %v1972
    %2218 = vmatprep.mubr.bf16.mxu0 %v1461
    %2219 = vmatmul.mubr.bf16.gmra.mrb[0].mxu0 %v1460
    %v2220 = vpop.f32.mrb[0].mxu0
    %v2221 = vadd.f32 0.0, %v2220
    %v2222 = vpop.f32.mrb[0].mxu0
    %v2223 = vadd.f32 0.0, %v2222
    %v2224 = vpop.f32.mrb[0].mxu0
    %v2225 = vpop.f32.mrb[0].mxu0
    %2226 = vdwg.mxu0
    %2227 = vmatprep.subr.bf16.mxu0 %v1855
    %2228 = vmatpush1.bf16.msra.mxu0 %v1854
    %2229 = vmatprep.subr.bf16.mxu0 %v1863
    %2230 = vmatpush1.bf16.msra.mxu0 %v1862
    %2231 = vmatprep.subr.bf16.mxu0 %v1871
    %2232 = vmatpush1.bf16.msra.mxu0 %v1870
    %2233 = vmatprep.subr.bf16.mxu0 %v1879
    %2234 = vmatpush1.bf16.msra.mxu0 %v1878
    %2235 = vmatprep.subr.bf16.mxu0 %v1887
    %2236 = vmatpush1.bf16.msra.mxu0 %v1886
    %2237 = vmatprep.subr.bf16.mxu0 %v1895
    %2238 = vmatpush1.bf16.msra.mxu0 %v1894
    %2239 = vmatprep.subr.bf16.mxu0 %v1903
    %2240 = vmatpush1.bf16.msra.mxu0 %v1902
    %2241 = vmatprep.subr.bf16.mxu0 %v1911
    %2242 = vmatpush1.bf16.msra.mxu0 %v1910
    %2243 = vmatprep.subr.bf16.mxu0 %v1919
    %2244 = vmatpush1.bf16.msra.mxu0 %v1918
    %2245 = vmatprep.subr.bf16.mxu0 %v1927
    %2246 = vmatpush1.bf16.msra.mxu0 %v1926
    %2247 = vmatprep.subr.bf16.mxu0 %v1935
    %2248 = vmatpush1.bf16.msra.mxu0 %v1934
    %2249 = vmatprep.subr.bf16.mxu0 %v1943
    %2250 = vmatpush1.bf16.msra.mxu0 %v1942
    %2251 = vmatprep.subr.bf16.mxu0 %v1951
    %2252 = vmatpush1.bf16.msra.mxu0 %v1950
    %2253 = vmatprep.subr.bf16.mxu0 %v1959
    %2254 = vmatpush1.bf16.msra.mxu0 %v1958
    %2255 = vmatprep.subr.bf16.mxu0 %v1967
    %2256 = vmatpush1.bf16.msra.mxu0 %v1966
    %2257 = vmatprep.subr.bf16.mxu0 %v1975
    %2258 = vmatpush1.bf16.msra.mxu0 %v1974
    %2259 = vmatprep.mubr.bf16.mxu0 %v1461
    %2260 = vmatmul.mubr.bf16.gmra.mrb[0].mxu0 %v1460
    %v2261 = vpop.f32.mrb[0].mxu0
    %v2262 = vadd.f32 0.0, %v2261
    %v2263 = vpop.f32.mrb[0].mxu0
    %v2264 = vadd.f32 0.0, %v2263
    %v2265 = vpop.f32.mrb[0].mxu0
    %v2266 = vpop.f32.mrb[0].mxu0
    %2267 = vdwg.mxu0
    %v2268 = vld [vmem:[#allocation10] sm:$0xff]
    %v2269 = vld [vmem:[#allocation10 + $0x8] sm:$0xff]
    %v2270 = vld [vmem:[#allocation10 + $0x10] sm:$0xff]
    %v2271 = vld [vmem:[#allocation10 + $0x18] sm:$0xff]
    %v2272 = vld [vmem:[#allocation10 + $0x20] sm:$0xff]
    %v2273 = vld [vmem:[#allocation10 + $0x28] sm:$0xff]
    %v2274 = vld [vmem:[#allocation10 + $0x30] sm:$0xff]
    %v2275 = vld [vmem:[#allocation10 + $0x38] sm:$0xff]
    %v2276 = vlaneseq
    %v2277 = vshrl.u32 %v2276, 7
    %v2278 = vadd.s32 %v2277, 8
    %vm2279 = vcmp.lt.s32.totalorder %v2277, 0
    %v2280 = vsub.s32 0, %v2277
    %v2281 = vsel %vm2279, %v2280, %v2277
    %v2282 = vshrl.u32 %v2281, 3
    %v2283 = vand.u32 %v2281, 7
    %v2284 = vsub.s32 0, %v2283
    %v2285 = vsel %vm2279, %v2284, %v2283
    %vm2286 = vcmp.lt.s32.totalorder %v2278, 0
    %v2287 = vsub.s32 0, %v2278
    %v2288 = vsel %vm2286, %v2287, %v2278
    %v2289 = vshrl.u32 %v2288, 3
    %v2290 = vand.u32 %v2288, 7
    %v2291 = vsub.s32 0, %v2290
    %v2292 = vsel %vm2286, %v2291, %v2290
    %vm2293 = vcmp.ne.s32.totalorder %v2285, 0
    %vm2294 = vcmp.ne.s32.totalorder %v2292, 0
    %vm2295 = vcmp.lt.s32.totalorder %v2285, 0
    %vm2296 = vcmp.lt.s32.totalorder %v2292, 0
    %vm2297 = vmand %vm2295, %vm2293
    %vm2298 = vmand %vm2296, %vm2294
    %v2299 = vadd.s32 %v2285, 8
    %v2300 = vadd.s32 %v2292, 8
    %v2301 = vsel %vm2297, %v2299, %v2285
    %v2302 = vsel %vm2298, %v2300, %v2292
    %v2303 = vlaneseq
    %v2304 = vshrl.u32 %v2303, 7
    %v2305 = vsub.s32 7, %v2304
    %v2306 = vrot.slane %v2268, %v2305
    %v2307 = vlaneseq
    %v2308 = vshrl.u32 %v2307, 7
    %v2309 = vsub.s32 7, %v2308
    %v2310 = vrot.slane %v2269, %v2309
    %v2311 = vlaneseq
    %v2312 = vshrl.u32 %v2311, 7
    %v2313 = vsub.s32 7, %v2312
    %v2314 = vrot.slane %v2270, %v2313
    %v2315 = vlaneseq
    %v2316 = vshrl.u32 %v2315, 7
    %v2317 = vsub.s32 7, %v2316
    %v2318 = vrot.slane %v2271, %v2317
    %v2319 = vlaneseq
    %v2320 = vshrl.u32 %v2319, 7
    %v2321 = vsub.s32 7, %v2320
    %v2322 = vrot.slane %v2272, %v2321
    %v2323 = vlaneseq
    %v2324 = vshrl.u32 %v2323, 7
    %v2325 = vsub.s32 7, %v2324
    %v2326 = vrot.slane %v2273, %v2325
    %v2327 = vlaneseq
    %v2328 = vshrl.u32 %v2327, 7
    %v2329 = vsub.s32 7, %v2328
    %v2330 = vrot.slane %v2274, %v2329
    %v2331 = vlaneseq
    %v2332 = vshrl.u32 %v2331, 7
    %v2333 = vsub.s32 7, %v2332
    %v2334 = vrot.slane %v2275, %v2333
    %v2335 = vmul.f32 %v1174, %v2306
    %v2336 = vmul.f32 %v1176, %v2310
    %v2337 = vmul.f32 %v1217, %v2314
    %v2338 = vmul.f32 %v1219, %v2318
    %v2339 = vmul.f32 %v1260, %v2322
    %v2340 = vmul.f32 %v1262, %v2326
    %v2341 = vmul.f32 %v1303, %v2330
    %v2342 = vmul.f32 %v1305, %v2334
    %v2343 = vmul.f32 %v1178, %v2306
    %v2344 = vmul.f32 %v1180, %v2310
    %v2345 = vmul.f32 %v1221, %v2314
    %v2346 = vmul.f32 %v1223, %v2318
    %v2347 = vmul.f32 %v1264, %v2322
    %v2348 = vmul.f32 %v1266, %v2326
    %v2349 = vmul.f32 %v1307, %v2330
    %v2350 = vmul.f32 %v1309, %v2334
    %v2351 = vrot.slane %v1174, 1
    %v2352 = vrot.slane %v1176, 1
    %v2353 = vrot.slane %v1217, 1
    %v2354 = vrot.slane %v1219, 1
    %v2355 = vrot.slane %v1260, 1
    %v2356 = vrot.slane %v1262, 1
    %v2357 = vrot.slane %v1303, 1
    %v2358 = vrot.slane %v1305, 1
    %v2359 = vrot.slane %v1178, 1
    %v2360 = vrot.slane %v1180, 1
    %v2361 = vrot.slane %v1221, 1
    %v2362 = vrot.slane %v1223, 1
    %v2363 = vrot.slane %v1264, 1
    %v2364 = vrot.slane %v1266, 1
    %v2365 = vrot.slane %v1307, 1
    %v2366 = vrot.slane %v1309, 1
    %vm2367 = vcmp.lt.s32.totalorder %v2277, 7
    %v2368 = vsel %vm2367, %v2351, %v2359
    %v2369 = vsel %vm2367, %v2352, %v2360
    %v2370 = vsel %vm2367, %v2353, %v2361
    %v2371 = vsel %vm2367, %v2354, %v2362
    %v2372 = vsel %vm2367, %v2355, %v2363
    %v2373 = vsel %vm2367, %v2356, %v2364
    %v2374 = vsel %vm2367, %v2357, %v2365
    %v2375 = vsel %vm2367, %v2358, %v2366
    %v2376 = vsel %vm2367, %v2359, %v2351
    %v2377 = vsel %vm2367, %v2360, %v2352
    %v2378 = vsel %vm2367, %v2361, %v2353
    %v2379 = vsel %vm2367, %v2362, %v2354
    %v2380 = vsel %vm2367, %v2363, %v2355
    %v2381 = vsel %vm2367, %v2364, %v2356
    %v2382 = vsel %vm2367, %v2365, %v2357
    %v2383 = vsel %vm2367, %v2366, %v2358
    %vm2384 = vcmp.ge.s32.totalorder %v2301, 7
    %vm2385 = vcmp.ge.s32.totalorder %v2302, 7
    %v2386 = vsel %vm2384, 1, 0
    %v2387 = vsel %vm2385, 1, 0
    %vm2388 = vcmp.eq.s32.totalorder %v2386, 1
    %vm2389 = vcmp.eq.s32.totalorder %v2387, 1
    %v2390 = vsel %vm2388, %v2376, 0.0
    %v2391 = vsel %vm2388, %v2377, 0.0
    %v2392 = vsel %vm2388, %v2378, 0.0
    %v2393 = vsel %vm2388, %v2379, 0.0
    %v2394 = vsel %vm2388, %v2380, 0.0
    %v2395 = vsel %vm2388, %v2381, 0.0
    %v2396 = vsel %vm2388, %v2382, 0.0
    %v2397 = vsel %vm2388, %v2383, 0.0
    %v2398 = vsel %vm2389, %v2368, 0.0
    %v2399 = vsel %vm2389, %v2369, 0.0
    %v2400 = vsel %vm2389, %v2370, 0.0
    %v2401 = vsel %vm2389, %v2371, 0.0
    %v2402 = vsel %vm2389, %v2372, 0.0
    %v2403 = vsel %vm2389, %v2373, 0.0
    %v2404 = vsel %vm2389, %v2374, 0.0
    %v2405 = vsel %vm2389, %v2375, 0.0
    %v2406 = vlaneseq
    %v2407 = vshrl.u32 %v2406, 7
    %v2408 = vsub.s32 0, %v2407
    %v2409 = vrot.slane %v2268, %v2408
    %v2410 = vlaneseq
    %v2411 = vshrl.u32 %v2410, 7
    %v2412 = vsub.s32 0, %v2411
    %v2413 = vrot.slane %v2269, %v2412
    %v2414 = vlaneseq
    %v2415 = vshrl.u32 %v2414, 7
    %v2416 = vsub.s32 0, %v2415
    %v2417 = vrot.slane %v2270, %v2416
    %v2418 = vlaneseq
    %v2419 = vshrl.u32 %v2418, 7
    %v2420 = vsub.s32 0, %v2419
    %v2421 = vrot.slane %v2271, %v2420
    %v2422 = vlaneseq
    %v2423 = vshrl.u32 %v2422, 7
    %v2424 = vsub.s32 0, %v2423
    %v2425 = vrot.slane %v2272, %v2424
    %v2426 = vlaneseq
    %v2427 = vshrl.u32 %v2426, 7
    %v2428 = vsub.s32 0, %v2427
    %v2429 = vrot.slane %v2273, %v2428
    %v2430 = vlaneseq
    %v2431 = vshrl.u32 %v2430, 7
    %v2432 = vsub.s32 0, %v2431
    %v2433 = vrot.slane %v2274, %v2432
    %v2434 = vlaneseq
    %v2435 = vshrl.u32 %v2434, 7
    %v2436 = vsub.s32 0, %v2435
    %v2437 = vrot.slane %v2275, %v2436
    %v2438 = vmul.f32 %v2390, %v2409
    %v2439 = vmul.f32 %v2391, %v2413
    %v2440 = vmul.f32 %v2392, %v2417
    %v2441 = vmul.f32 %v2393, %v2421
    %v2442 = vmul.f32 %v2394, %v2425
    %v2443 = vmul.f32 %v2395, %v2429
    %v2444 = vmul.f32 %v2396, %v2433
    %v2445 = vmul.f32 %v2397, %v2437
    %v2446 = vmul.f32 %v2398, %v2409
    %v2447 = vmul.f32 %v2399, %v2413
    %v2448 = vmul.f32 %v2400, %v2417
    %v2449 = vmul.f32 %v2401, %v2421
    %v2450 = vmul.f32 %v2402, %v2425
    %v2451 = vmul.f32 %v2403, %v2429
    %v2452 = vmul.f32 %v2404, %v2433
    %v2453 = vmul.f32 %v2405, %v2437
    %v2454 = vadd.f32 %v2335, %v2438
    %v2455 = vadd.f32 %v2336, %v2439
    %v2456 = vadd.f32 %v2337, %v2440
    %v2457 = vadd.f32 %v2338, %v2441
    %v2458 = vadd.f32 %v2339, %v2442
    %v2459 = vadd.f32 %v2340, %v2443
    %v2460 = vadd.f32 %v2341, %v2444
    %v2461 = vadd.f32 %v2342, %v2445
    %v2462 = vadd.f32 %v2343, %v2446
    %v2463 = vadd.f32 %v2344, %v2447
    %v2464 = vadd.f32 %v2345, %v2448
    %v2465 = vadd.f32 %v2346, %v2449
    %v2466 = vadd.f32 %v2347, %v2450
    %v2467 = vadd.f32 %v2348, %v2451
    %v2468 = vadd.f32 %v2349, %v2452
    %v2469 = vadd.f32 %v2350, %v2453
    %v2470 = vrot.slane %v1174, 2
    %v2471 = vrot.slane %v1176, 2
    %v2472 = vrot.slane %v1217, 2
    %v2473 = vrot.slane %v1219, 2
    %v2474 = vrot.slane %v1260, 2
    %v2475 = vrot.slane %v1262, 2
    %v2476 = vrot.slane %v1303, 2
    %v2477 = vrot.slane %v1305, 2
    %v2478 = vrot.slane %v1178, 2
    %v2479 = vrot.slane %v1180, 2
    %v2480 = vrot.slane %v1221, 2
    %v2481 = vrot.slane %v1223, 2
    %v2482 = vrot.slane %v1264, 2
    %v2483 = vrot.slane %v1266, 2
    %v2484 = vrot.slane %v1307, 2
    %v2485 = vrot.slane %v1309, 2
    %vm2486 = vcmp.lt.s32.totalorder %v2277, 6
    %v2487 = vsel %vm2486, %v2470, %v2478
    %v2488 = vsel %vm2486, %v2471, %v2479
    %v2489 = vsel %vm2486, %v2472, %v2480
    %v2490 = vsel %vm2486, %v2473, %v2481
    %v2491 = vsel %vm2486, %v2474, %v2482
    %v2492 = vsel %vm2486, %v2475, %v2483
    %v2493 = vsel %vm2486, %v2476, %v2484
    %v2494 = vsel %vm2486, %v2477, %v2485
    %v2495 = vsel %vm2486, %v2478, %v2470
    %v2496 = vsel %vm2486, %v2479, %v2471
    %v2497 = vsel %vm2486, %v2480, %v2472
    %v2498 = vsel %vm2486, %v2481, %v2473
    %v2499 = vsel %vm2486, %v2482, %v2474
    %v2500 = vsel %vm2486, %v2483, %v2475
    %v2501 = vsel %vm2486, %v2484, %v2476
    %v2502 = vsel %vm2486, %v2485, %v2477
    %vm2503 = vcmp.ge.s32.totalorder %v2301, 6
    %vm2504 = vcmp.ge.s32.totalorder %v2302, 6
    %v2505 = vsel %vm2503, 1, 0
    %v2506 = vsel %vm2504, 1, 0
    %vm2507 = vcmp.eq.s32.totalorder %v2505, 1
    %vm2508 = vcmp.eq.s32.totalorder %v2506, 1
    %v2509 = vsel %vm2507, %v2495, 0.0
    %v2510 = vsel %vm2507, %v2496, 0.0
    %v2511 = vsel %vm2507, %v2497, 0.0
    %v2512 = vsel %vm2507, %v2498, 0.0
    %v2513 = vsel %vm2507, %v2499, 0.0
    %v2514 = vsel %vm2507, %v2500, 0.0
    %v2515 = vsel %vm2507, %v2501, 0.0
    %v2516 = vsel %vm2507, %v2502, 0.0
    %v2517 = vsel %vm2508, %v2487, 0.0
    %v2518 = vsel %vm2508, %v2488, 0.0
    %v2519 = vsel %vm2508, %v2489, 0.0
    %v2520 = vsel %vm2508, %v2490, 0.0
    %v2521 = vsel %vm2508, %v2491, 0.0
    %v2522 = vsel %vm2508, %v2492, 0.0
    %v2523 = vsel %vm2508, %v2493, 0.0
    %v2524 = vsel %vm2508, %v2494, 0.0
    %v2525 = vlaneseq
    %v2526 = vshrl.u32 %v2525, 7
    %v2527 = vsub.s32 1, %v2526
    %v2528 = vrot.slane %v2268, %v2527
    %v2529 = vlaneseq
    %v2530 = vshrl.u32 %v2529, 7
    %v2531 = vsub.s32 1, %v2530
    %v2532 = vrot.slane %v2269, %v2531
    %v2533 = vlaneseq
    %v2534 = vshrl.u32 %v2533, 7
    %v2535 = vsub.s32 1, %v2534
    %v2536 = vrot.slane %v2270, %v2535
    %v2537 = vlaneseq
    %v2538 = vshrl.u32 %v2537, 7
    %v2539 = vsub.s32 1, %v2538
    %v2540 = vrot.slane %v2271, %v2539
    %v2541 = vlaneseq
    %v2542 = vshrl.u32 %v2541, 7
    %v2543 = vsub.s32 1, %v2542
    %v2544 = vrot.slane %v2272, %v2543
    %v2545 = vlaneseq
    %v2546 = vshrl.u32 %v2545, 7
    %v2547 = vsub.s32 1, %v2546
    %v2548 = vrot.slane %v2273, %v2547
    %v2549 = vlaneseq
    %v2550 = vshrl.u32 %v2549, 7
    %v2551 = vsub.s32 1, %v2550
    %v2552 = vrot.slane %v2274, %v2551
    %v2553 = vlaneseq
    %v2554 = vshrl.u32 %v2553, 7
    %v2555 = vsub.s32 1, %v2554
    %v2556 = vrot.slane %v2275, %v2555
    %v2557 = vmul.f32 %v2509, %v2528
    %v2558 = vmul.f32 %v2510, %v2532
    %v2559 = vmul.f32 %v2511, %v2536
    %v2560 = vmul.f32 %v2512, %v2540
    %v2561 = vmul.f32 %v2513, %v2544
    %v2562 = vmul.f32 %v2514, %v2548
    %v2563 = vmul.f32 %v2515, %v2552
    %v2564 = vmul.f32 %v2516, %v2556
    %v2565 = vmul.f32 %v2517, %v2528
    %v2566 = vmul.f32 %v2518, %v2532
    %v2567 = vmul.f32 %v2519, %v2536
    %v2568 = vmul.f32 %v2520, %v2540
    %v2569 = vmul.f32 %v2521, %v2544
    %v2570 = vmul.f32 %v2522, %v2548
    %v2571 = vmul.f32 %v2523, %v2552
    %v2572 = vmul.f32 %v2524, %v2556
    %v2573 = vadd.f32 %v2454, %v2557
    %v2574 = vadd.f32 %v2455, %v2558
    %v2575 = vadd.f32 %v2456, %v2559
    %v2576 = vadd.f32 %v2457, %v2560
    %v2577 = vadd.f32 %v2458, %v2561
    %v2578 = vadd.f32 %v2459, %v2562
    %v2579 = vadd.f32 %v2460, %v2563
    %v2580 = vadd.f32 %v2461, %v2564
    %v2581 = vadd.f32 %v2462, %v2565
    %v2582 = vadd.f32 %v2463, %v2566
    %v2583 = vadd.f32 %v2464, %v2567
    %v2584 = vadd.f32 %v2465, %v2568
    %v2585 = vadd.f32 %v2466, %v2569
    %v2586 = vadd.f32 %v2467, %v2570
    %v2587 = vadd.f32 %v2468, %v2571
    %v2588 = vadd.f32 %v2469, %v2572
    %v2589 = vrot.slane %v1174, 3
    %v2590 = vrot.slane %v1176, 3
    %v2591 = vrot.slane %v1217, 3
    %v2592 = vrot.slane %v1219, 3
    %v2593 = vrot.slane %v1260, 3
    %v2594 = vrot.slane %v1262, 3
    %v2595 = vrot.slane %v1303, 3
    %v2596 = vrot.slane %v1305, 3
    %v2597 = vrot.slane %v1178, 3
    %v2598 = vrot.slane %v1180, 3
    %v2599 = vrot.slane %v1221, 3
    %v2600 = vrot.slane %v1223, 3
    %v2601 = vrot.slane %v1264, 3
    %v2602 = vrot.slane %v1266, 3
    %v2603 = vrot.slane %v1307, 3
    %v2604 = vrot.slane %v1309, 3
    %vm2605 = vcmp.lt.s32.totalorder %v2277, 5
    %v2606 = vsel %vm2605, %v2589, %v2597
    %v2607 = vsel %vm2605, %v2590, %v2598
    %v2608 = vsel %vm2605, %v2591, %v2599
    %v2609 = vsel %vm2605, %v2592, %v2600
    %v2610 = vsel %vm2605, %v2593, %v2601
    %v2611 = vsel %vm2605, %v2594, %v2602
    %v2612 = vsel %vm2605, %v2595, %v2603
    %v2613 = vsel %vm2605, %v2596, %v2604
    %v2614 = vsel %vm2605, %v2597, %v2589
    %v2615 = vsel %vm2605, %v2598, %v2590
    %v2616 = vsel %vm2605, %v2599, %v2591
    %v2617 = vsel %vm2605, %v2600, %v2592
    %v2618 = vsel %vm2605, %v2601, %v2593
    %v2619 = vsel %vm2605, %v2602, %v2594
    %v2620 = vsel %vm2605, %v2603, %v2595
    %v2621 = vsel %vm2605, %v2604, %v2596
    %vm2622 = vcmp.ge.s32.totalorder %v2301, 5
    %vm2623 = vcmp.ge.s32.totalorder %v2302, 5
    %v2624 = vsel %vm2622, 1, 0
    %v2625 = vsel %vm2623, 1, 0
    %vm2626 = vcmp.eq.s32.totalorder %v2624, 1
    %vm2627 = vcmp.eq.s32.totalorder %v2625, 1
    %v2628 = vsel %vm2626, %v2614, 0.0
    %v2629 = vsel %vm2626, %v2615, 0.0
    %v2630 = vsel %vm2626, %v2616, 0.0
    %v2631 = vsel %vm2626, %v2617, 0.0
    %v2632 = vsel %vm2626, %v2618, 0.0
    %v2633 = vsel %vm2626, %v2619, 0.0
    %v2634 = vsel %vm2626, %v2620, 0.0
    %v2635 = vsel %vm2626, %v2621, 0.0
    %v2636 = vsel %vm2627, %v2606, 0.0
    %v2637 = vsel %vm2627, %v2607, 0.0
    %v2638 = vsel %vm2627, %v2608, 0.0
    %v2639 = vsel %vm2627, %v2609, 0.0
    %v2640 = vsel %vm2627, %v2610, 0.0
    %v2641 = vsel %vm2627, %v2611, 0.0
    %v2642 = vsel %vm2627, %v2612, 0.0
    %v2643 = vsel %vm2627, %v2613, 0.0
    %v2644 = vlaneseq
    %v2645 = vshrl.u32 %v2644, 7
    %v2646 = vsub.s32 2, %v2645
    %v2647 = vrot.slane %v2268, %v2646
    %v2648 = vlaneseq
    %v2649 = vshrl.u32 %v2648, 7
    %v2650 = vsub.s32 2, %v2649
    %v2651 = vrot.slane %v2269, %v2650
    %v2652 = vlaneseq
    %v2653 = vshrl.u32 %v2652, 7
    %v2654 = vsub.s32 2, %v2653
    %v2655 = vrot.slane %v2270, %v2654
    %v2656 = vlaneseq
    %v2657 = vshrl.u32 %v2656, 7
    %v2658 = vsub.s32 2, %v2657
    %v2659 = vrot.slane %v2271, %v2658
    %v2660 = vlaneseq
    %v2661 = vshrl.u32 %v2660, 7
    %v2662 = vsub.s32 2, %v2661
    %v2663 = vrot.slane %v2272, %v2662
    %v2664 = vlaneseq
    %v2665 = vshrl.u32 %v2664, 7
    %v2666 = vsub.s32 2, %v2665
    %v2667 = vrot.slane %v2273, %v2666
    %v2668 = vlaneseq
    %v2669 = vshrl.u32 %v2668, 7
    %v2670 = vsub.s32 2, %v2669
    %v2671 = vrot.slane %v2274, %v2670
    %v2672 = vlaneseq
    %v2673 = vshrl.u32 %v2672, 7
    %v2674 = vsub.s32 2, %v2673
    %v2675 = vrot.slane %v2275, %v2674
    %v2676 = vmul.f32 %v2628, %v2647
    %v2677 = vmul.f32 %v2629, %v2651
    %v2678 = vmul.f32 %v2630, %v2655
    %v2679 = vmul.f32 %v2631, %v2659
    %v2680 = vmul.f32 %v2632, %v2663
    %v2681 = vmul.f32 %v2633, %v2667
    %v2682 = vmul.f32 %v2634, %v2671
    %v2683 = vmul.f32 %v2635, %v2675
    %v2684 = vmul.f32 %v2636, %v2647
    %v2685 = vmul.f32 %v2637, %v2651
    %v2686 = vmul.f32 %v2638, %v2655
    %v2687 = vmul.f32 %v2639, %v2659
    %v2688 = vmul.f32 %v2640, %v2663
    %v2689 = vmul.f32 %v2641, %v2667
    %v2690 = vmul.f32 %v2642, %v2671
    %v2691 = vmul.f32 %v2643, %v2675
    %v2692 = vadd.f32 %v2573, %v2676
    %v2693 = vadd.f32 %v2574, %v2677
    %v2694 = vadd.f32 %v2575, %v2678
    %v2695 = vadd.f32 %v2576, %v2679
    %v2696 = vadd.f32 %v2577, %v2680
    %v2697 = vadd.f32 %v2578, %v2681
    %v2698 = vadd.f32 %v2579, %v2682
    %v2699 = vadd.f32 %v2580, %v2683
    %v2700 = vadd.f32 %v2581, %v2684
    %v2701 = vadd.f32 %v2582, %v2685
    %v2702 = vadd.f32 %v2583, %v2686
    %v2703 = vadd.f32 %v2584, %v2687
    %v2704 = vadd.f32 %v2585, %v2688
    %v2705 = vadd.f32 %v2586, %v2689
    %v2706 = vadd.f32 %v2587, %v2690
    %v2707 = vadd.f32 %v2588, %v2691
    %v2708 = vrot.slane %v1174, 4
    %v2709 = vrot.slane %v1176, 4
    %v2710 = vrot.slane %v1217, 4
    %v2711 = vrot.slane %v1219, 4
    %v2712 = vrot.slane %v1260, 4
    %v2713 = vrot.slane %v1262, 4
    %v2714 = vrot.slane %v1303, 4
    %v2715 = vrot.slane %v1305, 4
    %v2716 = vrot.slane %v1178, 4
    %v2717 = vrot.slane %v1180, 4
    %v2718 = vrot.slane %v1221, 4
    %v2719 = vrot.slane %v1223, 4
    %v2720 = vrot.slane %v1264, 4
    %v2721 = vrot.slane %v1266, 4
    %v2722 = vrot.slane %v1307, 4
    %v2723 = vrot.slane %v1309, 4
    %vm2724 = vcmp.lt.s32.totalorder %v2277, 4
    %v2725 = vsel %vm2724, %v2708, %v2716
    %v2726 = vsel %vm2724, %v2709, %v2717
    %v2727 = vsel %vm2724, %v2710, %v2718
    %v2728 = vsel %vm2724, %v2711, %v2719
    %v2729 = vsel %vm2724, %v2712, %v2720
    %v2730 = vsel %vm2724, %v2713, %v2721
    %v2731 = vsel %vm2724, %v2714, %v2722
    %v2732 = vsel %vm2724, %v2715, %v2723
    %v2733 = vsel %vm2724, %v2716, %v2708
    %v2734 = vsel %vm2724, %v2717, %v2709
    %v2735 = vsel %vm2724, %v2718, %v2710
    %v2736 = vsel %vm2724, %v2719, %v2711
    %v2737 = vsel %vm2724, %v2720, %v2712
    %v2738 = vsel %vm2724, %v2721, %v2713
    %v2739 = vsel %vm2724, %v2722, %v2714
    %v2740 = vsel %vm2724, %v2723, %v2715
    %vm2741 = vcmp.ge.s32.totalorder %v2301, 4
    %vm2742 = vcmp.ge.s32.totalorder %v2302, 4
    %v2743 = vsel %vm2741, 1, 0
    %v2744 = vsel %vm2742, 1, 0
    %vm2745 = vcmp.eq.s32.totalorder %v2743, 1
    %vm2746 = vcmp.eq.s32.totalorder %v2744, 1
    %v2747 = vsel %vm2745, %v2733, 0.0
    %v2748 = vsel %vm2745, %v2734, 0.0
    %v2749 = vsel %vm2745, %v2735, 0.0
    %v2750 = vsel %vm2745, %v2736, 0.0
    %v2751 = vsel %vm2745, %v2737, 0.0
    %v2752 = vsel %vm2745, %v2738, 0.0
    %v2753 = vsel %vm2745, %v2739, 0.0
    %v2754 = vsel %vm2745, %v2740, 0.0
    %v2755 = vsel %vm2746, %v2725, 0.0
    %v2756 = vsel %vm2746, %v2726, 0.0
    %v2757 = vsel %vm2746, %v2727, 0.0
    %v2758 = vsel %vm2746, %v2728, 0.0
    %v2759 = vsel %vm2746, %v2729, 0.0
    %v2760 = vsel %vm2746, %v2730, 0.0
    %v2761 = vsel %vm2746, %v2731, 0.0
    %v2762 = vsel %vm2746, %v2732, 0.0
    %v2763 = vlaneseq
    %v2764 = vshrl.u32 %v2763, 7
    %v2765 = vsub.s32 3, %v2764
    %v2766 = vrot.slane %v2268, %v2765
    %v2767 = vlaneseq
    %v2768 = vshrl.u32 %v2767, 7
    %v2769 = vsub.s32 3, %v2768
    %v2770 = vrot.slane %v2269, %v2769
    %v2771 = vlaneseq
    %v2772 = vshrl.u32 %v2771, 7
    %v2773 = vsub.s32 3, %v2772
    %v2774 = vrot.slane %v2270, %v2773
    %v2775 = vlaneseq
    %v2776 = vshrl.u32 %v2775, 7
    %v2777 = vsub.s32 3, %v2776
    %v2778 = vrot.slane %v2271, %v2777
    %v2779 = vlaneseq
    %v2780 = vshrl.u32 %v2779, 7
    %v2781 = vsub.s32 3, %v2780
    %v2782 = vrot.slane %v2272, %v2781
    %v2783 = vlaneseq
    %v2784 = vshrl.u32 %v2783, 7
    %v2785 = vsub.s32 3, %v2784
    %v2786 = vrot.slane %v2273, %v2785
    %v2787 = vlaneseq
    %v2788 = vshrl.u32 %v2787, 7
    %v2789 = vsub.s32 3, %v2788
    %v2790 = vrot.slane %v2274, %v2789
    %v2791 = vlaneseq
    %v2792 = vshrl.u32 %v2791, 7
    %v2793 = vsub.s32 3, %v2792
    %v2794 = vrot.slane %v2275, %v2793
    %v2795 = vmul.f32 %v2747, %v2766
    %v2796 = vmul.f32 %v2748, %v2770
    %v2797 = vmul.f32 %v2749, %v2774
    %v2798 = vmul.f32 %v2750, %v2778
    %v2799 = vmul.f32 %v2751, %v2782
    %v2800 = vmul.f32 %v2752, %v2786
    %v2801 = vmul.f32 %v2753, %v2790
    %v2802 = vmul.f32 %v2754, %v2794
    %v2803 = vmul.f32 %v2755, %v2766
    %v2804 = vmul.f32 %v2756, %v2770
    %v2805 = vmul.f32 %v2757, %v2774
    %v2806 = vmul.f32 %v2758, %v2778
    %v2807 = vmul.f32 %v2759, %v2782
    %v2808 = vmul.f32 %v2760, %v2786
    %v2809 = vmul.f32 %v2761, %v2790
    %v2810 = vmul.f32 %v2762, %v2794
    %v2811 = vadd.f32 %v2692, %v2795
    %v2812 = vadd.f32 %v2693, %v2796
    %v2813 = vadd.f32 %v2694, %v2797
    %v2814 = vadd.f32 %v2695, %v2798
    %v2815 = vadd.f32 %v2696, %v2799
    %v2816 = vadd.f32 %v2697, %v2800
    %v2817 = vadd.f32 %v2698, %v2801
    %v2818 = vadd.f32 %v2699, %v2802
    %v2819 = vadd.f32 %v2700, %v2803
    %v2820 = vadd.f32 %v2701, %v2804
    %v2821 = vadd.f32 %v2702, %v2805
    %v2822 = vadd.f32 %v2703, %v2806
    %v2823 = vadd.f32 %v2704, %v2807
    %v2824 = vadd.f32 %v2705, %v2808
    %v2825 = vadd.f32 %v2706, %v2809
    %v2826 = vadd.f32 %v2707, %v2810
    %v2827 = vrot.slane %v1174, 5
    %v2828 = vrot.slane %v1176, 5
    %v2829 = vrot.slane %v1217, 5
    %v2830 = vrot.slane %v1219, 5
    %v2831 = vrot.slane %v1260, 5
    %v2832 = vrot.slane %v1262, 5
    %v2833 = vrot.slane %v1303, 5
    %v2834 = vrot.slane %v1305, 5
    %v2835 = vrot.slane %v1178, 5
    %v2836 = vrot.slane %v1180, 5
    %v2837 = vrot.slane %v1221, 5
    %v2838 = vrot.slane %v1223, 5
    %v2839 = vrot.slane %v1264, 5
    %v2840 = vrot.slane %v1266, 5
    %v2841 = vrot.slane %v1307, 5
    %v2842 = vrot.slane %v1309, 5
    %vm2843 = vcmp.lt.s32.totalorder %v2277, 3
    %v2844 = vsel %vm2843, %v2827, %v2835
    %v2845 = vsel %vm2843, %v2828, %v2836
    %v2846 = vsel %vm2843, %v2829, %v2837
    %v2847 = vsel %vm2843, %v2830, %v2838
    %v2848 = vsel %vm2843, %v2831, %v2839
    %v2849 = vsel %vm2843, %v2832, %v2840
    %v2850 = vsel %vm2843, %v2833, %v2841
    %v2851 = vsel %vm2843, %v2834, %v2842
    %v2852 = vsel %vm2843, %v2835, %v2827
    %v2853 = vsel %vm2843, %v2836, %v2828
    %v2854 = vsel %vm2843, %v2837, %v2829
    %v2855 = vsel %vm2843, %v2838, %v2830
    %v2856 = vsel %vm2843, %v2839, %v2831
    %v2857 = vsel %vm2843, %v2840, %v2832
    %v2858 = vsel %vm2843, %v2841, %v2833
    %v2859 = vsel %vm2843, %v2842, %v2834
    %vm2860 = vcmp.ge.s32.totalorder %v2301, 3
    %vm2861 = vcmp.ge.s32.totalorder %v2302, 3
    %v2862 = vsel %vm2860, 1, 0
    %v2863 = vsel %vm2861, 1, 0
    %vm2864 = vcmp.eq.s32.totalorder %v2862, 1
    %vm2865 = vcmp.eq.s32.totalorder %v2863, 1
    %v2866 = vsel %vm2864, %v2852, 0.0
    %v2867 = vsel %vm2864, %v2853, 0.0
    %v2868 = vsel %vm2864, %v2854, 0.0
    %v2869 = vsel %vm2864, %v2855, 0.0
    %v2870 = vsel %vm2864, %v2856, 0.0
    %v2871 = vsel %vm2864, %v2857, 0.0
    %v2872 = vsel %vm2864, %v2858, 0.0
    %v2873 = vsel %vm2864, %v2859, 0.0
    %v2874 = vsel %vm2865, %v2844, 0.0
    %v2875 = vsel %vm2865, %v2845, 0.0
    %v2876 = vsel %vm2865, %v2846, 0.0
    %v2877 = vsel %vm2865, %v2847, 0.0
    %v2878 = vsel %vm2865, %v2848, 0.0
    %v2879 = vsel %vm2865, %v2849, 0.0
    %v2880 = vsel %vm2865, %v2850, 0.0
    %v2881 = vsel %vm2865, %v2851, 0.0
    %v2882 = vlaneseq
    %v2883 = vshrl.u32 %v2882, 7
    %v2884 = vsub.s32 4, %v2883
    %v2885 = vrot.slane %v2268, %v2884
    %v2886 = vlaneseq
    %v2887 = vshrl.u32 %v2886, 7
    %v2888 = vsub.s32 4, %v2887
    %v2889 = vrot.slane %v2269, %v2888
    %v2890 = vlaneseq
    %v2891 = vshrl.u32 %v2890, 7
    %v2892 = vsub.s32 4, %v2891
    %v2893 = vrot.slane %v2270, %v2892
    %v2894 = vlaneseq
    %v2895 = vshrl.u32 %v2894, 7
    %v2896 = vsub.s32 4, %v2895
    %v2897 = vrot.slane %v2271, %v2896
    %v2898 = vlaneseq
    %v2899 = vshrl.u32 %v2898, 7
    %v2900 = vsub.s32 4, %v2899
    %v2901 = vrot.slane %v2272, %v2900
    %v2902 = vlaneseq
    %v2903 = vshrl.u32 %v2902, 7
    %v2904 = vsub.s32 4, %v2903
    %v2905 = vrot.slane %v2273, %v2904
    %v2906 = vlaneseq
    %v2907 = vshrl.u32 %v2906, 7
    %v2908 = vsub.s32 4, %v2907
    %v2909 = vrot.slane %v2274, %v2908
    %v2910 = vlaneseq
    %v2911 = vshrl.u32 %v2910, 7
    %v2912 = vsub.s32 4, %v2911
    %v2913 = vrot.slane %v2275, %v2912
    %v2914 = vmul.f32 %v2866, %v2885
    %v2915 = vmul.f32 %v2867, %v2889
    %v2916 = vmul.f32 %v2868, %v2893
    %v2917 = vmul.f32 %v2869, %v2897
    %v2918 = vmul.f32 %v2870, %v2901
    %v2919 = vmul.f32 %v2871, %v2905
    %v2920 = vmul.f32 %v2872, %v2909
    %v2921 = vmul.f32 %v2873, %v2913
    %v2922 = vmul.f32 %v2874, %v2885
    %v2923 = vmul.f32 %v2875, %v2889
    %v2924 = vmul.f32 %v2876, %v2893
    %v2925 = vmul.f32 %v2877, %v2897
    %v2926 = vmul.f32 %v2878, %v2901
    %v2927 = vmul.f32 %v2879, %v2905
    %v2928 = vmul.f32 %v2880, %v2909
    %v2929 = vmul.f32 %v2881, %v2913
    %v2930 = vadd.f32 %v2811, %v2914
    %v2931 = vadd.f32 %v2812, %v2915
    %v2932 = vadd.f32 %v2813, %v2916
    %v2933 = vadd.f32 %v2814, %v2917
    %v2934 = vadd.f32 %v2815, %v2918
    %v2935 = vadd.f32 %v2816, %v2919
    %v2936 = vadd.f32 %v2817, %v2920
    %v2937 = vadd.f32 %v2818, %v2921
    %v2938 = vadd.f32 %v2819, %v2922
    %v2939 = vadd.f32 %v2820, %v2923
    %v2940 = vadd.f32 %v2821, %v2924
    %v2941 = vadd.f32 %v2822, %v2925
    %v2942 = vadd.f32 %v2823, %v2926
    %v2943 = vadd.f32 %v2824, %v2927
    %v2944 = vadd.f32 %v2825, %v2928
    %v2945 = vadd.f32 %v2826, %v2929
    %v2946 = vrot.slane %v1174, 6
    %v2947 = vrot.slane %v1176, 6
    %v2948 = vrot.slane %v1217, 6
    %v2949 = vrot.slane %v1219, 6
    %v2950 = vrot.slane %v1260, 6
    %v2951 = vrot.slane %v1262, 6
    %v2952 = vrot.slane %v1303, 6
    %v2953 = vrot.slane %v1305, 6
    %v2954 = vrot.slane %v1178, 6
    %v2955 = vrot.slane %v1180, 6
    %v2956 = vrot.slane %v1221, 6
    %v2957 = vrot.slane %v1223, 6
    %v2958 = vrot.slane %v1264, 6
    %v2959 = vrot.slane %v1266, 6
    %v2960 = vrot.slane %v1307, 6
    %v2961 = vrot.slane %v1309, 6
    %vm2962 = vcmp.lt.s32.totalorder %v2277, 2
    %v2963 = vsel %vm2962, %v2946, %v2954
    %v2964 = vsel %vm2962, %v2947, %v2955
    %v2965 = vsel %vm2962, %v2948, %v2956
    %v2966 = vsel %vm2962, %v2949, %v2957
    %v2967 = vsel %vm2962, %v2950, %v2958
    %v2968 = vsel %vm2962, %v2951, %v2959
    %v2969 = vsel %vm2962, %v2952, %v2960
    %v2970 = vsel %vm2962, %v2953, %v2961
    %v2971 = vsel %vm2962, %v2954, %v2946
    %v2972 = vsel %vm2962, %v2955, %v2947
    %v2973 = vsel %vm2962, %v2956, %v2948
    %v2974 = vsel %vm2962, %v2957, %v2949
    %v2975 = vsel %vm2962, %v2958, %v2950
    %v2976 = vsel %vm2962, %v2959, %v2951
    %v2977 = vsel %vm2962, %v2960, %v2952
    %v2978 = vsel %vm2962, %v2961, %v2953
    %vm2979 = vcmp.ge.s32.totalorder %v2301, 2
    %vm2980 = vcmp.ge.s32.totalorder %v2302, 2
    %v2981 = vsel %vm2979, 1, 0
    %v2982 = vsel %vm2980, 1, 0
    %vm2983 = vcmp.eq.s32.totalorder %v2981, 1
    %vm2984 = vcmp.eq.s32.totalorder %v2982, 1
    %v2985 = vsel %vm2983, %v2971, 0.0
    %v2986 = vsel %vm2983, %v2972, 0.0
    %v2987 = vsel %vm2983, %v2973, 0.0
    %v2988 = vsel %vm2983, %v2974, 0.0
    %v2989 = vsel %vm2983, %v2975, 0.0
    %v2990 = vsel %vm2983, %v2976, 0.0
    %v2991 = vsel %vm2983, %v2977, 0.0
    %v2992 = vsel %vm2983, %v2978, 0.0
    %v2993 = vsel %vm2984, %v2963, 0.0
    %v2994 = vsel %vm2984, %v2964, 0.0
    %v2995 = vsel %vm2984, %v2965, 0.0
    %v2996 = vsel %vm2984, %v2966, 0.0
    %v2997 = vsel %vm2984, %v2967, 0.0
    %v2998 = vsel %vm2984, %v2968, 0.0
    %v2999 = vsel %vm2984, %v2969, 0.0
    %v3000 = vsel %vm2984, %v2970, 0.0
    %v3001 = vlaneseq
    %v3002 = vshrl.u32 %v3001, 7
    %v3003 = vsub.s32 5, %v3002
    %v3004 = vrot.slane %v2268, %v3003
    %v3005 = vlaneseq
    %v3006 = vshrl.u32 %v3005, 7
    %v3007 = vsub.s32 5, %v3006
    %v3008 = vrot.slane %v2269, %v3007
    %v3009 = vlaneseq
    %v3010 = vshrl.u32 %v3009, 7
    %v3011 = vsub.s32 5, %v3010
    %v3012 = vrot.slane %v2270, %v3011
    %v3013 = vlaneseq
    %v3014 = vshrl.u32 %v3013, 7
    %v3015 = vsub.s32 5, %v3014
    %v3016 = vrot.slane %v2271, %v3015
    %v3017 = vlaneseq
    %v3018 = vshrl.u32 %v3017, 7
    %v3019 = vsub.s32 5, %v3018
    %v3020 = vrot.slane %v2272, %v3019
    %v3021 = vlaneseq
    %v3022 = vshrl.u32 %v3021, 7
    %v3023 = vsub.s32 5, %v3022
    %v3024 = vrot.slane %v2273, %v3023
    %v3025 = vlaneseq
    %v3026 = vshrl.u32 %v3025, 7
    %v3027 = vsub.s32 5, %v3026
    %v3028 = vrot.slane %v2274, %v3027
    %v3029 = vlaneseq
    %v3030 = vshrl.u32 %v3029, 7
    %v3031 = vsub.s32 5, %v3030
    %v3032 = vrot.slane %v2275, %v3031
    %v3033 = vmul.f32 %v2985, %v3004
    %v3034 = vmul.f32 %v2986, %v3008
    %v3035 = vmul.f32 %v2987, %v3012
    %v3036 = vmul.f32 %v2988, %v3016
    %v3037 = vmul.f32 %v2989, %v3020
    %v3038 = vmul.f32 %v2990, %v3024
    %v3039 = vmul.f32 %v2991, %v3028
    %v3040 = vmul.f32 %v2992, %v3032
    %v3041 = vmul.f32 %v2993, %v3004
    %v3042 = vmul.f32 %v2994, %v3008
    %v3043 = vmul.f32 %v2995, %v3012
    %v3044 = vmul.f32 %v2996, %v3016
    %v3045 = vmul.f32 %v2997, %v3020
    %v3046 = vmul.f32 %v2998, %v3024
    %v3047 = vmul.f32 %v2999, %v3028
    %v3048 = vmul.f32 %v3000, %v3032
    %v3049 = vadd.f32 %v2930, %v3033
    %v3050 = vadd.f32 %v2931, %v3034
    %v3051 = vadd.f32 %v2932, %v3035
    %v3052 = vadd.f32 %v2933, %v3036
    %v3053 = vadd.f32 %v2934, %v3037
    %v3054 = vadd.f32 %v2935, %v3038
    %v3055 = vadd.f32 %v2936, %v3039
    %v3056 = vadd.f32 %v2937, %v3040
    %v3057 = vadd.f32 %v2938, %v3041
    %v3058 = vadd.f32 %v2939, %v3042
    %v3059 = vadd.f32 %v2940, %v3043
    %v3060 = vadd.f32 %v2941, %v3044
    %v3061 = vadd.f32 %v2942, %v3045
    %v3062 = vadd.f32 %v2943, %v3046
    %v3063 = vadd.f32 %v2944, %v3047
    %v3064 = vadd.f32 %v2945, %v3048
    %v3065 = vrot.slane %v1174, 7
    %v3066 = vrot.slane %v1176, 7
    %v3067 = vrot.slane %v1217, 7
    %v3068 = vrot.slane %v1219, 7
    %v3069 = vrot.slane %v1260, 7
    %v3070 = vrot.slane %v1262, 7
    %v3071 = vrot.slane %v1303, 7
    %v3072 = vrot.slane %v1305, 7
    %v3073 = vrot.slane %v1178, 7
    %v3074 = vrot.slane %v1180, 7
    %v3075 = vrot.slane %v1221, 7
    %v3076 = vrot.slane %v1223, 7
    %v3077 = vrot.slane %v1264, 7
    %v3078 = vrot.slane %v1266, 7
    %v3079 = vrot.slane %v1307, 7
    %v3080 = vrot.slane %v1309, 7
    %vm3081 = vcmp.lt.s32.totalorder %v2277, 1
    %v3082 = vsel %vm3081, %v3065, %v3073
    %v3083 = vsel %vm3081, %v3066, %v3074
    %v3084 = vsel %vm3081, %v3067, %v3075
    %v3085 = vsel %vm3081, %v3068, %v3076
    %v3086 = vsel %vm3081, %v3069, %v3077
    %v3087 = vsel %vm3081, %v3070, %v3078
    %v3088 = vsel %vm3081, %v3071, %v3079
    %v3089 = vsel %vm3081, %v3072, %v3080
    %v3090 = vsel %vm3081, %v3073, %v3065
    %v3091 = vsel %vm3081, %v3074, %v3066
    %v3092 = vsel %vm3081, %v3075, %v3067
    %v3093 = vsel %vm3081, %v3076, %v3068
    %v3094 = vsel %vm3081, %v3077, %v3069
    %v3095 = vsel %vm3081, %v3078, %v3070
    %v3096 = vsel %vm3081, %v3079, %v3071
    %v3097 = vsel %vm3081, %v3080, %v3072
    %vm3098 = vcmp.ge.s32.totalorder %v2301, 1
    %vm3099 = vcmp.ge.s32.totalorder %v2302, 1
    %v3100 = vsel %vm3098, 1, 0
    %v3101 = vsel %vm3099, 1, 0
    %vm3102 = vcmp.eq.s32.totalorder %v3100, 1
    %vm3103 = vcmp.eq.s32.totalorder %v3101, 1
    %v3104 = vsel %vm3102, %v3090, 0.0
    %v3105 = vsel %vm3102, %v3091, 0.0
    %v3106 = vsel %vm3102, %v3092, 0.0
    %v3107 = vsel %vm3102, %v3093, 0.0
    %v3108 = vsel %vm3102, %v3094, 0.0
    %v3109 = vsel %vm3102, %v3095, 0.0
    %v3110 = vsel %vm3102, %v3096, 0.0
    %v3111 = vsel %vm3102, %v3097, 0.0
    %v3112 = vsel %vm3103, %v3082, 0.0
    %v3113 = vsel %vm3103, %v3083, 0.0
    %v3114 = vsel %vm3103, %v3084, 0.0
    %v3115 = vsel %vm3103, %v3085, 0.0
    %v3116 = vsel %vm3103, %v3086, 0.0
    %v3117 = vsel %vm3103, %v3087, 0.0
    %v3118 = vsel %vm3103, %v3088, 0.0
    %v3119 = vsel %vm3103, %v3089, 0.0
    %v3120 = vlaneseq
    %v3121 = vshrl.u32 %v3120, 7
    %v3122 = vsub.s32 6, %v3121
    %v3123 = vrot.slane %v2268, %v3122
    %v3124 = vlaneseq
    %v3125 = vshrl.u32 %v3124, 7
    %v3126 = vsub.s32 6, %v3125
    %v3127 = vrot.slane %v2269, %v3126
    %v3128 = vlaneseq
    %v3129 = vshrl.u32 %v3128, 7
    %v3130 = vsub.s32 6, %v3129
    %v3131 = vrot.slane %v2270, %v3130
    %v3132 = vlaneseq
    %v3133 = vshrl.u32 %v3132, 7
    %v3134 = vsub.s32 6, %v3133
    %v3135 = vrot.slane %v2271, %v3134
    %v3136 = vlaneseq
    %v3137 = vshrl.u32 %v3136, 7
    %v3138 = vsub.s32 6, %v3137
    %v3139 = vrot.slane %v2272, %v3138
    %v3140 = vlaneseq
    %v3141 = vshrl.u32 %v3140, 7
    %v3142 = vsub.s32 6, %v3141
    %v3143 = vrot.slane %v2273, %v3142
    %v3144 = vlaneseq
    %v3145 = vshrl.u32 %v3144, 7
    %v3146 = vsub.s32 6, %v3145
    %v3147 = vrot.slane %v2274, %v3146
    %v3148 = vlaneseq
    %v3149 = vshrl.u32 %v3148, 7
    %v3150 = vsub.s32 6, %v3149
    %v3151 = vrot.slane %v2275, %v3150
    %v3152 = vmul.f32 %v3104, %v3123
    %v3153 = vmul.f32 %v3105, %v3127
    %v3154 = vmul.f32 %v3106, %v3131
    %v3155 = vmul.f32 %v3107, %v3135
    %v3156 = vmul.f32 %v3108, %v3139
    %v3157 = vmul.f32 %v3109, %v3143
    %v3158 = vmul.f32 %v3110, %v3147
    %v3159 = vmul.f32 %v3111, %v3151
    %v3160 = vmul.f32 %v3112, %v3123
    %v3161 = vmul.f32 %v3113, %v3127
    %v3162 = vmul.f32 %v3114, %v3131
    %v3163 = vmul.f32 %v3115, %v3135
    %v3164 = vmul.f32 %v3116, %v3139
    %v3165 = vmul.f32 %v3117, %v3143
    %v3166 = vmul.f32 %v3118, %v3147
    %v3167 = vmul.f32 %v3119, %v3151
    %v3168 = vadd.f32 %v3049, %v3152
    %v3169 = vadd.f32 %v3050, %v3153
    %v3170 = vadd.f32 %v3051, %v3154
    %v3171 = vadd.f32 %v3052, %v3155
    %v3172 = vadd.f32 %v3053, %v3156
    %v3173 = vadd.f32 %v3054, %v3157
    %v3174 = vadd.f32 %v3055, %v3158
    %v3175 = vadd.f32 %v3056, %v3159
    %v3176 = vadd.f32 %v3057, %v3160
    %v3177 = vadd.f32 %v3058, %v3161
    %v3178 = vadd.f32 %v3059, %v3162
    %v3179 = vadd.f32 %v3060, %v3163
    %v3180 = vadd.f32 %v3061, %v3164
    %v3181 = vadd.f32 %v3062, %v3165
    %v3182 = vadd.f32 %v3063, %v3166
    %v3183 = vadd.f32 %v3064, %v3167
    %v3184 = vld [vmem:[%s6] sm:$0xff]
    %v3186 = vlaneseq
    %v3187 = vshrl.u32 %v3186, 7
    %v3188 = vsub.s32 0, %v3187
    %v3189 = vrot.slane %v3184, %v3188
    %v3190 = vlaneseq
    %v3191 = vshrl.u32 %v3190, 7
    %v3192 = vsub.s32 1, %v3191
    %v3193 = vrot.slane %v3184, %v3192
    %v3194 = vlaneseq
    %v3195 = vshrl.u32 %v3194, 7
    %v3196 = vsub.s32 2, %v3195
    %v3197 = vrot.slane %v3184, %v3196
    %v3198 = vlaneseq
    %v3199 = vshrl.u32 %v3198, 7
    %v3200 = vsub.s32 3, %v3199
    %v3201 = vrot.slane %v3184, %v3200
    %v3202 = vlaneseq
    %v3203 = vshrl.u32 %v3202, 7
    %v3204 = vsub.s32 4, %v3203
    %v3205 = vrot.slane %v3184, %v3204
    %v3206 = vlaneseq
    %v3207 = vshrl.u32 %v3206, 7
    %v3208 = vsub.s32 5, %v3207
    %v3209 = vrot.slane %v3184, %v3208
    %v3210 = vlaneseq
    %v3211 = vshrl.u32 %v3210, 7
    %v3212 = vsub.s32 6, %v3211
    %v3213 = vrot.slane %v3184, %v3212
    %v3214 = vlaneseq
    %v3215 = vshrl.u32 %v3214, 7
    %v3216 = vsub.s32 7, %v3215
    %v3217 = vrot.slane %v3184, %v3216
    %v3226 = vadd.f32 %v3168, %v3189
    %v3227 = vadd.f32 %v3169, %v3193
    %v3228 = vadd.f32 %v3170, %v3197
    %v3229 = vadd.f32 %v3171, %v3201
    %v3230 = vadd.f32 %v3172, %v3205
    %v3231 = vadd.f32 %v3173, %v3209
    %v3232 = vadd.f32 %v3174, %v3213
    %v3233 = vadd.f32 %v3175, %v3217
    %v3234 = vadd.f32 %v3176, %v3189
    %v3235 = vadd.f32 %v3177, %v3193
    %v3236 = vadd.f32 %v3178, %v3197
    %v3237 = vadd.f32 %v3179, %v3201
    %v3238 = vadd.f32 %v3180, %v3205
    %v3239 = vadd.f32 %v3181, %v3209
    %v3240 = vadd.f32 %v3182, %v3213
    %v3241 = vadd.f32 %v3183, %v3217
    %v3242 = vxor.u32 %v3226, 2147483648
    %v3243 = vxor.u32 %v3227, 2147483648
    %v3244 = vxor.u32 %v3228, 2147483648
    %v3245 = vxor.u32 %v3229, 2147483648
    %v3246 = vxor.u32 %v3230, 2147483648
    %v3247 = vxor.u32 %v3231, 2147483648
    %v3248 = vxor.u32 %v3232, 2147483648
    %v3249 = vxor.u32 %v3233, 2147483648
    %v3250 = vxor.u32 %v3234, 2147483648
    %v3251 = vxor.u32 %v3235, 2147483648
    %v3252 = vxor.u32 %v3236, 2147483648
    %v3253 = vxor.u32 %v3237, 2147483648
    %v3254 = vxor.u32 %v3238, 2147483648
    %v3255 = vxor.u32 %v3239, 2147483648
    %v3256 = vxor.u32 %v3240, 2147483648
    %v3257 = vxor.u32 %v3241, 2147483648
    %v3258 = vmul.f32 %v3242, 1.442695
    %v3259 = vpow.pop %v3258
    %v3260 = vmul.f32 %v3243, 1.442695
    %v3261 = vpow.pop %v3260
    %v3262 = vmul.f32 %v3244, 1.442695
    %v3263 = vpow.pop %v3262
    %v3264 = vmul.f32 %v3245, 1.442695
    %v3265 = vpow.pop %v3264
    %v3266 = vmul.f32 %v3246, 1.442695
    %v3267 = vpow.pop %v3266
    %v3268 = vmul.f32 %v3247, 1.442695
    %v3269 = vpow.pop %v3268
    %v3270 = vmul.f32 %v3248, 1.442695
    %v3271 = vpow.pop %v3270
    %v3272 = vmul.f32 %v3249, 1.442695
    %v3273 = vpow.pop %v3272
    %v3274 = vmul.f32 %v3250, 1.442695
    %v3275 = vpow.pop %v3274
    %v3276 = vmul.f32 %v3251, 1.442695
    %v3277 = vpow.pop %v3276
    %v3278 = vmul.f32 %v3252, 1.442695
    %v3279 = vpow.pop %v3278
    %v3280 = vmul.f32 %v3253, 1.442695
    %v3281 = vpow.pop %v3280
    %v3282 = vmul.f32 %v3254, 1.442695
    %v3283 = vpow.pop %v3282
    %v3284 = vmul.f32 %v3255, 1.442695
    %v3285 = vpow.pop %v3284
    %v3286 = vmul.f32 %v3256, 1.442695
    %v3287 = vpow.pop %v3286
    %v3288 = vmul.f32 %v3257, 1.442695
    %v3289 = vpow.pop %v3288
    %v3290 = vadd.f32 %v3259, 1.0
    %v3291 = vadd.f32 %v3261, 1.0
    %v3292 = vadd.f32 %v3263, 1.0
    %v3293 = vadd.f32 %v3265, 1.0
    %v3294 = vadd.f32 %v3267, 1.0
    %v3295 = vadd.f32 %v3269, 1.0
    %v3296 = vadd.f32 %v3271, 1.0
    %v3297 = vadd.f32 %v3273, 1.0
    %v3298 = vadd.f32 %v3275, 1.0
    %v3299 = vadd.f32 %v3277, 1.0
    %v3300 = vadd.f32 %v3279, 1.0
    %v3301 = vadd.f32 %v3281, 1.0
    %v3302 = vadd.f32 %v3283, 1.0
    %v3303 = vadd.f32 %v3285, 1.0
    %v3304 = vadd.f32 %v3287, 1.0
    %v3305 = vadd.f32 %v3289, 1.0
    %v3306 = vrcp.pop %v3290
    %v3307 = vmul.f32 1.0, %v3306
    %v3308 = vrcp.pop %v3291
    %v3309 = vmul.f32 1.0, %v3308
    %v3310 = vrcp.pop %v3292
    %v3311 = vmul.f32 1.0, %v3310
    %v3312 = vrcp.pop %v3293
    %v3313 = vmul.f32 1.0, %v3312
    %v3314 = vrcp.pop %v3294
    %v3315 = vmul.f32 1.0, %v3314
    %v3316 = vrcp.pop %v3295
    %v3317 = vmul.f32 1.0, %v3316
    %v3318 = vrcp.pop %v3296
    %v3319 = vmul.f32 1.0, %v3318
    %v3320 = vrcp.pop %v3297
    %v3321 = vmul.f32 1.0, %v3320
    %v3322 = vrcp.pop %v3298
    %v3323 = vmul.f32 1.0, %v3322
    %v3324 = vrcp.pop %v3299
    %v3325 = vmul.f32 1.0, %v3324
    %v3326 = vrcp.pop %v3300
    %v3327 = vmul.f32 1.0, %v3326
    %v3328 = vrcp.pop %v3301
    %v3329 = vmul.f32 1.0, %v3328
    %v3330 = vrcp.pop %v3302
    %v3331 = vmul.f32 1.0, %v3330
    %v3332 = vrcp.pop %v3303
    %v3333 = vmul.f32 1.0, %v3332
    %v3334 = vrcp.pop %v3304
    %v3335 = vmul.f32 1.0, %v3334
    %v3336 = vrcp.pop %v3305
    %v3337 = vmul.f32 1.0, %v3336
    %v3338 = vmul.f32 %v3226, %v3307
    %v3339 = vmul.f32 %v3227, %v3309
    %v3340 = vmul.f32 %v3228, %v3311
    %v3341 = vmul.f32 %v3229, %v3313
    %v3342 = vmul.f32 %v3230, %v3315
    %v3343 = vmul.f32 %v3231, %v3317
    %v3344 = vmul.f32 %v3232, %v3319
    %v3345 = vmul.f32 %v3233, %v3321
    %v3346 = vmul.f32 %v3234, %v3323
    %v3347 = vmul.f32 %v3235, %v3325
    %v3348 = vmul.f32 %v3236, %v3327
    %v3349 = vmul.f32 %v3237, %v3329
    %v3350 = vmul.f32 %v3238, %v3331
    %v3351 = vmul.f32 %v3239, %v3333
    %v3352 = vmul.f32 %v3240, %v3335
    %v3353 = vmul.f32 %v3241, %v3337
    %v3354 = vpack.c.bf16 %v3346, %v3338
    %v3355 = vpack.c.bf16 %v3347, %v3339
    %v3356 = vpack.c.bf16 %v3348, %v3340
    %v3357 = vpack.c.bf16 %v3349, %v3341
    %v3358 = vpack.c.bf16 %v3350, %v3342
    %v3359 = vpack.c.bf16 %v3351, %v3343
    %v3360 = vpack.c.bf16 %v3352, %v3344
    %v3361 = vpack.c.bf16 %v3353, %v3345
    %v3362 = vld [vmem:[#allocation11] sm:$0xff]
    %v3363 = vld [vmem:[#allocation11 + $0x8] sm:$0xf]
    %v3364 = vld [vmem:[#allocation11 + $0xc] sm:$0xff]
    %v3365 = vld [vmem:[#allocation11 + $0x14] sm:$0xf]
    %v3366 = vld [vmem:[#allocation11 + $0x18] sm:$0xff]
    %v3367 = vld [vmem:[#allocation11 + $0x20] sm:$0xf]
    %v3368 = vld [vmem:[#allocation11 + $0x24] sm:$0xff]
    %v3369 = vld [vmem:[#allocation11 + $0x2c] sm:$0xf]
    %v3370 = vld [vmem:[#allocation11 + $0x30] sm:$0xff]
    %v3371 = vld [vmem:[#allocation11 + $0x38] sm:$0xf]
    %v3372 = vld [vmem:[#allocation11 + $0x3c] sm:$0xff]
    %v3373 = vld [vmem:[#allocation11 + $0x44] sm:$0xf]
    %v3374 = vld [vmem:[#allocation11 + $0x48] sm:$0xff]
    %v3375 = vld [vmem:[#allocation11 + $0x50] sm:$0xf]
    %v3376 = vld [vmem:[#allocation11 + $0x54] sm:$0xff]
    %v3377 = vld [vmem:[#allocation11 + $0x5c] sm:$0xf]
    %v3378 = vld [vmem:[#allocation11 + $0x60] sm:$0xff]
    %v3379 = vld [vmem:[#allocation11 + $0x68] sm:$0xf]
    %v3380 = vld [vmem:[#allocation11 + $0x6c] sm:$0xff]
    %v3381 = vld [vmem:[#allocation11 + $0x74] sm:$0xf]
    %v3382 = vld [vmem:[#allocation11 + $0x78] sm:$0xff]
    %v3383 = vld [vmem:[#allocation11 + $0x80] sm:$0xf]
    %v3384 = vld [vmem:[#allocation11 + $0x84] sm:$0xff]
    %v3385 = vld [vmem:[#allocation11 + $0x8c] sm:$0xf]
    %v3386 = vld [vmem:[#allocation11 + $0x90] sm:$0xff]
    %v3387 = vld [vmem:[#allocation11 + $0x98] sm:$0xf]
    %v3388 = vld [vmem:[#allocation11 + $0x9c] sm:$0xff]
    %v3389 = vld [vmem:[#allocation11 + $0xa4] sm:$0xf]
    %v3390 = vld [vmem:[#allocation11 + $0xa8] sm:$0xff]
    %v3391 = vld [vmem:[#allocation11 + $0xb0] sm:$0xf]
    %v3392 = vld [vmem:[#allocation11 + $0xb4] sm:$0xff]
    %v3393 = vld [vmem:[#allocation11 + $0xbc] sm:$0xf]
    %v3394 = vld [vmem:[#allocation11 + $0xc0] sm:$0xff]
    %v3395 = vld [vmem:[#allocation11 + $0xc8] sm:$0xf]
    %v3396 = vld [vmem:[#allocation11 + $0xcc] sm:$0xff]
    %v3397 = vld [vmem:[#allocation11 + $0xd4] sm:$0xf]
    %v3398 = vld [vmem:[#allocation11 + $0xd8] sm:$0xff]
    %v3399 = vld [vmem:[#allocation11 + $0xe0] sm:$0xf]
    %v3400 = vld [vmem:[#allocation11 + $0xe4] sm:$0xff]
    %v3401 = vld [vmem:[#allocation11 + $0xec] sm:$0xf]
    %v3402 = vld [vmem:[#allocation11 + $0xf0] sm:$0xff]
    %v3403 = vld [vmem:[#allocation11 + $0xf8] sm:$0xf]
    %v3404 = vld [vmem:[#allocation11 + $0xfc] sm:$0xff]
    %v3405 = vld [vmem:[#allocation11 + $0x104] sm:$0xf]
    %v3406 = vld [vmem:[#allocation11 + $0x108] sm:$0xff]
    %v3407 = vld [vmem:[#allocation11 + $0x110] sm:$0xf]
    %v3408 = vld [vmem:[#allocation11 + $0x114] sm:$0xff]
    %v3409 = vld [vmem:[#allocation11 + $0x11c] sm:$0xf]
    %v3410 = vld [vmem:[#allocation11 + $0x120] sm:$0xff]
    %v3411 = vld [vmem:[#allocation11 + $0x128] sm:$0xf]
    %v3412 = vld [vmem:[#allocation11 + $0x12c] sm:$0xff]
    %v3413 = vld [vmem:[#allocation11 + $0x134] sm:$0xf]
    %v3414 = vld [vmem:[#allocation11 + $0x138] sm:$0xff]
    %v3415 = vld [vmem:[#allocation11 + $0x140] sm:$0xf]
    %v3416 = vld [vmem:[#allocation11 + $0x144] sm:$0xff]
    %v3417 = vld [vmem:[#allocation11 + $0x14c] sm:$0xf]
    %v3418 = vld [vmem:[#allocation11 + $0x150] sm:$0xff]
    %v3419 = vld [vmem:[#allocation11 + $0x158] sm:$0xf]
    %v3420 = vld [vmem:[#allocation11 + $0x15c] sm:$0xff]
    %v3421 = vld [vmem:[#allocation11 + $0x164] sm:$0xf]
    %v3422 = vld [vmem:[#allocation11 + $0x168] sm:$0xff]
    %v3423 = vld [vmem:[#allocation11 + $0x170] sm:$0xf]
    %v3424 = vld [vmem:[#allocation11 + $0x174] sm:$0xff]
    %v3425 = vld [vmem:[#allocation11 + $0x17c] sm:$0xf]
    %v3426 = vld [vmem:[#allocation11 + $0x180] sm:$0xff]
    %v3427 = vld [vmem:[#allocation11 + $0x188] sm:$0xf]
    %v3428 = vld [vmem:[#allocation11 + $0x18c] sm:$0xff]
    %v3429 = vld [vmem:[#allocation11 + $0x194] sm:$0xf]
    %v3430 = vld [vmem:[#allocation11 + $0x198] sm:$0xff]
    %v3431 = vld [vmem:[#allocation11 + $0x1a0] sm:$0xf]
    %v3432 = vld [vmem:[#allocation11 + $0x1a4] sm:$0xff]
    %v3433 = vld [vmem:[#allocation11 + $0x1ac] sm:$0xf]
    %v3434 = vld [vmem:[#allocation11 + $0x1b0] sm:$0xff]
    %v3435 = vld [vmem:[#allocation11 + $0x1b8] sm:$0xf]
    %v3436 = vld [vmem:[#allocation11 + $0x1bc] sm:$0xff]
    %v3437 = vld [vmem:[#allocation11 + $0x1c4] sm:$0xf]
    %v3438 = vld [vmem:[#allocation11 + $0x1c8] sm:$0xff]
    %v3439 = vld [vmem:[#allocation11 + $0x1d0] sm:$0xf]
    %v3440 = vld [vmem:[#allocation11 + $0x1d4] sm:$0xff]
    %v3441 = vld [vmem:[#allocation11 + $0x1dc] sm:$0xf]
    %v3442 = vld [vmem:[#allocation11 + $0x1e0] sm:$0xff]
    %v3443 = vld [vmem:[#allocation11 + $0x1e8] sm:$0xf]
    %v3444 = vld [vmem:[#allocation11 + $0x1ec] sm:$0xff]
    %v3445 = vld [vmem:[#allocation11 + $0x1f4] sm:$0xf]
    %v3446 = vld [vmem:[#allocation11 + $0x1f8] sm:$0xff]
    %v3447 = vld [vmem:[#allocation11 + $0x200] sm:$0xf]
    %v3448 = vld [vmem:[#allocation11 + $0x204] sm:$0xff]
    %v3449 = vld [vmem:[#allocation11 + $0x20c] sm:$0xf]
    %v3450 = vld [vmem:[#allocation11 + $0x210] sm:$0xff]
    %v3451 = vld [vmem:[#allocation11 + $0x218] sm:$0xf]
    %v3452 = vld [vmem:[#allocation11 + $0x21c] sm:$0xff]
    %v3453 = vld [vmem:[#allocation11 + $0x224] sm:$0xf]
    %v3454 = vld [vmem:[#allocation11 + $0x228] sm:$0xff]
    %v3455 = vld [vmem:[#allocation11 + $0x230] sm:$0xf]
    %v3456 = vld [vmem:[#allocation11 + $0x234] sm:$0xff]
    %v3457 = vld [vmem:[#allocation11 + $0x23c] sm:$0xf]
    %v3458 = vld [vmem:[#allocation11 + $0x240] sm:$0xff]
    %v3459 = vld [vmem:[#allocation11 + $0x248] sm:$0xf]
    %v3460 = vld [vmem:[#allocation11 + $0x24c] sm:$0xff]
    %v3461 = vld [vmem:[#allocation11 + $0x254] sm:$0xf]
    %v3462 = vld [vmem:[#allocation11 + $0x258] sm:$0xff]
    %v3463 = vld [vmem:[#allocation11 + $0x260] sm:$0xf]
    %v3464 = vld [vmem:[#allocation11 + $0x264] sm:$0xff]
    %v3465 = vld [vmem:[#allocation11 + $0x26c] sm:$0xf]
    %v3466 = vld [vmem:[#allocation11 + $0x270] sm:$0xff]
    %v3467 = vld [vmem:[#allocation11 + $0x278] sm:$0xf]
    %v3468 = vld [vmem:[#allocation11 + $0x27c] sm:$0xff]
    %v3469 = vld [vmem:[#allocation11 + $0x284] sm:$0xf]
    %v3470 = vld [vmem:[#allocation11 + $0x288] sm:$0xff]
    %v3471 = vld [vmem:[#allocation11 + $0x290] sm:$0xf]
    %v3472 = vld [vmem:[#allocation11 + $0x294] sm:$0xff]
    %v3473 = vld [vmem:[#allocation11 + $0x29c] sm:$0xf]
    %v3474 = vld [vmem:[#allocation11 + $0x2a0] sm:$0xff]
    %v3475 = vld [vmem:[#allocation11 + $0x2a8] sm:$0xf]
    %v3476 = vld [vmem:[#allocation11 + $0x2ac] sm:$0xff]
    %v3477 = vld [vmem:[#allocation11 + $0x2b4] sm:$0xf]
    %v3478 = vld [vmem:[#allocation11 + $0x2b8] sm:$0xff]
    %v3479 = vld [vmem:[#allocation11 + $0x2c0] sm:$0xf]
    %v3480 = vld [vmem:[#allocation11 + $0x2c4] sm:$0xff]
    %v3481 = vld [vmem:[#allocation11 + $0x2cc] sm:$0xf]
    %v3482 = vld [vmem:[#allocation11 + $0x2d0] sm:$0xff]
    %v3483 = vld [vmem:[#allocation11 + $0x2d8] sm:$0xf]
    %v3484 = vld [vmem:[#allocation11 + $0x2dc] sm:$0xff]
    %v3485 = vld [vmem:[#allocation11 + $0x2e4] sm:$0xf]
    %v3486 = vld [vmem:[#allocation11 + $0x2e8] sm:$0xff]
    %v3487 = vld [vmem:[#allocation11 + $0x2f0] sm:$0xf]
    %v3488 = vld [vmem:[#allocation11 + $0x2f4] sm:$0xff]
    %v3489 = vld [vmem:[#allocation11 + $0x2fc] sm:$0xf]
    %v3490 = vld [vmem:[#allocation11 + $0x300] sm:$0xff]
    %v3491 = vld [vmem:[#allocation11 + $0x308] sm:$0xf]
    %v3492 = vld [vmem:[#allocation11 + $0x30c] sm:$0xff]
    %v3493 = vld [vmem:[#allocation11 + $0x314] sm:$0xf]
    %v3494 = vld [vmem:[#allocation11 + $0x318] sm:$0xff]
    %v3495 = vld [vmem:[#allocation11 + $0x320] sm:$0xf]
    %v3496 = vld [vmem:[#allocation11 + $0x324] sm:$0xff]
    %v3497 = vld [vmem:[#allocation11 + $0x32c] sm:$0xf]
    %v3498 = vld [vmem:[#allocation11 + $0x330] sm:$0xff]
    %v3499 = vld [vmem:[#allocation11 + $0x338] sm:$0xf]
    %v3500 = vld [vmem:[#allocation11 + $0x33c] sm:$0xff]
    %v3501 = vld [vmem:[#allocation11 + $0x344] sm:$0xf]
    %v3502 = vld [vmem:[#allocation11 + $0x348] sm:$0xff]
    %v3503 = vld [vmem:[#allocation11 + $0x350] sm:$0xf]
    %v3504 = vld [vmem:[#allocation11 + $0x354] sm:$0xff]
    %v3505 = vld [vmem:[#allocation11 + $0x35c] sm:$0xf]
    %v3506 = vld [vmem:[#allocation11 + $0x360] sm:$0xff]
    %v3507 = vld [vmem:[#allocation11 + $0x368] sm:$0xf]
    %v3508 = vld [vmem:[#allocation11 + $0x36c] sm:$0xff]
    %v3509 = vld [vmem:[#allocation11 + $0x374] sm:$0xf]
    %v3510 = vld [vmem:[#allocation11 + $0x378] sm:$0xff]
    %v3511 = vld [vmem:[#allocation11 + $0x380] sm:$0xf]
    %v3512 = vld [vmem:[#allocation11 + $0x384] sm:$0xff]
    %v3513 = vld [vmem:[#allocation11 + $0x38c] sm:$0xf]
    %v3514 = vld [vmem:[#allocation11 + $0x390] sm:$0xff]
    %v3515 = vld [vmem:[#allocation11 + $0x398] sm:$0xf]
    %v3516 = vld [vmem:[#allocation11 + $0x39c] sm:$0xff]
    %v3517 = vld [vmem:[#allocation11 + $0x3a4] sm:$0xf]
    %v3518 = vld [vmem:[#allocation11 + $0x3a8] sm:$0xff]
    %v3519 = vld [vmem:[#allocation11 + $0x3b0] sm:$0xf]
    %v3520 = vld [vmem:[#allocation11 + $0x3b4] sm:$0xff]
    %v3521 = vld [vmem:[#allocation11 + $0x3bc] sm:$0xf]
    %v3522 = vld [vmem:[#allocation11 + $0x3c0] sm:$0xff]
    %v3523 = vld [vmem:[#allocation11 + $0x3c8] sm:$0xf]
    %v3524 = vld [vmem:[#allocation11 + $0x3cc] sm:$0xff]
    %v3525 = vld [vmem:[#allocation11 + $0x3d4] sm:$0xf]
    %v3526 = vld [vmem:[#allocation11 + $0x3d8] sm:$0xff]
    %v3527 = vld [vmem:[#allocation11 + $0x3e0] sm:$0xf]
    %v3528 = vld [vmem:[#allocation11 + $0x3e4] sm:$0xff]
    %v3529 = vld [vmem:[#allocation11 + $0x3ec] sm:$0xf]
    %v3530 = vld [vmem:[#allocation11 + $0x3f0] sm:$0xff]
    %v3531 = vld [vmem:[#allocation11 + $0x3f8] sm:$0xf]
    %v3532 = vld [vmem:[#allocation11 + $0x3fc] sm:$0xff]
    %v3533 = vld [vmem:[#allocation11 + $0x404] sm:$0xf]
    %v3534 = vld [vmem:[#allocation11 + $0x408] sm:$0xff]
    %v3535 = vld [vmem:[#allocation11 + $0x410] sm:$0xf]
    %v3536 = vld [vmem:[#allocation11 + $0x414] sm:$0xff]
    %v3537 = vld [vmem:[#allocation11 + $0x41c] sm:$0xf]
    %v3538 = vld [vmem:[#allocation11 + $0x420] sm:$0xff]
    %v3539 = vld [vmem:[#allocation11 + $0x428] sm:$0xf]
    %v3540 = vld [vmem:[#allocation11 + $0x42c] sm:$0xff]
    %v3541 = vld [vmem:[#allocation11 + $0x434] sm:$0xf]
    %v3542 = vld [vmem:[#allocation11 + $0x438] sm:$0xff]
    %v3543 = vld [vmem:[#allocation11 + $0x440] sm:$0xf]
    %v3544 = vld [vmem:[#allocation11 + $0x444] sm:$0xff]
    %v3545 = vld [vmem:[#allocation11 + $0x44c] sm:$0xf]
    %v3546 = vld [vmem:[#allocation11 + $0x450] sm:$0xff]
    %v3547 = vld [vmem:[#allocation11 + $0x458] sm:$0xf]
    %v3548 = vld [vmem:[#allocation11 + $0x45c] sm:$0xff]
    %v3549 = vld [vmem:[#allocation11 + $0x464] sm:$0xf]
    %v3550 = vld [vmem:[#allocation11 + $0x468] sm:$0xff]
    %v3551 = vld [vmem:[#allocation11 + $0x470] sm:$0xf]
    %v3552 = vld [vmem:[#allocation11 + $0x474] sm:$0xff]
    %v3553 = vld [vmem:[#allocation11 + $0x47c] sm:$0xf]
    %v3554 = vld [vmem:[#allocation11 + $0x480] sm:$0xff]
    %v3555 = vld [vmem:[#allocation11 + $0x488] sm:$0xf]
    %v3556 = vld [vmem:[#allocation11 + $0x48c] sm:$0xff]
    %v3557 = vld [vmem:[#allocation11 + $0x494] sm:$0xf]
    %v3558 = vld [vmem:[#allocation11 + $0x498] sm:$0xff]
    %v3559 = vld [vmem:[#allocation11 + $0x4a0] sm:$0xf]
    %v3560 = vld [vmem:[#allocation11 + $0x4a4] sm:$0xff]
    %v3561 = vld [vmem:[#allocation11 + $0x4ac] sm:$0xf]
    %v3562 = vld [vmem:[#allocation11 + $0x4b0] sm:$0xff]
    %v3563 = vld [vmem:[#allocation11 + $0x4b8] sm:$0xf]
    %v3564 = vld [vmem:[#allocation11 + $0x4bc] sm:$0xff]
    %v3565 = vld [vmem:[#allocation11 + $0x4c4] sm:$0xf]
    %v3566 = vld [vmem:[#allocation11 + $0x4c8] sm:$0xff]
    %v3567 = vld [vmem:[#allocation11 + $0x4d0] sm:$0xf]
    %v3568 = vld [vmem:[#allocation11 + $0x4d4] sm:$0xff]
    %v3569 = vld [vmem:[#allocation11 + $0x4dc] sm:$0xf]
    %v3570 = vld [vmem:[#allocation11 + $0x4e0] sm:$0xff]
    %v3571 = vld [vmem:[#allocation11 + $0x4e8] sm:$0xf]
    %v3572 = vld [vmem:[#allocation11 + $0x4ec] sm:$0xff]
    %v3573 = vld [vmem:[#allocation11 + $0x4f4] sm:$0xf]
    %v3574 = vld [vmem:[#allocation11 + $0x4f8] sm:$0xff]
    %v3575 = vld [vmem:[#allocation11 + $0x500] sm:$0xf]
    %v3576 = vld [vmem:[#allocation11 + $0x504] sm:$0xff]
    %v3577 = vld [vmem:[#allocation11 + $0x50c] sm:$0xf]
    %v3578 = vld [vmem:[#allocation11 + $0x510] sm:$0xff]
    %v3579 = vld [vmem:[#allocation11 + $0x518] sm:$0xf]
    %v3580 = vld [vmem:[#allocation11 + $0x51c] sm:$0xff]
    %v3581 = vld [vmem:[#allocation11 + $0x524] sm:$0xf]
    %v3582 = vld [vmem:[#allocation11 + $0x528] sm:$0xff]
    %v3583 = vld [vmem:[#allocation11 + $0x530] sm:$0xf]
    %v3584 = vld [vmem:[#allocation11 + $0x534] sm:$0xff]
    %v3585 = vld [vmem:[#allocation11 + $0x53c] sm:$0xf]
    %v3586 = vld [vmem:[#allocation11 + $0x540] sm:$0xff]
    %v3587 = vld [vmem:[#allocation11 + $0x548] sm:$0xf]
    %v3588 = vld [vmem:[#allocation11 + $0x54c] sm:$0xff]
    %v3589 = vld [vmem:[#allocation11 + $0x554] sm:$0xf]
    %v3590 = vld [vmem:[#allocation11 + $0x558] sm:$0xff]
    %v3591 = vld [vmem:[#allocation11 + $0x560] sm:$0xf]
    %v3592 = vld [vmem:[#allocation11 + $0x564] sm:$0xff]
    %v3593 = vld [vmem:[#allocation11 + $0x56c] sm:$0xf]
    %v3594 = vld [vmem:[#allocation11 + $0x570] sm:$0xff]
    %v3595 = vld [vmem:[#allocation11 + $0x578] sm:$0xf]
    %v3596 = vld [vmem:[#allocation11 + $0x57c] sm:$0xff]
    %v3597 = vld [vmem:[#allocation11 + $0x584] sm:$0xf]
    %v3598 = vld [vmem:[#allocation11 + $0x588] sm:$0xff]
    %v3599 = vld [vmem:[#allocation11 + $0x590] sm:$0xf]
    %v3600 = vld [vmem:[#allocation11 + $0x594] sm:$0xff]
    %v3601 = vld [vmem:[#allocation11 + $0x59c] sm:$0xf]
    %v3602 = vld [vmem:[#allocation11 + $0x5a0] sm:$0xff]
    %v3603 = vld [vmem:[#allocation11 + $0x5a8] sm:$0xf]
    %v3604 = vld [vmem:[#allocation11 + $0x5ac] sm:$0xff]
    %v3605 = vld [vmem:[#allocation11 + $0x5b4] sm:$0xf]
    %v3606 = vld [vmem:[#allocation11 + $0x5b8] sm:$0xff]
    %v3607 = vld [vmem:[#allocation11 + $0x5c0] sm:$0xf]
    %v3608 = vld [vmem:[#allocation11 + $0x5c4] sm:$0xff]
    %v3609 = vld [vmem:[#allocation11 + $0x5cc] sm:$0xf]
    %v3610 = vld [vmem:[#allocation11 + $0x5d0] sm:$0xff]
    %v3611 = vld [vmem:[#allocation11 + $0x5d8] sm:$0xf]
    %v3612 = vld [vmem:[#allocation11 + $0x5dc] sm:$0xff]
    %v3613 = vld [vmem:[#allocation11 + $0x5e4] sm:$0xf]
    %v3614 = vld [vmem:[#allocation11 + $0x5e8] sm:$0xff]
    %v3615 = vld [vmem:[#allocation11 + $0x5f0] sm:$0xf]
    %v3616 = vld [vmem:[#allocation11 + $0x5f4] sm:$0xff]
    %v3617 = vld [vmem:[#allocation11 + $0x5fc] sm:$0xf]
    %v3874 = vunpack.c.l.b16 %v3362
    %v3875 = vunpack.c.h.b16 %v3362
    %v3876 = vunpack.c.l.b16 %v3363
    %v3877 = vunpack.c.l.b16 %v3364
    %v3878 = vunpack.c.h.b16 %v3364
    %v3879 = vunpack.c.l.b16 %v3365
    %v3880 = vunpack.c.l.b16 %v3366
    %v3881 = vunpack.c.h.b16 %v3366
    %v3882 = vunpack.c.l.b16 %v3367
    %v3883 = vunpack.c.l.b16 %v3368
    %v3884 = vunpack.c.h.b16 %v3368
    %v3885 = vunpack.c.l.b16 %v3369
    %v3886 = vunpack.c.l.b16 %v3370
    %v3887 = vunpack.c.h.b16 %v3370
    %v3888 = vunpack.c.l.b16 %v3371
    %v3889 = vunpack.c.l.b16 %v3372
    %v3890 = vunpack.c.h.b16 %v3372
    %v3891 = vunpack.c.l.b16 %v3373
    %v3892 = vunpack.c.l.b16 %v3374
    %v3893 = vunpack.c.h.b16 %v3374
    %v3894 = vunpack.c.l.b16 %v3375
    %v3895 = vunpack.c.l.b16 %v3376
    %v3896 = vunpack.c.h.b16 %v3376
    %v3897 = vunpack.c.l.b16 %v3377
    %v3898 = vunpack.c.l.b16 %v3378
    %v3899 = vunpack.c.h.b16 %v3378
    %v3900 = vunpack.c.l.b16 %v3379
    %v3901 = vunpack.c.l.b16 %v3380
    %v3902 = vunpack.c.h.b16 %v3380
    %v3903 = vunpack.c.l.b16 %v3381
    %v3904 = vunpack.c.l.b16 %v3382
    %v3905 = vunpack.c.h.b16 %v3382
    %v3906 = vunpack.c.l.b16 %v3383
    %v3907 = vunpack.c.l.b16 %v3384
    %v3908 = vunpack.c.h.b16 %v3384
    %v3909 = vunpack.c.l.b16 %v3385
    %v3910 = vunpack.c.l.b16 %v3386
    %v3911 = vunpack.c.h.b16 %v3386
    %v3912 = vunpack.c.l.b16 %v3387
    %v3913 = vunpack.c.l.b16 %v3388
    %v3914 = vunpack.c.h.b16 %v3388
    %v3915 = vunpack.c.l.b16 %v3389
    %v3916 = vunpack.c.l.b16 %v3390
    %v3917 = vunpack.c.h.b16 %v3390
    %v3918 = vunpack.c.l.b16 %v3391
    %v3919 = vunpack.c.l.b16 %v3392
    %v3920 = vunpack.c.h.b16 %v3392
    %v3921 = vunpack.c.l.b16 %v3393
    %v3922 = vunpack.c.l.b16 %v3394
    %v3923 = vunpack.c.h.b16 %v3394
    %v3924 = vunpack.c.l.b16 %v3395
    %v3925 = vunpack.c.l.b16 %v3396
    %v3926 = vunpack.c.h.b16 %v3396
    %v3927 = vunpack.c.l.b16 %v3397
    %v3928 = vunpack.c.l.b16 %v3398
    %v3929 = vunpack.c.h.b16 %v3398
    %v3930 = vunpack.c.l.b16 %v3399
    %v3931 = vunpack.c.l.b16 %v3400
    %v3932 = vunpack.c.h.b16 %v3400
    %v3933 = vunpack.c.l.b16 %v3401
    %v3934 = vunpack.c.l.b16 %v3402
    %v3935 = vunpack.c.h.b16 %v3402
    %v3936 = vunpack.c.l.b16 %v3403
    %v3937 = vunpack.c.l.b16 %v3404
    %v3938 = vunpack.c.h.b16 %v3404
    %v3939 = vunpack.c.l.b16 %v3405
    %v3940 = vunpack.c.l.b16 %v3406
    %v3941 = vunpack.c.h.b16 %v3406
    %v3942 = vunpack.c.l.b16 %v3407
    %v3943 = vunpack.c.l.b16 %v3408
    %v3944 = vunpack.c.h.b16 %v3408
    %v3945 = vunpack.c.l.b16 %v3409
    %v3946 = vunpack.c.l.b16 %v3410
    %v3947 = vunpack.c.h.b16 %v3410
    %v3948 = vunpack.c.l.b16 %v3411
    %v3949 = vunpack.c.l.b16 %v3412
    %v3950 = vunpack.c.h.b16 %v3412
    %v3951 = vunpack.c.l.b16 %v3413
    %v3952 = vunpack.c.l.b16 %v3414
    %v3953 = vunpack.c.h.b16 %v3414
    %v3954 = vunpack.c.l.b16 %v3415
    %v3955 = vunpack.c.l.b16 %v3416
    %v3956 = vunpack.c.h.b16 %v3416
    %v3957 = vunpack.c.l.b16 %v3417
    %v3958 = vunpack.c.l.b16 %v3418
    %v3959 = vunpack.c.h.b16 %v3418
    %v3960 = vunpack.c.l.b16 %v3419
    %v3961 = vunpack.c.l.b16 %v3420
    %v3962 = vunpack.c.h.b16 %v3420
    %v3963 = vunpack.c.l.b16 %v3421
    %v3964 = vunpack.c.l.b16 %v3422
    %v3965 = vunpack.c.h.b16 %v3422
    %v3966 = vunpack.c.l.b16 %v3423
    %v3967 = vunpack.c.l.b16 %v3424
    %v3968 = vunpack.c.h.b16 %v3424
    %v3969 = vunpack.c.l.b16 %v3425
    %v3970 = vunpack.c.l.b16 %v3426
    %v3971 = vunpack.c.h.b16 %v3426
    %v3972 = vunpack.c.l.b16 %v3427
    %v3973 = vunpack.c.l.b16 %v3428
    %v3974 = vunpack.c.h.b16 %v3428
    %v3975 = vunpack.c.l.b16 %v3429
    %v3976 = vunpack.c.l.b16 %v3430
    %v3977 = vunpack.c.h.b16 %v3430
    %v3978 = vunpack.c.l.b16 %v3431
    %v3979 = vunpack.c.l.b16 %v3432
    %v3980 = vunpack.c.h.b16 %v3432
    %v3981 = vunpack.c.l.b16 %v3433
    %v3982 = vunpack.c.l.b16 %v3434
    %v3983 = vunpack.c.h.b16 %v3434
    %v3984 = vunpack.c.l.b16 %v3435
    %v3985 = vunpack.c.l.b16 %v3436
    %v3986 = vunpack.c.h.b16 %v3436
    %v3987 = vunpack.c.l.b16 %v3437
    %v3988 = vunpack.c.l.b16 %v3438
    %v3989 = vunpack.c.h.b16 %v3438
    %v3990 = vunpack.c.l.b16 %v3439
    %v3991 = vunpack.c.l.b16 %v3440
    %v3992 = vunpack.c.h.b16 %v3440
    %v3993 = vunpack.c.l.b16 %v3441
    %v3994 = vunpack.c.l.b16 %v3442
    %v3995 = vunpack.c.h.b16 %v3442
    %v3996 = vunpack.c.l.b16 %v3443
    %v3997 = vunpack.c.l.b16 %v3444
    %v3998 = vunpack.c.h.b16 %v3444
    %v3999 = vunpack.c.l.b16 %v3445
    %v4000 = vunpack.c.l.b16 %v3446
    %v4001 = vunpack.c.h.b16 %v3446
    %v4002 = vunpack.c.l.b16 %v3447
    %v4003 = vunpack.c.l.b16 %v3448
    %v4004 = vunpack.c.h.b16 %v3448
    %v4005 = vunpack.c.l.b16 %v3449
    %v4006 = vunpack.c.l.b16 %v3450
    %v4007 = vunpack.c.h.b16 %v3450
    %v4008 = vunpack.c.l.b16 %v3451
    %v4009 = vunpack.c.l.b16 %v3452
    %v4010 = vunpack.c.h.b16 %v3452
    %v4011 = vunpack.c.l.b16 %v3453
    %v4012 = vunpack.c.l.b16 %v3454
    %v4013 = vunpack.c.h.b16 %v3454
    %v4014 = vunpack.c.l.b16 %v3455
    %v4015 = vunpack.c.l.b16 %v3456
    %v4016 = vunpack.c.h.b16 %v3456
    %v4017 = vunpack.c.l.b16 %v3457
    %v4018 = vunpack.c.l.b16 %v3458
    %v4019 = vunpack.c.h.b16 %v3458
    %v4020 = vunpack.c.l.b16 %v3459
    %v4021 = vunpack.c.l.b16 %v3460
    %v4022 = vunpack.c.h.b16 %v3460
    %v4023 = vunpack.c.l.b16 %v3461
    %v4024 = vunpack.c.l.b16 %v3462
    %v4025 = vunpack.c.h.b16 %v3462
    %v4026 = vunpack.c.l.b16 %v3463
    %v4027 = vunpack.c.l.b16 %v3464
    %v4028 = vunpack.c.h.b16 %v3464
    %v4029 = vunpack.c.l.b16 %v3465
    %v4030 = vunpack.c.l.b16 %v3466
    %v4031 = vunpack.c.h.b16 %v3466
    %v4032 = vunpack.c.l.b16 %v3467
    %v4033 = vunpack.c.l.b16 %v3468
    %v4034 = vunpack.c.h.b16 %v3468
    %v4035 = vunpack.c.l.b16 %v3469
    %v4036 = vunpack.c.l.b16 %v3470
    %v4037 = vunpack.c.h.b16 %v3470
    %v4038 = vunpack.c.l.b16 %v3471
    %v4039 = vunpack.c.l.b16 %v3472
    %v4040 = vunpack.c.h.b16 %v3472
    %v4041 = vunpack.c.l.b16 %v3473
    %v4042 = vunpack.c.l.b16 %v3474
    %v4043 = vunpack.c.h.b16 %v3474
    %v4044 = vunpack.c.l.b16 %v3475
    %v4045 = vunpack.c.l.b16 %v3476
    %v4046 = vunpack.c.h.b16 %v3476
    %v4047 = vunpack.c.l.b16 %v3477
    %v4048 = vunpack.c.l.b16 %v3478
    %v4049 = vunpack.c.h.b16 %v3478
    %v4050 = vunpack.c.l.b16 %v3479
    %v4051 = vunpack.c.l.b16 %v3480
    %v4052 = vunpack.c.h.b16 %v3480
    %v4053 = vunpack.c.l.b16 %v3481
    %v4054 = vunpack.c.l.b16 %v3482
    %v4055 = vunpack.c.h.b16 %v3482
    %v4056 = vunpack.c.l.b16 %v3483
    %v4057 = vunpack.c.l.b16 %v3484
    %v4058 = vunpack.c.h.b16 %v3484
    %v4059 = vunpack.c.l.b16 %v3485
    %v4060 = vunpack.c.l.b16 %v3486
    %v4061 = vunpack.c.h.b16 %v3486
    %v4062 = vunpack.c.l.b16 %v3487
    %v4063 = vunpack.c.l.b16 %v3488
    %v4064 = vunpack.c.h.b16 %v3488
    %v4065 = vunpack.c.l.b16 %v3489
    %v4066 = vunpack.c.l.b16 %v3490
    %v4067 = vunpack.c.h.b16 %v3490
    %v4068 = vunpack.c.l.b16 %v3491
    %v4069 = vunpack.c.l.b16 %v3492
    %v4070 = vunpack.c.h.b16 %v3492
    %v4071 = vunpack.c.l.b16 %v3493
    %v4072 = vunpack.c.l.b16 %v3494
    %v4073 = vunpack.c.h.b16 %v3494
    %v4074 = vunpack.c.l.b16 %v3495
    %v4075 = vunpack.c.l.b16 %v3496
    %v4076 = vunpack.c.h.b16 %v3496
    %v4077 = vunpack.c.l.b16 %v3497
    %v4078 = vunpack.c.l.b16 %v3498
    %v4079 = vunpack.c.h.b16 %v3498
    %v4080 = vunpack.c.l.b16 %v3499
    %v4081 = vunpack.c.l.b16 %v3500
    %v4082 = vunpack.c.h.b16 %v3500
    %v4083 = vunpack.c.l.b16 %v3501
    %v4084 = vunpack.c.l.b16 %v3502
    %v4085 = vunpack.c.h.b16 %v3502
    %v4086 = vunpack.c.l.b16 %v3503
    %v4087 = vunpack.c.l.b16 %v3504
    %v4088 = vunpack.c.h.b16 %v3504
    %v4089 = vunpack.c.l.b16 %v3505
    %v4090 = vunpack.c.l.b16 %v3506
    %v4091 = vunpack.c.h.b16 %v3506
    %v4092 = vunpack.c.l.b16 %v3507
    %v4093 = vunpack.c.l.b16 %v3508
    %v4094 = vunpack.c.h.b16 %v3508
    %v4095 = vunpack.c.l.b16 %v3509
    %v4096 = vunpack.c.l.b16 %v3510
    %v4097 = vunpack.c.h.b16 %v3510
    %v4098 = vunpack.c.l.b16 %v3511
    %v4099 = vunpack.c.l.b16 %v3512
    %v4100 = vunpack.c.h.b16 %v3512
    %v4101 = vunpack.c.l.b16 %v3513
    %v4102 = vunpack.c.l.b16 %v3514
    %v4103 = vunpack.c.h.b16 %v3514
    %v4104 = vunpack.c.l.b16 %v3515
    %v4105 = vunpack.c.l.b16 %v3516
    %v4106 = vunpack.c.h.b16 %v3516
    %v4107 = vunpack.c.l.b16 %v3517
    %v4108 = vunpack.c.l.b16 %v3518
    %v4109 = vunpack.c.h.b16 %v3518
    %v4110 = vunpack.c.l.b16 %v3519
    %v4111 = vunpack.c.l.b16 %v3520
    %v4112 = vunpack.c.h.b16 %v3520
    %v4113 = vunpack.c.l.b16 %v3521
    %v4114 = vunpack.c.l.b16 %v3522
    %v4115 = vunpack.c.h.b16 %v3522
    %v4116 = vunpack.c.l.b16 %v3523
    %v4117 = vunpack.c.l.b16 %v3524
    %v4118 = vunpack.c.h.b16 %v3524
    %v4119 = vunpack.c.l.b16 %v3525
    %v4120 = vunpack.c.l.b16 %v3526
    %v4121 = vunpack.c.h.b16 %v3526
    %v4122 = vunpack.c.l.b16 %v3527
    %v4123 = vunpack.c.l.b16 %v3528
    %v4124 = vunpack.c.h.b16 %v3528
    %v4125 = vunpack.c.l.b16 %v3529
    %v4126 = vunpack.c.l.b16 %v3530
    %v4127 = vunpack.c.h.b16 %v3530
    %v4128 = vunpack.c.l.b16 %v3531
    %v4129 = vunpack.c.l.b16 %v3532
    %v4130 = vunpack.c.h.b16 %v3532
    %v4131 = vunpack.c.l.b16 %v3533
    %v4132 = vunpack.c.l.b16 %v3534
    %v4133 = vunpack.c.h.b16 %v3534
    %v4134 = vunpack.c.l.b16 %v3535
    %v4135 = vunpack.c.l.b16 %v3536
    %v4136 = vunpack.c.h.b16 %v3536
    %v4137 = vunpack.c.l.b16 %v3537
    %v4138 = vunpack.c.l.b16 %v3538
    %v4139 = vunpack.c.h.b16 %v3538
    %v4140 = vunpack.c.l.b16 %v3539
    %v4141 = vunpack.c.l.b16 %v3540
    %v4142 = vunpack.c.h.b16 %v3540
    %v4143 = vunpack.c.l.b16 %v3541
    %v4144 = vunpack.c.l.b16 %v3542
    %v4145 = vunpack.c.h.b16 %v3542
    %v4146 = vunpack.c.l.b16 %v3543
    %v4147 = vunpack.c.l.b16 %v3544
    %v4148 = vunpack.c.h.b16 %v3544
    %v4149 = vunpack.c.l.b16 %v3545
    %v4150 = vunpack.c.l.b16 %v3546
    %v4151 = vunpack.c.h.b16 %v3546
    %v4152 = vunpack.c.l.b16 %v3547
    %v4153 = vunpack.c.l.b16 %v3548
    %v4154 = vunpack.c.h.b16 %v3548
    %v4155 = vunpack.c.l.b16 %v3549
    %v4156 = vunpack.c.l.b16 %v3550
    %v4157 = vunpack.c.h.b16 %v3550
    %v4158 = vunpack.c.l.b16 %v3551
    %v4159 = vunpack.c.l.b16 %v3552
    %v4160 = vunpack.c.h.b16 %v3552
    %v4161 = vunpack.c.l.b16 %v3553
    %v4162 = vunpack.c.l.b16 %v3554
    %v4163 = vunpack.c.h.b16 %v3554
    %v4164 = vunpack.c.l.b16 %v3555
    %v4165 = vunpack.c.l.b16 %v3556
    %v4166 = vunpack.c.h.b16 %v3556
    %v4167 = vunpack.c.l.b16 %v3557
    %v4168 = vunpack.c.l.b16 %v3558
    %v4169 = vunpack.c.h.b16 %v3558
    %v4170 = vunpack.c.l.b16 %v3559
    %v4171 = vunpack.c.l.b16 %v3560
    %v4172 = vunpack.c.h.b16 %v3560
    %v4173 = vunpack.c.l.b16 %v3561
    %v4174 = vunpack.c.l.b16 %v3562
    %v4175 = vunpack.c.h.b16 %v3562
    %v4176 = vunpack.c.l.b16 %v3563
    %v4177 = vunpack.c.l.b16 %v3564
    %v4178 = vunpack.c.h.b16 %v3564
    %v4179 = vunpack.c.l.b16 %v3565
    %v4180 = vunpack.c.l.b16 %v3566
    %v4181 = vunpack.c.h.b16 %v3566
    %v4182 = vunpack.c.l.b16 %v3567
    %v4183 = vunpack.c.l.b16 %v3568
    %v4184 = vunpack.c.h.b16 %v3568
    %v4185 = vunpack.c.l.b16 %v3569
    %v4186 = vunpack.c.l.b16 %v3570
    %v4187 = vunpack.c.h.b16 %v3570
    %v4188 = vunpack.c.l.b16 %v3571
    %v4189 = vunpack.c.l.b16 %v3572
    %v4190 = vunpack.c.h.b16 %v3572
    %v4191 = vunpack.c.l.b16 %v3573
    %v4192 = vunpack.c.l.b16 %v3574
    %v4193 = vunpack.c.h.b16 %v3574
    %v4194 = vunpack.c.l.b16 %v3575
    %v4195 = vunpack.c.l.b16 %v3576
    %v4196 = vunpack.c.h.b16 %v3576
    %v4197 = vunpack.c.l.b16 %v3577
    %v4198 = vunpack.c.l.b16 %v3578
    %v4199 = vunpack.c.h.b16 %v3578
    %v4200 = vunpack.c.l.b16 %v3579
    %v4201 = vunpack.c.l.b16 %v3580
    %v4202 = vunpack.c.h.b16 %v3580
    %v4203 = vunpack.c.l.b16 %v3581
    %v4204 = vunpack.c.l.b16 %v3582
    %v4205 = vunpack.c.h.b16 %v3582
    %v4206 = vunpack.c.l.b16 %v3583
    %v4207 = vunpack.c.l.b16 %v3584
    %v4208 = vunpack.c.h.b16 %v3584
    %v4209 = vunpack.c.l.b16 %v3585
    %v4210 = vunpack.c.l.b16 %v3586
    %v4211 = vunpack.c.h.b16 %v3586
    %v4212 = vunpack.c.l.b16 %v3587
    %v4213 = vunpack.c.l.b16 %v3588
    %v4214 = vunpack.c.h.b16 %v3588
    %v4215 = vunpack.c.l.b16 %v3589
    %v4216 = vunpack.c.l.b16 %v3590
    %v4217 = vunpack.c.h.b16 %v3590
    %v4218 = vunpack.c.l.b16 %v3591
    %v4219 = vunpack.c.l.b16 %v3592
    %v4220 = vunpack.c.h.b16 %v3592
    %v4221 = vunpack.c.l.b16 %v3593
    %v4222 = vunpack.c.l.b16 %v3594
    %v4223 = vunpack.c.h.b16 %v3594
    %v4224 = vunpack.c.l.b16 %v3595
    %v4225 = vunpack.c.l.b16 %v3596
    %v4226 = vunpack.c.h.b16 %v3596
    %v4227 = vunpack.c.l.b16 %v3597
    %v4228 = vunpack.c.l.b16 %v3598
    %v4229 = vunpack.c.h.b16 %v3598
    %v4230 = vunpack.c.l.b16 %v3599
    %v4231 = vunpack.c.l.b16 %v3600
    %v4232 = vunpack.c.h.b16 %v3600
    %v4233 = vunpack.c.l.b16 %v3601
    %v4234 = vunpack.c.l.b16 %v3602
    %v4235 = vunpack.c.h.b16 %v3602
    %v4236 = vunpack.c.l.b16 %v3603
    %v4237 = vunpack.c.l.b16 %v3604
    %v4238 = vunpack.c.h.b16 %v3604
    %v4239 = vunpack.c.l.b16 %v3605
    %v4240 = vunpack.c.l.b16 %v3606
    %v4241 = vunpack.c.h.b16 %v3606
    %v4242 = vunpack.c.l.b16 %v3607
    %v4243 = vunpack.c.l.b16 %v3608
    %v4244 = vunpack.c.h.b16 %v3608
    %v4245 = vunpack.c.l.b16 %v3609
    %v4246 = vunpack.c.l.b16 %v3610
    %v4247 = vunpack.c.h.b16 %v3610
    %v4248 = vunpack.c.l.b16 %v3611
    %v4249 = vunpack.c.l.b16 %v3612
    %v4250 = vunpack.c.h.b16 %v3612
    %v4251 = vunpack.c.l.b16 %v3613
    %v4252 = vunpack.c.l.b16 %v3614
    %v4253 = vunpack.c.h.b16 %v3614
    %v4254 = vunpack.c.l.b16 %v3615
    %v4255 = vunpack.c.l.b16 %v3616
    %v4256 = vunpack.c.h.b16 %v3616
    %v4257 = vunpack.c.l.b16 %v3617
    %v4258 = vpack.c.b16 %v3877, %v3874
    %v4259 = vpack.c.b16 %v3878, %v3875
    %v4260 = vpack.c.b16 %v3879, %v3876
    %v4261 = vpack.c.b16 %v3883, %v3880
    %v4262 = vpack.c.b16 %v3884, %v3881
    %v4263 = vpack.c.b16 %v3885, %v3882
    %v4264 = vpack.c.b16 %v3889, %v3886
    %v4265 = vpack.c.b16 %v3890, %v3887
    %v4266 = vpack.c.b16 %v3891, %v3888
    %v4267 = vpack.c.b16 %v3895, %v3892
    %v4268 = vpack.c.b16 %v3896, %v3893
    %v4269 = vpack.c.b16 %v3897, %v3894
    %v4270 = vpack.c.b16 %v3901, %v3898
    %v4271 = vpack.c.b16 %v3902, %v3899
    %v4272 = vpack.c.b16 %v3903, %v3900
    %v4273 = vpack.c.b16 %v3907, %v3904
    %v4274 = vpack.c.b16 %v3908, %v3905
    %v4275 = vpack.c.b16 %v3909, %v3906
    %v4276 = vpack.c.b16 %v3913, %v3910
    %v4277 = vpack.c.b16 %v3914, %v3911
    %v4278 = vpack.c.b16 %v3915, %v3912
    %v4279 = vpack.c.b16 %v3919, %v3916
    %v4280 = vpack.c.b16 %v3920, %v3917
    %v4281 = vpack.c.b16 %v3921, %v3918
    %v4282 = vpack.c.b16 %v3925, %v3922
    %v4283 = vpack.c.b16 %v3926, %v3923
    %v4284 = vpack.c.b16 %v3927, %v3924
    %v4285 = vpack.c.b16 %v3931, %v3928
    %v4286 = vpack.c.b16 %v3932, %v3929
    %v4287 = vpack.c.b16 %v3933, %v3930
    %v4288 = vpack.c.b16 %v3937, %v3934
    %v4289 = vpack.c.b16 %v3938, %v3935
    %v4290 = vpack.c.b16 %v3939, %v3936
    %v4291 = vpack.c.b16 %v3943, %v3940
    %v4292 = vpack.c.b16 %v3944, %v3941
    %v4293 = vpack.c.b16 %v3945, %v3942
    %v4294 = vpack.c.b16 %v3949, %v3946
    %v4295 = vpack.c.b16 %v3950, %v3947
    %v4296 = vpack.c.b16 %v3951, %v3948
    %v4297 = vpack.c.b16 %v3955, %v3952
    %v4298 = vpack.c.b16 %v3956, %v3953
    %v4299 = vpack.c.b16 %v3957, %v3954
    %v4300 = vpack.c.b16 %v3961, %v3958
    %v4301 = vpack.c.b16 %v3962, %v3959
    %v4302 = vpack.c.b16 %v3963, %v3960
    %v4303 = vpack.c.b16 %v3967, %v3964
    %v4304 = vpack.c.b16 %v3968, %v3965
    %v4305 = vpack.c.b16 %v3969, %v3966
    %v4306 = vpack.c.b16 %v3973, %v3970
    %v4307 = vpack.c.b16 %v3974, %v3971
    %v4308 = vpack.c.b16 %v3975, %v3972
    %v4309 = vpack.c.b16 %v3979, %v3976
    %v4310 = vpack.c.b16 %v3980, %v3977
    %v4311 = vpack.c.b16 %v3981, %v3978
    %v4312 = vpack.c.b16 %v3985, %v3982
    %v4313 = vpack.c.b16 %v3986, %v3983
    %v4314 = vpack.c.b16 %v3987, %v3984
    %v4315 = vpack.c.b16 %v3991, %v3988
    %v4316 = vpack.c.b16 %v3992, %v3989
    %v4317 = vpack.c.b16 %v3993, %v3990
    %v4318 = vpack.c.b16 %v3997, %v3994
    %v4319 = vpack.c.b16 %v3998, %v3995
    %v4320 = vpack.c.b16 %v3999, %v3996
    %v4321 = vpack.c.b16 %v4003, %v4000
    %v4322 = vpack.c.b16 %v4004, %v4001
    %v4323 = vpack.c.b16 %v4005, %v4002
    %v4324 = vpack.c.b16 %v4009, %v4006
    %v4325 = vpack.c.b16 %v4010, %v4007
    %v4326 = vpack.c.b16 %v4011, %v4008
    %v4327 = vpack.c.b16 %v4015, %v4012
    %v4328 = vpack.c.b16 %v4016, %v4013
    %v4329 = vpack.c.b16 %v4017, %v4014
    %v4330 = vpack.c.b16 %v4021, %v4018
    %v4331 = vpack.c.b16 %v4022, %v4019
    %v4332 = vpack.c.b16 %v4023, %v4020
    %v4333 = vpack.c.b16 %v4027, %v4024
    %v4334 = vpack.c.b16 %v4028, %v4025
    %v4335 = vpack.c.b16 %v4029, %v4026
    %v4336 = vpack.c.b16 %v4033, %v4030
    %v4337 = vpack.c.b16 %v4034, %v4031
    %v4338 = vpack.c.b16 %v4035, %v4032
    %v4339 = vpack.c.b16 %v4039, %v4036
    %v4340 = vpack.c.b16 %v4040, %v4037
    %v4341 = vpack.c.b16 %v4041, %v4038
    %v4342 = vpack.c.b16 %v4045, %v4042
    %v4343 = vpack.c.b16 %v4046, %v4043
    %v4344 = vpack.c.b16 %v4047, %v4044
    %v4345 = vpack.c.b16 %v4051, %v4048
    %v4346 = vpack.c.b16 %v4052, %v4049
    %v4347 = vpack.c.b16 %v4053, %v4050
    %v4348 = vpack.c.b16 %v4057, %v4054
    %v4349 = vpack.c.b16 %v4058, %v4055
    %v4350 = vpack.c.b16 %v4059, %v4056
    %v4351 = vpack.c.b16 %v4063, %v4060
    %v4352 = vpack.c.b16 %v4064, %v4061
    %v4353 = vpack.c.b16 %v4065, %v4062
    %v4354 = vpack.c.b16 %v4069, %v4066
    %v4355 = vpack.c.b16 %v4070, %v4067
    %v4356 = vpack.c.b16 %v4071, %v4068
    %v4357 = vpack.c.b16 %v4075, %v4072
    %v4358 = vpack.c.b16 %v4076, %v4073
    %v4359 = vpack.c.b16 %v4077, %v4074
    %v4360 = vpack.c.b16 %v4081, %v4078
    %v4361 = vpack.c.b16 %v4082, %v4079
    %v4362 = vpack.c.b16 %v4083, %v4080
    %v4363 = vpack.c.b16 %v4087, %v4084
    %v4364 = vpack.c.b16 %v4088, %v4085
    %v4365 = vpack.c.b16 %v4089, %v4086
    %v4366 = vpack.c.b16 %v4093, %v4090
    %v4367 = vpack.c.b16 %v4094, %v4091
    %v4368 = vpack.c.b16 %v4095, %v4092
    %v4369 = vpack.c.b16 %v4099, %v4096
    %v4370 = vpack.c.b16 %v4100, %v4097
    %v4371 = vpack.c.b16 %v4101, %v4098
    %v4372 = vpack.c.b16 %v4105, %v4102
    %v4373 = vpack.c.b16 %v4106, %v4103
    %v4374 = vpack.c.b16 %v4107, %v4104
    %v4375 = vpack.c.b16 %v4111, %v4108
    %v4376 = vpack.c.b16 %v4112, %v4109
    %v4377 = vpack.c.b16 %v4113, %v4110
    %v4378 = vpack.c.b16 %v4117, %v4114
    %v4379 = vpack.c.b16 %v4118, %v4115
    %v4380 = vpack.c.b16 %v4119, %v4116
    %v4381 = vpack.c.b16 %v4123, %v4120
    %v4382 = vpack.c.b16 %v4124, %v4121
    %v4383 = vpack.c.b16 %v4125, %v4122
    %v4384 = vpack.c.b16 %v4129, %v4126
    %v4385 = vpack.c.b16 %v4130, %v4127
    %v4386 = vpack.c.b16 %v4131, %v4128
    %v4387 = vpack.c.b16 %v4135, %v4132
    %v4388 = vpack.c.b16 %v4136, %v4133
    %v4389 = vpack.c.b16 %v4137, %v4134
    %v4390 = vpack.c.b16 %v4141, %v4138
    %v4391 = vpack.c.b16 %v4142, %v4139
    %v4392 = vpack.c.b16 %v4143, %v4140
    %v4393 = vpack.c.b16 %v4147, %v4144
    %v4394 = vpack.c.b16 %v4148, %v4145
    %v4395 = vpack.c.b16 %v4149, %v4146
    %v4396 = vpack.c.b16 %v4153, %v4150
    %v4397 = vpack.c.b16 %v4154, %v4151
    %v4398 = vpack.c.b16 %v4155, %v4152
    %v4399 = vpack.c.b16 %v4159, %v4156
    %v4400 = vpack.c.b16 %v4160, %v4157
    %v4401 = vpack.c.b16 %v4161, %v4158
    %v4402 = vpack.c.b16 %v4165, %v4162
    %v4403 = vpack.c.b16 %v4166, %v4163
    %v4404 = vpack.c.b16 %v4167, %v4164
    %v4405 = vpack.c.b16 %v4171, %v4168
    %v4406 = vpack.c.b16 %v4172, %v4169
    %v4407 = vpack.c.b16 %v4173, %v4170
    %v4408 = vpack.c.b16 %v4177, %v4174
    %v4409 = vpack.c.b16 %v4178, %v4175
    %v4410 = vpack.c.b16 %v4179, %v4176
    %v4411 = vpack.c.b16 %v4183, %v4180
    %v4412 = vpack.c.b16 %v4184, %v4181
    %v4413 = vpack.c.b16 %v4185, %v4182
    %v4414 = vpack.c.b16 %v4189, %v4186
    %v4415 = vpack.c.b16 %v4190, %v4187
    %v4416 = vpack.c.b16 %v4191, %v4188
    %v4417 = vpack.c.b16 %v4195, %v4192
    %v4418 = vpack.c.b16 %v4196, %v4193
    %v4419 = vpack.c.b16 %v4197, %v4194
    %v4420 = vpack.c.b16 %v4201, %v4198
    %v4421 = vpack.c.b16 %v4202, %v4199
    %v4422 = vpack.c.b16 %v4203, %v4200
    %v4423 = vpack.c.b16 %v4207, %v4204
    %v4424 = vpack.c.b16 %v4208, %v4205
    %v4425 = vpack.c.b16 %v4209, %v4206
    %v4426 = vpack.c.b16 %v4213, %v4210
    %v4427 = vpack.c.b16 %v4214, %v4211
    %v4428 = vpack.c.b16 %v4215, %v4212
    %v4429 = vpack.c.b16 %v4219, %v4216
    %v4430 = vpack.c.b16 %v4220, %v4217
    %v4431 = vpack.c.b16 %v4221, %v4218
    %v4432 = vpack.c.b16 %v4225, %v4222
    %v4433 = vpack.c.b16 %v4226, %v4223
    %v4434 = vpack.c.b16 %v4227, %v4224
    %v4435 = vpack.c.b16 %v4231, %v4228
    %v4436 = vpack.c.b16 %v4232, %v4229
    %v4437 = vpack.c.b16 %v4233, %v4230
    %v4438 = vpack.c.b16 %v4237, %v4234
    %v4439 = vpack.c.b16 %v4238, %v4235
    %v4440 = vpack.c.b16 %v4239, %v4236
    %v4441 = vpack.c.b16 %v4243, %v4240
    %v4442 = vpack.c.b16 %v4244, %v4241
    %v4443 = vpack.c.b16 %v4245, %v4242
    %v4444 = vpack.c.b16 %v4249, %v4246
    %v4445 = vpack.c.b16 %v4250, %v4247
    %v4446 = vpack.c.b16 %v4251, %v4248
    %v4447 = vpack.c.b16 %v4255, %v4252
    %v4448 = vpack.c.b16 %v4256, %v4253
    %v4449 = vpack.c.b16 %v4257, %v4254
    %4642 = vmatprep.subr.bf16.mxu0 %v4259
    %4643 = vmatpush1.bf16.msra.mxu0 %v4258
    %4644 = vmatprep.subr.bf16.mxu0 %v4262
    %4645 = vmatpush1.bf16.msra.mxu0 %v4261
    %4646 = vmatprep.subr.bf16.mxu0 %v4265
    %4647 = vmatpush1.bf16.msra.mxu0 %v4264
    %4648 = vmatprep.subr.bf16.mxu0 %v4268
    %4649 = vmatpush1.bf16.msra.mxu0 %v4267
    %4650 = vmatprep.subr.bf16.mxu0 %v4271
    %4651 = vmatpush1.bf16.msra.mxu0 %v4270
    %4652 = vmatprep.subr.bf16.mxu0 %v4274
    %4653 = vmatpush1.bf16.msra.mxu0 %v4273
    %4654 = vmatprep.subr.bf16.mxu0 %v4277
    %4655 = vmatpush1.bf16.msra.mxu0 %v4276
    %4656 = vmatprep.subr.bf16.mxu0 %v4280
    %4657 = vmatpush1.bf16.msra.mxu0 %v4279
    %4658 = vmatprep.subr.bf16.mxu0 %v4283
    %4659 = vmatpush1.bf16.msra.mxu0 %v4282
    %4660 = vmatprep.subr.bf16.mxu0 %v4286
    %4661 = vmatpush1.bf16.msra.mxu0 %v4285
    %4662 = vmatprep.subr.bf16.mxu0 %v4289
    %4663 = vmatpush1.bf16.msra.mxu0 %v4288
    %4664 = vmatprep.subr.bf16.mxu0 %v4292
    %4665 = vmatpush1.bf16.msra.mxu0 %v4291
    %4666 = vmatprep.subr.bf16.mxu0 %v4295
    %4667 = vmatpush1.bf16.msra.mxu0 %v4294
    %4668 = vmatprep.subr.bf16.mxu0 %v4298
    %4669 = vmatpush1.bf16.msra.mxu0 %v4297
    %4670 = vmatprep.subr.bf16.mxu0 %v4301
    %4671 = vmatpush1.bf16.msra.mxu0 %v4300
    %4672 = vmatprep.subr.bf16.mxu0 %v4304
    %4673 = vmatpush1.bf16.msra.mxu0 %v4303
    %4674 = vmatprep.mubr.bf16.mxu0 %v3355
    %4675 = vmatmul.mubr.bf16.gmra.mrb[0].mxu0 %v3354
    %v4676 = vpop.f32.mrb[0].mxu0
    %v4677 = vadd.f32 0.0, %v4676
    %v4678 = vpop.f32.mrb[0].mxu0
    %v4679 = vadd.f32 0.0, %v4678
    %v4680 = vpop.f32.mrb[0].mxu0
    %v4681 = vadd.f32 0.0, %v4680
    %v4682 = vpop.f32.mrb[0].mxu0
    %v4683 = vadd.f32 0.0, %v4682
    %4684 = vdwg.mxu0
    %4685 = vmatprep.subr.bf16.mxu0 %v4307
    %4686 = vmatpush1.bf16.msra.mxu0 %v4306
    %4687 = vmatprep.subr.bf16.mxu0 %v4310
    %4688 = vmatpush1.bf16.msra.mxu0 %v4309
    %4689 = vmatprep.subr.bf16.mxu0 %v4313
    %4690 = vmatpush1.bf16.msra.mxu0 %v4312
    %4691 = vmatprep.subr.bf16.mxu0 %v4316
    %4692 = vmatpush1.bf16.msra.mxu0 %v4315
    %4693 = vmatprep.subr.bf16.mxu0 %v4319
    %4694 = vmatpush1.bf16.msra.mxu0 %v4318
    %4695 = vmatprep.subr.bf16.mxu0 %v4322
    %4696 = vmatpush1.bf16.msra.mxu0 %v4321
    %4697 = vmatprep.subr.bf16.mxu0 %v4325
    %4698 = vmatpush1.bf16.msra.mxu0 %v4324
    %4699 = vmatprep.subr.bf16.mxu0 %v4328
    %4700 = vmatpush1.bf16.msra.mxu0 %v4327
    %4701 = vmatprep.subr.bf16.mxu0 %v4331
    %4702 = vmatpush1.bf16.msra.mxu0 %v4330
    %4703 = vmatprep.subr.bf16.mxu0 %v4334
    %4704 = vmatpush1.bf16.msra.mxu0 %v4333
    %4705 = vmatprep.subr.bf16.mxu0 %v4337
    %4706 = vmatpush1.bf16.msra.mxu0 %v4336
    %4707 = vmatprep.subr.bf16.mxu0 %v4340
    %4708 = vmatpush1.bf16.msra.mxu0 %v4339
    %4709 = vmatprep.subr.bf16.mxu0 %v4343
    %4710 = vmatpush1.bf16.msra.mxu0 %v4342
    %4711 = vmatprep.subr.bf16.mxu0 %v4346
    %4712 = vmatpush1.bf16.msra.mxu0 %v4345
    %4713 = vmatprep.subr.bf16.mxu0 %v4349
    %4714 = vmatpush1.bf16.msra.mxu0 %v4348
    %4715 = vmatprep.subr.bf16.mxu0 %v4352
    %4716 = vmatpush1.bf16.msra.mxu0 %v4351
    %4717 = vmatprep.mubr.bf16.mxu0 %v3357
    %4718 = vmatmul.mubr.bf16.gmra.mrb[0].mxu0 %v3356
    %v4719 = vpop.f32.mrb[0].mxu0
    %v4720 = vadd.f32 %v4677, %v4719
    %v4721 = vpop.f32.mrb[0].mxu0
    %v4722 = vadd.f32 %v4679, %v4721
    %v4723 = vpop.f32.mrb[0].mxu0
    %v4724 = vadd.f32 %v4681, %v4723
    %v4725 = vpop.f32.mrb[0].mxu0
    %v4726 = vadd.f32 %v4683, %v4725
    %4727 = vdwg.mxu0
    %4728 = vmatprep.subr.bf16.mxu0 %v4355
    %4729 = vmatpush1.bf16.msra.mxu0 %v4354
    %4730 = vmatprep.subr.bf16.mxu0 %v4358
    %4731 = vmatpush1.bf16.msra.mxu0 %v4357
    %4732 = vmatprep.subr.bf16.mxu0 %v4361
    %4733 = vmatpush1.bf16.msra.mxu0 %v4360
    %4734 = vmatprep.subr.bf16.mxu0 %v4364
    %4735 = vmatpush1.bf16.msra.mxu0 %v4363
    %4736 = vmatprep.subr.bf16.mxu0 %v4367
    %4737 = vmatpush1.bf16.msra.mxu0 %v4366
    %4738 = vmatprep.subr.bf16.mxu0 %v4370
    %4739 = vmatpush1.bf16.msra.mxu0 %v4369
    %4740 = vmatprep.subr.bf16.mxu0 %v4373
    %4741 = vmatpush1.bf16.msra.mxu0 %v4372
    %4742 = vmatprep.subr.bf16.mxu0 %v4376
    %4743 = vmatpush1.bf16.msra.mxu0 %v4375
    %4744 = vmatprep.subr.bf16.mxu0 %v4379
    %4745 = vmatpush1.bf16.msra.mxu0 %v4378
    %4746 = vmatprep.subr.bf16.mxu0 %v4382
    %4747 = vmatpush1.bf16.msra.mxu0 %v4381
    %4748 = vmatprep.subr.bf16.mxu0 %v4385
    %4749 = vmatpush1.bf16.msra.mxu0 %v4384
    %4750 = vmatprep.subr.bf16.mxu0 %v4388
    %4751 = vmatpush1.bf16.msra.mxu0 %v4387
    %4752 = vmatprep.subr.bf16.mxu0 %v4391
    %4753 = vmatpush1.bf16.msra.mxu0 %v4390
    %4754 = vmatprep.subr.bf16.mxu0 %v4394
    %4755 = vmatpush1.bf16.msra.mxu0 %v4393
    %4756 = vmatprep.subr.bf16.mxu0 %v4397
    %4757 = vmatpush1.bf16.msra.mxu0 %v4396
    %4758 = vmatprep.subr.bf16.mxu0 %v4400
    %4759 = vmatpush1.bf16.msra.mxu0 %v4399
    %4760 = vmatprep.mubr.bf16.mxu0 %v3359
    %4761 = vmatmul.mubr.bf16.gmra.mrb[0].mxu0 %v3358
    %v4762 = vpop.f32.mrb[0].mxu0
    %v4763 = vadd.f32 %v4720, %v4762
    %v4764 = vpop.f32.mrb[0].mxu0
    %v4765 = vadd.f32 %v4722, %v4764
    %v4766 = vpop.f32.mrb[0].mxu0
    %v4767 = vadd.f32 %v4724, %v4766
    %v4768 = vpop.f32.mrb[0].mxu0
    %v4769 = vadd.f32 %v4726, %v4768
    %4770 = vdwg.mxu0
    %4771 = vmatprep.subr.bf16.mxu0 %v4403
    %4772 = vmatpush1.bf16.msra.mxu0 %v4402
    %4773 = vmatprep.subr.bf16.mxu0 %v4406
    %4774 = vmatpush1.bf16.msra.mxu0 %v4405
    %4775 = vmatprep.subr.bf16.mxu0 %v4409
    %4776 = vmatpush1.bf16.msra.mxu0 %v4408
    %4777 = vmatprep.subr.bf16.mxu0 %v4412
    %4778 = vmatpush1.bf16.msra.mxu0 %v4411
    %4779 = vmatprep.subr.bf16.mxu0 %v4415
    %4780 = vmatpush1.bf16.msra.mxu0 %v4414
    %4781 = vmatprep.subr.bf16.mxu0 %v4418
    %4782 = vmatpush1.bf16.msra.mxu0 %v4417
    %4783 = vmatprep.subr.bf16.mxu0 %v4421
    %4784 = vmatpush1.bf16.msra.mxu0 %v4420
    %4785 = vmatprep.subr.bf16.mxu0 %v4424
    %4786 = vmatpush1.bf16.msra.mxu0 %v4423
    %4787 = vmatprep.subr.bf16.mxu0 %v4427
    %4788 = vmatpush1.bf16.msra.mxu0 %v4426
    %4789 = vmatprep.subr.bf16.mxu0 %v4430
    %4790 = vmatpush1.bf16.msra.mxu0 %v4429
    %4791 = vmatprep.subr.bf16.mxu0 %v4433
    %4792 = vmatpush1.bf16.msra.mxu0 %v4432
    %4793 = vmatprep.subr.bf16.mxu0 %v4436
    %4794 = vmatpush1.bf16.msra.mxu0 %v4435
    %4795 = vmatprep.subr.bf16.mxu0 %v4439
    %4796 = vmatpush1.bf16.msra.mxu0 %v4438
    %4797 = vmatprep.subr.bf16.mxu0 %v4442
    %4798 = vmatpush1.bf16.msra.mxu0 %v4441
    %4799 = vmatprep.subr.bf16.mxu0 %v4445
    %4800 = vmatpush1.bf16.msra.mxu0 %v4444
    %4801 = vmatprep.subr.bf16.mxu0 %v4448
    %4802 = vmatpush1.bf16.msra.mxu0 %v4447
    %4803 = vmatprep.mubr.bf16.mxu0 %v3361
    %4804 = vmatmul.mubr.bf16.gmra.mrb[0].mxu0 %v3360
    %v4805 = vpop.f32.mrb[0].mxu0
    %v4806 = vadd.f32 %v4763, %v4805
    %v4807 = vpop.f32.mrb[0].mxu0
    %v4808 = vadd.f32 %v4765, %v4807
    %v4809 = vpop.f32.mrb[0].mxu0
    %v4810 = vadd.f32 %v4767, %v4809
    %v4811 = vpop.f32.mrb[0].mxu0
    %v4812 = vadd.f32 %v4769, %v4811
    %4813 = vdwg.mxu0
    %4814 = vmatprep.subr.bf16.mxu0 0
    %4815 = vmatpush1.bf16.msra.mxu0 %v4260
    %4816 = vmatprep.subr.bf16.mxu0 0
    %4817 = vmatpush1.bf16.msra.mxu0 %v4263
    %4818 = vmatprep.subr.bf16.mxu0 0
    %4819 = vmatpush1.bf16.msra.mxu0 %v4266
    %4820 = vmatprep.subr.bf16.mxu0 0
    %4821 = vmatpush1.bf16.msra.mxu0 %v4269
    %4822 = vmatprep.subr.bf16.mxu0 0
    %4823 = vmatpush1.bf16.msra.mxu0 %v4272
    %4824 = vmatprep.subr.bf16.mxu0 0
    %4825 = vmatpush1.bf16.msra.mxu0 %v4275
    %4826 = vmatprep.subr.bf16.mxu0 0
    %4827 = vmatpush1.bf16.msra.mxu0 %v4278
    %4828 = vmatprep.subr.bf16.mxu0 0
    %4829 = vmatpush1.bf16.msra.mxu0 %v4281
    %4830 = vmatprep.subr.bf16.mxu0 0
    %4831 = vmatpush1.bf16.msra.mxu0 %v4284
    %4832 = vmatprep.subr.bf16.mxu0 0
    %4833 = vmatpush1.bf16.msra.mxu0 %v4287
    %4834 = vmatprep.subr.bf16.mxu0 0
    %4835 = vmatpush1.bf16.msra.mxu0 %v4290
    %4836 = vmatprep.subr.bf16.mxu0 0
    %4837 = vmatpush1.bf16.msra.mxu0 %v4293
    %4838 = vmatprep.subr.bf16.mxu0 0
    %4839 = vmatpush1.bf16.msra.mxu0 %v4296
    %4840 = vmatprep.subr.bf16.mxu0 0
    %4841 = vmatpush1.bf16.msra.mxu0 %v4299
    %4842 = vmatprep.subr.bf16.mxu0 0
    %4843 = vmatpush1.bf16.msra.mxu0 %v4302
    %4844 = vmatprep.subr.bf16.mxu0 0
    %4845 = vmatpush1.bf16.msra.mxu0 %v4305
    %4846 = vmatprep.mubr.bf16.mxu0 %v3355
    %4847 = vmatmul.mubr.bf16.gmra.mrb[0].mxu0 %v3354
    %v4848 = vpop.f32.mrb[0].mxu0
    %v4849 = vadd.f32 0.0, %v4848
    %v4850 = vpop.f32.mrb[0].mxu0
    %v4851 = vpop.f32.mrb[0].mxu0
    %v4852 = vadd.f32 0.0, %v4851
    %v4853 = vpop.f32.mrb[0].mxu0
    %4854 = vdwg.mxu0
    %4855 = vmatprep.subr.bf16.mxu0 0
    %4856 = vmatpush1.bf16.msra.mxu0 %v4308
    %4857 = vmatprep.subr.bf16.mxu0 0
    %4858 = vmatpush1.bf16.msra.mxu0 %v4311
    %4859 = vmatprep.subr.bf16.mxu0 0
    %4860 = vmatpush1.bf16.msra.mxu0 %v4314
    %4861 = vmatprep.subr.bf16.mxu0 0
    %4862 = vmatpush1.bf16.msra.mxu0 %v4317
    %4863 = vmatprep.subr.bf16.mxu0 0
    %4864 = vmatpush1.bf16.msra.mxu0 %v4320
    %4865 = vmatprep.subr.bf16.mxu0 0
    %4866 = vmatpush1.bf16.msra.mxu0 %v4323
    %4867 = vmatprep.subr.bf16.mxu0 0
    %4868 = vmatpush1.bf16.msra.mxu0 %v4326
    %4869 = vmatprep.subr.bf16.mxu0 0
    %4870 = vmatpush1.bf16.msra.mxu0 %v4329
    %4871 = vmatprep.subr.bf16.mxu0 0
    %4872 = vmatpush1.bf16.msra.mxu0 %v4332
    %4873 = vmatprep.subr.bf16.mxu0 0
    %4874 = vmatpush1.bf16.msra.mxu0 %v4335
    %4875 = vmatprep.subr.bf16.mxu0 0
    %4876 = vmatpush1.bf16.msra.mxu0 %v4338
    %4877 = vmatprep.subr.bf16.mxu0 0
    %4878 = vmatpush1.bf16.msra.mxu0 %v4341
    %4879 = vmatprep.subr.bf16.mxu0 0
    %4880 = vmatpush1.bf16.msra.mxu0 %v4344
    %4881 = vmatprep.subr.bf16.mxu0 0
    %4882 = vmatpush1.bf16.msra.mxu0 %v4347
    %4883 = vmatprep.subr.bf16.mxu0 0
    %4884 = vmatpush1.bf16.msra.mxu0 %v4350
    %4885 = vmatprep.subr.bf16.mxu0 0
    %4886 = vmatpush1.bf16.msra.mxu0 %v4353
    %4887 = vmatprep.mubr.bf16.mxu0 %v3357
    %4888 = vmatmul.mubr.bf16.gmra.mrb[0].mxu0 %v3356
    %v4889 = vpop.f32.mrb[0].mxu0
    %v4890 = vadd.f32 %v4849, %v4889
    %v4891 = vpop.f32.mrb[0].mxu0
    %v4892 = vpop.f32.mrb[0].mxu0
    %v4893 = vadd.f32 %v4852, %v4892
    %v4894 = vpop.f32.mrb[0].mxu0
    %4895 = vdwg.mxu0
    %4896 = vmatprep.subr.bf16.mxu0 0
    %4897 = vmatpush1.bf16.msra.mxu0 %v4356
    %4898 = vmatprep.subr.bf16.mxu0 0
    %4899 = vmatpush1.bf16.msra.mxu0 %v4359
    %4900 = vmatprep.subr.bf16.mxu0 0
    %4901 = vmatpush1.bf16.msra.mxu0 %v4362
    %4902 = vmatprep.subr.bf16.mxu0 0
    %4903 = vmatpush1.bf16.msra.mxu0 %v4365
    %4904 = vmatprep.subr.bf16.mxu0 0
    %4905 = vmatpush1.bf16.msra.mxu0 %v4368
    %4906 = vmatprep.subr.bf16.mxu0 0
    %4907 = vmatpush1.bf16.msra.mxu0 %v4371
    %4908 = vmatprep.subr.bf16.mxu0 0
    %4909 = vmatpush1.bf16.msra.mxu0 %v4374
    %4910 = vmatprep.subr.bf16.mxu0 0
    %4911 = vmatpush1.bf16.msra.mxu0 %v4377
    %4912 = vmatprep.subr.bf16.mxu0 0
    %4913 = vmatpush1.bf16.msra.mxu0 %v4380
    %4914 = vmatprep.subr.bf16.mxu0 0
    %4915 = vmatpush1.bf16.msra.mxu0 %v4383
    %4916 = vmatprep.subr.bf16.mxu0 0
    %4917 = vmatpush1.bf16.msra.mxu0 %v4386
    %4918 = vmatprep.subr.bf16.mxu0 0
    %4919 = vmatpush1.bf16.msra.mxu0 %v4389
    %4920 = vmatprep.subr.bf16.mxu0 0
    %4921 = vmatpush1.bf16.msra.mxu0 %v4392
    %4922 = vmatprep.subr.bf16.mxu0 0
    %4923 = vmatpush1.bf16.msra.mxu0 %v4395
    %4924 = vmatprep.subr.bf16.mxu0 0
    %4925 = vmatpush1.bf16.msra.mxu0 %v4398
    %4926 = vmatprep.subr.bf16.mxu0 0
    %4927 = vmatpush1.bf16.msra.mxu0 %v4401
    %4928 = vmatprep.mubr.bf16.mxu0 %v3359
    %4929 = vmatmul.mubr.bf16.gmra.mrb[0].mxu0 %v3358
    %v4930 = vpop.f32.mrb[0].mxu0
    %v4931 = vadd.f32 %v4890, %v4930
    %v4932 = vpop.f32.mrb[0].mxu0
    %v4933 = vpop.f32.mrb[0].mxu0
    %v4934 = vadd.f32 %v4893, %v4933
    %v4935 = vpop.f32.mrb[0].mxu0
    %4936 = vdwg.mxu0
    %4937 = vmatprep.subr.bf16.mxu0 0
    %4938 = vmatpush1.bf16.msra.mxu0 %v4404
    %4939 = vmatprep.subr.bf16.mxu0 0
    %4940 = vmatpush1.bf16.msra.mxu0 %v4407
    %4941 = vmatprep.subr.bf16.mxu0 0
    %4942 = vmatpush1.bf16.msra.mxu0 %v4410
    %4943 = vmatprep.subr.bf16.mxu0 0
    %4944 = vmatpush1.bf16.msra.mxu0 %v4413
    %4945 = vmatprep.subr.bf16.mxu0 0
    %4946 = vmatpush1.bf16.msra.mxu0 %v4416
    %4947 = vmatprep.subr.bf16.mxu0 0
    %4948 = vmatpush1.bf16.msra.mxu0 %v4419
    %4949 = vmatprep.subr.bf16.mxu0 0
    %4950 = vmatpush1.bf16.msra.mxu0 %v4422
    %4951 = vmatprep.subr.bf16.mxu0 0
    %4952 = vmatpush1.bf16.msra.mxu0 %v4425
    %4953 = vmatprep.subr.bf16.mxu0 0
    %4954 = vmatpush1.bf16.msra.mxu0 %v4428
    %4955 = vmatprep.subr.bf16.mxu0 0
    %4956 = vmatpush1.bf16.msra.mxu0 %v4431
    %4957 = vmatprep.subr.bf16.mxu0 0
    %4958 = vmatpush1.bf16.msra.mxu0 %v4434
    %4959 = vmatprep.subr.bf16.mxu0 0
    %4960 = vmatpush1.bf16.msra.mxu0 %v4437
    %4961 = vmatprep.subr.bf16.mxu0 0
    %4962 = vmatpush1.bf16.msra.mxu0 %v4440
    %4963 = vmatprep.subr.bf16.mxu0 0
    %4964 = vmatpush1.bf16.msra.mxu0 %v4443
    %4965 = vmatprep.subr.bf16.mxu0 0
    %4966 = vmatpush1.bf16.msra.mxu0 %v4446
    %4967 = vmatprep.subr.bf16.mxu0 0
    %4968 = vmatpush1.bf16.msra.mxu0 %v4449
    %4969 = vmatprep.mubr.bf16.mxu0 %v3361
    %4970 = vmatmul.mubr.bf16.gmra.mrb[0].mxu0 %v3360
    %v4971 = vpop.f32.mrb[0].mxu0
    %v4972 = vadd.f32 %v4931, %v4971
    %v4973 = vpop.f32.mrb[0].mxu0
    %v4974 = vpop.f32.mrb[0].mxu0
    %v4975 = vadd.f32 %v4934, %v4974
    %v4976 = vpop.f32.mrb[0].mxu0
    %4977 = vdwg.mxu0
    %v4978 = vld [vmem:[#allocation13] sm:$0xff]
    %v4979 = vld [vmem:[#allocation13 + $0x8] sm:$0xff]
    %v4980 = vld [vmem:[#allocation13 + $0x10] sm:$0xff]
    %v4981 = vld [vmem:[#allocation13 + $0x18] sm:$0xff]
    %v4982 = vld [vmem:[#allocation13 + $0x20] sm:$0xff]
    %v4983 = vld [vmem:[#allocation13 + $0x28] sm:$0xff]
    %v4984 = vld [vmem:[#allocation13 + $0x30] sm:$0xff]
    %v4985 = vld [vmem:[#allocation13 + $0x38] sm:$0xff]
    %v4986 = vld [vmem:[#allocation13 + $0x40] sm:$0xff]
    %v4987 = vld [vmem:[#allocation13 + $0x48] sm:$0xff]
    %v4988 = vld [vmem:[#allocation13 + $0x50] sm:$0xff]
    %v4989 = vld [vmem:[#allocation13 + $0x58] sm:$0xff]
    %v4990 = vld [vmem:[#allocation13 + $0x60] sm:$0xff]
    %v4991 = vld [vmem:[#allocation13 + $0x68] sm:$0xff]
    %v4992 = vld [vmem:[#allocation13 + $0x70] sm:$0xff]
    %v4993 = vld [vmem:[#allocation13 + $0x78] sm:$0xff]
    %v4994 = vld [vmem:[#allocation13 + $0x80] sm:$0xff]
    %v4995 = vld [vmem:[#allocation13 + $0x88] sm:$0xff]
    %v4996 = vld [vmem:[#allocation13 + $0x90] sm:$0xff]
    %v4997 = vld [vmem:[#allocation13 + $0x98] sm:$0xff]
    %v4998 = vld [vmem:[#allocation13 + $0xa0] sm:$0xff]
    %v4999 = vld [vmem:[#allocation13 + $0xa8] sm:$0xff]
    %v5000 = vld [vmem:[#allocation13 + $0xb0] sm:$0xff]
    %v5001 = vld [vmem:[#allocation13 + $0xb8] sm:$0xff]
    %v5002 = vld [vmem:[#allocation13 + $0xc0] sm:$0xff]
    %v5003 = vld [vmem:[#allocation13 + $0xc8] sm:$0xff]
    %v5004 = vld [vmem:[#allocation13 + $0xd0] sm:$0xff]
    %v5005 = vld [vmem:[#allocation13 + $0xd8] sm:$0xff]
    %v5006 = vld [vmem:[#allocation13 + $0xe0] sm:$0xff]
    %v5007 = vld [vmem:[#allocation13 + $0xe8] sm:$0xff]
    %v5008 = vld [vmem:[#allocation13 + $0xf0] sm:$0xff]
    %v5009 = vld [vmem:[#allocation13 + $0xf8] sm:$0xff]
    %v5010 = vld [vmem:[#allocation13 + $0x100] sm:$0xff]
    %v5011 = vld [vmem:[#allocation13 + $0x108] sm:$0xff]
    %v5012 = vld [vmem:[#allocation13 + $0x110] sm:$0xff]
    %v5013 = vld [vmem:[#allocation13 + $0x118] sm:$0xff]
    %v5014 = vld [vmem:[#allocation13 + $0x120] sm:$0xff]
    %v5015 = vld [vmem:[#allocation13 + $0x128] sm:$0xff]
    %v5016 = vld [vmem:[#allocation13 + $0x130] sm:$0xff]
    %v5017 = vld [vmem:[#allocation13 + $0x138] sm:$0xff]
    %v5018 = vld [vmem:[#allocation13 + $0x140] sm:$0xff]
    %v5019 = vld [vmem:[#allocation13 + $0x148] sm:$0xff]
    %v5020 = vld [vmem:[#allocation13 + $0x150] sm:$0xff]
    %v5021 = vld [vmem:[#allocation13 + $0x158] sm:$0xff]
    %v5022 = vld [vmem:[#allocation13 + $0x160] sm:$0xff]
    %v5023 = vld [vmem:[#allocation13 + $0x168] sm:$0xff]
    %v5024 = vld [vmem:[#allocation13 + $0x170] sm:$0xff]
    %v5025 = vld [vmem:[#allocation13 + $0x178] sm:$0xff]
    %v5026 = vld [vmem:[#allocation13 + $0x180] sm:$0xff]
    %v5027 = vld [vmem:[#allocation13 + $0x188] sm:$0xff]
    %v5028 = vld [vmem:[#allocation13 + $0x190] sm:$0xff]
    %v5029 = vld [vmem:[#allocation13 + $0x198] sm:$0xff]
    %v5030 = vld [vmem:[#allocation13 + $0x1a0] sm:$0xff]
    %v5031 = vld [vmem:[#allocation13 + $0x1a8] sm:$0xff]
    %v5032 = vld [vmem:[#allocation13 + $0x1b0] sm:$0xff]
    %v5033 = vld [vmem:[#allocation13 + $0x1b8] sm:$0xff]
    %v5034 = vld [vmem:[#allocation13 + $0x1c0] sm:$0xff]
    %v5035 = vld [vmem:[#allocation13 + $0x1c8] sm:$0xff]
    %v5036 = vld [vmem:[#allocation13 + $0x1d0] sm:$0xff]
    %v5037 = vld [vmem:[#allocation13 + $0x1d8] sm:$0xff]
    %v5038 = vld [vmem:[#allocation13 + $0x1e0] sm:$0xff]
    %v5039 = vld [vmem:[#allocation13 + $0x1e8] sm:$0xff]
    %v5040 = vld [vmem:[#allocation13 + $0x1f0] sm:$0xff]
    %v5041 = vld [vmem:[#allocation13 + $0x1f8] sm:$0xff]
    %v5042 = vld [vmem:[#allocation13 + $0x200] sm:$0xff]
    %v5043 = vld [vmem:[#allocation13 + $0x208] sm:$0xff]
    %v5044 = vld [vmem:[#allocation13 + $0x210] sm:$0xff]
    %v5045 = vld [vmem:[#allocation13 + $0x218] sm:$0xff]
    %v5046 = vld [vmem:[#allocation13 + $0x220] sm:$0xff]
    %v5047 = vld [vmem:[#allocation13 + $0x228] sm:$0xff]
    %v5048 = vld [vmem:[#allocation13 + $0x230] sm:$0xff]
    %v5049 = vld [vmem:[#allocation13 + $0x238] sm:$0xff]
    %v5050 = vld [vmem:[#allocation13 + $0x240] sm:$0xff]
    %v5051 = vld [vmem:[#allocation13 + $0x248] sm:$0xff]
    %v5052 = vld [vmem:[#allocation13 + $0x250] sm:$0xff]
    %v5053 = vld [vmem:[#allocation13 + $0x258] sm:$0xff]
    %v5054 = vld [vmem:[#allocation13 + $0x260] sm:$0xff]
    %v5055 = vld [vmem:[#allocation13 + $0x268] sm:$0xff]
    %v5056 = vld [vmem:[#allocation13 + $0x270] sm:$0xff]
    %v5057 = vld [vmem:[#allocation13 + $0x278] sm:$0xff]
    %v5058 = vld [vmem:[#allocation13 + $0x280] sm:$0xff]
    %v5059 = vld [vmem:[#allocation13 + $0x288] sm:$0xff]
    %v5060 = vld [vmem:[#allocation13 + $0x290] sm:$0xff]
    %v5061 = vld [vmem:[#allocation13 + $0x298] sm:$0xff]
    %v5062 = vld [vmem:[#allocation13 + $0x2a0] sm:$0xff]
    %v5063 = vld [vmem:[#allocation13 + $0x2a8] sm:$0xff]
    %v5064 = vld [vmem:[#allocation13 + $0x2b0] sm:$0xff]
    %v5065 = vld [vmem:[#allocation13 + $0x2b8] sm:$0xff]
    %v5066 = vld [vmem:[#allocation13 + $0x2c0] sm:$0xff]
    %v5067 = vld [vmem:[#allocation13 + $0x2c8] sm:$0xff]
    %v5068 = vld [vmem:[#allocation13 + $0x2d0] sm:$0xff]
    %v5069 = vld [vmem:[#allocation13 + $0x2d8] sm:$0xff]
    %v5070 = vld [vmem:[#allocation13 + $0x2e0] sm:$0xff]
    %v5071 = vld [vmem:[#allocation13 + $0x2e8] sm:$0xff]
    %v5072 = vld [vmem:[#allocation13 + $0x2f0] sm:$0xff]
    %v5073 = vld [vmem:[#allocation13 + $0x2f8] sm:$0xff]
    %v5074 = vld [vmem:[#allocation13 + $0x300] sm:$0xff]
    %v5075 = vld [vmem:[#allocation13 + $0x308] sm:$0xff]
    %v5076 = vld [vmem:[#allocation13 + $0x310] sm:$0xff]
    %v5077 = vld [vmem:[#allocation13 + $0x318] sm:$0xff]
    %v5078 = vld [vmem:[#allocation13 + $0x320] sm:$0xff]
    %v5079 = vld [vmem:[#allocation13 + $0x328] sm:$0xff]
    %v5080 = vld [vmem:[#allocation13 + $0x330] sm:$0xff]
    %v5081 = vld [vmem:[#allocation13 + $0x338] sm:$0xff]
    %v5082 = vld [vmem:[#allocation13 + $0x340] sm:$0xff]
    %v5083 = vld [vmem:[#allocation13 + $0x348] sm:$0xff]
    %v5084 = vld [vmem:[#allocation13 + $0x350] sm:$0xff]
    %v5085 = vld [vmem:[#allocation13 + $0x358] sm:$0xff]
    %v5086 = vld [vmem:[#allocation13 + $0x360] sm:$0xff]
    %v5087 = vld [vmem:[#allocation13 + $0x368] sm:$0xff]
    %v5088 = vld [vmem:[#allocation13 + $0x370] sm:$0xff]
    %v5089 = vld [vmem:[#allocation13 + $0x378] sm:$0xff]
    %v5090 = vld [vmem:[#allocation13 + $0x380] sm:$0xff]
    %v5091 = vld [vmem:[#allocation13 + $0x388] sm:$0xff]
    %v5092 = vld [vmem:[#allocation13 + $0x390] sm:$0xff]
    %v5093 = vld [vmem:[#allocation13 + $0x398] sm:$0xff]
    %v5094 = vld [vmem:[#allocation13 + $0x3a0] sm:$0xff]
    %v5095 = vld [vmem:[#allocation13 + $0x3a8] sm:$0xff]
    %v5096 = vld [vmem:[#allocation13 + $0x3b0] sm:$0xff]
    %v5097 = vld [vmem:[#allocation13 + $0x3b8] sm:$0xff]
    %v5098 = vld [vmem:[#allocation13 + $0x3c0] sm:$0xff]
    %v5099 = vld [vmem:[#allocation13 + $0x3c8] sm:$0xff]
    %v5100 = vld [vmem:[#allocation13 + $0x3d0] sm:$0xff]
    %v5101 = vld [vmem:[#allocation13 + $0x3d8] sm:$0xff]
    %v5102 = vld [vmem:[#allocation13 + $0x3e0] sm:$0xff]
    %v5103 = vld [vmem:[#allocation13 + $0x3e8] sm:$0xff]
    %v5104 = vld [vmem:[#allocation13 + $0x3f0] sm:$0xff]
    %v5105 = vld [vmem:[#allocation13 + $0x3f8] sm:$0xff]
    %v5106 = vld [vmem:[%s9] sm:$0xff]
    %v5108 = vlaneseq
    %v5109 = vshrl.u32 %v5108, 7
    %v5110 = vsub.s32 0, %v5109
    %v5111 = vrot.slane %v5106, %v5110
    %v5112 = vlaneseq
    %v5113 = vshrl.u32 %v5112, 7
    %v5114 = vsub.s32 1, %v5113
    %v5115 = vrot.slane %v5106, %v5114
    %v5116 = vlaneseq
    %v5117 = vshrl.u32 %v5116, 7
    %v5118 = vsub.s32 2, %v5117
    %v5119 = vrot.slane %v5106, %v5118
    %v5120 = vlaneseq
    %v5121 = vshrl.u32 %v5120, 7
    %v5122 = vsub.s32 3, %v5121
    %v5123 = vrot.slane %v5106, %v5122
    %v5124 = vlaneseq
    %v5125 = vshrl.u32 %v5124, 7
    %v5126 = vsub.s32 4, %v5125
    %v5127 = vrot.slane %v5106, %v5126
    %v5128 = vlaneseq
    %v5129 = vshrl.u32 %v5128, 7
    %v5130 = vsub.s32 5, %v5129
    %v5131 = vrot.slane %v5106, %v5130
    %v5132 = vlaneseq
    %v5133 = vshrl.u32 %v5132, 7
    %v5134 = vsub.s32 6, %v5133
    %v5135 = vrot.slane %v5106, %v5134
    %v5136 = vlaneseq
    %v5137 = vshrl.u32 %v5136, 7
    %v5138 = vsub.s32 7, %v5137
    %v5139 = vrot.slane %v5106, %v5138
    %5148 = vmatprep.subr.mxu0 %v4979
    %5149 = vmatpush1.msra.mxu0 %v4978
    %5150 = vmatprep.subr.mxu0 %v4987
    %5151 = vmatpush1.msra.mxu0 %v4986
    %5152 = vmatprep.subr.mxu0 %v4995
    %5153 = vmatpush1.msra.mxu0 %v4994
    %5154 = vmatprep.subr.mxu0 %v5003
    %5155 = vmatpush1.msra.mxu0 %v5002
    %5156 = vmatprep.subr.mxu0 %v5011
    %5157 = vmatpush1.msra.mxu0 %v5010
    %5158 = vmatprep.subr.mxu0 %v5019
    %5159 = vmatpush1.msra.mxu0 %v5018
    %5160 = vmatprep.subr.mxu0 %v5027
    %5161 = vmatpush1.msra.mxu0 %v5026
    %5162 = vmatprep.subr.mxu0 %v5035
    %5163 = vmatpush1.msra.mxu0 %v5034
    %5164 = vmatprep.subr.mxu0 %v5043
    %5165 = vmatpush1.msra.mxu0 %v5042
    %5166 = vmatprep.subr.mxu0 %v5051
    %5167 = vmatpush1.msra.mxu0 %v5050
    %5168 = vmatprep.subr.mxu0 %v5059
    %5169 = vmatpush1.msra.mxu0 %v5058
    %5170 = vmatprep.subr.mxu0 %v5067
    %5171 = vmatpush1.msra.mxu0 %v5066
    %5172 = vmatprep.subr.mxu0 %v5075
    %5173 = vmatpush1.msra.mxu0 %v5074
    %5174 = vmatprep.subr.mxu0 %v5083
    %5175 = vmatpush1.msra.mxu0 %v5082
    %5176 = vmatprep.subr.mxu0 %v5091
    %5177 = vmatpush1.msra.mxu0 %v5090
    %5178 = vmatprep.subr.mxu0 %v5099
    %5179 = vmatpush1.msra.mxu0 %v5098
    %5180 = vmatprep.subr.mxu0 0.0
    %5181 = vmatpush1.msra.mxu0 0.0
    %5182 = vmatprep.subr.mxu0 0.0
    %5183 = vmatpush1.msra.mxu0 0.0
    %5184 = vmatprep.subr.mxu0 0.0
    %5185 = vmatpush1.msra.mxu0 0.0
    %5186 = vmatprep.subr.mxu0 0.0
    %5187 = vmatpush1.msra.mxu0 0.0
    %5188 = vmatprep.subr.mxu0 0.0
    %5189 = vmatpush1.msra.mxu0 0.0
    %5190 = vmatprep.subr.mxu0 0.0
    %5191 = vmatpush1.msra.mxu0 0.0
    %5192 = vmatprep.subr.mxu0 0.0
    %5193 = vmatpush1.msra.mxu0 0.0
    %5194 = vmatprep.subr.mxu0 0.0
    %5195 = vmatpush1.msra.mxu0 0.0
    %5196 = vmatprep.subr.mxu0 0.0
    %5197 = vmatpush1.msra.mxu0 0.0
    %5198 = vmatprep.subr.mxu0 0.0
    %5199 = vmatpush1.msra.mxu0 0.0
    %5200 = vmatprep.subr.mxu0 0.0
    %5201 = vmatpush1.msra.mxu0 0.0
    %5202 = vmatprep.subr.mxu0 0.0
    %5203 = vmatpush1.msra.mxu0 0.0
    %5204 = vmatprep.subr.mxu0 0.0
    %5205 = vmatpush1.msra.mxu0 0.0
    %5206 = vmatprep.subr.mxu0 0.0
    %5207 = vmatpush1.msra.mxu0 0.0
    %5208 = vmatprep.subr.mxu0 0.0
    %5209 = vmatpush1.msra.mxu0 0.0
    %5210 = vmatprep.subr.mxu0 0.0
    %5211 = vmatpush1.msra.mxu0 0.0
    %5212 = vmatprep.mubr.f32.mxu0 0.0
    %5213 = vmatmul.mubr.f32.gmra.mrb[0].mxu0 %v4806
    %v5214 = vpop.f32.mrb[0].mxu0
    %v5215 = vadd.f32 %v5111, %v5214
    %v5216 = vpop.f32.mrb[0].mxu0
    %v5217 = vadd.f32 %v5115, %v5216
    %5218 = vmatprep.mubr.f32.mxu0 0.0
    %5219 = vmatmul.mubr.f32.gmra.mrb[0].mxu0 %v4810
    %v5220 = vpop.f32.mrb[0].mxu0
    %v5221 = vadd.f32 %v5111, %v5220
    %v5222 = vpop.f32.mrb[0].mxu0
    %v5223 = vadd.f32 %v5115, %v5222
    %5224 = vdwg.mxu0
    %5225 = vmatprep.subr.mxu0 %v4981
    %5226 = vmatpush1.msra.mxu0 %v4980
    %5227 = vmatprep.subr.mxu0 %v4989
    %5228 = vmatpush1.msra.mxu0 %v4988
    %5229 = vmatprep.subr.mxu0 %v4997
    %5230 = vmatpush1.msra.mxu0 %v4996
    %5231 = vmatprep.subr.mxu0 %v5005
    %5232 = vmatpush1.msra.mxu0 %v5004
    %5233 = vmatprep.subr.mxu0 %v5013
    %5234 = vmatpush1.msra.mxu0 %v5012
    %5235 = vmatprep.subr.mxu0 %v5021
    %5236 = vmatpush1.msra.mxu0 %v5020
    %5237 = vmatprep.subr.mxu0 %v5029
    %5238 = vmatpush1.msra.mxu0 %v5028
    %5239 = vmatprep.subr.mxu0 %v5037
    %5240 = vmatpush1.msra.mxu0 %v5036
    %5241 = vmatprep.subr.mxu0 %v5045
    %5242 = vmatpush1.msra.mxu0 %v5044
    %5243 = vmatprep.subr.mxu0 %v5053
    %5244 = vmatpush1.msra.mxu0 %v5052
    %5245 = vmatprep.subr.mxu0 %v5061
    %5246 = vmatpush1.msra.mxu0 %v5060
    %5247 = vmatprep.subr.mxu0 %v5069
    %5248 = vmatpush1.msra.mxu0 %v5068
    %5249 = vmatprep.subr.mxu0 %v5077
    %5250 = vmatpush1.msra.mxu0 %v5076
    %5251 = vmatprep.subr.mxu0 %v5085
    %5252 = vmatpush1.msra.mxu0 %v5084
    %5253 = vmatprep.subr.mxu0 %v5093
    %5254 = vmatpush1.msra.mxu0 %v5092
    %5255 = vmatprep.subr.mxu0 %v5101
    %5256 = vmatpush1.msra.mxu0 %v5100
    %5257 = vmatprep.subr.mxu0 0.0
    %5258 = vmatpush1.msra.mxu0 0.0
    %5259 = vmatprep.subr.mxu0 0.0
    %5260 = vmatpush1.msra.mxu0 0.0
    %5261 = vmatprep.subr.mxu0 0.0
    %5262 = vmatpush1.msra.mxu0 0.0
    %5263 = vmatprep.subr.mxu0 0.0
    %5264 = vmatpush1.msra.mxu0 0.0
    %5265 = vmatprep.subr.mxu0 0.0
    %5266 = vmatpush1.msra.mxu0 0.0
    %5267 = vmatprep.subr.mxu0 0.0
    %5268 = vmatpush1.msra.mxu0 0.0
    %5269 = vmatprep.subr.mxu0 0.0
    %5270 = vmatpush1.msra.mxu0 0.0
    %5271 = vmatprep.subr.mxu0 0.0
    %5272 = vmatpush1.msra.mxu0 0.0
    %5273 = vmatprep.subr.mxu0 0.0
    %5274 = vmatpush1.msra.mxu0 0.0
    %5275 = vmatprep.subr.mxu0 0.0
    %5276 = vmatpush1.msra.mxu0 0.0
    %5277 = vmatprep.subr.mxu0 0.0
    %5278 = vmatpush1.msra.mxu0 0.0
    %5279 = vmatprep.subr.mxu0 0.0
    %5280 = vmatpush1.msra.mxu0 0.0
    %5281 = vmatprep.subr.mxu0 0.0
    %5282 = vmatpush1.msra.mxu0 0.0
    %5283 = vmatprep.subr.mxu0 0.0
    %5284 = vmatpush1.msra.mxu0 0.0
    %5285 = vmatprep.subr.mxu0 0.0
    %5286 = vmatpush1.msra.mxu0 0.0
    %5287 = vmatprep.subr.mxu0 0.0
    %5288 = vmatpush1.msra.mxu0 0.0
    %5289 = vmatprep.mubr.f32.mxu0 0.0
    %5290 = vmatmul.mubr.f32.gmra.mrb[0].mxu0 %v4806
    %v5291 = vpop.f32.mrb[0].mxu0
    %v5292 = vadd.f32 %v5119, %v5291
    %v5293 = vpop.f32.mrb[0].mxu0
    %v5294 = vadd.f32 %v5123, %v5293
    %5295 = vmatprep.mubr.f32.mxu0 0.0
    %5296 = vmatmul.mubr.f32.gmra.mrb[0].mxu0 %v4810
    %v5297 = vpop.f32.mrb[0].mxu0
    %v5298 = vadd.f32 %v5119, %v5297
    %v5299 = vpop.f32.mrb[0].mxu0
    %v5300 = vadd.f32 %v5123, %v5299
    %5301 = vdwg.mxu0
    %5302 = vmatprep.subr.mxu0 %v4983
    %5303 = vmatpush1.msra.mxu0 %v4982
    %5304 = vmatprep.subr.mxu0 %v4991
    %5305 = vmatpush1.msra.mxu0 %v4990
    %5306 = vmatprep.subr.mxu0 %v4999
    %5307 = vmatpush1.msra.mxu0 %v4998
    %5308 = vmatprep.subr.mxu0 %v5007
    %5309 = vmatpush1.msra.mxu0 %v5006
    %5310 = vmatprep.subr.mxu0 %v5015
    %5311 = vmatpush1.msra.mxu0 %v5014
    %5312 = vmatprep.subr.mxu0 %v5023
    %5313 = vmatpush1.msra.mxu0 %v5022
    %5314 = vmatprep.subr.mxu0 %v5031
    %5315 = vmatpush1.msra.mxu0 %v5030
    %5316 = vmatprep.subr.mxu0 %v5039
    %5317 = vmatpush1.msra.mxu0 %v5038
    %5318 = vmatprep.subr.mxu0 %v5047
    %5319 = vmatpush1.msra.mxu0 %v5046
    %5320 = vmatprep.subr.mxu0 %v5055
    %5321 = vmatpush1.msra.mxu0 %v5054
    %5322 = vmatprep.subr.mxu0 %v5063
    %5323 = vmatpush1.msra.mxu0 %v5062
    %5324 = vmatprep.subr.mxu0 %v5071
    %5325 = vmatpush1.msra.mxu0 %v5070
    %5326 = vmatprep.subr.mxu0 %v5079
    %5327 = vmatpush1.msra.mxu0 %v5078
    %5328 = vmatprep.subr.mxu0 %v5087
    %5329 = vmatpush1.msra.mxu0 %v5086
    %5330 = vmatprep.subr.mxu0 %v5095
    %5331 = vmatpush1.msra.mxu0 %v5094
    %5332 = vmatprep.subr.mxu0 %v5103
    %5333 = vmatpush1.msra.mxu0 %v5102
    %5334 = vmatprep.subr.mxu0 0.0
    %5335 = vmatpush1.msra.mxu0 0.0
    %5336 = vmatprep.subr.mxu0 0.0
    %5337 = vmatpush1.msra.mxu0 0.0
    %5338 = vmatprep.subr.mxu0 0.0
    %5339 = vmatpush1.msra.mxu0 0.0
    %5340 = vmatprep.subr.mxu0 0.0
    %5341 = vmatpush1.msra.mxu0 0.0
    %5342 = vmatprep.subr.mxu0 0.0
    %5343 = vmatpush1.msra.mxu0 0.0
    %5344 = vmatprep.subr.mxu0 0.0
    %5345 = vmatpush1.msra.mxu0 0.0
    %5346 = vmatprep.subr.mxu0 0.0
    %5347 = vmatpush1.msra.mxu0 0.0
    %5348 = vmatprep.subr.mxu0 0.0
    %5349 = vmatpush1.msra.mxu0 0.0
    %5350 = vmatprep.subr.mxu0 0.0
    %5351 = vmatpush1.msra.mxu0 0.0
    %5352 = vmatprep.subr.mxu0 0.0
    %5353 = vmatpush1.msra.mxu0 0.0
    %5354 = vmatprep.subr.mxu0 0.0
    %5355 = vmatpush1.msra.mxu0 0.0
    %5356 = vmatprep.subr.mxu0 0.0
    %5357 = vmatpush1.msra.mxu0 0.0
    %5358 = vmatprep.subr.mxu0 0.0
    %5359 = vmatpush1.msra.mxu0 0.0
    %5360 = vmatprep.subr.mxu0 0.0
    %5361 = vmatpush1.msra.mxu0 0.0
    %5362 = vmatprep.subr.mxu0 0.0
    %5363 = vmatpush1.msra.mxu0 0.0
    %5364 = vmatprep.subr.mxu0 0.0
    %5365 = vmatpush1.msra.mxu0 0.0
    %5366 = vmatprep.mubr.f32.mxu0 0.0
    %5367 = vmatmul.mubr.f32.gmra.mrb[0].mxu0 %v4806
    %v5368 = vpop.f32.mrb[0].mxu0
    %v5369 = vadd.f32 %v5127, %v5368
    %v5370 = vpop.f32.mrb[0].mxu0
    %v5371 = vadd.f32 %v5131, %v5370
    %5372 = vmatprep.mubr.f32.mxu0 0.0
    %5373 = vmatmul.mubr.f32.gmra.mrb[0].mxu0 %v4810
    %v5374 = vpop.f32.mrb[0].mxu0
    %v5375 = vadd.f32 %v5127, %v5374
    %v5376 = vpop.f32.mrb[0].mxu0
    %v5377 = vadd.f32 %v5131, %v5376
    %5378 = vdwg.mxu0
    %5379 = vmatprep.subr.mxu0 %v4985
    %5380 = vmatpush1.msra.mxu0 %v4984
    %5381 = vmatprep.subr.mxu0 %v4993
    %5382 = vmatpush1.msra.mxu0 %v4992
    %5383 = vmatprep.subr.mxu0 %v5001
    %5384 = vmatpush1.msra.mxu0 %v5000
    %5385 = vmatprep.subr.mxu0 %v5009
    %5386 = vmatpush1.msra.mxu0 %v5008
    %5387 = vmatprep.subr.mxu0 %v5017
    %5388 = vmatpush1.msra.mxu0 %v5016
    %5389 = vmatprep.subr.mxu0 %v5025
    %5390 = vmatpush1.msra.mxu0 %v5024
    %5391 = vmatprep.subr.mxu0 %v5033
    %5392 = vmatpush1.msra.mxu0 %v5032
    %5393 = vmatprep.subr.mxu0 %v5041
    %5394 = vmatpush1.msra.mxu0 %v5040
    %5395 = vmatprep.subr.mxu0 %v5049
    %5396 = vmatpush1.msra.mxu0 %v5048
    %5397 = vmatprep.subr.mxu0 %v5057
    %5398 = vmatpush1.msra.mxu0 %v5056
    %5399 = vmatprep.subr.mxu0 %v5065
    %5400 = vmatpush1.msra.mxu0 %v5064
    %5401 = vmatprep.subr.mxu0 %v5073
    %5402 = vmatpush1.msra.mxu0 %v5072
    %5403 = vmatprep.subr.mxu0 %v5081
    %5404 = vmatpush1.msra.mxu0 %v5080
    %5405 = vmatprep.subr.mxu0 %v5089
    %5406 = vmatpush1.msra.mxu0 %v5088
    %5407 = vmatprep.subr.mxu0 %v5097
    %5408 = vmatpush1.msra.mxu0 %v5096
    %5409 = vmatprep.subr.mxu0 %v5105
    %5410 = vmatpush1.msra.mxu0 %v5104
    %5411 = vmatprep.subr.mxu0 0.0
    %5412 = vmatpush1.msra.mxu0 0.0
    %5413 = vmatprep.subr.mxu0 0.0
    %5414 = vmatpush1.msra.mxu0 0.0
    %5415 = vmatprep.subr.mxu0 0.0
    %5416 = vmatpush1.msra.mxu0 0.0
    %5417 = vmatprep.subr.mxu0 0.0
    %5418 = vmatpush1.msra.mxu0 0.0
    %5419 = vmatprep.subr.mxu0 0.0
    %5420 = vmatpush1.msra.mxu0 0.0
    %5421 = vmatprep.subr.mxu0 0.0
    %5422 = vmatpush1.msra.mxu0 0.0
    %5423 = vmatprep.subr.mxu0 0.0
    %5424 = vmatpush1.msra.mxu0 0.0
    %5425 = vmatprep.subr.mxu0 0.0
    %5426 = vmatpush1.msra.mxu0 0.0
    %5427 = vmatprep.subr.mxu0 0.0
    %5428 = vmatpush1.msra.mxu0 0.0
    %5429 = vmatprep.subr.mxu0 0.0
    %5430 = vmatpush1.msra.mxu0 0.0
    %5431 = vmatprep.subr.mxu0 0.0
    %5432 = vmatpush1.msra.mxu0 0.0
    %5433 = vmatprep.subr.mxu0 0.0
    %5434 = vmatpush1.msra.mxu0 0.0
    %5435 = vmatprep.subr.mxu0 0.0
    %5436 = vmatpush1.msra.mxu0 0.0
    %5437 = vmatprep.subr.mxu0 0.0
    %5438 = vmatpush1.msra.mxu0 0.0
    %5439 = vmatprep.subr.mxu0 0.0
    %5440 = vmatpush1.msra.mxu0 0.0
    %5441 = vmatprep.subr.mxu0 0.0
    %5442 = vmatpush1.msra.mxu0 0.0
    %5443 = vmatprep.mubr.f32.mxu0 0.0
    %5444 = vmatmul.mubr.f32.gmra.mrb[0].mxu0 %v4806
    %v5445 = vpop.f32.mrb[0].mxu0
    %v5446 = vadd.f32 %v5135, %v5445
    %v5447 = vpop.f32.mrb[0].mxu0
    %v5448 = vadd.f32 %v5139, %v5447
    %5449 = vmatprep.mubr.f32.mxu0 0.0
    %5450 = vmatmul.mubr.f32.gmra.mrb[0].mxu0 %v4810
    %v5451 = vpop.f32.mrb[0].mxu0
    %v5452 = vadd.f32 %v5135, %v5451
    %v5453 = vpop.f32.mrb[0].mxu0
    %v5454 = vadd.f32 %v5139, %v5453
    %5455 = vdwg.mxu0
    %vm5456 = vcmp.gt.f32.partialorder %v5215, 20.0
    %vm5457 = vcmp.gt.f32.partialorder %v5217, 20.0
    %vm5458 = vcmp.gt.f32.partialorder %v5292, 20.0
    %vm5459 = vcmp.gt.f32.partialorder %v5294, 20.0
    %vm5460 = vcmp.gt.f32.partialorder %v5369, 20.0
    %vm5461 = vcmp.gt.f32.partialorder %v5371, 20.0
    %vm5462 = vcmp.gt.f32.partialorder %v5446, 20.0
    %vm5463 = vcmp.gt.f32.partialorder %v5448, 20.0
    %vm5464 = vcmp.gt.f32.partialorder %v5221, 20.0
    %vm5465 = vcmp.gt.f32.partialorder %v5223, 20.0
    %vm5466 = vcmp.gt.f32.partialorder %v5298, 20.0
    %vm5467 = vcmp.gt.f32.partialorder %v5300, 20.0
    %vm5468 = vcmp.gt.f32.partialorder %v5375, 20.0
    %vm5469 = vcmp.gt.f32.partialorder %v5377, 20.0
    %vm5470 = vcmp.gt.f32.partialorder %v5452, 20.0
    %vm5471 = vcmp.gt.f32.partialorder %v5454, 20.0
    %v5472 = vmin.f32 %v5215, 20.0
    %v5473 = vmin.f32 %v5217, 20.0
    %v5474 = vmin.f32 %v5292, 20.0
    %v5475 = vmin.f32 %v5294, 20.0
    %v5476 = vmin.f32 %v5369, 20.0
    %v5477 = vmin.f32 %v5371, 20.0
    %v5478 = vmin.f32 %v5446, 20.0
    %v5479 = vmin.f32 %v5448, 20.0
    %v5480 = vmin.f32 %v5221, 20.0
    %v5481 = vmin.f32 %v5223, 20.0
    %v5482 = vmin.f32 %v5298, 20.0
    %v5483 = vmin.f32 %v5300, 20.0
    %v5484 = vmin.f32 %v5375, 20.0
    %v5485 = vmin.f32 %v5377, 20.0
    %v5486 = vmin.f32 %v5452, 20.0
    %v5487 = vmin.f32 %v5454, 20.0
    %v5488 = vmul.f32 %v5472, 1.442695
    %v5489 = vpow.pop %v5488
    %v5490 = vmul.f32 %v5473, 1.442695
    %v5491 = vpow.pop %v5490
    %v5492 = vmul.f32 %v5474, 1.442695
    %v5493 = vpow.pop %v5492
    %v5494 = vmul.f32 %v5475, 1.442695
    %v5495 = vpow.pop %v5494
    %v5496 = vmul.f32 %v5476, 1.442695
    %v5497 = vpow.pop %v5496
    %v5498 = vmul.f32 %v5477, 1.442695
    %v5499 = vpow.pop %v5498
    %v5500 = vmul.f32 %v5478, 1.442695
    %v5501 = vpow.pop %v5500
    %v5502 = vmul.f32 %v5479, 1.442695
    %v5503 = vpow.pop %v5502
    %v5504 = vmul.f32 %v5480, 1.442695
    %v5505 = vpow.pop %v5504
    %v5506 = vmul.f32 %v5481, 1.442695
    %v5507 = vpow.pop %v5506
    %v5508 = vmul.f32 %v5482, 1.442695
    %v5509 = vpow.pop %v5508
    %v5510 = vmul.f32 %v5483, 1.442695
    %v5511 = vpow.pop %v5510
    %v5512 = vmul.f32 %v5484, 1.442695
    %v5513 = vpow.pop %v5512
    %v5514 = vmul.f32 %v5485, 1.442695
    %v5515 = vpow.pop %v5514
    %v5516 = vmul.f32 %v5486, 1.442695
    %v5517 = vpow.pop %v5516
    %v5518 = vmul.f32 %v5487, 1.442695
    %v5519 = vpow.pop %v5518
    %v5520 = vadd.f32 %v5489, 1.0
    %v5521 = vlog2.pop %v5520
    %v5522 = vmul.f32 %v5521, 0.6931472
    %v5523 = vmul.f32 -0.5, %v5489
    %v5524 = vadd.f32 %v5523, 1.0
    %v5525 = vmul.f32 %v5524, %v5489
    %v5526 = vand.u32 2147483647, %v5489
    %vm5527 = vcmp.lt.f32.partialorder %v5526, 0.0004427343
    %v5528 = vsel %vm5527, %v5525, %v5522
    %v5529 = vadd.f32 %v5491, 1.0
    %v5530 = vlog2.pop %v5529
    %v5531 = vmul.f32 %v5530, 0.6931472
    %v5532 = vmul.f32 -0.5, %v5491
    %v5533 = vadd.f32 %v5532, 1.0
    %v5534 = vmul.f32 %v5533, %v5491
    %v5535 = vand.u32 2147483647, %v5491
    %vm5536 = vcmp.lt.f32.partialorder %v5535, 0.0004427343
    %v5537 = vsel %vm5536, %v5534, %v5531
    %v5538 = vadd.f32 %v5493, 1.0
    %v5539 = vlog2.pop %v5538
    %v5540 = vmul.f32 %v5539, 0.6931472
    %v5541 = vmul.f32 -0.5, %v5493
    %v5542 = vadd.f32 %v5541, 1.0
    %v5543 = vmul.f32 %v5542, %v5493
    %v5544 = vand.u32 2147483647, %v5493
    %vm5545 = vcmp.lt.f32.partialorder %v5544, 0.0004427343
    %v5546 = vsel %vm5545, %v5543, %v5540
    %v5547 = vadd.f32 %v5495, 1.0
    %v5548 = vlog2.pop %v5547
    %v5549 = vmul.f32 %v5548, 0.6931472
    %v5550 = vmul.f32 -0.5, %v5495
    %v5551 = vadd.f32 %v5550, 1.0
    %v5552 = vmul.f32 %v5551, %v5495
    %v5553 = vand.u32 2147483647, %v5495
    %vm5554 = vcmp.lt.f32.partialorder %v5553, 0.0004427343
    %v5555 = vsel %vm5554, %v5552, %v5549
    %v5556 = vadd.f32 %v5497, 1.0
    %v5557 = vlog2.pop %v5556
    %v5558 = vmul.f32 %v5557, 0.6931472
    %v5559 = vmul.f32 -0.5, %v5497
    %v5560 = vadd.f32 %v5559, 1.0
    %v5561 = vmul.f32 %v5560, %v5497
    %v5562 = vand.u32 2147483647, %v5497
    %vm5563 = vcmp.lt.f32.partialorder %v5562, 0.0004427343
    %v5564 = vsel %vm5563, %v5561, %v5558
    %v5565 = vadd.f32 %v5499, 1.0
    %v5566 = vlog2.pop %v5565
    %v5567 = vmul.f32 %v5566, 0.6931472
    %v5568 = vmul.f32 -0.5, %v5499
    %v5569 = vadd.f32 %v5568, 1.0
    %v5570 = vmul.f32 %v5569, %v5499
    %v5571 = vand.u32 2147483647, %v5499
    %vm5572 = vcmp.lt.f32.partialorder %v5571, 0.0004427343
    %v5573 = vsel %vm5572, %v5570, %v5567
    %v5574 = vadd.f32 %v5501, 1.0
    %v5575 = vlog2.pop %v5574
    %v5576 = vmul.f32 %v5575, 0.6931472
    %v5577 = vmul.f32 -0.5, %v5501
    %v5578 = vadd.f32 %v5577, 1.0
    %v5579 = vmul.f32 %v5578, %v5501
    %v5580 = vand.u32 2147483647, %v5501
    %vm5581 = vcmp.lt.f32.partialorder %v5580, 0.0004427343
    %v5582 = vsel %vm5581, %v5579, %v5576
    %v5583 = vadd.f32 %v5503, 1.0
    %v5584 = vlog2.pop %v5583
    %v5585 = vmul.f32 %v5584, 0.6931472
    %v5586 = vmul.f32 -0.5, %v5503
    %v5587 = vadd.f32 %v5586, 1.0
    %v5588 = vmul.f32 %v5587, %v5503
    %v5589 = vand.u32 2147483647, %v5503
    %vm5590 = vcmp.lt.f32.partialorder %v5589, 0.0004427343
    %v5591 = vsel %vm5590, %v5588, %v5585
    %v5592 = vadd.f32 %v5505, 1.0
    %v5593 = vlog2.pop %v5592
    %v5594 = vmul.f32 %v5593, 0.6931472
    %v5595 = vmul.f32 -0.5, %v5505
    %v5596 = vadd.f32 %v5595, 1.0
    %v5597 = vmul.f32 %v5596, %v5505
    %v5598 = vand.u32 2147483647, %v5505
    %vm5599 = vcmp.lt.f32.partialorder %v5598, 0.0004427343
    %v5600 = vsel %vm5599, %v5597, %v5594
    %v5601 = vadd.f32 %v5507, 1.0
    %v5602 = vlog2.pop %v5601
    %v5603 = vmul.f32 %v5602, 0.6931472
    %v5604 = vmul.f32 -0.5, %v5507
    %v5605 = vadd.f32 %v5604, 1.0
    %v5606 = vmul.f32 %v5605, %v5507
    %v5607 = vand.u32 2147483647, %v5507
    %vm5608 = vcmp.lt.f32.partialorder %v5607, 0.0004427343
    %v5609 = vsel %vm5608, %v5606, %v5603
    %v5610 = vadd.f32 %v5509, 1.0
    %v5611 = vlog2.pop %v5610
    %v5612 = vmul.f32 %v5611, 0.6931472
    %v5613 = vmul.f32 -0.5, %v5509
    %v5614 = vadd.f32 %v5613, 1.0
    %v5615 = vmul.f32 %v5614, %v5509
    %v5616 = vand.u32 2147483647, %v5509
    %vm5617 = vcmp.lt.f32.partialorder %v5616, 0.0004427343
    %v5618 = vsel %vm5617, %v5615, %v5612
    %v5619 = vadd.f32 %v5511, 1.0
    %v5620 = vlog2.pop %v5619
    %v5621 = vmul.f32 %v5620, 0.6931472
    %v5622 = vmul.f32 -0.5, %v5511
    %v5623 = vadd.f32 %v5622, 1.0
    %v5624 = vmul.f32 %v5623, %v5511
    %v5625 = vand.u32 2147483647, %v5511
    %vm5626 = vcmp.lt.f32.partialorder %v5625, 0.0004427343
    %v5627 = vsel %vm5626, %v5624, %v5621
    %v5628 = vadd.f32 %v5513, 1.0
    %v5629 = vlog2.pop %v5628
    %v5630 = vmul.f32 %v5629, 0.6931472
    %v5631 = vmul.f32 -0.5, %v5513
    %v5632 = vadd.f32 %v5631, 1.0
    %v5633 = vmul.f32 %v5632, %v5513
    %v5634 = vand.u32 2147483647, %v5513
    %vm5635 = vcmp.lt.f32.partialorder %v5634, 0.0004427343
    %v5636 = vsel %vm5635, %v5633, %v5630
    %v5637 = vadd.f32 %v5515, 1.0
    %v5638 = vlog2.pop %v5637
    %v5639 = vmul.f32 %v5638, 0.6931472
    %v5640 = vmul.f32 -0.5, %v5515
    %v5641 = vadd.f32 %v5640, 1.0
    %v5642 = vmul.f32 %v5641, %v5515
    %v5643 = vand.u32 2147483647, %v5515
    %vm5644 = vcmp.lt.f32.partialorder %v5643, 0.0004427343
    %v5645 = vsel %vm5644, %v5642, %v5639
    %v5646 = vadd.f32 %v5517, 1.0
    %v5647 = vlog2.pop %v5646
    %v5648 = vmul.f32 %v5647, 0.6931472
    %v5649 = vmul.f32 -0.5, %v5517
    %v5650 = vadd.f32 %v5649, 1.0
    %v5651 = vmul.f32 %v5650, %v5517
    %v5652 = vand.u32 2147483647, %v5517
    %vm5653 = vcmp.lt.f32.partialorder %v5652, 0.0004427343
    %v5654 = vsel %vm5653, %v5651, %v5648
    %v5655 = vadd.f32 %v5519, 1.0
    %v5656 = vlog2.pop %v5655
    %v5657 = vmul.f32 %v5656, 0.6931472
    %v5658 = vmul.f32 -0.5, %v5519
    %v5659 = vadd.f32 %v5658, 1.0
    %v5660 = vmul.f32 %v5659, %v5519
    %v5661 = vand.u32 2147483647, %v5519
    %vm5662 = vcmp.lt.f32.partialorder %v5661, 0.0004427343
    %v5663 = vsel %vm5662, %v5660, %v5657
    %v5664 = vsel %vm5456, %v5215, %v5528
    %v5665 = vsel %vm5457, %v5217, %v5537
    %v5666 = vsel %vm5458, %v5292, %v5546
    %v5667 = vsel %vm5459, %v5294, %v5555
    %v5668 = vsel %vm5460, %v5369, %v5564
    %v5669 = vsel %vm5461, %v5371, %v5573
    %v5670 = vsel %vm5462, %v5446, %v5582
    %v5671 = vsel %vm5463, %v5448, %v5591
    %v5672 = vsel %vm5464, %v5221, %v5600
    %v5673 = vsel %vm5465, %v5223, %v5609
    %v5674 = vsel %vm5466, %v5298, %v5618
    %v5675 = vsel %vm5467, %v5300, %v5627
    %v5676 = vsel %vm5468, %v5375, %v5636
    %v5677 = vsel %vm5469, %v5377, %v5645
    %v5678 = vsel %vm5470, %v5452, %v5654
    %v5679 = vsel %vm5471, %v5454, %v5663
    %v5680 = vmul.f32 %v5664, %v3338
    %v5681 = vmul.f32 %v5665, %v3339
    %v5682 = vmul.f32 %v5666, %v3340
    %v5683 = vmul.f32 %v5667, %v3341
    %v5684 = vmul.f32 %v5668, %v3342
    %v5685 = vmul.f32 %v5669, %v3343
    %v5686 = vmul.f32 %v5670, %v3344
    %v5687 = vmul.f32 %v5671, %v3345
    %v5688 = vmul.f32 %v5672, %v3346
    %v5689 = vmul.f32 %v5673, %v3347
    %v5690 = vmul.f32 %v5674, %v3348
    %v5691 = vmul.f32 %v5675, %v3349
    %v5692 = vmul.f32 %v5676, %v3350
    %v5693 = vmul.f32 %v5677, %v3351
    %v5694 = vmul.f32 %v5678, %v3352
    %v5695 = vmul.f32 %v5679, %v3353
    %v5696 = vsub.f32 0.0, %v5664
    %v5697 = vsub.f32 0.0, %v5665
    %v5698 = vsub.f32 0.0, %v5666
    %v5699 = vsub.f32 0.0, %v5667
    %v5700 = vsub.f32 0.0, %v5668
    %v5701 = vsub.f32 0.0, %v5669
    %v5702 = vsub.f32 0.0, %v5670
    %v5703 = vsub.f32 0.0, %v5671
    %v5704 = vsub.f32 0.0, %v5672
    %v5705 = vsub.f32 0.0, %v5673
    %v5706 = vsub.f32 0.0, %v5674
    %v5707 = vsub.f32 0.0, %v5675
    %v5708 = vsub.f32 0.0, %v5676
    %v5709 = vsub.f32 0.0, %v5677
    %v5710 = vsub.f32 0.0, %v5678
    %v5711 = vsub.f32 0.0, %v5679
    %v5712 = vmul.f32 %v5696, 1.442695
    %v5713 = vpow.pop %v5712
    %v5714 = vmul.f32 %v5697, 1.442695
    %v5715 = vpow.pop %v5714
    %v5716 = vmul.f32 %v5698, 1.442695
    %v5717 = vpow.pop %v5716
    %v5718 = vmul.f32 %v5699, 1.442695
    %v5719 = vpow.pop %v5718
    %v5720 = vmul.f32 %v5700, 1.442695
    %v5721 = vpow.pop %v5720
    %v5722 = vmul.f32 %v5701, 1.442695
    %v5723 = vpow.pop %v5722
    %v5724 = vmul.f32 %v5702, 1.442695
    %v5725 = vpow.pop %v5724
    %v5726 = vmul.f32 %v5703, 1.442695
    %v5727 = vpow.pop %v5726
    %v5728 = vmul.f32 %v5704, 1.442695
    %v5729 = vpow.pop %v5728
    %v5730 = vmul.f32 %v5705, 1.442695
    %v5731 = vpow.pop %v5730
    %v5732 = vmul.f32 %v5706, 1.442695
    %v5733 = vpow.pop %v5732
    %v5734 = vmul.f32 %v5707, 1.442695
    %v5735 = vpow.pop %v5734
    %v5736 = vmul.f32 %v5708, 1.442695
    %v5737 = vpow.pop %v5736
    %v5738 = vmul.f32 %v5709, 1.442695
    %v5739 = vpow.pop %v5738
    %v5740 = vmul.f32 %v5710, 1.442695
    %v5741 = vpow.pop %v5740
    %v5742 = vmul.f32 %v5711, 1.442695
    %v5743 = vpow.pop %v5742
    %v5760 = vrot.slane %v5713, 7
    %v5761 = vrot.slane %v5715, 7
    %v5762 = vrot.slane %v5717, 7
    %v5763 = vrot.slane %v5719, 7
    %v5764 = vrot.slane %v5721, 7
    %v5765 = vrot.slane %v5723, 7
    %v5766 = vrot.slane %v5725, 7
    %v5767 = vrot.slane %v5727, 7
    %v5768 = vrot.slane %v5729, 7
    %v5769 = vrot.slane %v5731, 7
    %v5770 = vrot.slane %v5733, 7
    %v5771 = vrot.slane %v5735, 7
    %v5772 = vrot.slane %v5737, 7
    %v5773 = vrot.slane %v5739, 7
    %v5774 = vrot.slane %v5741, 7
    %v5775 = vrot.slane %v5743, 7
    %v5792 = vmul.f32 %v5713, %v5760
    %v5793 = vmul.f32 %v5715, %v5761
    %v5794 = vmul.f32 %v5717, %v5762
    %v5795 = vmul.f32 %v5719, %v5763
    %v5796 = vmul.f32 %v5721, %v5764
    %v5797 = vmul.f32 %v5723, %v5765
    %v5798 = vmul.f32 %v5725, %v5766
    %v5799 = vmul.f32 %v5727, %v5767
    %v5800 = vmul.f32 %v5729, %v5768
    %v5801 = vmul.f32 %v5731, %v5769
    %v5802 = vmul.f32 %v5733, %v5770
    %v5803 = vmul.f32 %v5735, %v5771
    %v5804 = vmul.f32 %v5737, %v5772
    %v5805 = vmul.f32 %v5739, %v5773
    %v5806 = vmul.f32 %v5741, %v5774
    %v5807 = vmul.f32 %v5743, %v5775
    %v5808 = vrot.slane %v5713, 6
    %v5809 = vrot.slane %v5715, 6
    %v5810 = vrot.slane %v5717, 6
    %v5811 = vrot.slane %v5719, 6
    %v5812 = vrot.slane %v5721, 6
    %v5813 = vrot.slane %v5723, 6
    %v5814 = vrot.slane %v5725, 6
    %v5815 = vrot.slane %v5727, 6
    %v5816 = vrot.slane %v5729, 6
    %v5817 = vrot.slane %v5731, 6
    %v5818 = vrot.slane %v5733, 6
    %v5819 = vrot.slane %v5735, 6
    %v5820 = vrot.slane %v5737, 6
    %v5821 = vrot.slane %v5739, 6
    %v5822 = vrot.slane %v5741, 6
    %v5823 = vrot.slane %v5743, 6
    %v5840 = vmul.f32 %v5792, %v5808
    %v5841 = vmul.f32 %v5793, %v5809
    %v5842 = vmul.f32 %v5794, %v5810
    %v5843 = vmul.f32 %v5795, %v5811
    %v5844 = vmul.f32 %v5796, %v5812
    %v5845 = vmul.f32 %v5797, %v5813
    %v5846 = vmul.f32 %v5798, %v5814
    %v5847 = vmul.f32 %v5799, %v5815
    %v5848 = vmul.f32 %v5800, %v5816
    %v5849 = vmul.f32 %v5801, %v5817
    %v5850 = vmul.f32 %v5802, %v5818
    %v5851 = vmul.f32 %v5803, %v5819
    %v5852 = vmul.f32 %v5804, %v5820
    %v5853 = vmul.f32 %v5805, %v5821
    %v5854 = vmul.f32 %v5806, %v5822
    %v5855 = vmul.f32 %v5807, %v5823
    %v5856 = vrot.slane %v5713, 5
    %v5857 = vrot.slane %v5715, 5
    %v5858 = vrot.slane %v5717, 5
    %v5859 = vrot.slane %v5719, 5
    %v5860 = vrot.slane %v5721, 5
    %v5861 = vrot.slane %v5723, 5
    %v5862 = vrot.slane %v5725, 5
    %v5863 = vrot.slane %v5727, 5
    %v5864 = vrot.slane %v5729, 5
    %v5865 = vrot.slane %v5731, 5
    %v5866 = vrot.slane %v5733, 5
    %v5867 = vrot.slane %v5735, 5
    %v5868 = vrot.slane %v5737, 5
    %v5869 = vrot.slane %v5739, 5
    %v5870 = vrot.slane %v5741, 5
    %v5871 = vrot.slane %v5743, 5
    %v5888 = vmul.f32 %v5840, %v5856
    %v5889 = vmul.f32 %v5841, %v5857
    %v5890 = vmul.f32 %v5842, %v5858
    %v5891 = vmul.f32 %v5843, %v5859
    %v5892 = vmul.f32 %v5844, %v5860
    %v5893 = vmul.f32 %v5845, %v5861
    %v5894 = vmul.f32 %v5846, %v5862
    %v5895 = vmul.f32 %v5847, %v5863
    %v5896 = vmul.f32 %v5848, %v5864
    %v5897 = vmul.f32 %v5849, %v5865
    %v5898 = vmul.f32 %v5850, %v5866
    %v5899 = vmul.f32 %v5851, %v5867
    %v5900 = vmul.f32 %v5852, %v5868
    %v5901 = vmul.f32 %v5853, %v5869
    %v5902 = vmul.f32 %v5854, %v5870
    %v5903 = vmul.f32 %v5855, %v5871
    %v5904 = vrot.slane %v5713, 4
    %v5905 = vrot.slane %v5715, 4
    %v5906 = vrot.slane %v5717, 4
    %v5907 = vrot.slane %v5719, 4
    %v5908 = vrot.slane %v5721, 4
    %v5909 = vrot.slane %v5723, 4
    %v5910 = vrot.slane %v5725, 4
    %v5911 = vrot.slane %v5727, 4
    %v5912 = vrot.slane %v5729, 4
    %v5913 = vrot.slane %v5731, 4
    %v5914 = vrot.slane %v5733, 4
    %v5915 = vrot.slane %v5735, 4
    %v5916 = vrot.slane %v5737, 4
    %v5917 = vrot.slane %v5739, 4
    %v5918 = vrot.slane %v5741, 4
    %v5919 = vrot.slane %v5743, 4
    %v5936 = vmul.f32 %v5888, %v5904
    %v5937 = vmul.f32 %v5889, %v5905
    %v5938 = vmul.f32 %v5890, %v5906
    %v5939 = vmul.f32 %v5891, %v5907
    %v5940 = vmul.f32 %v5892, %v5908
    %v5941 = vmul.f32 %v5893, %v5909
    %v5942 = vmul.f32 %v5894, %v5910
    %v5943 = vmul.f32 %v5895, %v5911
    %v5944 = vmul.f32 %v5896, %v5912
    %v5945 = vmul.f32 %v5897, %v5913
    %v5946 = vmul.f32 %v5898, %v5914
    %v5947 = vmul.f32 %v5899, %v5915
    %v5948 = vmul.f32 %v5900, %v5916
    %v5949 = vmul.f32 %v5901, %v5917
    %v5950 = vmul.f32 %v5902, %v5918
    %v5951 = vmul.f32 %v5903, %v5919
    %v5952 = vrot.slane %v5713, 3
    %v5953 = vrot.slane %v5715, 3
    %v5954 = vrot.slane %v5717, 3
    %v5955 = vrot.slane %v5719, 3
    %v5956 = vrot.slane %v5721, 3
    %v5957 = vrot.slane %v5723, 3
    %v5958 = vrot.slane %v5725, 3
    %v5959 = vrot.slane %v5727, 3
    %v5960 = vrot.slane %v5729, 3
    %v5961 = vrot.slane %v5731, 3
    %v5962 = vrot.slane %v5733, 3
    %v5963 = vrot.slane %v5735, 3
    %v5964 = vrot.slane %v5737, 3
    %v5965 = vrot.slane %v5739, 3
    %v5966 = vrot.slane %v5741, 3
    %v5967 = vrot.slane %v5743, 3
    %v5984 = vmul.f32 %v5936, %v5952
    %v5985 = vmul.f32 %v5937, %v5953
    %v5986 = vmul.f32 %v5938, %v5954
    %v5987 = vmul.f32 %v5939, %v5955
    %v5988 = vmul.f32 %v5940, %v5956
    %v5989 = vmul.f32 %v5941, %v5957
    %v5990 = vmul.f32 %v5942, %v5958
    %v5991 = vmul.f32 %v5943, %v5959
    %v5992 = vmul.f32 %v5944, %v5960
    %v5993 = vmul.f32 %v5945, %v5961
    %v5994 = vmul.f32 %v5946, %v5962
    %v5995 = vmul.f32 %v5947, %v5963
    %v5996 = vmul.f32 %v5948, %v5964
    %v5997 = vmul.f32 %v5949, %v5965
    %v5998 = vmul.f32 %v5950, %v5966
    %v5999 = vmul.f32 %v5951, %v5967
    %v6000 = vrot.slane %v5713, 2
    %v6001 = vrot.slane %v5715, 2
    %v6002 = vrot.slane %v5717, 2
    %v6003 = vrot.slane %v5719, 2
    %v6004 = vrot.slane %v5721, 2
    %v6005 = vrot.slane %v5723, 2
    %v6006 = vrot.slane %v5725, 2
    %v6007 = vrot.slane %v5727, 2
    %v6008 = vrot.slane %v5729, 2
    %v6009 = vrot.slane %v5731, 2
    %v6010 = vrot.slane %v5733, 2
    %v6011 = vrot.slane %v5735, 2
    %v6012 = vrot.slane %v5737, 2
    %v6013 = vrot.slane %v5739, 2
    %v6014 = vrot.slane %v5741, 2
    %v6015 = vrot.slane %v5743, 2
    %v6032 = vmul.f32 %v5984, %v6000
    %v6033 = vmul.f32 %v5985, %v6001
    %v6034 = vmul.f32 %v5986, %v6002
    %v6035 = vmul.f32 %v5987, %v6003
    %v6036 = vmul.f32 %v5988, %v6004
    %v6037 = vmul.f32 %v5989, %v6005
    %v6038 = vmul.f32 %v5990, %v6006
    %v6039 = vmul.f32 %v5991, %v6007
    %v6040 = vmul.f32 %v5992, %v6008
    %v6041 = vmul.f32 %v5993, %v6009
    %v6042 = vmul.f32 %v5994, %v6010
    %v6043 = vmul.f32 %v5995, %v6011
    %v6044 = vmul.f32 %v5996, %v6012
    %v6045 = vmul.f32 %v5997, %v6013
    %v6046 = vmul.f32 %v5998, %v6014
    %v6047 = vmul.f32 %v5999, %v6015
    %v6064 = vrot.slane %v6032, 7
    %v6065 = vrot.slane %v6033, 7
    %v6066 = vrot.slane %v6034, 7
    %v6067 = vrot.slane %v6035, 7
    %v6068 = vrot.slane %v6036, 7
    %v6069 = vrot.slane %v6037, 7
    %v6070 = vrot.slane %v6038, 7
    %v6071 = vrot.slane %v6039, 7
    %v6072 = vrot.slane %v6040, 7
    %v6073 = vrot.slane %v6041, 7
    %v6074 = vrot.slane %v6042, 7
    %v6075 = vrot.slane %v6043, 7
    %v6076 = vrot.slane %v6044, 7
    %v6077 = vrot.slane %v6045, 7
    %v6078 = vrot.slane %v6046, 7
    %v6079 = vrot.slane %v6047, 7
    %v6112 = vrot.slane %v5984, 6
    %v6113 = vrot.slane %v5985, 6
    %v6114 = vrot.slane %v5986, 6
    %v6115 = vrot.slane %v5987, 6
    %v6116 = vrot.slane %v5988, 6
    %v6117 = vrot.slane %v5989, 6
    %v6118 = vrot.slane %v5990, 6
    %v6119 = vrot.slane %v5991, 6
    %v6120 = vrot.slane %v5992, 6
    %v6121 = vrot.slane %v5993, 6
    %v6122 = vrot.slane %v5994, 6
    %v6123 = vrot.slane %v5995, 6
    %v6124 = vrot.slane %v5996, 6
    %v6125 = vrot.slane %v5997, 6
    %v6126 = vrot.slane %v5998, 6
    %v6127 = vrot.slane %v5999, 6
    %v6160 = vrot.slane %v5936, 5
    %v6161 = vrot.slane %v5937, 5
    %v6162 = vrot.slane %v5938, 5
    %v6163 = vrot.slane %v5939, 5
    %v6164 = vrot.slane %v5940, 5
    %v6165 = vrot.slane %v5941, 5
    %v6166 = vrot.slane %v5942, 5
    %v6167 = vrot.slane %v5943, 5
    %v6168 = vrot.slane %v5944, 5
    %v6169 = vrot.slane %v5945, 5
    %v6170 = vrot.slane %v5946, 5
    %v6171 = vrot.slane %v5947, 5
    %v6172 = vrot.slane %v5948, 5
    %v6173 = vrot.slane %v5949, 5
    %v6174 = vrot.slane %v5950, 5
    %v6175 = vrot.slane %v5951, 5
    %v6208 = vrot.slane %v5888, 4
    %v6209 = vrot.slane %v5889, 4
    %v6210 = vrot.slane %v5890, 4
    %v6211 = vrot.slane %v5891, 4
    %v6212 = vrot.slane %v5892, 4
    %v6213 = vrot.slane %v5893, 4
    %v6214 = vrot.slane %v5894, 4
    %v6215 = vrot.slane %v5895, 4
    %v6216 = vrot.slane %v5896, 4
    %v6217 = vrot.slane %v5897, 4
    %v6218 = vrot.slane %v5898, 4
    %v6219 = vrot.slane %v5899, 4
    %v6220 = vrot.slane %v5900, 4
    %v6221 = vrot.slane %v5901, 4
    %v6222 = vrot.slane %v5902, 4
    %v6223 = vrot.slane %v5903, 4
    %v6256 = vrot.slane %v5840, 3
    %v6257 = vrot.slane %v5841, 3
    %v6258 = vrot.slane %v5842, 3
    %v6259 = vrot.slane %v5843, 3
    %v6260 = vrot.slane %v5844, 3
    %v6261 = vrot.slane %v5845, 3
    %v6262 = vrot.slane %v5846, 3
    %v6263 = vrot.slane %v5847, 3
    %v6264 = vrot.slane %v5848, 3
    %v6265 = vrot.slane %v5849, 3
    %v6266 = vrot.slane %v5850, 3
    %v6267 = vrot.slane %v5851, 3
    %v6268 = vrot.slane %v5852, 3
    %v6269 = vrot.slane %v5853, 3
    %v6270 = vrot.slane %v5854, 3
    %v6271 = vrot.slane %v5855, 3
    %v6304 = vrot.slane %v5792, 2
    %v6305 = vrot.slane %v5793, 2
    %v6306 = vrot.slane %v5794, 2
    %v6307 = vrot.slane %v5795, 2
    %v6308 = vrot.slane %v5796, 2
    %v6309 = vrot.slane %v5797, 2
    %v6310 = vrot.slane %v5798, 2
    %v6311 = vrot.slane %v5799, 2
    %v6312 = vrot.slane %v5800, 2
    %v6313 = vrot.slane %v5801, 2
    %v6314 = vrot.slane %v5802, 2
    %v6315 = vrot.slane %v5803, 2
    %v6316 = vrot.slane %v5804, 2
    %v6317 = vrot.slane %v5805, 2
    %v6318 = vrot.slane %v5806, 2
    %v6319 = vrot.slane %v5807, 2
    %v6336 = vrot.slane %v5713, 1
    %v6337 = vrot.slane %v5715, 1
    %v6338 = vrot.slane %v5717, 1
    %v6339 = vrot.slane %v5719, 1
    %v6340 = vrot.slane %v5721, 1
    %v6341 = vrot.slane %v5723, 1
    %v6342 = vrot.slane %v5725, 1
    %v6343 = vrot.slane %v5727, 1
    %v6344 = vrot.slane %v5729, 1
    %v6345 = vrot.slane %v5731, 1
    %v6346 = vrot.slane %v5733, 1
    %v6347 = vrot.slane %v5735, 1
    %v6348 = vrot.slane %v5737, 1
    %v6349 = vrot.slane %v5739, 1
    %v6350 = vrot.slane %v5741, 1
    %v6351 = vrot.slane %v5743, 1
    %vm6368 = vcmask 1040384
    %v6369 = vsel %vm6368, %v6064, %v6112
    %v6370 = vsel %vm6368, %v6065, %v6113
    %v6371 = vsel %vm6368, %v6066, %v6114
    %v6372 = vsel %vm6368, %v6067, %v6115
    %v6373 = vsel %vm6368, %v6068, %v6116
    %v6374 = vsel %vm6368, %v6069, %v6117
    %v6375 = vsel %vm6368, %v6070, %v6118
    %v6376 = vsel %vm6368, %v6071, %v6119
    %v6377 = vsel %vm6368, %v6072, %v6120
    %v6378 = vsel %vm6368, %v6073, %v6121
    %v6379 = vsel %vm6368, %v6074, %v6122
    %v6380 = vsel %vm6368, %v6075, %v6123
    %v6381 = vsel %vm6368, %v6076, %v6124
    %v6382 = vsel %vm6368, %v6077, %v6125
    %v6383 = vsel %vm6368, %v6078, %v6126
    %v6384 = vsel %vm6368, %v6079, %v6127
    %vm6385 = vcmask 1041408
    %v6386 = vsel %vm6385, %v6369, %v6160
    %v6387 = vsel %vm6385, %v6370, %v6161
    %v6388 = vsel %vm6385, %v6371, %v6162
    %v6389 = vsel %vm6385, %v6372, %v6163
    %v6390 = vsel %vm6385, %v6373, %v6164
    %v6391 = vsel %vm6385, %v6374, %v6165
    %v6392 = vsel %vm6385, %v6375, %v6166
    %v6393 = vsel %vm6385, %v6376, %v6167
    %v6394 = vsel %vm6385, %v6377, %v6168
    %v6395 = vsel %vm6385, %v6378, %v6169
    %v6396 = vsel %vm6385, %v6379, %v6170
    %v6397 = vsel %vm6385, %v6380, %v6171
    %v6398 = vsel %vm6385, %v6381, %v6172
    %v6399 = vsel %vm6385, %v6382, %v6173
    %v6400 = vsel %vm6385, %v6383, %v6174
    %v6401 = vsel %vm6385, %v6384, %v6175
    %vm6402 = vcmask 1042432
    %v6403 = vsel %vm6402, %v6386, %v6208
    %v6404 = vsel %vm6402, %v6387, %v6209
    %v6405 = vsel %vm6402, %v6388, %v6210
    %v6406 = vsel %vm6402, %v6389, %v6211
    %v6407 = vsel %vm6402, %v6390, %v6212
    %v6408 = vsel %vm6402, %v6391, %v6213
    %v6409 = vsel %vm6402, %v6392, %v6214
    %v6410 = vsel %vm6402, %v6393, %v6215
    %v6411 = vsel %vm6402, %v6394, %v6216
    %v6412 = vsel %vm6402, %v6395, %v6217
    %v6413 = vsel %vm6402, %v6396, %v6218
    %v6414 = vsel %vm6402, %v6397, %v6219
    %v6415 = vsel %vm6402, %v6398, %v6220
    %v6416 = vsel %vm6402, %v6399, %v6221
    %v6417 = vsel %vm6402, %v6400, %v6222
    %v6418 = vsel %vm6402, %v6401, %v6223
    %vm6419 = vcmask 1043456
    %v6420 = vsel %vm6419, %v6403, %v6256
    %v6421 = vsel %vm6419, %v6404, %v6257
    %v6422 = vsel %vm6419, %v6405, %v6258
    %v6423 = vsel %vm6419, %v6406, %v6259
    %v6424 = vsel %vm6419, %v6407, %v6260
    %v6425 = vsel %vm6419, %v6408, %v6261
    %v6426 = vsel %vm6419, %v6409, %v6262
    %v6427 = vsel %vm6419, %v6410, %v6263
    %v6428 = vsel %vm6419, %v6411, %v6264
    %v6429 = vsel %vm6419, %v6412, %v6265
    %v6430 = vsel %vm6419, %v6413, %v6266
    %v6431 = vsel %vm6419, %v6414, %v6267
    %v6432 = vsel %vm6419, %v6415, %v6268
    %v6433 = vsel %vm6419, %v6416, %v6269
    %v6434 = vsel %vm6419, %v6417, %v6270
    %v6435 = vsel %vm6419, %v6418, %v6271
    %vm6436 = vcmask 1044480
    %v6437 = vsel %vm6436, %v6420, %v6304
    %v6438 = vsel %vm6436, %v6421, %v6305
    %v6439 = vsel %vm6436, %v6422, %v6306
    %v6440 = vsel %vm6436, %v6423, %v6307
    %v6441 = vsel %vm6436, %v6424, %v6308
    %v6442 = vsel %vm6436, %v6425, %v6309
    %v6443 = vsel %vm6436, %v6426, %v6310
    %v6444 = vsel %vm6436, %v6427, %v6311
    %v6445 = vsel %vm6436, %v6428, %v6312
    %v6446 = vsel %vm6436, %v6429, %v6313
    %v6447 = vsel %vm6436, %v6430, %v6314
    %v6448 = vsel %vm6436, %v6431, %v6315
    %v6449 = vsel %vm6436, %v6432, %v6316
    %v6450 = vsel %vm6436, %v6433, %v6317
    %v6451 = vsel %vm6436, %v6434, %v6318
    %v6452 = vsel %vm6436, %v6435, %v6319
    %vm6453 = vcmask 1045504
    %v6454 = vsel %vm6453, %v6437, %v6336
    %v6455 = vsel %vm6453, %v6438, %v6337
    %v6456 = vsel %vm6453, %v6439, %v6338
    %v6457 = vsel %vm6453, %v6440, %v6339
    %v6458 = vsel %vm6453, %v6441, %v6340
    %v6459 = vsel %vm6453, %v6442, %v6341
    %v6460 = vsel %vm6453, %v6443, %v6342
    %v6461 = vsel %vm6453, %v6444, %v6343
    %v6462 = vsel %vm6453, %v6445, %v6344
    %v6463 = vsel %vm6453, %v6446, %v6345
    %v6464 = vsel %vm6453, %v6447, %v6346
    %v6465 = vsel %vm6453, %v6448, %v6347
    %v6466 = vsel %vm6453, %v6449, %v6348
    %v6467 = vsel %vm6453, %v6450, %v6349
    %v6468 = vsel %vm6453, %v6451, %v6350
    %v6469 = vsel %vm6453, %v6452, %v6351
    %vm6470 = vcmask 1046528
    %v6471 = vsel %vm6470, %v6454, 1.0
    %v6472 = vsel %vm6470, %v6455, 1.0
    %v6473 = vsel %vm6470, %v6456, 1.0
    %v6474 = vsel %vm6470, %v6457, 1.0
    %v6475 = vsel %vm6470, %v6458, 1.0
    %v6476 = vsel %vm6470, %v6459, 1.0
    %v6477 = vsel %vm6470, %v6460, 1.0
    %v6478 = vsel %vm6470, %v6461, 1.0
    %v6479 = vsel %vm6470, %v6462, 1.0
    %v6480 = vsel %vm6470, %v6463, 1.0
    %v6481 = vsel %vm6470, %v6464, 1.0
    %v6482 = vsel %vm6470, %v6465, 1.0
    %v6483 = vsel %vm6470, %v6466, 1.0
    %v6484 = vsel %vm6470, %v6467, 1.0
    %v6485 = vsel %vm6470, %v6468, 1.0
    %v6486 = vsel %vm6470, %v6469, 1.0
    %v6487 = vlaneseq
    %v6488 = vshrl.u32 %v6487, 7
    %v6489 = vsub.s32 7, %v6488
    %v6490 = vrot.slane %v4972, %v6489
    %v6491 = vlaneseq
    %v6492 = vshrl.u32 %v6491, 7
    %v6493 = vsub.s32 7, %v6492
    %v6494 = vrot.slane %v4975, %v6493
    %v6495 = vmul.f32 %v4808, %v6490
    %v6496 = vmul.f32 %v4812, %v6494
    %6498 = vset.pattern.permute.xlu0 15
    %6499 = vperm.xlu0 %6498, %v6495
    %v6500 = vpop.permute.xlu0 %6499
    %6503 = vset.pattern.permute.xlu0 15
    %6504 = vperm.xlu0 %6503, %v6496
    %v6505 = vpop.permute.xlu0 %6504
    %v6507 = vmul.f32 %v6500, %v6471
    %v6508 = vmul.f32 %v6500, %v6472
    %v6509 = vmul.f32 %v6500, %v6473
    %v6510 = vmul.f32 %v6500, %v6474
    %v6511 = vmul.f32 %v6500, %v6475
    %v6512 = vmul.f32 %v6500, %v6476
    %v6513 = vmul.f32 %v6500, %v6477
    %v6514 = vmul.f32 %v6500, %v6478
    %v6515 = vmul.f32 %v6505, %v6479
    %v6516 = vmul.f32 %v6505, %v6480
    %v6517 = vmul.f32 %v6505, %v6481
    %v6518 = vmul.f32 %v6505, %v6482
    %v6519 = vmul.f32 %v6505, %v6483
    %v6520 = vmul.f32 %v6505, %v6484
    %v6521 = vmul.f32 %v6505, %v6485
    %v6522 = vmul.f32 %v6505, %v6486
    %6523 = vset.pattern.permute.xlu0 14
    %6524 = vperm.xlu0 %6523, %v6495
    %v6525 = vpop.permute.xlu0 %6524
    %6527 = vset.pattern.permute.xlu0 14
    %6528 = vperm.xlu0 %6527, %v6496
    %v6529 = vpop.permute.xlu0 %6528
    %v6531 = vadd.f32 %v6507, %v6525
    %v6532 = vadd.f32 %v6508, %v6525
    %v6533 = vadd.f32 %v6509, %v6525
    %v6534 = vadd.f32 %v6510, %v6525
    %v6535 = vadd.f32 %v6511, %v6525
    %v6536 = vadd.f32 %v6512, %v6525
    %v6537 = vadd.f32 %v6513, %v6525
    %v6538 = vadd.f32 %v6514, %v6525
    %v6539 = vadd.f32 %v6515, %v6529
    %v6540 = vadd.f32 %v6516, %v6529
    %v6541 = vadd.f32 %v6517, %v6529
    %v6542 = vadd.f32 %v6518, %v6529
    %v6543 = vadd.f32 %v6519, %v6529
    %v6544 = vadd.f32 %v6520, %v6529
    %v6545 = vadd.f32 %v6521, %v6529
    %v6546 = vadd.f32 %v6522, %v6529
    %v6547 = vmul.f32 %v6531, %v6471
    %v6548 = vmul.f32 %v6532, %v6472
    %v6549 = vmul.f32 %v6533, %v6473
    %v6550 = vmul.f32 %v6534, %v6474
    %v6551 = vmul.f32 %v6535, %v6475
    %v6552 = vmul.f32 %v6536, %v6476
    %v6553 = vmul.f32 %v6537, %v6477
    %v6554 = vmul.f32 %v6538, %v6478
    %v6555 = vmul.f32 %v6539, %v6479
    %v6556 = vmul.f32 %v6540, %v6480
    %v6557 = vmul.f32 %v6541, %v6481
    %v6558 = vmul.f32 %v6542, %v6482
    %v6559 = vmul.f32 %v6543, %v6483
    %v6560 = vmul.f32 %v6544, %v6484
    %v6561 = vmul.f32 %v6545, %v6485
    %v6562 = vmul.f32 %v6546, %v6486
    %6563 = vset.pattern.permute.xlu0 13
    %6564 = vperm.xlu0 %6563, %v6495
    %v6565 = vpop.permute.xlu0 %6564
    %6567 = vset.pattern.permute.xlu0 13
    %6568 = vperm.xlu0 %6567, %v6496
    %v6569 = vpop.permute.xlu0 %6568
    %v6571 = vadd.f32 %v6547, %v6565
    %v6572 = vadd.f32 %v6548, %v6565
    %v6573 = vadd.f32 %v6549, %v6565
    %v6574 = vadd.f32 %v6550, %v6565
    %v6575 = vadd.f32 %v6551, %v6565
    %v6576 = vadd.f32 %v6552, %v6565
    %v6577 = vadd.f32 %v6553, %v6565
    %v6578 = vadd.f32 %v6554, %v6565
    %v6579 = vadd.f32 %v6555, %v6569
    %v6580 = vadd.f32 %v6556, %v6569
    %v6581 = vadd.f32 %v6557, %v6569
    %v6582 = vadd.f32 %v6558, %v6569
    %v6583 = vadd.f32 %v6559, %v6569
    %v6584 = vadd.f32 %v6560, %v6569
    %v6585 = vadd.f32 %v6561, %v6569
    %v6586 = vadd.f32 %v6562, %v6569
    %v6587 = vmul.f32 %v6571, %v6471
    %v6588 = vmul.f32 %v6572, %v6472
    %v6589 = vmul.f32 %v6573, %v6473
    %v6590 = vmul.f32 %v6574, %v6474
    %v6591 = vmul.f32 %v6575, %v6475
    %v6592 = vmul.f32 %v6576, %v6476
    %v6593 = vmul.f32 %v6577, %v6477
    %v6594 = vmul.f32 %v6578, %v6478
    %v6595 = vmul.f32 %v6579, %v6479
    %v6596 = vmul.f32 %v6580, %v6480
    %v6597 = vmul.f32 %v6581, %v6481
    %v6598 = vmul.f32 %v6582, %v6482
    %v6599 = vmul.f32 %v6583, %v6483
    %v6600 = vmul.f32 %v6584, %v6484
    %v6601 = vmul.f32 %v6585, %v6485
    %v6602 = vmul.f32 %v6586, %v6486
    %6603 = vset.pattern.permute.xlu0 12
    %6604 = vperm.xlu0 %6603, %v6495
    %v6605 = vpop.permute.xlu0 %6604
    %6607 = vset.pattern.permute.xlu0 12
    %6608 = vperm.xlu0 %6607, %v6496
    %v6609 = vpop.permute.xlu0 %6608
    %v6611 = vadd.f32 %v6587, %v6605
    %v6612 = vadd.f32 %v6588, %v6605
    %v6613 = vadd.f32 %v6589, %v6605
    %v6614 = vadd.f32 %v6590, %v6605
    %v6615 = vadd.f32 %v6591, %v6605
    %v6616 = vadd.f32 %v6592, %v6605
    %v6617 = vadd.f32 %v6593, %v6605
    %v6618 = vadd.f32 %v6594, %v6605
    %v6619 = vadd.f32 %v6595, %v6609
    %v6620 = vadd.f32 %v6596, %v6609
    %v6621 = vadd.f32 %v6597, %v6609
    %v6622 = vadd.f32 %v6598, %v6609
    %v6623 = vadd.f32 %v6599, %v6609
    %v6624 = vadd.f32 %v6600, %v6609
    %v6625 = vadd.f32 %v6601, %v6609
    %v6626 = vadd.f32 %v6602, %v6609
    %v6627 = vmul.f32 %v6611, %v6471
    %v6628 = vmul.f32 %v6612, %v6472
    %v6629 = vmul.f32 %v6613, %v6473
    %v6630 = vmul.f32 %v6614, %v6474
    %v6631 = vmul.f32 %v6615, %v6475
    %v6632 = vmul.f32 %v6616, %v6476
    %v6633 = vmul.f32 %v6617, %v6477
    %v6634 = vmul.f32 %v6618, %v6478
    %v6635 = vmul.f32 %v6619, %v6479
    %v6636 = vmul.f32 %v6620, %v6480
    %v6637 = vmul.f32 %v6621, %v6481
    %v6638 = vmul.f32 %v6622, %v6482
    %v6639 = vmul.f32 %v6623, %v6483
    %v6640 = vmul.f32 %v6624, %v6484
    %v6641 = vmul.f32 %v6625, %v6485
    %v6642 = vmul.f32 %v6626, %v6486
    %6643 = vset.pattern.permute.xlu0 11
    %6644 = vperm.xlu0 %6643, %v6495
    %v6645 = vpop.permute.xlu0 %6644
    %6647 = vset.pattern.permute.xlu0 11
    %6648 = vperm.xlu0 %6647, %v6496
    %v6649 = vpop.permute.xlu0 %6648
    %v6651 = vadd.f32 %v6627, %v6645
    %v6652 = vadd.f32 %v6628, %v6645
    %v6653 = vadd.f32 %v6629, %v6645
    %v6654 = vadd.f32 %v6630, %v6645
    %v6655 = vadd.f32 %v6631, %v6645
    %v6656 = vadd.f32 %v6632, %v6645
    %v6657 = vadd.f32 %v6633, %v6645
    %v6658 = vadd.f32 %v6634, %v6645
    %v6659 = vadd.f32 %v6635, %v6649
    %v6660 = vadd.f32 %v6636, %v6649
    %v6661 = vadd.f32 %v6637, %v6649
    %v6662 = vadd.f32 %v6638, %v6649
    %v6663 = vadd.f32 %v6639, %v6649
    %v6664 = vadd.f32 %v6640, %v6649
    %v6665 = vadd.f32 %v6641, %v6649
    %v6666 = vadd.f32 %v6642, %v6649
    %v6667 = vmul.f32 %v6651, %v6471
    %v6668 = vmul.f32 %v6652, %v6472
    %v6669 = vmul.f32 %v6653, %v6473
    %v6670 = vmul.f32 %v6654, %v6474
    %v6671 = vmul.f32 %v6655, %v6475
    %v6672 = vmul.f32 %v6656, %v6476
    %v6673 = vmul.f32 %v6657, %v6477
    %v6674 = vmul.f32 %v6658, %v6478
    %v6675 = vmul.f32 %v6659, %v6479
    %v6676 = vmul.f32 %v6660, %v6480
    %v6677 = vmul.f32 %v6661, %v6481
    %v6678 = vmul.f32 %v6662, %v6482
    %v6679 = vmul.f32 %v6663, %v6483
    %v6680 = vmul.f32 %v6664, %v6484
    %v6681 = vmul.f32 %v6665, %v6485
    %v6682 = vmul.f32 %v6666, %v6486
    %6683 = vset.pattern.permute.xlu0 10
    %6684 = vperm.xlu0 %6683, %v6495
    %v6685 = vpop.permute.xlu0 %6684
    %6687 = vset.pattern.permute.xlu0 10
    %6688 = vperm.xlu0 %6687, %v6496
    %v6689 = vpop.permute.xlu0 %6688
    %v6691 = vadd.f32 %v6667, %v6685
    %v6692 = vadd.f32 %v6668, %v6685
    %v6693 = vadd.f32 %v6669, %v6685
    %v6694 = vadd.f32 %v6670, %v6685
    %v6695 = vadd.f32 %v6671, %v6685
    %v6696 = vadd.f32 %v6672, %v6685
    %v6697 = vadd.f32 %v6673, %v6685
    %v6698 = vadd.f32 %v6674, %v6685
    %v6699 = vadd.f32 %v6675, %v6689
    %v6700 = vadd.f32 %v6676, %v6689
    %v6701 = vadd.f32 %v6677, %v6689
    %v6702 = vadd.f32 %v6678, %v6689
    %v6703 = vadd.f32 %v6679, %v6689
    %v6704 = vadd.f32 %v6680, %v6689
    %v6705 = vadd.f32 %v6681, %v6689
    %v6706 = vadd.f32 %v6682, %v6689
    %v6707 = vmul.f32 %v6691, %v6471
    %v6708 = vmul.f32 %v6692, %v6472
    %v6709 = vmul.f32 %v6693, %v6473
    %v6710 = vmul.f32 %v6694, %v6474
    %v6711 = vmul.f32 %v6695, %v6475
    %v6712 = vmul.f32 %v6696, %v6476
    %v6713 = vmul.f32 %v6697, %v6477
    %v6714 = vmul.f32 %v6698, %v6478
    %v6715 = vmul.f32 %v6699, %v6479
    %v6716 = vmul.f32 %v6700, %v6480
    %v6717 = vmul.f32 %v6701, %v6481
    %v6718 = vmul.f32 %v6702, %v6482
    %v6719 = vmul.f32 %v6703, %v6483
    %v6720 = vmul.f32 %v6704, %v6484
    %v6721 = vmul.f32 %v6705, %v6485
    %v6722 = vmul.f32 %v6706, %v6486
    %6723 = vset.pattern.permute.xlu0 9
    %6724 = vperm.xlu0 %6723, %v6495
    %v6725 = vpop.permute.xlu0 %6724
    %6727 = vset.pattern.permute.xlu0 9
    %6728 = vperm.xlu0 %6727, %v6496
    %v6729 = vpop.permute.xlu0 %6728
    %v6731 = vadd.f32 %v6707, %v6725
    %v6732 = vadd.f32 %v6708, %v6725
    %v6733 = vadd.f32 %v6709, %v6725
    %v6734 = vadd.f32 %v6710, %v6725
    %v6735 = vadd.f32 %v6711, %v6725
    %v6736 = vadd.f32 %v6712, %v6725
    %v6737 = vadd.f32 %v6713, %v6725
    %v6738 = vadd.f32 %v6714, %v6725
    %v6739 = vadd.f32 %v6715, %v6729
    %v6740 = vadd.f32 %v6716, %v6729
    %v6741 = vadd.f32 %v6717, %v6729
    %v6742 = vadd.f32 %v6718, %v6729
    %v6743 = vadd.f32 %v6719, %v6729
    %v6744 = vadd.f32 %v6720, %v6729
    %v6745 = vadd.f32 %v6721, %v6729
    %v6746 = vadd.f32 %v6722, %v6729
    %v6747 = vmul.f32 %v6731, %v6471
    %v6748 = vmul.f32 %v6732, %v6472
    %v6749 = vmul.f32 %v6733, %v6473
    %v6750 = vmul.f32 %v6734, %v6474
    %v6751 = vmul.f32 %v6735, %v6475
    %v6752 = vmul.f32 %v6736, %v6476
    %v6753 = vmul.f32 %v6737, %v6477
    %v6754 = vmul.f32 %v6738, %v6478
    %v6755 = vmul.f32 %v6739, %v6479
    %v6756 = vmul.f32 %v6740, %v6480
    %v6757 = vmul.f32 %v6741, %v6481
    %v6758 = vmul.f32 %v6742, %v6482
    %v6759 = vmul.f32 %v6743, %v6483
    %v6760 = vmul.f32 %v6744, %v6484
    %v6761 = vmul.f32 %v6745, %v6485
    %v6762 = vmul.f32 %v6746, %v6486
    %6763 = vset.pattern.permute.xlu0 8
    %6764 = vperm.xlu0 %6763, %v6495
    %v6765 = vpop.permute.xlu0 %6764
    %6767 = vset.pattern.permute.xlu0 8
    %6768 = vperm.xlu0 %6767, %v6496
    %v6769 = vpop.permute.xlu0 %6768
    %v6771 = vadd.f32 %v6747, %v6765
    %v6772 = vadd.f32 %v6748, %v6765
    %v6773 = vadd.f32 %v6749, %v6765
    %v6774 = vadd.f32 %v6750, %v6765
    %v6775 = vadd.f32 %v6751, %v6765
    %v6776 = vadd.f32 %v6752, %v6765
    %v6777 = vadd.f32 %v6753, %v6765
    %v6778 = vadd.f32 %v6754, %v6765
    %v6779 = vadd.f32 %v6755, %v6769
    %v6780 = vadd.f32 %v6756, %v6769
    %v6781 = vadd.f32 %v6757, %v6769
    %v6782 = vadd.f32 %v6758, %v6769
    %v6783 = vadd.f32 %v6759, %v6769
    %v6784 = vadd.f32 %v6760, %v6769
    %v6785 = vadd.f32 %v6761, %v6769
    %v6786 = vadd.f32 %v6762, %v6769
    %v6787 = vmul.f32 %v6771, %v6471
    %v6788 = vmul.f32 %v6772, %v6472
    %v6789 = vmul.f32 %v6773, %v6473
    %v6790 = vmul.f32 %v6774, %v6474
    %v6791 = vmul.f32 %v6775, %v6475
    %v6792 = vmul.f32 %v6776, %v6476
    %v6793 = vmul.f32 %v6777, %v6477
    %v6794 = vmul.f32 %v6778, %v6478
    %v6795 = vmul.f32 %v6779, %v6479
    %v6796 = vmul.f32 %v6780, %v6480
    %v6797 = vmul.f32 %v6781, %v6481
    %v6798 = vmul.f32 %v6782, %v6482
    %v6799 = vmul.f32 %v6783, %v6483
    %v6800 = vmul.f32 %v6784, %v6484
    %v6801 = vmul.f32 %v6785, %v6485
    %v6802 = vmul.f32 %v6786, %v6486
    %6803 = vset.pattern.permute.xlu0 7
    %6804 = vperm.xlu0 %6803, %v6495
    %v6805 = vpop.permute.xlu0 %6804
    %6807 = vset.pattern.permute.xlu0 7
    %6808 = vperm.xlu0 %6807, %v6496
    %v6809 = vpop.permute.xlu0 %6808
    %v6811 = vadd.f32 %v6787, %v6805
    %v6812 = vadd.f32 %v6788, %v6805
    %v6813 = vadd.f32 %v6789, %v6805
    %v6814 = vadd.f32 %v6790, %v6805
    %v6815 = vadd.f32 %v6791, %v6805
    %v6816 = vadd.f32 %v6792, %v6805
    %v6817 = vadd.f32 %v6793, %v6805
    %v6818 = vadd.f32 %v6794, %v6805
    %v6819 = vadd.f32 %v6795, %v6809
    %v6820 = vadd.f32 %v6796, %v6809
    %v6821 = vadd.f32 %v6797, %v6809
    %v6822 = vadd.f32 %v6798, %v6809
    %v6823 = vadd.f32 %v6799, %v6809
    %v6824 = vadd.f32 %v6800, %v6809
    %v6825 = vadd.f32 %v6801, %v6809
    %v6826 = vadd.f32 %v6802, %v6809
    %v6827 = vmul.f32 %v6811, %v6471
    %v6828 = vmul.f32 %v6812, %v6472
    %v6829 = vmul.f32 %v6813, %v6473
    %v6830 = vmul.f32 %v6814, %v6474
    %v6831 = vmul.f32 %v6815, %v6475
    %v6832 = vmul.f32 %v6816, %v6476
    %v6833 = vmul.f32 %v6817, %v6477
    %v6834 = vmul.f32 %v6818, %v6478
    %v6835 = vmul.f32 %v6819, %v6479
    %v6836 = vmul.f32 %v6820, %v6480
    %v6837 = vmul.f32 %v6821, %v6481
    %v6838 = vmul.f32 %v6822, %v6482
    %v6839 = vmul.f32 %v6823, %v6483
    %v6840 = vmul.f32 %v6824, %v6484
    %v6841 = vmul.f32 %v6825, %v6485
    %v6842 = vmul.f32 %v6826, %v6486
    %6843 = vset.pattern.permute.xlu0 6
    %6844 = vperm.xlu0 %6843, %v6495
    %v6845 = vpop.permute.xlu0 %6844
    %6847 = vset.pattern.permute.xlu0 6
    %6848 = vperm.xlu0 %6847, %v6496
    %v6849 = vpop.permute.xlu0 %6848
    %v6851 = vadd.f32 %v6827, %v6845
    %v6852 = vadd.f32 %v6828, %v6845
    %v6853 = vadd.f32 %v6829, %v6845
    %v6854 = vadd.f32 %v6830, %v6845
    %v6855 = vadd.f32 %v6831, %v6845
    %v6856 = vadd.f32 %v6832, %v6845
    %v6857 = vadd.f32 %v6833, %v6845
    %v6858 = vadd.f32 %v6834, %v6845
    %v6859 = vadd.f32 %v6835, %v6849
    %v6860 = vadd.f32 %v6836, %v6849
    %v6861 = vadd.f32 %v6837, %v6849
    %v6862 = vadd.f32 %v6838, %v6849
    %v6863 = vadd.f32 %v6839, %v6849
    %v6864 = vadd.f32 %v6840, %v6849
    %v6865 = vadd.f32 %v6841, %v6849
    %v6866 = vadd.f32 %v6842, %v6849
    %v6867 = vmul.f32 %v6851, %v6471
    %v6868 = vmul.f32 %v6852, %v6472
    %v6869 = vmul.f32 %v6853, %v6473
    %v6870 = vmul.f32 %v6854, %v6474
    %v6871 = vmul.f32 %v6855, %v6475
    %v6872 = vmul.f32 %v6856, %v6476
    %v6873 = vmul.f32 %v6857, %v6477
    %v6874 = vmul.f32 %v6858, %v6478
    %v6875 = vmul.f32 %v6859, %v6479
    %v6876 = vmul.f32 %v6860, %v6480
    %v6877 = vmul.f32 %v6861, %v6481
    %v6878 = vmul.f32 %v6862, %v6482
    %v6879 = vmul.f32 %v6863, %v6483
    %v6880 = vmul.f32 %v6864, %v6484
    %v6881 = vmul.f32 %v6865, %v6485
    %v6882 = vmul.f32 %v6866, %v6486
    %6883 = vset.pattern.permute.xlu0 5
    %6884 = vperm.xlu0 %6883, %v6495
    %v6885 = vpop.permute.xlu0 %6884
    %6887 = vset.pattern.permute.xlu0 5
    %6888 = vperm.xlu0 %6887, %v6496
    %v6889 = vpop.permute.xlu0 %6888
    %v6891 = vadd.f32 %v6867, %v6885
    %v6892 = vadd.f32 %v6868, %v6885
    %v6893 = vadd.f32 %v6869, %v6885
    %v6894 = vadd.f32 %v6870, %v6885
    %v6895 = vadd.f32 %v6871, %v6885
    %v6896 = vadd.f32 %v6872, %v6885
    %v6897 = vadd.f32 %v6873, %v6885
    %v6898 = vadd.f32 %v6874, %v6885
    %v6899 = vadd.f32 %v6875, %v6889
    %v6900 = vadd.f32 %v6876, %v6889
    %v6901 = vadd.f32 %v6877, %v6889
    %v6902 = vadd.f32 %v6878, %v6889
    %v6903 = vadd.f32 %v6879, %v6889
    %v6904 = vadd.f32 %v6880, %v6889
    %v6905 = vadd.f32 %v6881, %v6889
    %v6906 = vadd.f32 %v6882, %v6889
    %v6907 = vmul.f32 %v6891, %v6471
    %v6908 = vmul.f32 %v6892, %v6472
    %v6909 = vmul.f32 %v6893, %v6473
    %v6910 = vmul.f32 %v6894, %v6474
    %v6911 = vmul.f32 %v6895, %v6475
    %v6912 = vmul.f32 %v6896, %v6476
    %v6913 = vmul.f32 %v6897, %v6477
    %v6914 = vmul.f32 %v6898, %v6478
    %v6915 = vmul.f32 %v6899, %v6479
    %v6916 = vmul.f32 %v6900, %v6480
    %v6917 = vmul.f32 %v6901, %v6481
    %v6918 = vmul.f32 %v6902, %v6482
    %v6919 = vmul.f32 %v6903, %v6483
    %v6920 = vmul.f32 %v6904, %v6484
    %v6921 = vmul.f32 %v6905, %v6485
    %v6922 = vmul.f32 %v6906, %v6486
    %6923 = vset.pattern.permute.xlu0 4
    %6924 = vperm.xlu0 %6923, %v6495
    %v6925 = vpop.permute.xlu0 %6924
    %6927 = vset.pattern.permute.xlu0 4
    %6928 = vperm.xlu0 %6927, %v6496
    %v6929 = vpop.permute.xlu0 %6928
    %v6931 = vadd.f32 %v6907, %v6925
    %v6932 = vadd.f32 %v6908, %v6925
    %v6933 = vadd.f32 %v6909, %v6925
    %v6934 = vadd.f32 %v6910, %v6925
    %v6935 = vadd.f32 %v6911, %v6925
    %v6936 = vadd.f32 %v6912, %v6925
    %v6937 = vadd.f32 %v6913, %v6925
    %v6938 = vadd.f32 %v6914, %v6925
    %v6939 = vadd.f32 %v6915, %v6929
    %v6940 = vadd.f32 %v6916, %v6929
    %v6941 = vadd.f32 %v6917, %v6929
    %v6942 = vadd.f32 %v6918, %v6929
    %v6943 = vadd.f32 %v6919, %v6929
    %v6944 = vadd.f32 %v6920, %v6929
    %v6945 = vadd.f32 %v6921, %v6929
    %v6946 = vadd.f32 %v6922, %v6929
    %v6947 = vmul.f32 %v6931, %v6471
    %v6948 = vmul.f32 %v6932, %v6472
    %v6949 = vmul.f32 %v6933, %v6473
    %v6950 = vmul.f32 %v6934, %v6474
    %v6951 = vmul.f32 %v6935, %v6475
    %v6952 = vmul.f32 %v6936, %v6476
    %v6953 = vmul.f32 %v6937, %v6477
    %v6954 = vmul.f32 %v6938, %v6478
    %v6955 = vmul.f32 %v6939, %v6479
    %v6956 = vmul.f32 %v6940, %v6480
    %v6957 = vmul.f32 %v6941, %v6481
    %v6958 = vmul.f32 %v6942, %v6482
    %v6959 = vmul.f32 %v6943, %v6483
    %v6960 = vmul.f32 %v6944, %v6484
    %v6961 = vmul.f32 %v6945, %v6485
    %v6962 = vmul.f32 %v6946, %v6486
    %6963 = vset.pattern.permute.xlu0 3
    %6964 = vperm.xlu0 %6963, %v6495
    %v6965 = vpop.permute.xlu0 %6964
    %6967 = vset.pattern.permute.xlu0 3
    %6968 = vperm.xlu0 %6967, %v6496
    %v6969 = vpop.permute.xlu0 %6968
    %v6971 = vadd.f32 %v6947, %v6965
    %v6972 = vadd.f32 %v6948, %v6965
    %v6973 = vadd.f32 %v6949, %v6965
    %v6974 = vadd.f32 %v6950, %v6965
    %v6975 = vadd.f32 %v6951, %v6965
    %v6976 = vadd.f32 %v6952, %v6965
    %v6977 = vadd.f32 %v6953, %v6965
    %v6978 = vadd.f32 %v6954, %v6965
    %v6979 = vadd.f32 %v6955, %v6969
    %v6980 = vadd.f32 %v6956, %v6969
    %v6981 = vadd.f32 %v6957, %v6969
    %v6982 = vadd.f32 %v6958, %v6969
    %v6983 = vadd.f32 %v6959, %v6969
    %v6984 = vadd.f32 %v6960, %v6969
    %v6985 = vadd.f32 %v6961, %v6969
    %v6986 = vadd.f32 %v6962, %v6969
    %v6987 = vmul.f32 %v6971, %v6471
    %v6988 = vmul.f32 %v6972, %v6472
    %v6989 = vmul.f32 %v6973, %v6473
    %v6990 = vmul.f32 %v6974, %v6474
    %v6991 = vmul.f32 %v6975, %v6475
    %v6992 = vmul.f32 %v6976, %v6476
    %v6993 = vmul.f32 %v6977, %v6477
    %v6994 = vmul.f32 %v6978, %v6478
    %v6995 = vmul.f32 %v6979, %v6479
    %v6996 = vmul.f32 %v6980, %v6480
    %v6997 = vmul.f32 %v6981, %v6481
    %v6998 = vmul.f32 %v6982, %v6482
    %v6999 = vmul.f32 %v6983, %v6483
    %v7000 = vmul.f32 %v6984, %v6484
    %v7001 = vmul.f32 %v6985, %v6485
    %v7002 = vmul.f32 %v6986, %v6486
    %7003 = vset.pattern.permute.xlu0 2
    %7004 = vperm.xlu0 %7003, %v6495
    %v7005 = vpop.permute.xlu0 %7004
    %7007 = vset.pattern.permute.xlu0 2
    %7008 = vperm.xlu0 %7007, %v6496
    %v7009 = vpop.permute.xlu0 %7008
    %v7011 = vadd.f32 %v6987, %v7005
    %v7012 = vadd.f32 %v6988, %v7005
    %v7013 = vadd.f32 %v6989, %v7005
    %v7014 = vadd.f32 %v6990, %v7005
    %v7015 = vadd.f32 %v6991, %v7005
    %v7016 = vadd.f32 %v6992, %v7005
    %v7017 = vadd.f32 %v6993, %v7005
    %v7018 = vadd.f32 %v6994, %v7005
    %v7019 = vadd.f32 %v6995, %v7009
    %v7020 = vadd.f32 %v6996, %v7009
    %v7021 = vadd.f32 %v6997, %v7009
    %v7022 = vadd.f32 %v6998, %v7009
    %v7023 = vadd.f32 %v6999, %v7009
    %v7024 = vadd.f32 %v7000, %v7009
    %v7025 = vadd.f32 %v7001, %v7009
    %v7026 = vadd.f32 %v7002, %v7009
    %v7027 = vmul.f32 %v7011, %v6471
    %v7028 = vmul.f32 %v7012, %v6472
    %v7029 = vmul.f32 %v7013, %v6473
    %v7030 = vmul.f32 %v7014, %v6474
    %v7031 = vmul.f32 %v7015, %v6475
    %v7032 = vmul.f32 %v7016, %v6476
    %v7033 = vmul.f32 %v7017, %v6477
    %v7034 = vmul.f32 %v7018, %v6478
    %v7035 = vmul.f32 %v7019, %v6479
    %v7036 = vmul.f32 %v7020, %v6480
    %v7037 = vmul.f32 %v7021, %v6481
    %v7038 = vmul.f32 %v7022, %v6482
    %v7039 = vmul.f32 %v7023, %v6483
    %v7040 = vmul.f32 %v7024, %v6484
    %v7041 = vmul.f32 %v7025, %v6485
    %v7042 = vmul.f32 %v7026, %v6486
    %7043 = vset.pattern.permute.xlu0 1
    %7044 = vperm.xlu0 %7043, %v6495
    %v7045 = vpop.permute.xlu0 %7044
    %7047 = vset.pattern.permute.xlu0 1
    %7048 = vperm.xlu0 %7047, %v6496
    %v7049 = vpop.permute.xlu0 %7048
    %v7051 = vadd.f32 %v7027, %v7045
    %v7052 = vadd.f32 %v7028, %v7045
    %v7053 = vadd.f32 %v7029, %v7045
    %v7054 = vadd.f32 %v7030, %v7045
    %v7055 = vadd.f32 %v7031, %v7045
    %v7056 = vadd.f32 %v7032, %v7045
    %v7057 = vadd.f32 %v7033, %v7045
    %v7058 = vadd.f32 %v7034, %v7045
    %v7059 = vadd.f32 %v7035, %v7049
    %v7060 = vadd.f32 %v7036, %v7049
    %v7061 = vadd.f32 %v7037, %v7049
    %v7062 = vadd.f32 %v7038, %v7049
    %v7063 = vadd.f32 %v7039, %v7049
    %v7064 = vadd.f32 %v7040, %v7049
    %v7065 = vadd.f32 %v7041, %v7049
    %v7066 = vadd.f32 %v7042, %v7049
    %v7067 = vmul.f32 %v7051, %v6471
    %v7068 = vmul.f32 %v7052, %v6472
    %v7069 = vmul.f32 %v7053, %v6473
    %v7070 = vmul.f32 %v7054, %v6474
    %v7071 = vmul.f32 %v7055, %v6475
    %v7072 = vmul.f32 %v7056, %v6476
    %v7073 = vmul.f32 %v7057, %v6477
    %v7074 = vmul.f32 %v7058, %v6478
    %v7075 = vmul.f32 %v7059, %v6479
    %v7076 = vmul.f32 %v7060, %v6480
    %v7077 = vmul.f32 %v7061, %v6481
    %v7078 = vmul.f32 %v7062, %v6482
    %v7079 = vmul.f32 %v7063, %v6483
    %v7080 = vmul.f32 %v7064, %v6484
    %v7081 = vmul.f32 %v7065, %v6485
    %v7082 = vmul.f32 %v7066, %v6486
    %7083 = vset.pattern.permute.xlu0 0
    %7084 = vperm.xlu0 %7083, %v6495
    %v7085 = vpop.permute.xlu0 %7084
    %7087 = vset.pattern.permute.xlu0 0
    %7088 = vperm.xlu0 %7087, %v6496
    %v7089 = vpop.permute.xlu0 %7088
    %v7091 = vadd.f32 %v7067, %v7085
    %v7092 = vadd.f32 %v7068, %v7085
    %v7093 = vadd.f32 %v7069, %v7085
    %v7094 = vadd.f32 %v7070, %v7085
    %v7095 = vadd.f32 %v7071, %v7085
    %v7096 = vadd.f32 %v7072, %v7085
    %v7097 = vadd.f32 %v7073, %v7085
    %v7098 = vadd.f32 %v7074, %v7085
    %v7099 = vadd.f32 %v7075, %v7089
    %v7100 = vadd.f32 %v7076, %v7089
    %v7101 = vadd.f32 %v7077, %v7089
    %v7102 = vadd.f32 %v7078, %v7089
    %v7103 = vadd.f32 %v7079, %v7089
    %v7104 = vadd.f32 %v7080, %v7089
    %v7105 = vadd.f32 %v7081, %v7089
    %v7106 = vadd.f32 %v7082, %v7089
    %v7107 = vmul.f32 %v7091, %v6471
    %v7108 = vmul.f32 %v7092, %v6472
    %v7109 = vmul.f32 %v7093, %v6473
    %v7110 = vmul.f32 %v7094, %v6474
    %v7111 = vmul.f32 %v7095, %v6475
    %v7112 = vmul.f32 %v7096, %v6476
    %v7113 = vmul.f32 %v7097, %v6477
    %v7114 = vmul.f32 %v7098, %v6478
    %v7115 = vmul.f32 %v7099, %v6479
    %v7116 = vmul.f32 %v7100, %v6480
    %v7117 = vmul.f32 %v7101, %v6481
    %v7118 = vmul.f32 %v7102, %v6482
    %v7119 = vmul.f32 %v7103, %v6483
    %v7120 = vmul.f32 %v7104, %v6484
    %v7121 = vmul.f32 %v7105, %v6485
    %v7122 = vmul.f32 %v7106, %v6486
    %v7123 = vmul.f32 %v5680, %v7107
    %v7124 = vmul.f32 %v5681, %v7108
    %v7125 = vmul.f32 %v5682, %v7109
    %v7126 = vmul.f32 %v5683, %v7110
    %v7127 = vmul.f32 %v5684, %v7111
    %v7128 = vmul.f32 %v5685, %v7112
    %v7129 = vmul.f32 %v5686, %v7113
    %v7130 = vmul.f32 %v5687, %v7114
    %v7131 = vmul.f32 %v5688, %v7115
    %v7132 = vmul.f32 %v5689, %v7116
    %v7133 = vmul.f32 %v5690, %v7117
    %v7134 = vmul.f32 %v5691, %v7118
    %v7135 = vmul.f32 %v5692, %v7119
    %v7136 = vmul.f32 %v5693, %v7120
    %v7137 = vmul.f32 %v5694, %v7121
    %v7138 = vmul.f32 %v5695, %v7122
    %v7139 = vrot.slane %v7123, 4
    %v7140 = vadd.f32 %v7123, %v7139
    %v7141 = vrot.slane %v7140, 2
    %v7142 = vadd.f32 %v7140, %v7141
    %v7143 = vrot.slane %v7142, 1
    %v7144 = vadd.f32 %v7142, %v7143
    %v7145 = vrot.slane %v7124, 4
    %v7146 = vadd.f32 %v7124, %v7145
    %v7147 = vrot.slane %v7146, 2
    %v7148 = vadd.f32 %v7146, %v7147
    %v7149 = vrot.slane %v7148, 1
    %v7150 = vadd.f32 %v7148, %v7149
    %v7151 = vrot.slane %v7125, 4
    %v7152 = vadd.f32 %v7125, %v7151
    %v7153 = vrot.slane %v7152, 2
    %v7154 = vadd.f32 %v7152, %v7153
    %v7155 = vrot.slane %v7154, 1
    %v7156 = vadd.f32 %v7154, %v7155
    %v7157 = vrot.slane %v7126, 4
    %v7158 = vadd.f32 %v7126, %v7157
    %v7159 = vrot.slane %v7158, 2
    %v7160 = vadd.f32 %v7158, %v7159
    %v7161 = vrot.slane %v7160, 1
    %v7162 = vadd.f32 %v7160, %v7161
    %v7163 = vrot.slane %v7127, 4
    %v7164 = vadd.f32 %v7127, %v7163
    %v7165 = vrot.slane %v7164, 2
    %v7166 = vadd.f32 %v7164, %v7165
    %v7167 = vrot.slane %v7166, 1
    %v7168 = vadd.f32 %v7166, %v7167
    %v7169 = vrot.slane %v7128, 4
    %v7170 = vadd.f32 %v7128, %v7169
    %v7171 = vrot.slane %v7170, 2
    %v7172 = vadd.f32 %v7170, %v7171
    %v7173 = vrot.slane %v7172, 1
    %v7174 = vadd.f32 %v7172, %v7173
    %v7175 = vrot.slane %v7129, 4
    %v7176 = vadd.f32 %v7129, %v7175
    %v7177 = vrot.slane %v7176, 2
    %v7178 = vadd.f32 %v7176, %v7177
    %v7179 = vrot.slane %v7178, 1
    %v7180 = vadd.f32 %v7178, %v7179
    %v7181 = vrot.slane %v7130, 4
    %v7182 = vadd.f32 %v7130, %v7181
    %v7183 = vrot.slane %v7182, 2
    %v7184 = vadd.f32 %v7182, %v7183
    %v7185 = vrot.slane %v7184, 1
    %v7186 = vadd.f32 %v7184, %v7185
    %v7187 = vrot.slane %v7131, 4
    %v7188 = vadd.f32 %v7131, %v7187
    %v7189 = vrot.slane %v7188, 2
    %v7190 = vadd.f32 %v7188, %v7189
    %v7191 = vrot.slane %v7190, 1
    %v7192 = vadd.f32 %v7190, %v7191
    %v7193 = vrot.slane %v7132, 4
    %v7194 = vadd.f32 %v7132, %v7193
    %v7195 = vrot.slane %v7194, 2
    %v7196 = vadd.f32 %v7194, %v7195
    %v7197 = vrot.slane %v7196, 1
    %v7198 = vadd.f32 %v7196, %v7197
    %v7199 = vrot.slane %v7133, 4
    %v7200 = vadd.f32 %v7133, %v7199
    %v7201 = vrot.slane %v7200, 2
    %v7202 = vadd.f32 %v7200, %v7201
    %v7203 = vrot.slane %v7202, 1
    %v7204 = vadd.f32 %v7202, %v7203
    %v7205 = vrot.slane %v7134, 4
    %v7206 = vadd.f32 %v7134, %v7205
    %v7207 = vrot.slane %v7206, 2
    %v7208 = vadd.f32 %v7206, %v7207
    %v7209 = vrot.slane %v7208, 1
    %v7210 = vadd.f32 %v7208, %v7209
    %v7211 = vrot.slane %v7135, 4
    %v7212 = vadd.f32 %v7135, %v7211
    %v7213 = vrot.slane %v7212, 2
    %v7214 = vadd.f32 %v7212, %v7213
    %v7215 = vrot.slane %v7214, 1
    %v7216 = vadd.f32 %v7214, %v7215
    %v7217 = vrot.slane %v7136, 4
    %v7218 = vadd.f32 %v7136, %v7217
    %v7219 = vrot.slane %v7218, 2
    %v7220 = vadd.f32 %v7218, %v7219
    %v7221 = vrot.slane %v7220, 1
    %v7222 = vadd.f32 %v7220, %v7221
    %v7223 = vrot.slane %v7137, 4
    %v7224 = vadd.f32 %v7137, %v7223
    %v7225 = vrot.slane %v7224, 2
    %v7226 = vadd.f32 %v7224, %v7225
    %v7227 = vrot.slane %v7226, 1
    %v7228 = vadd.f32 %v7226, %v7227
    %v7229 = vrot.slane %v7138, 4
    %v7230 = vadd.f32 %v7138, %v7229
    %v7231 = vrot.slane %v7230, 2
    %v7232 = vadd.f32 %v7230, %v7231
    %v7233 = vrot.slane %v7232, 1
    %v7234 = vadd.f32 %v7232, %v7233
    %v7235 = vld [vmem:[%s11] sm:$0xff]
    %v7237 = vlaneseq
    %v7238 = vshrl.u32 %v7237, 7
    %v7239 = vsub.s32 0, %v7238
    %v7240 = vrot.slane %v7235, %v7239
    %v7241 = vlaneseq
    %v7242 = vshrl.u32 %v7241, 7
    %v7243 = vsub.s32 1, %v7242
    %v7244 = vrot.slane %v7235, %v7243
    %v7245 = vlaneseq
    %v7246 = vshrl.u32 %v7245, 7
    %v7247 = vsub.s32 2, %v7246
    %v7248 = vrot.slane %v7235, %v7247
    %v7249 = vlaneseq
    %v7250 = vshrl.u32 %v7249, 7
    %v7251 = vsub.s32 3, %v7250
    %v7252 = vrot.slane %v7235, %v7251
    %v7253 = vlaneseq
    %v7254 = vshrl.u32 %v7253, 7
    %v7255 = vsub.s32 4, %v7254
    %v7256 = vrot.slane %v7235, %v7255
    %v7257 = vlaneseq
    %v7258 = vshrl.u32 %v7257, 7
    %v7259 = vsub.s32 5, %v7258
    %v7260 = vrot.slane %v7235, %v7259
    %v7261 = vlaneseq
    %v7262 = vshrl.u32 %v7261, 7
    %v7263 = vsub.s32 6, %v7262
    %v7264 = vrot.slane %v7235, %v7263
    %v7265 = vlaneseq
    %v7266 = vshrl.u32 %v7265, 7
    %v7267 = vsub.s32 7, %v7266
    %v7268 = vrot.slane %v7235, %v7267
    %v7277 = vmul.f32 %v3338, %v7240
    %v7278 = vmul.f32 %v3339, %v7244
    %v7279 = vmul.f32 %v3340, %v7248
    %v7280 = vmul.f32 %v3341, %v7252
    %v7281 = vmul.f32 %v3342, %v7256
    %v7282 = vmul.f32 %v3343, %v7260
    %v7283 = vmul.f32 %v3344, %v7264
    %v7284 = vmul.f32 %v3345, %v7268
    %v7285 = vmul.f32 %v3346, %v7240
    %v7286 = vmul.f32 %v3347, %v7244
    %v7287 = vmul.f32 %v3348, %v7248
    %v7288 = vmul.f32 %v3349, %v7252
    %v7289 = vmul.f32 %v3350, %v7256
    %v7290 = vmul.f32 %v3351, %v7260
    %v7291 = vmul.f32 %v3352, %v7264
    %v7292 = vmul.f32 %v3353, %v7268
    %v7293 = vadd.f32 %v7144, %v7277
    %v7294 = vadd.f32 %v7150, %v7278
    %v7295 = vadd.f32 %v7156, %v7279
    %v7296 = vadd.f32 %v7162, %v7280
    %v7297 = vadd.f32 %v7168, %v7281
    %v7298 = vadd.f32 %v7174, %v7282
    %v7299 = vadd.f32 %v7180, %v7283
    %v7300 = vadd.f32 %v7186, %v7284
    %v7301 = vadd.f32 %v7192, %v7285
    %v7302 = vadd.f32 %v7198, %v7286
    %v7303 = vadd.f32 %v7204, %v7287
    %v7304 = vadd.f32 %v7210, %v7288
    %v7305 = vadd.f32 %v7216, %v7289
    %v7306 = vadd.f32 %v7222, %v7290
    %v7307 = vadd.f32 %v7228, %v7291
    %v7308 = vadd.f32 %v7234, %v7292
    %v7309 = vxor.u32 %v2139, 2147483648
    %v7310 = vxor.u32 %v2141, 2147483648
    %v7311 = vxor.u32 %v2180, 2147483648
    %v7312 = vxor.u32 %v2182, 2147483648
    %v7313 = vxor.u32 %v2221, 2147483648
    %v7314 = vxor.u32 %v2223, 2147483648
    %v7315 = vxor.u32 %v2262, 2147483648
    %v7316 = vxor.u32 %v2264, 2147483648
    %v7317 = vmul.f32 %v7309, 1.442695
    %v7318 = vpow.pop %v7317
    %v7319 = vmul.f32 %v7310, 1.442695
    %v7320 = vpow.pop %v7319
    %v7321 = vmul.f32 %v7311, 1.442695
    %v7322 = vpow.pop %v7321
    %v7323 = vmul.f32 %v7312, 1.442695
    %v7324 = vpow.pop %v7323
    %v7325 = vmul.f32 %v7313, 1.442695
    %v7326 = vpow.pop %v7325
    %v7327 = vmul.f32 %v7314, 1.442695
    %v7328 = vpow.pop %v7327
    %v7329 = vmul.f32 %v7315, 1.442695
    %v7330 = vpow.pop %v7329
    %v7331 = vmul.f32 %v7316, 1.442695
    %v7332 = vpow.pop %v7331
    %v7333 = vadd.f32 %v7318, 1.0
    %v7334 = vadd.f32 %v7320, 1.0
    %v7335 = vadd.f32 %v7322, 1.0
    %v7336 = vadd.f32 %v7324, 1.0
    %v7337 = vadd.f32 %v7326, 1.0
    %v7338 = vadd.f32 %v7328, 1.0
    %v7339 = vadd.f32 %v7330, 1.0
    %v7340 = vadd.f32 %v7332, 1.0
    %v7341 = vrcp.pop %v7333
    %v7342 = vmul.f32 1.0, %v7341
    %v7343 = vrcp.pop %v7334
    %v7344 = vmul.f32 1.0, %v7343
    %v7345 = vrcp.pop %v7335
    %v7346 = vmul.f32 1.0, %v7345
    %v7347 = vrcp.pop %v7336
    %v7348 = vmul.f32 1.0, %v7347
    %v7349 = vrcp.pop %v7337
    %v7350 = vmul.f32 1.0, %v7349
    %v7351 = vrcp.pop %v7338
    %v7352 = vmul.f32 1.0, %v7351
    %v7353 = vrcp.pop %v7339
    %v7354 = vmul.f32 1.0, %v7353
    %v7355 = vrcp.pop %v7340
    %v7356 = vmul.f32 1.0, %v7355
    %v7357 = vmul.f32 %v2139, %v7342
    %v7358 = vmul.f32 %v2141, %v7344
    %v7359 = vmul.f32 %v2180, %v7346
    %v7360 = vmul.f32 %v2182, %v7348
    %v7361 = vmul.f32 %v2221, %v7350
    %v7362 = vmul.f32 %v2223, %v7352
    %v7363 = vmul.f32 %v2262, %v7354
    %v7364 = vmul.f32 %v2264, %v7356
    %v7373 = vrot.slane %v7357, 1
    %v7374 = vrot.slane %v7358, 1
    %v7375 = vrot.slane %v7359, 1
    %v7376 = vrot.slane %v7360, 1
    %v7377 = vrot.slane %v7361, 1
    %v7378 = vrot.slane %v7362, 1
    %v7379 = vrot.slane %v7363, 1
    %v7380 = vrot.slane %v7364, 1
    %v7381 = vrot.slane %v7357, 2
    %v7382 = vrot.slane %v7358, 2
    %v7383 = vrot.slane %v7359, 2
    %v7384 = vrot.slane %v7360, 2
    %v7385 = vrot.slane %v7361, 2
    %v7386 = vrot.slane %v7362, 2
    %v7387 = vrot.slane %v7363, 2
    %v7388 = vrot.slane %v7364, 2
    %v7405 = vmul.f32 %v7293, %v7373
    %v7406 = vmul.f32 %v7294, %v7374
    %v7407 = vmul.f32 %v7295, %v7375
    %v7408 = vmul.f32 %v7296, %v7376
    %v7409 = vmul.f32 %v7297, %v7377
    %v7410 = vmul.f32 %v7298, %v7378
    %v7411 = vmul.f32 %v7299, %v7379
    %v7412 = vmul.f32 %v7300, %v7380
    %v7413 = vmul.f32 %v7301, %v7381
    %v7414 = vmul.f32 %v7302, %v7382
    %v7415 = vmul.f32 %v7303, %v7383
    %v7416 = vmul.f32 %v7304, %v7384
    %v7417 = vmul.f32 %v7305, %v7385
    %v7418 = vmul.f32 %v7306, %v7386
    %v7419 = vmul.f32 %v7307, %v7387
    %v7420 = vmul.f32 %v7308, %v7388
    %v7421 = vpack.c.bf16 %v7405, %v7405
    %v7422 = vpack.c.bf16 %v7406, %v7406
    %v7423 = vpack.c.bf16 %v7407, %v7407
    %v7424 = vpack.c.bf16 %v7408, %v7408
    %v7425 = vpack.c.bf16 %v7409, %v7409
    %v7426 = vpack.c.bf16 %v7410, %v7410
    %v7427 = vpack.c.bf16 %v7411, %v7411
    %v7428 = vpack.c.bf16 %v7412, %v7412
    %v7429 = vpack.c.bf16 %v7413, %v7413
    %v7430 = vpack.c.bf16 %v7414, %v7414
    %v7431 = vpack.c.bf16 %v7415, %v7415
    %v7432 = vpack.c.bf16 %v7416, %v7416
    %v7433 = vpack.c.bf16 %v7417, %v7417
    %v7434 = vpack.c.bf16 %v7418, %v7418
    %v7435 = vpack.c.bf16 %v7419, %v7419
    %v7436 = vpack.c.bf16 %v7420, %v7420
    %v7437 = vld [vmem:[#allocation16] sm:$0xff]
    %v7438 = vld [vmem:[#allocation16 + $0x8] sm:$0xff]
    %v7439 = vld [vmem:[#allocation16 + $0x10] sm:$0xff]
    %v7440 = vld [vmem:[#allocation16 + $0x18] sm:$0xff]
    %v7441 = vld [vmem:[#allocation16 + $0x20] sm:$0xff]
    %v7442 = vld [vmem:[#allocation16 + $0x28] sm:$0xff]
    %v7443 = vld [vmem:[#allocation16 + $0x30] sm:$0xff]
    %v7444 = vld [vmem:[#allocation16 + $0x38] sm:$0xff]
    %v7445 = vld [vmem:[#allocation16 + $0x40] sm:$0xff]
    %v7446 = vld [vmem:[#allocation16 + $0x48] sm:$0xff]
    %v7447 = vld [vmem:[#allocation16 + $0x50] sm:$0xff]
    %v7448 = vld [vmem:[#allocation16 + $0x58] sm:$0xff]
    %v7449 = vld [vmem:[#allocation16 + $0x60] sm:$0xff]
    %v7450 = vld [vmem:[#allocation16 + $0x68] sm:$0xff]
    %v7451 = vld [vmem:[#allocation16 + $0x70] sm:$0xff]
    %v7452 = vld [vmem:[#allocation16 + $0x78] sm:$0xff]
    %v7453 = vld [vmem:[#allocation16 + $0x80] sm:$0xff]
    %v7454 = vld [vmem:[#allocation16 + $0x88] sm:$0xff]
    %v7455 = vld [vmem:[#allocation16 + $0x90] sm:$0xff]
    %v7456 = vld [vmem:[#allocation16 + $0x98] sm:$0xff]
    %v7457 = vld [vmem:[#allocation16 + $0xa0] sm:$0xff]
    %v7458 = vld [vmem:[#allocation16 + $0xa8] sm:$0xff]
    %v7459 = vld [vmem:[#allocation16 + $0xb0] sm:$0xff]
    %v7460 = vld [vmem:[#allocation16 + $0xb8] sm:$0xff]
    %v7461 = vld [vmem:[#allocation16 + $0xc0] sm:$0xff]
    %v7462 = vld [vmem:[#allocation16 + $0xc8] sm:$0xff]
    %v7463 = vld [vmem:[#allocation16 + $0xd0] sm:$0xff]
    %v7464 = vld [vmem:[#allocation16 + $0xd8] sm:$0xff]
    %v7465 = vld [vmem:[#allocation16 + $0xe0] sm:$0xff]
    %v7466 = vld [vmem:[#allocation16 + $0xe8] sm:$0xff]
    %v7467 = vld [vmem:[#allocation16 + $0xf0] sm:$0xff]
    %v7468 = vld [vmem:[#allocation16 + $0xf8] sm:$0xff]
    %v7469 = vld [vmem:[#allocation16 + $0x100] sm:$0xff]
    %v7470 = vld [vmem:[#allocation16 + $0x108] sm:$0xff]
    %v7471 = vld [vmem:[#allocation16 + $0x110] sm:$0xff]
    %v7472 = vld [vmem:[#allocation16 + $0x118] sm:$0xff]
    %v7473 = vld [vmem:[#allocation16 + $0x120] sm:$0xff]
    %v7474 = vld [vmem:[#allocation16 + $0x128] sm:$0xff]
    %v7475 = vld [vmem:[#allocation16 + $0x130] sm:$0xff]
    %v7476 = vld [vmem:[#allocation16 + $0x138] sm:$0xff]
    %v7477 = vld [vmem:[#allocation16 + $0x140] sm:$0xff]
    %v7478 = vld [vmem:[#allocation16 + $0x148] sm:$0xff]
    %v7479 = vld [vmem:[#allocation16 + $0x150] sm:$0xff]
    %v7480 = vld [vmem:[#allocation16 + $0x158] sm:$0xff]
    %v7481 = vld [vmem:[#allocation16 + $0x160] sm:$0xff]
    %v7482 = vld [vmem:[#allocation16 + $0x168] sm:$0xff]
    %v7483 = vld [vmem:[#allocation16 + $0x170] sm:$0xff]
    %v7484 = vld [vmem:[#allocation16 + $0x178] sm:$0xff]
    %v7485 = vld [vmem:[#allocation16 + $0x180] sm:$0xff]
    %v7486 = vld [vmem:[#allocation16 + $0x188] sm:$0xff]
    %v7487 = vld [vmem:[#allocation16 + $0x190] sm:$0xff]
    %v7488 = vld [vmem:[#allocation16 + $0x198] sm:$0xff]
    %v7489 = vld [vmem:[#allocation16 + $0x1a0] sm:$0xff]
    %v7490 = vld [vmem:[#allocation16 + $0x1a8] sm:$0xff]
    %v7491 = vld [vmem:[#allocation16 + $0x1b0] sm:$0xff]
    %v7492 = vld [vmem:[#allocation16 + $0x1b8] sm:$0xff]
    %v7493 = vld [vmem:[#allocation16 + $0x1c0] sm:$0xff]
    %v7494 = vld [vmem:[#allocation16 + $0x1c8] sm:$0xff]
    %v7495 = vld [vmem:[#allocation16 + $0x1d0] sm:$0xff]
    %v7496 = vld [vmem:[#allocation16 + $0x1d8] sm:$0xff]
    %v7497 = vld [vmem:[#allocation16 + $0x1e0] sm:$0xff]
    %v7498 = vld [vmem:[#allocation16 + $0x1e8] sm:$0xff]
    %v7499 = vld [vmem:[#allocation16 + $0x1f0] sm:$0xff]
    %v7500 = vld [vmem:[#allocation16 + $0x1f8] sm:$0xff]
    %v7501 = vld [vmem:[#allocation16 + $0x200] sm:$0xff]
    %v7502 = vld [vmem:[#allocation16 + $0x208] sm:$0xff]
    %v7503 = vld [vmem:[#allocation16 + $0x210] sm:$0xff]
    %v7504 = vld [vmem:[#allocation16 + $0x218] sm:$0xff]
    %v7505 = vld [vmem:[#allocation16 + $0x220] sm:$0xff]
    %v7506 = vld [vmem:[#allocation16 + $0x228] sm:$0xff]
    %v7507 = vld [vmem:[#allocation16 + $0x230] sm:$0xff]
    %v7508 = vld [vmem:[#allocation16 + $0x238] sm:$0xff]
    %v7509 = vld [vmem:[#allocation16 + $0x240] sm:$0xff]
    %v7510 = vld [vmem:[#allocation16 + $0x248] sm:$0xff]
    %v7511 = vld [vmem:[#allocation16 + $0x250] sm:$0xff]
    %v7512 = vld [vmem:[#allocation16 + $0x258] sm:$0xff]
    %v7513 = vld [vmem:[#allocation16 + $0x260] sm:$0xff]
    %v7514 = vld [vmem:[#allocation16 + $0x268] sm:$0xff]
    %v7515 = vld [vmem:[#allocation16 + $0x270] sm:$0xff]
    %v7516 = vld [vmem:[#allocation16 + $0x278] sm:$0xff]
    %v7517 = vld [vmem:[#allocation16 + $0x280] sm:$0xff]
    %v7518 = vld [vmem:[#allocation16 + $0x288] sm:$0xff]
    %v7519 = vld [vmem:[#allocation16 + $0x290] sm:$0xff]
    %v7520 = vld [vmem:[#allocation16 + $0x298] sm:$0xff]
    %v7521 = vld [vmem:[#allocation16 + $0x2a0] sm:$0xff]
    %v7522 = vld [vmem:[#allocation16 + $0x2a8] sm:$0xff]
    %v7523 = vld [vmem:[#allocation16 + $0x2b0] sm:$0xff]
    %v7524 = vld [vmem:[#allocation16 + $0x2b8] sm:$0xff]
    %v7525 = vld [vmem:[#allocation16 + $0x2c0] sm:$0xff]
    %v7526 = vld [vmem:[#allocation16 + $0x2c8] sm:$0xff]
    %v7527 = vld [vmem:[#allocation16 + $0x2d0] sm:$0xff]
    %v7528 = vld [vmem:[#allocation16 + $0x2d8] sm:$0xff]
    %v7529 = vld [vmem:[#allocation16 + $0x2e0] sm:$0xff]
    %v7530 = vld [vmem:[#allocation16 + $0x2e8] sm:$0xff]
    %v7531 = vld [vmem:[#allocation16 + $0x2f0] sm:$0xff]
    %v7532 = vld [vmem:[#allocation16 + $0x2f8] sm:$0xff]
    %v7533 = vld [vmem:[#allocation16 + $0x300] sm:$0xff]
    %v7534 = vld [vmem:[#allocation16 + $0x308] sm:$0xff]
    %v7535 = vld [vmem:[#allocation16 + $0x310] sm:$0xff]
    %v7536 = vld [vmem:[#allocation16 + $0x318] sm:$0xff]
    %v7537 = vld [vmem:[#allocation16 + $0x320] sm:$0xff]
    %v7538 = vld [vmem:[#allocation16 + $0x328] sm:$0xff]
    %v7539 = vld [vmem:[#allocation16 + $0x330] sm:$0xff]
    %v7540 = vld [vmem:[#allocation16 + $0x338] sm:$0xff]
    %v7541 = vld [vmem:[#allocation16 + $0x340] sm:$0xff]
    %v7542 = vld [vmem:[#allocation16 + $0x348] sm:$0xff]
    %v7543 = vld [vmem:[#allocation16 + $0x350] sm:$0xff]
    %v7544 = vld [vmem:[#allocation16 + $0x358] sm:$0xff]
    %v7545 = vld [vmem:[#allocation16 + $0x360] sm:$0xff]
    %v7546 = vld [vmem:[#allocation16 + $0x368] sm:$0xff]
    %v7547 = vld [vmem:[#allocation16 + $0x370] sm:$0xff]
    %v7548 = vld [vmem:[#allocation16 + $0x378] sm:$0xff]
    %v7549 = vld [vmem:[#allocation16 + $0x380] sm:$0xff]
    %v7550 = vld [vmem:[#allocation16 + $0x388] sm:$0xff]
    %v7551 = vld [vmem:[#allocation16 + $0x390] sm:$0xff]
    %v7552 = vld [vmem:[#allocation16 + $0x398] sm:$0xff]
    %v7553 = vld [vmem:[#allocation16 + $0x3a0] sm:$0xff]
    %v7554 = vld [vmem:[#allocation16 + $0x3a8] sm:$0xff]
    %v7555 = vld [vmem:[#allocation16 + $0x3b0] sm:$0xff]
    %v7556 = vld [vmem:[#allocation16 + $0x3b8] sm:$0xff]
    %v7557 = vld [vmem:[#allocation16 + $0x3c0] sm:$0xff]
    %v7558 = vld [vmem:[#allocation16 + $0x3c8] sm:$0xff]
    %v7559 = vld [vmem:[#allocation16 + $0x3d0] sm:$0xff]
    %v7560 = vld [vmem:[#allocation16 + $0x3d8] sm:$0xff]
    %v7561 = vld [vmem:[#allocation16 + $0x3e0] sm:$0xff]
    %v7562 = vld [vmem:[#allocation16 + $0x3e8] sm:$0xff]
    %v7563 = vld [vmem:[#allocation16 + $0x3f0] sm:$0xff]
    %v7564 = vld [vmem:[#allocation16 + $0x3f8] sm:$0xff]
    %v7581 = vunpack.c.l.b16 %v7421
    %v7582 = vunpack.c.l.b16 %v7422
    %v7583 = vunpack.c.l.b16 %v7423
    %v7584 = vunpack.c.l.b16 %v7424
    %v7585 = vunpack.c.l.b16 %v7425
    %v7586 = vunpack.c.l.b16 %v7426
    %v7587 = vunpack.c.l.b16 %v7427
    %v7588 = vunpack.c.l.b16 %v7428
    %v7589 = vunpack.c.l.b16 %v7429
    %v7590 = vunpack.c.l.b16 %v7430
    %v7591 = vunpack.c.l.b16 %v7431
    %v7592 = vunpack.c.l.b16 %v7432
    %v7593 = vunpack.c.l.b16 %v7433
    %v7594 = vunpack.c.l.b16 %v7434
    %v7595 = vunpack.c.l.b16 %v7435
    %v7596 = vunpack.c.l.b16 %v7436
    %v7597 = vrot.slane %v7581, 7
    %v7598 = vrot.slane %v7589, 6
    %v7599 = vsel %vm1455, %v7598, %v7597
    %v7600 = vrot.slane %v7582, 7
    %v7601 = vrot.slane %v7590, 6
    %v7602 = vsel %vm1455, %v7601, %v7600
    %v7603 = vrot.slane %v7583, 7
    %v7604 = vrot.slane %v7591, 6
    %v7605 = vsel %vm1455, %v7604, %v7603
    %v7606 = vrot.slane %v7584, 7
    %v7607 = vrot.slane %v7592, 6
    %v7608 = vsel %vm1455, %v7607, %v7606
    %v7609 = vrot.slane %v7585, 7
    %v7610 = vrot.slane %v7593, 6
    %v7611 = vsel %vm1455, %v7610, %v7609
    %v7612 = vrot.slane %v7586, 7
    %v7613 = vrot.slane %v7594, 6
    %v7614 = vsel %vm1455, %v7613, %v7612
    %v7615 = vrot.slane %v7587, 7
    %v7616 = vrot.slane %v7595, 6
    %v7617 = vsel %vm1455, %v7616, %v7615
    %v7618 = vrot.slane %v7588, 7
    %v7619 = vrot.slane %v7596, 6
    %v7620 = vsel %vm1455, %v7619, %v7618
    %v7621 = vpack.c.b16 %v7599, %v7599
    %v7622 = vpack.c.b16 %v7602, %v7602
    %v7623 = vpack.c.b16 %v7605, %v7605
    %v7624 = vpack.c.b16 %v7608, %v7608
    %v7625 = vpack.c.b16 %v7611, %v7611
    %v7626 = vpack.c.b16 %v7614, %v7614
    %v7627 = vpack.c.b16 %v7617, %v7617
    %v7628 = vpack.c.b16 %v7620, %v7620
    %v7765 = vunpack.c.l.b16 %v7437
    %v7766 = vunpack.c.h.b16 %v7437
    %v7767 = vunpack.c.l.b16 %v7438
    %v7768 = vunpack.c.h.b16 %v7438
    %v7769 = vunpack.c.l.b16 %v7439
    %v7770 = vunpack.c.h.b16 %v7439
    %v7771 = vunpack.c.l.b16 %v7440
    %v7772 = vunpack.c.h.b16 %v7440
    %v7773 = vunpack.c.l.b16 %v7441
    %v7774 = vunpack.c.h.b16 %v7441
    %v7775 = vunpack.c.l.b16 %v7442
    %v7776 = vunpack.c.h.b16 %v7442
    %v7777 = vunpack.c.l.b16 %v7443
    %v7778 = vunpack.c.h.b16 %v7443
    %v7779 = vunpack.c.l.b16 %v7444
    %v7780 = vunpack.c.h.b16 %v7444
    %v7781 = vunpack.c.l.b16 %v7445
    %v7782 = vunpack.c.h.b16 %v7445
    %v7783 = vunpack.c.l.b16 %v7446
    %v7784 = vunpack.c.h.b16 %v7446
    %v7785 = vunpack.c.l.b16 %v7447
    %v7786 = vunpack.c.h.b16 %v7447
    %v7787 = vunpack.c.l.b16 %v7448
    %v7788 = vunpack.c.h.b16 %v7448
    %v7789 = vunpack.c.l.b16 %v7449
    %v7790 = vunpack.c.h.b16 %v7449
    %v7791 = vunpack.c.l.b16 %v7450
    %v7792 = vunpack.c.h.b16 %v7450
    %v7793 = vunpack.c.l.b16 %v7451
    %v7794 = vunpack.c.h.b16 %v7451
    %v7795 = vunpack.c.l.b16 %v7452
    %v7796 = vunpack.c.h.b16 %v7452
    %v7797 = vunpack.c.l.b16 %v7453
    %v7798 = vunpack.c.h.b16 %v7453
    %v7799 = vunpack.c.l.b16 %v7454
    %v7800 = vunpack.c.h.b16 %v7454
    %v7801 = vunpack.c.l.b16 %v7455
    %v7802 = vunpack.c.h.b16 %v7455
    %v7803 = vunpack.c.l.b16 %v7456
    %v7804 = vunpack.c.h.b16 %v7456
    %v7805 = vunpack.c.l.b16 %v7457
    %v7806 = vunpack.c.h.b16 %v7457
    %v7807 = vunpack.c.l.b16 %v7458
    %v7808 = vunpack.c.h.b16 %v7458
    %v7809 = vunpack.c.l.b16 %v7459
    %v7810 = vunpack.c.h.b16 %v7459
    %v7811 = vunpack.c.l.b16 %v7460
    %v7812 = vunpack.c.h.b16 %v7460
    %v7813 = vunpack.c.l.b16 %v7461
    %v7814 = vunpack.c.h.b16 %v7461
    %v7815 = vunpack.c.l.b16 %v7462
    %v7816 = vunpack.c.h.b16 %v7462
    %v7817 = vunpack.c.l.b16 %v7463
    %v7818 = vunpack.c.h.b16 %v7463
    %v7819 = vunpack.c.l.b16 %v7464
    %v7820 = vunpack.c.h.b16 %v7464
    %v7821 = vunpack.c.l.b16 %v7465
    %v7822 = vunpack.c.h.b16 %v7465
    %v7823 = vunpack.c.l.b16 %v7466
    %v7824 = vunpack.c.h.b16 %v7466
    %v7825 = vunpack.c.l.b16 %v7467
    %v7826 = vunpack.c.h.b16 %v7467
    %v7827 = vunpack.c.l.b16 %v7468
    %v7828 = vunpack.c.h.b16 %v7468
    %v7829 = vunpack.c.l.b16 %v7469
    %v7830 = vunpack.c.h.b16 %v7469
    %v7831 = vunpack.c.l.b16 %v7470
    %v7832 = vunpack.c.h.b16 %v7470
    %v7833 = vunpack.c.l.b16 %v7471
    %v7834 = vunpack.c.h.b16 %v7471
    %v7835 = vunpack.c.l.b16 %v7472
    %v7836 = vunpack.c.h.b16 %v7472
    %v7837 = vunpack.c.l.b16 %v7473
    %v7838 = vunpack.c.h.b16 %v7473
    %v7839 = vunpack.c.l.b16 %v7474
    %v7840 = vunpack.c.h.b16 %v7474
    %v7841 = vunpack.c.l.b16 %v7475
    %v7842 = vunpack.c.h.b16 %v7475
    %v7843 = vunpack.c.l.b16 %v7476
    %v7844 = vunpack.c.h.b16 %v7476
    %v7845 = vunpack.c.l.b16 %v7477
    %v7846 = vunpack.c.h.b16 %v7477
    %v7847 = vunpack.c.l.b16 %v7478
    %v7848 = vunpack.c.h.b16 %v7478
    %v7849 = vunpack.c.l.b16 %v7479
    %v7850 = vunpack.c.h.b16 %v7479
    %v7851 = vunpack.c.l.b16 %v7480
    %v7852 = vunpack.c.h.b16 %v7480
    %v7853 = vunpack.c.l.b16 %v7481
    %v7854 = vunpack.c.h.b16 %v7481
    %v7855 = vunpack.c.l.b16 %v7482
    %v7856 = vunpack.c.h.b16 %v7482
    %v7857 = vunpack.c.l.b16 %v7483
    %v7858 = vunpack.c.h.b16 %v7483
    %v7859 = vunpack.c.l.b16 %v7484
    %v7860 = vunpack.c.h.b16 %v7484
    %v7861 = vunpack.c.l.b16 %v7485
    %v7862 = vunpack.c.h.b16 %v7485
    %v7863 = vunpack.c.l.b16 %v7486
    %v7864 = vunpack.c.h.b16 %v7486
    %v7865 = vunpack.c.l.b16 %v7487
    %v7866 = vunpack.c.h.b16 %v7487
    %v7867 = vunpack.c.l.b16 %v7488
    %v7868 = vunpack.c.h.b16 %v7488
    %v7869 = vunpack.c.l.b16 %v7489
    %v7870 = vunpack.c.h.b16 %v7489
    %v7871 = vunpack.c.l.b16 %v7490
    %v7872 = vunpack.c.h.b16 %v7490
    %v7873 = vunpack.c.l.b16 %v7491
    %v7874 = vunpack.c.h.b16 %v7491
    %v7875 = vunpack.c.l.b16 %v7492
    %v7876 = vunpack.c.h.b16 %v7492
    %v7877 = vunpack.c.l.b16 %v7493
    %v7878 = vunpack.c.h.b16 %v7493
    %v7879 = vunpack.c.l.b16 %v7494
    %v7880 = vunpack.c.h.b16 %v7494
    %v7881 = vunpack.c.l.b16 %v7495
    %v7882 = vunpack.c.h.b16 %v7495
    %v7883 = vunpack.c.l.b16 %v7496
    %v7884 = vunpack.c.h.b16 %v7496
    %v7885 = vunpack.c.l.b16 %v7497
    %v7886 = vunpack.c.h.b16 %v7497
    %v7887 = vunpack.c.l.b16 %v7498
    %v7888 = vunpack.c.h.b16 %v7498
    %v7889 = vunpack.c.l.b16 %v7499
    %v7890 = vunpack.c.h.b16 %v7499
    %v7891 = vunpack.c.l.b16 %v7500
    %v7892 = vunpack.c.h.b16 %v7500
    %v7893 = vunpack.c.l.b16 %v7501
    %v7894 = vunpack.c.h.b16 %v7501
    %v7895 = vunpack.c.l.b16 %v7502
    %v7896 = vunpack.c.h.b16 %v7502
    %v7897 = vunpack.c.l.b16 %v7503
    %v7898 = vunpack.c.h.b16 %v7503
    %v7899 = vunpack.c.l.b16 %v7504
    %v7900 = vunpack.c.h.b16 %v7504
    %v7901 = vunpack.c.l.b16 %v7505
    %v7902 = vunpack.c.h.b16 %v7505
    %v7903 = vunpack.c.l.b16 %v7506
    %v7904 = vunpack.c.h.b16 %v7506
    %v7905 = vunpack.c.l.b16 %v7507
    %v7906 = vunpack.c.h.b16 %v7507
    %v7907 = vunpack.c.l.b16 %v7508
    %v7908 = vunpack.c.h.b16 %v7508
    %v7909 = vunpack.c.l.b16 %v7509
    %v7910 = vunpack.c.h.b16 %v7509
    %v7911 = vunpack.c.l.b16 %v7510
    %v7912 = vunpack.c.h.b16 %v7510
    %v7913 = vunpack.c.l.b16 %v7511
    %v7914 = vunpack.c.h.b16 %v7511
    %v7915 = vunpack.c.l.b16 %v7512
    %v7916 = vunpack.c.h.b16 %v7512
    %v7917 = vunpack.c.l.b16 %v7513
    %v7918 = vunpack.c.h.b16 %v7513
    %v7919 = vunpack.c.l.b16 %v7514
    %v7920 = vunpack.c.h.b16 %v7514
    %v7921 = vunpack.c.l.b16 %v7515
    %v7922 = vunpack.c.h.b16 %v7515
    %v7923 = vunpack.c.l.b16 %v7516
    %v7924 = vunpack.c.h.b16 %v7516
    %v7925 = vunpack.c.l.b16 %v7517
    %v7926 = vunpack.c.h.b16 %v7517
    %v7927 = vunpack.c.l.b16 %v7518
    %v7928 = vunpack.c.h.b16 %v7518
    %v7929 = vunpack.c.l.b16 %v7519
    %v7930 = vunpack.c.h.b16 %v7519
    %v7931 = vunpack.c.l.b16 %v7520
    %v7932 = vunpack.c.h.b16 %v7520
    %v7933 = vunpack.c.l.b16 %v7521
    %v7934 = vunpack.c.h.b16 %v7521
    %v7935 = vunpack.c.l.b16 %v7522
    %v7936 = vunpack.c.h.b16 %v7522
    %v7937 = vunpack.c.l.b16 %v7523
    %v7938 = vunpack.c.h.b16 %v7523
    %v7939 = vunpack.c.l.b16 %v7524
    %v7940 = vunpack.c.h.b16 %v7524
    %v7941 = vunpack.c.l.b16 %v7525
    %v7942 = vunpack.c.h.b16 %v7525
    %v7943 = vunpack.c.l.b16 %v7526
    %v7944 = vunpack.c.h.b16 %v7526
    %v7945 = vunpack.c.l.b16 %v7527
    %v7946 = vunpack.c.h.b16 %v7527
    %v7947 = vunpack.c.l.b16 %v7528
    %v7948 = vunpack.c.h.b16 %v7528
    %v7949 = vunpack.c.l.b16 %v7529
    %v7950 = vunpack.c.h.b16 %v7529
    %v7951 = vunpack.c.l.b16 %v7530
    %v7952 = vunpack.c.h.b16 %v7530
    %v7953 = vunpack.c.l.b16 %v7531
    %v7954 = vunpack.c.h.b16 %v7531
    %v7955 = vunpack.c.l.b16 %v7532
    %v7956 = vunpack.c.h.b16 %v7532
    %v7957 = vunpack.c.l.b16 %v7533
    %v7958 = vunpack.c.h.b16 %v7533
    %v7959 = vunpack.c.l.b16 %v7534
    %v7960 = vunpack.c.h.b16 %v7534
    %v7961 = vunpack.c.l.b16 %v7535
    %v7962 = vunpack.c.h.b16 %v7535
    %v7963 = vunpack.c.l.b16 %v7536
    %v7964 = vunpack.c.h.b16 %v7536
    %v7965 = vunpack.c.l.b16 %v7537
    %v7966 = vunpack.c.h.b16 %v7537
    %v7967 = vunpack.c.l.b16 %v7538
    %v7968 = vunpack.c.h.b16 %v7538
    %v7969 = vunpack.c.l.b16 %v7539
    %v7970 = vunpack.c.h.b16 %v7539
    %v7971 = vunpack.c.l.b16 %v7540
    %v7972 = vunpack.c.h.b16 %v7540
    %v7973 = vunpack.c.l.b16 %v7541
    %v7974 = vunpack.c.h.b16 %v7541
    %v7975 = vunpack.c.l.b16 %v7542
    %v7976 = vunpack.c.h.b16 %v7542
    %v7977 = vunpack.c.l.b16 %v7543
    %v7978 = vunpack.c.h.b16 %v7543
    %v7979 = vunpack.c.l.b16 %v7544
    %v7980 = vunpack.c.h.b16 %v7544
    %v7981 = vunpack.c.l.b16 %v7545
    %v7982 = vunpack.c.h.b16 %v7545
    %v7983 = vunpack.c.l.b16 %v7546
    %v7984 = vunpack.c.h.b16 %v7546
    %v7985 = vunpack.c.l.b16 %v7547
    %v7986 = vunpack.c.h.b16 %v7547
    %v7987 = vunpack.c.l.b16 %v7548
    %v7988 = vunpack.c.h.b16 %v7548
    %v7989 = vunpack.c.l.b16 %v7549
    %v7990 = vunpack.c.h.b16 %v7549
    %v7991 = vunpack.c.l.b16 %v7550
    %v7992 = vunpack.c.h.b16 %v7550
    %v7993 = vunpack.c.l.b16 %v7551
    %v7994 = vunpack.c.h.b16 %v7551
    %v7995 = vunpack.c.l.b16 %v7552
    %v7996 = vunpack.c.h.b16 %v7552
    %v7997 = vunpack.c.l.b16 %v7553
    %v7998 = vunpack.c.h.b16 %v7553
    %v7999 = vunpack.c.l.b16 %v7554
    %v8000 = vunpack.c.h.b16 %v7554
    %v8001 = vunpack.c.l.b16 %v7555
    %v8002 = vunpack.c.h.b16 %v7555
    %v8003 = vunpack.c.l.b16 %v7556
    %v8004 = vunpack.c.h.b16 %v7556
    %v8005 = vunpack.c.l.b16 %v7557
    %v8006 = vunpack.c.h.b16 %v7557
    %v8007 = vunpack.c.l.b16 %v7558
    %v8008 = vunpack.c.h.b16 %v7558
    %v8009 = vunpack.c.l.b16 %v7559
    %v8010 = vunpack.c.h.b16 %v7559
    %v8011 = vunpack.c.l.b16 %v7560
    %v8012 = vunpack.c.h.b16 %v7560
    %v8013 = vunpack.c.l.b16 %v7561
    %v8014 = vunpack.c.h.b16 %v7561
    %v8015 = vunpack.c.l.b16 %v7562
    %v8016 = vunpack.c.h.b16 %v7562
    %v8017 = vunpack.c.l.b16 %v7563
    %v8018 = vunpack.c.h.b16 %v7563
    %v8019 = vunpack.c.l.b16 %v7564
    %v8020 = vunpack.c.h.b16 %v7564
    %v8021 = vpack.c.b16 %v7767, %v7765
    %v8022 = vpack.c.b16 %v7768, %v7766
    %v8023 = vpack.c.b16 %v7771, %v7769
    %v8024 = vpack.c.b16 %v7772, %v7770
    %v8025 = vpack.c.b16 %v7775, %v7773
    %v8026 = vpack.c.b16 %v7776, %v7774
    %v8027 = vpack.c.b16 %v7779, %v7777
    %v8028 = vpack.c.b16 %v7780, %v7778
    %v8029 = vpack.c.b16 %v7783, %v7781
    %v8030 = vpack.c.b16 %v7784, %v7782
    %v8031 = vpack.c.b16 %v7787, %v7785
    %v8032 = vpack.c.b16 %v7788, %v7786
    %v8033 = vpack.c.b16 %v7791, %v7789
    %v8034 = vpack.c.b16 %v7792, %v7790
    %v8035 = vpack.c.b16 %v7795, %v7793
    %v8036 = vpack.c.b16 %v7796, %v7794
    %v8037 = vpack.c.b16 %v7799, %v7797
    %v8038 = vpack.c.b16 %v7800, %v7798
    %v8039 = vpack.c.b16 %v7803, %v7801
    %v8040 = vpack.c.b16 %v7804, %v7802
    %v8041 = vpack.c.b16 %v7807, %v7805
    %v8042 = vpack.c.b16 %v7808, %v7806
    %v8043 = vpack.c.b16 %v7811, %v7809
    %v8044 = vpack.c.b16 %v7812, %v7810
    %v8045 = vpack.c.b16 %v7815, %v7813
    %v8046 = vpack.c.b16 %v7816, %v7814
    %v8047 = vpack.c.b16 %v7819, %v7817
    %v8048 = vpack.c.b16 %v7820, %v7818
    %v8049 = vpack.c.b16 %v7823, %v7821
    %v8050 = vpack.c.b16 %v7824, %v7822
    %v8051 = vpack.c.b16 %v7827, %v7825
    %v8052 = vpack.c.b16 %v7828, %v7826
    %v8053 = vpack.c.b16 %v7831, %v7829
    %v8054 = vpack.c.b16 %v7832, %v7830
    %v8055 = vpack.c.b16 %v7835, %v7833
    %v8056 = vpack.c.b16 %v7836, %v7834
    %v8057 = vpack.c.b16 %v7839, %v7837
    %v8058 = vpack.c.b16 %v7840, %v7838
    %v8059 = vpack.c.b16 %v7843, %v7841
    %v8060 = vpack.c.b16 %v7844, %v7842
    %v8061 = vpack.c.b16 %v7847, %v7845
    %v8062 = vpack.c.b16 %v7848, %v7846
    %v8063 = vpack.c.b16 %v7851, %v7849
    %v8064 = vpack.c.b16 %v7852, %v7850
    %v8065 = vpack.c.b16 %v7855, %v7853
    %v8066 = vpack.c.b16 %v7856, %v7854
    %v8067 = vpack.c.b16 %v7859, %v7857
    %v8068 = vpack.c.b16 %v7860, %v7858
    %v8069 = vpack.c.b16 %v7863, %v7861
    %v8070 = vpack.c.b16 %v7864, %v7862
    %v8071 = vpack.c.b16 %v7867, %v7865
    %v8072 = vpack.c.b16 %v7868, %v7866
    %v8073 = vpack.c.b16 %v7871, %v7869
    %v8074 = vpack.c.b16 %v7872, %v7870
    %v8075 = vpack.c.b16 %v7875, %v7873
    %v8076 = vpack.c.b16 %v7876, %v7874
    %v8077 = vpack.c.b16 %v7879, %v7877
    %v8078 = vpack.c.b16 %v7880, %v7878
    %v8079 = vpack.c.b16 %v7883, %v7881
    %v8080 = vpack.c.b16 %v7884, %v7882
    %v8081 = vpack.c.b16 %v7887, %v7885
    %v8082 = vpack.c.b16 %v7888, %v7886
    %v8083 = vpack.c.b16 %v7891, %v7889
    %v8084 = vpack.c.b16 %v7892, %v7890
    %v8085 = vpack.c.b16 %v7895, %v7893
    %v8086 = vpack.c.b16 %v7896, %v7894
    %v8087 = vpack.c.b16 %v7899, %v7897
    %v8088 = vpack.c.b16 %v7900, %v7898
    %v8089 = vpack.c.b16 %v7903, %v7901
    %v8090 = vpack.c.b16 %v7904, %v7902
    %v8091 = vpack.c.b16 %v7907, %v7905
    %v8092 = vpack.c.b16 %v7908, %v7906
    %v8093 = vpack.c.b16 %v7911, %v7909
    %v8094 = vpack.c.b16 %v7912, %v7910
    %v8095 = vpack.c.b16 %v7915, %v7913
    %v8096 = vpack.c.b16 %v7916, %v7914
    %v8097 = vpack.c.b16 %v7919, %v7917
    %v8098 = vpack.c.b16 %v7920, %v7918
    %v8099 = vpack.c.b16 %v7923, %v7921
    %v8100 = vpack.c.b16 %v7924, %v7922
    %v8101 = vpack.c.b16 %v7927, %v7925
    %v8102 = vpack.c.b16 %v7928, %v7926
    %v8103 = vpack.c.b16 %v7931, %v7929
    %v8104 = vpack.c.b16 %v7932, %v7930
    %v8105 = vpack.c.b16 %v7935, %v7933
    %v8106 = vpack.c.b16 %v7936, %v7934
    %v8107 = vpack.c.b16 %v7939, %v7937
    %v8108 = vpack.c.b16 %v7940, %v7938
    %v8109 = vpack.c.b16 %v7943, %v7941
    %v8110 = vpack.c.b16 %v7944, %v7942
    %v8111 = vpack.c.b16 %v7947, %v7945
    %v8112 = vpack.c.b16 %v7948, %v7946
    %v8113 = vpack.c.b16 %v7951, %v7949
    %v8114 = vpack.c.b16 %v7952, %v7950
    %v8115 = vpack.c.b16 %v7955, %v7953
    %v8116 = vpack.c.b16 %v7956, %v7954
    %v8117 = vpack.c.b16 %v7959, %v7957
    %v8118 = vpack.c.b16 %v7960, %v7958
    %v8119 = vpack.c.b16 %v7963, %v7961
    %v8120 = vpack.c.b16 %v7964, %v7962
    %v8121 = vpack.c.b16 %v7967, %v7965
    %v8122 = vpack.c.b16 %v7968, %v7966
    %v8123 = vpack.c.b16 %v7971, %v7969
    %v8124 = vpack.c.b16 %v7972, %v7970
    %v8125 = vpack.c.b16 %v7975, %v7973
    %v8126 = vpack.c.b16 %v7976, %v7974
    %v8127 = vpack.c.b16 %v7979, %v7977
    %v8128 = vpack.c.b16 %v7980, %v7978
    %v8129 = vpack.c.b16 %v7983, %v7981
    %v8130 = vpack.c.b16 %v7984, %v7982
    %v8131 = vpack.c.b16 %v7987, %v7985
    %v8132 = vpack.c.b16 %v7988, %v7986
    %v8133 = vpack.c.b16 %v7991, %v7989
    %v8134 = vpack.c.b16 %v7992, %v7990
    %v8135 = vpack.c.b16 %v7995, %v7993
    %v8136 = vpack.c.b16 %v7996, %v7994
    %v8137 = vpack.c.b16 %v7999, %v7997
    %v8138 = vpack.c.b16 %v8000, %v7998
    %v8139 = vpack.c.b16 %v8003, %v8001
    %v8140 = vpack.c.b16 %v8004, %v8002
    %v8141 = vpack.c.b16 %v8007, %v8005
    %v8142 = vpack.c.b16 %v8008, %v8006
    %v8143 = vpack.c.b16 %v8011, %v8009
    %v8144 = vpack.c.b16 %v8012, %v8010
    %v8145 = vpack.c.b16 %v8015, %v8013
    %v8146 = vpack.c.b16 %v8016, %v8014
    %v8147 = vpack.c.b16 %v8019, %v8017
    %v8148 = vpack.c.b16 %v8020, %v8018
    %8277 = vmatprep.subr.bf16.mxu0 %v8022
    %8278 = vmatpush1.bf16.msra.mxu0 %v8021
    %8279 = vmatprep.subr.bf16.mxu0 %v8024
    %8280 = vmatpush1.bf16.msra.mxu0 %v8023
    %8281 = vmatprep.subr.bf16.mxu0 %v8026
    %8282 = vmatpush1.bf16.msra.mxu0 %v8025
    %8283 = vmatprep.subr.bf16.mxu0 %v8028
    %8284 = vmatpush1.bf16.msra.mxu0 %v8027
    %8285 = vmatprep.subr.bf16.mxu0 %v8030
    %8286 = vmatpush1.bf16.msra.mxu0 %v8029
    %8287 = vmatprep.subr.bf16.mxu0 %v8032
    %8288 = vmatpush1.bf16.msra.mxu0 %v8031
    %8289 = vmatprep.subr.bf16.mxu0 %v8034
    %8290 = vmatpush1.bf16.msra.mxu0 %v8033
    %8291 = vmatprep.subr.bf16.mxu0 %v8036
    %8292 = vmatpush1.bf16.msra.mxu0 %v8035
    %8293 = vmatprep.subr.bf16.mxu0 %v8038
    %8294 = vmatpush1.bf16.msra.mxu0 %v8037
    %8295 = vmatprep.subr.bf16.mxu0 %v8040
    %8296 = vmatpush1.bf16.msra.mxu0 %v8039
    %8297 = vmatprep.subr.bf16.mxu0 %v8042
    %8298 = vmatpush1.bf16.msra.mxu0 %v8041
    %8299 = vmatprep.subr.bf16.mxu0 %v8044
    %8300 = vmatpush1.bf16.msra.mxu0 %v8043
    %8301 = vmatprep.subr.bf16.mxu0 %v8046
    %8302 = vmatpush1.bf16.msra.mxu0 %v8045
    %8303 = vmatprep.subr.bf16.mxu0 %v8048
    %8304 = vmatpush1.bf16.msra.mxu0 %v8047
    %8305 = vmatprep.subr.bf16.mxu0 %v8050
    %8306 = vmatpush1.bf16.msra.mxu0 %v8049
    %8307 = vmatprep.subr.bf16.mxu0 %v8052
    %8308 = vmatpush1.bf16.msra.mxu0 %v8051
    %8309 = vmatprep.mubr.bf16.mxu0 %v7622
    %8310 = vmatmul.mubr.bf16.gmra.mrb[0].mxu0 %v7621
    %v8311 = vpop.f32.mrb[0].mxu0
    %v8312 = vadd.f32 0.0, %v8311
    %v8313 = vpop.f32.mrb[0].mxu0
    %v8314 = vadd.f32 0.0, %v8313
    %v8315 = vpop.f32.mrb[0].mxu0
    %v8316 = vpop.f32.mrb[0].mxu0
    %8317 = vdwg.mxu0
    %8318 = vmatprep.subr.bf16.mxu0 %v8054
    %8319 = vmatpush1.bf16.msra.mxu0 %v8053
    %8320 = vmatprep.subr.bf16.mxu0 %v8056
    %8321 = vmatpush1.bf16.msra.mxu0 %v8055
    %8322 = vmatprep.subr.bf16.mxu0 %v8058
    %8323 = vmatpush1.bf16.msra.mxu0 %v8057
    %8324 = vmatprep.subr.bf16.mxu0 %v8060
    %8325 = vmatpush1.bf16.msra.mxu0 %v8059
    %8326 = vmatprep.subr.bf16.mxu0 %v8062
    %8327 = vmatpush1.bf16.msra.mxu0 %v8061
    %8328 = vmatprep.subr.bf16.mxu0 %v8064
    %8329 = vmatpush1.bf16.msra.mxu0 %v8063
    %8330 = vmatprep.subr.bf16.mxu0 %v8066
    %8331 = vmatpush1.bf16.msra.mxu0 %v8065
    %8332 = vmatprep.subr.bf16.mxu0 %v8068
    %8333 = vmatpush1.bf16.msra.mxu0 %v8067
    %8334 = vmatprep.subr.bf16.mxu0 %v8070
    %8335 = vmatpush1.bf16.msra.mxu0 %v8069
    %8336 = vmatprep.subr.bf16.mxu0 %v8072
    %8337 = vmatpush1.bf16.msra.mxu0 %v8071
    %8338 = vmatprep.subr.bf16.mxu0 %v8074
    %8339 = vmatpush1.bf16.msra.mxu0 %v8073
    %8340 = vmatprep.subr.bf16.mxu0 %v8076
    %8341 = vmatpush1.bf16.msra.mxu0 %v8075
    %8342 = vmatprep.subr.bf16.mxu0 %v8078
    %8343 = vmatpush1.bf16.msra.mxu0 %v8077
    %8344 = vmatprep.subr.bf16.mxu0 %v8080
    %8345 = vmatpush1.bf16.msra.mxu0 %v8079
    %8346 = vmatprep.subr.bf16.mxu0 %v8082
    %8347 = vmatpush1.bf16.msra.mxu0 %v8081
    %8348 = vmatprep.subr.bf16.mxu0 %v8084
    %8349 = vmatpush1.bf16.msra.mxu0 %v8083
    %8350 = vmatprep.mubr.bf16.mxu0 %v7624
    %8351 = vmatmul.mubr.bf16.gmra.mrb[0].mxu0 %v7623
    %v8352 = vpop.f32.mrb[0].mxu0
    %v8353 = vadd.f32 %v8312, %v8352
    %v8354 = vpop.f32.mrb[0].mxu0
    %v8355 = vadd.f32 %v8314, %v8354
    %v8356 = vpop.f32.mrb[0].mxu0
    %v8357 = vpop.f32.mrb[0].mxu0
    %8358 = vdwg.mxu0
    %8359 = vmatprep.subr.bf16.mxu0 %v8086
    %8360 = vmatpush1.bf16.msra.mxu0 %v8085
    %8361 = vmatprep.subr.bf16.mxu0 %v8088
    %8362 = vmatpush1.bf16.msra.mxu0 %v8087
    %8363 = vmatprep.subr.bf16.mxu0 %v8090
    %8364 = vmatpush1.bf16.msra.mxu0 %v8089
    %8365 = vmatprep.subr.bf16.mxu0 %v8092
    %8366 = vmatpush1.bf16.msra.mxu0 %v8091
    %8367 = vmatprep.subr.bf16.mxu0 %v8094
    %8368 = vmatpush1.bf16.msra.mxu0 %v8093
    %8369 = vmatprep.subr.bf16.mxu0 %v8096
    %8370 = vmatpush1.bf16.msra.mxu0 %v8095
    %8371 = vmatprep.subr.bf16.mxu0 %v8098
    %8372 = vmatpush1.bf16.msra.mxu0 %v8097
    %8373 = vmatprep.subr.bf16.mxu0 %v8100
    %8374 = vmatpush1.bf16.msra.mxu0 %v8099
    %8375 = vmatprep.subr.bf16.mxu0 %v8102
    %8376 = vmatpush1.bf16.msra.mxu0 %v8101
    %8377 = vmatprep.subr.bf16.mxu0 %v8104
    %8378 = vmatpush1.bf16.msra.mxu0 %v8103
    %8379 = vmatprep.subr.bf16.mxu0 %v8106
    %8380 = vmatpush1.bf16.msra.mxu0 %v8105
    %8381 = vmatprep.subr.bf16.mxu0 %v8108
    %8382 = vmatpush1.bf16.msra.mxu0 %v8107
    %8383 = vmatprep.subr.bf16.mxu0 %v8110
    %8384 = vmatpush1.bf16.msra.mxu0 %v8109
    %8385 = vmatprep.subr.bf16.mxu0 %v8112
    %8386 = vmatpush1.bf16.msra.mxu0 %v8111
    %8387 = vmatprep.subr.bf16.mxu0 %v8114
    %8388 = vmatpush1.bf16.msra.mxu0 %v8113
    %8389 = vmatprep.subr.bf16.mxu0 %v8116
    %8390 = vmatpush1.bf16.msra.mxu0 %v8115
    %8391 = vmatprep.mubr.bf16.mxu0 %v7626
    %8392 = vmatmul.mubr.bf16.gmra.mrb[0].mxu0 %v7625
    %v8393 = vpop.f32.mrb[0].mxu0
    %v8394 = vadd.f32 %v8353, %v8393
    %v8395 = vpop.f32.mrb[0].mxu0
    %v8396 = vadd.f32 %v8355, %v8395
    %v8397 = vpop.f32.mrb[0].mxu0
    %v8398 = vpop.f32.mrb[0].mxu0
    %8399 = vdwg.mxu0
    %8400 = vmatprep.subr.bf16.mxu0 %v8118
    %8401 = vmatpush1.bf16.msra.mxu0 %v8117
    %8402 = vmatprep.subr.bf16.mxu0 %v8120
    %8403 = vmatpush1.bf16.msra.mxu0 %v8119
    %8404 = vmatprep.subr.bf16.mxu0 %v8122
    %8405 = vmatpush1.bf16.msra.mxu0 %v8121
    %8406 = vmatprep.subr.bf16.mxu0 %v8124
    %8407 = vmatpush1.bf16.msra.mxu0 %v8123
    %8408 = vmatprep.subr.bf16.mxu0 %v8126
    %8409 = vmatpush1.bf16.msra.mxu0 %v8125
    %8410 = vmatprep.subr.bf16.mxu0 %v8128
    %8411 = vmatpush1.bf16.msra.mxu0 %v8127
    %8412 = vmatprep.subr.bf16.mxu0 %v8130
    %8413 = vmatpush1.bf16.msra.mxu0 %v8129
    %8414 = vmatprep.subr.bf16.mxu0 %v8132
    %8415 = vmatpush1.bf16.msra.mxu0 %v8131
    %8416 = vmatprep.subr.bf16.mxu0 %v8134
    %8417 = vmatpush1.bf16.msra.mxu0 %v8133
    %8418 = vmatprep.subr.bf16.mxu0 %v8136
    %8419 = vmatpush1.bf16.msra.mxu0 %v8135
    %8420 = vmatprep.subr.bf16.mxu0 %v8138
    %8421 = vmatpush1.bf16.msra.mxu0 %v8137
    %8422 = vmatprep.subr.bf16.mxu0 %v8140
    %8423 = vmatpush1.bf16.msra.mxu0 %v8139
    %8424 = vmatprep.subr.bf16.mxu0 %v8142
    %8425 = vmatpush1.bf16.msra.mxu0 %v8141
    %8426 = vmatprep.subr.bf16.mxu0 %v8144
    %8427 = vmatpush1.bf16.msra.mxu0 %v8143
    %8428 = vmatprep.subr.bf16.mxu0 %v8146
    %8429 = vmatpush1.bf16.msra.mxu0 %v8145
    %8430 = vmatprep.subr.bf16.mxu0 %v8148
    %8431 = vmatpush1.bf16.msra.mxu0 %v8147
    %8432 = vmatprep.mubr.bf16.mxu0 %v7628
    %8433 = vmatmul.mubr.bf16.gmra.mrb[0].mxu0 %v7627
    %v8434 = vpop.f32.mrb[0].mxu0
    %v8435 = vadd.f32 %v8394, %v8434
    %v8436 = vpop.f32.mrb[0].mxu0
    %v8437 = vadd.f32 %v8396, %v8436
    %v8438 = vpop.f32.mrb[0].mxu0
    %v8439 = vpop.f32.mrb[0].mxu0
    %8440 = vdwg.mxu0
    %v8441 = vld [vmem:[#allocation17] sm:$0xff]
    %v8442 = vld [vmem:[#allocation17 + $0x8] sm:$0xff]
    %v8443 = vld [vmem:[#allocation17 + $0x10] sm:$0xff]
    %v8444 = vld [vmem:[#allocation17 + $0x18] sm:$0xff]
    %v8445 = vld [vmem:[#allocation17 + $0x20] sm:$0xff]
    %v8446 = vld [vmem:[#allocation17 + $0x28] sm:$0xff]
    %v8447 = vld [vmem:[#allocation17 + $0x30] sm:$0xff]
    %v8448 = vld [vmem:[#allocation17 + $0x38] sm:$0xff]
    %v8449 = vld [vmem:[#allocation17 + $0x40] sm:$0xff]
    %v8450 = vld [vmem:[#allocation17 + $0x48] sm:$0xff]
    %v8451 = vld [vmem:[#allocation17 + $0x50] sm:$0xff]
    %v8452 = vld [vmem:[#allocation17 + $0x58] sm:$0xff]
    %v8453 = vld [vmem:[#allocation17 + $0x60] sm:$0xff]
    %v8454 = vld [vmem:[#allocation17 + $0x68] sm:$0xff]
    %v8455 = vld [vmem:[#allocation17 + $0x70] sm:$0xff]
    %v8456 = vld [vmem:[#allocation17 + $0x78] sm:$0xff]
    %v8457 = vld [vmem:[#allocation17 + $0x80] sm:$0xff]
    %v8458 = vld [vmem:[#allocation17 + $0x88] sm:$0xff]
    %v8459 = vld [vmem:[#allocation17 + $0x90] sm:$0xff]
    %v8460 = vld [vmem:[#allocation17 + $0x98] sm:$0xff]
    %v8461 = vld [vmem:[#allocation17 + $0xa0] sm:$0xff]
    %v8462 = vld [vmem:[#allocation17 + $0xa8] sm:$0xff]
    %v8463 = vld [vmem:[#allocation17 + $0xb0] sm:$0xff]
    %v8464 = vld [vmem:[#allocation17 + $0xb8] sm:$0xff]
    %v8465 = vld [vmem:[#allocation17 + $0xc0] sm:$0xff]
    %v8466 = vld [vmem:[#allocation17 + $0xc8] sm:$0xff]
    %v8467 = vld [vmem:[#allocation17 + $0xd0] sm:$0xff]
    %v8468 = vld [vmem:[#allocation17 + $0xd8] sm:$0xff]
    %v8469 = vld [vmem:[#allocation17 + $0xe0] sm:$0xff]
    %v8470 = vld [vmem:[#allocation17 + $0xe8] sm:$0xff]
    %v8471 = vld [vmem:[#allocation17 + $0xf0] sm:$0xff]
    %v8472 = vld [vmem:[#allocation17 + $0xf8] sm:$0xff]
    %v8473 = vld [vmem:[%s14] sm:$0x1]
    %v8475 = vlaneseq
    %v8476 = vshrl.u32 %v8475, 7
    %v8477 = vsub.s32 0, %v8476
    %v8478 = vrot.slane %v8473, %v8477
    %8480 = vmatprep.subr.mxu0 0.0
    %8481 = vmatpush1.msra.mxu0 %v8441
    %8482 = vmatprep.subr.mxu0 0.0
    %8483 = vmatpush1.msra.mxu0 %v8442
    %8484 = vmatprep.subr.mxu0 0.0
    %8485 = vmatpush1.msra.mxu0 %v8443
    %8486 = vmatprep.subr.mxu0 0.0
    %8487 = vmatpush1.msra.mxu0 %v8444
    %8488 = vmatprep.subr.mxu0 0.0
    %8489 = vmatpush1.msra.mxu0 %v8445
    %8490 = vmatprep.subr.mxu0 0.0
    %8491 = vmatpush1.msra.mxu0 %v8446
    %8492 = vmatprep.subr.mxu0 0.0
    %8493 = vmatpush1.msra.mxu0 %v8447
    %8494 = vmatprep.subr.mxu0 0.0
    %8495 = vmatpush1.msra.mxu0 %v8448
    %8496 = vmatprep.subr.mxu0 0.0
    %8497 = vmatpush1.msra.mxu0 %v8449
    %8498 = vmatprep.subr.mxu0 0.0
    %8499 = vmatpush1.msra.mxu0 %v8450
    %8500 = vmatprep.subr.mxu0 0.0
    %8501 = vmatpush1.msra.mxu0 %v8451
    %8502 = vmatprep.subr.mxu0 0.0
    %8503 = vmatpush1.msra.mxu0 %v8452
    %8504 = vmatprep.subr.mxu0 0.0
    %8505 = vmatpush1.msra.mxu0 %v8453
    %8506 = vmatprep.subr.mxu0 0.0
    %8507 = vmatpush1.msra.mxu0 %v8454
    %8508 = vmatprep.subr.mxu0 0.0
    %8509 = vmatpush1.msra.mxu0 %v8455
    %8510 = vmatprep.subr.mxu0 0.0
    %8511 = vmatpush1.msra.mxu0 %v8456
    %8512 = vmatprep.subr.mxu0 0.0
    %8513 = vmatpush1.msra.mxu0 %v8457
    %8514 = vmatprep.subr.mxu0 0.0
    %8515 = vmatpush1.msra.mxu0 %v8458
    %8516 = vmatprep.subr.mxu0 0.0
    %8517 = vmatpush1.msra.mxu0 %v8459
    %8518 = vmatprep.subr.mxu0 0.0
    %8519 = vmatpush1.msra.mxu0 %v8460
    %8520 = vmatprep.subr.mxu0 0.0
    %8521 = vmatpush1.msra.mxu0 %v8461
    %8522 = vmatprep.subr.mxu0 0.0
    %8523 = vmatpush1.msra.mxu0 %v8462
    %8524 = vmatprep.subr.mxu0 0.0
    %8525 = vmatpush1.msra.mxu0 %v8463
    %8526 = vmatprep.subr.mxu0 0.0
    %8527 = vmatpush1.msra.mxu0 %v8464
    %8528 = vmatprep.subr.mxu0 0.0
    %8529 = vmatpush1.msra.mxu0 %v8465
    %8530 = vmatprep.subr.mxu0 0.0
    %8531 = vmatpush1.msra.mxu0 %v8466
    %8532 = vmatprep.subr.mxu0 0.0
    %8533 = vmatpush1.msra.mxu0 %v8467
    %8534 = vmatprep.subr.mxu0 0.0
    %8535 = vmatpush1.msra.mxu0 %v8468
    %8536 = vmatprep.subr.mxu0 0.0
    %8537 = vmatpush1.msra.mxu0 %v8469
    %8538 = vmatprep.subr.mxu0 0.0
    %8539 = vmatpush1.msra.mxu0 %v8470
    %8540 = vmatprep.subr.mxu0 0.0
    %8541 = vmatpush1.msra.mxu0 %v8471
    %8542 = vmatprep.subr.mxu0 0.0
    %8543 = vmatpush1.msra.mxu0 %v8472
    %8544 = vmatprep.mubr.f32.mxu0 %v8437
    %8545 = vmatmul.mubr.f32.gmra.mrb[0].mxu0 %v8435
    %v8546 = vpop.f32.mrb[0].mxu0
    %v8547 = vadd.f32 %v8478, %v8546
    %v8548 = vpop.f32.mrb[0].mxu0
    %8549 = vdwg.mxu0
    %v8550 = vsel %vm6385, %v8547, -inf
    %8551 = vmax.xlane.f32.xlu0 %v8550
    %v8552 = vpop.xlane.xlu0 %8551
    %v8553 = vsub.f32 %v8547, %v8552
    %v8554 = vmul.f32 %v8553, 1.442695
    %v8555 = vpow.pop %v8554
    %v8556 = vsel %vm6385, %v8555, 0.0
    %8557 = vadd.xlane.f32.xlu0 %v8556
    %v8558 = vpop.xlane.xlu0 %8557
    %v8559 = vrcp.pop %v8558
    %v8560 = vmul.f32 %v8555, %v8559
    %8561 = vst [vmem:[#allocation19] sm:$0x3] %v8560
    // Predicated region
    $region102: #{tpu_custom_call.1} parent=1 // pred_check
      _
    $region103: #{tpu_custom_call.1} parent=1 // pred_check_branch
      %8563 = sbr.rel (0) target = $region105
    $region104: #{tpu_custom_call.1} parent=1 // pred_region
      %s8565 = ssub.s32 32, 32
      %8566 = vsyncadd [#allocation4], %s8565
      %s8568 = sshll.u32 [#allocation19], 4
      %s8569 = int_to_ptr.vmem [resolvable:$true] %s8568
      %8571 = dma.vmem_to_hbm [thread:$0]  %s8569, 32, %s15, [#allocation4]
    $region105: #{tpu_custom_call.1} parent=1 // pred_fallthru
      _
    // Predicated region
    $region106: #{tpu_custom_call.1} parent=1 // pred_check
      _
    $region107: #{tpu_custom_call.1} parent=1 // pred_check_branch
      %8573 = sbr.rel (0) target = $region109
    $region108: #{tpu_custom_call.1} parent=1 // pred_region
      %8574 = dma.done [#allocation4], 32
    $region109: #{tpu_custom_call.1} parent=1 // pred_fallthru
      _
    %8575 = vsyncpa [#allocation3], 1
    %8576 = vsyncpa [#allocation6], 1
    %8577 = vsyncpa [#allocation9], 1
    %8578 = vsyncpa [#allocation12], 1
    %8579 = vsyncpa [#allocation15], 1
    %8580 = vsyncpa [#allocation18], 1
    %8581 = vsyncpa [#allocation4], 1

</llo_original>
